<compile_context>
chip_gen: v6e
topology: v6e:2x2x1
jax: 0.10.0
libtpu: 0.0.40
codegen_flags: <defaults>
</compile_context>

<pallas_src>
import functools

import jax
import jax.numpy as jnp
from jax.experimental import pallas as pl
from jax.experimental.pallas import tpu as pltpu


# ---------------------------------------------------------------------------
# Fused kernel: GRU offer embedder -> encoder LSTM (+ctx projection) ->
# pointer decoder.  Everything is VMEM-resident; no grid.
# ---------------------------------------------------------------------------
def fused_pointer_catalog_kernel(
        emb_ref, gwih_ref, gbih_ref, gwhh_ref, gbhh_ref,
        pw_ref, pb_ref, ewhh_ref, ebhh_ref, wctx_ref, bctx_ref,
        dwh_ref, dbh_ref, wil_ref, bil_ref, v_ref, who_ref, bho_ref, d0_ref,
        out_ref, ptr_ref,
        ctx_scr, dgi_scr,
        *, B, S, W, Eo, H):
    f32 = jnp.float32
    SB = S * B

    # ===== 1. offer-embedder GRU over words (gate order r|z|n) =============
    # Hoisted input projection: one matmul over all (word, offer, catalog) rows.
    gi_all = (jnp.dot(emb_ref[...], gwih_ref[...], preferred_element_type=f32)
              + gbih_ref[...])                                  # (W*SB, 3Eo)
    gwhh = gwhh_ref[...]
    gbhh = gbhh_ref[...]
    h = jnp.zeros((SB, Eo), f32)
    for t in range(W):                                          # fully unrolled
        gi = gi_all[t * SB:(t + 1) * SB]                        # (SB, 3Eo)
        gh = jnp.dot(h, gwhh, preferred_element_type=f32) + gbhh
        r = jax.nn.sigmoid(gi[:, :Eo] + gh[:, :Eo])
        z = jax.nn.sigmoid(gi[:, Eo:2 * Eo] + gh[:, Eo:2 * Eo])
        n = jnp.tanh(gi[:, 2 * Eo:] + r * gh[:, 2 * Eo:])
        h = (1.0 - z) * n + z * h
    offer_h = h                                 # (SB, Eo), rows flat = s*B + b

    # ===== 2. merged input projections: [enc LSTM x@W_ih | dec x@W_i2h] ====
    proj = (jnp.dot(offer_h, pw_ref[...], preferred_element_type=f32)
            + pb_ref[...])                                      # (SB, 8H)

    # ===== 3. catalog-encoder LSTM (gate order i|f|g|o) + ctx projection ===
    ewhh = ewhh_ref[...]
    ebhh = ebhh_ref[...]
    wctx = wctx_ref[...]
    bctx = bctx_ref[...]
    hE = jnp.zeros((B, H), f32)
    cE = jnp.zeros((B, H), f32)
    for s in range(S):                                          # fully unrolled
        gi = proj[s * B:(s + 1) * B, :4 * H]                    # (B, 4H)
        gates = gi + jnp.dot(hE, ewhh, preferred_element_type=f32) + ebhh
        i_g = jax.nn.sigmoid(gates[:, :H])
        f_g = jax.nn.sigmoid(gates[:, H:2 * H])
        g_g = jnp.tanh(gates[:, 2 * H:3 * H])
        o_g = jax.nn.sigmoid(gates[:, 3 * H:])
        cE = f_g * cE + i_g * g_g
        hE = o_g * jnp.tanh(cE)
        # fused context_linear (Conv1d k=1) of this step's hidden state
        ctx_scr[:, s:s + 1, :] = (
            jnp.dot(hE, wctx, preferred_element_type=f32) + bctx)[:, None, :]
        # pre-projected decoder input gates for this offer, (B, S, 4H) layout
        dgi_scr[:, s:s + 1, :] = proj[s * B:(s + 1) * B, 4 * H:][:, None, :]

    ctx = ctx_scr[...]                                          # (B, S, H)
    dgi = dgi_scr[...]                                          # (B, S, 4H)

    # ===== 4. pointer decoder ==============================================
    dwh = dwh_ref[...]
    dbh = dbh_ref[...]
    wil = wil_ref[...]
    bil = bil_ref[...]
    v3 = v_ref[...].reshape(1, 1, H)
    who = who_ref[...]
    bho = bho_ref[...]

    # first decoder input, already pushed through W_i2h (+ bias)
    gi = jnp.broadcast_to(
        jnp.dot(d0_ref[...], pw_ref[...][:, 4 * H:], preferred_element_type=f32)
        + pb_ref[...][:, 4 * H:], (B, 4 * H))
    hD = hE                                      # decoder_hidden0 = enc final
    cD = cE
    mask = jnp.ones((B, S), f32)
    iota = jax.lax.broadcasted_iota(jnp.int32, (B, S), 1)

    for t in range(S):                                          # fully unrolled
        # LSTM cell (gate order i|f|g|o); x-projection hoisted/gathered
        gates = gi + jnp.dot(hD, dwh, preferred_element_type=f32) + dbh
        i_g = jax.nn.sigmoid(gates[:, :H])
        f_g = jax.nn.sigmoid(gates[:, H:2 * H])
        g_g = jnp.tanh(gates[:, 2 * H:3 * H])
        o_g = jax.nn.sigmoid(gates[:, 3 * H:])
        c_t = f_g * cD + i_g * g_g
        h_t = o_g * jnp.tanh(c_t)

        # additive attention over the S offers
        inp = jnp.dot(h_t, wil, preferred_element_type=f32) + bil      # (B,H)
        u = jnp.tanh(inp[:, None, :] + ctx)                            # (B,S,H)
        att = jnp.sum(u * v3, axis=-1)                                 # (B,S)
        att = jnp.where(mask > 0.0, att, jnp.full_like(att, -1e30))
        att_max = jnp.max(att, axis=-1, keepdims=True)
        e = jnp.exp(att - att_max)
        alpha = e / jnp.sum(e, axis=-1, keepdims=True)                 # (B,S)

        hidden_state = jnp.sum(ctx * alpha[:, :, None], axis=1)        # (B,H)
        # single K=2H matmul instead of two K=H matmuls on who slices
        h_cat = jnp.concatenate([hidden_state, h_t], axis=-1)          # (B,2H)
        hD = jnp.tanh(jnp.dot(h_cat, who, preferred_element_type=f32) + bho)
        cD = c_t

        # pointer = argmax of masked probabilities (first-max on ties;
        # torch.argmax tie order is backend-dependent)
        masked = alpha * mask
        mmax = jnp.max(masked, axis=-1, keepdims=True)
        idx = jnp.min(jnp.where(masked == mmax, iota, S),
                      axis=-1, keepdims=True)                          # (B,1)
        one_hot = (iota == idx).astype(f32)

        mask = mask * (1.0 - one_hot)
        # next decoder input: gather the *projected* gates of the chosen offer
        gi = jnp.sum(dgi * one_hot[:, :, None], axis=1)                # (B,4H)

        # static per-step VMEM stores; HBM writeback happens once at the end
        out_ref[:, t:t + 1, :] = alpha[:, None, :]
        ptr_ref[:, t:t + 1] = idx


# ---------------------------------------------------------------------------
# Full forward pass.
# ---------------------------------------------------------------------------
def pointer_catalog_forward(X, p):
    B, S, W = X.shape
    Eo = p["gru_w_hh"].shape[0]
    H = p["enc_w_hh"].shape[0]

    # Word embeddings gathered directly in (word, offer, catalog)-major order:
    # row flat index = w*(S*B) + s*B + b, so the kernel's time-major slicing
    # needs no HBM relayouts.
    flat_ids = jnp.transpose(X, (2, 1, 0)).reshape(-1)          # (W*S*B,)
    emb_words = jnp.take(p["word_emb"], flat_ids, axis=0)       # (W*S*B, Ew)
    # TODO(synk): the embedding-table gather stays in XLA (data-dependent row
    # gather from HBM has no cheap BlockSpec equivalent at this size).

    # enc_w_ih | dec_w_i2h concatenated -> one lane-dense (Eo, 8H) projection.
    proj_w = jnp.concatenate([p["enc_w_ih"], p["dec_w_i2h"]], axis=1)   # (Eo,8H)
    proj_b = jnp.concatenate([p["enc_b_ih"], p["dec_b_i2h"]], axis=1)   # (1,8H)

    kernel = functools.partial(fused_pointer_catalog_kernel,
                               B=B, S=S, W=W, Eo=Eo, H=H)
    outputs, pointers = pl.pallas_call(
        kernel,
        out_shape=(jax.ShapeDtypeStruct((B, S, S), jnp.float32),
                   jax.ShapeDtypeStruct((B, S), jnp.int32)),
        scratch_shapes=[pltpu.VMEM((B, S, H), jnp.float32),       # ctx
                        pltpu.VMEM((B, S, 4 * H), jnp.float32)],  # dec gates
    )(emb_words,
      p["gru_w_ih"], p["gru_b_ih"], p["gru_w_hh"], p["gru_b_hh"],
      proj_w, proj_b,
      p["enc_w_hh"], p["enc_b_hh"],
      p["att_w_ctx"], p["att_b_ctx"],
      p["dec_w_h2h"], p["dec_b_h2h"],
      p["att_w_in"], p["att_b_in"], p["att_v"],
      p["dec_w_out"], p["dec_b_out"],
      p["dec_input0"].reshape(1, -1))
    return outputs, pointers


# ---------------------------------------------------------------------------
# Deterministic parameter initialization (synthetic; shapes per module
# __init__).  Weights stored pre-transposed as [in_dim, out_dim].
# ---------------------------------------------------------------------------
def init_params(key, vocab, Ew, Eo, H):
    ks = jax.random.split(key, 21)
    u = lambda k, shape, s=0.1: jax.random.uniform(k, shape, jnp.float32, -s, s)
    return dict(
        word_emb=u(ks[0], (vocab, Ew), 0.5),
        # offer-embedder GRU (gate order r|z|n)
        gru_w_ih=u(ks[1], (Ew, 3 * Eo)),
        gru_w_hh=u(ks[2], (Eo, 3 * Eo)),
        gru_b_ih=u(ks[3], (1, 3 * Eo)),
        gru_b_hh=u(ks[4], (1, 3 * Eo)),
        # catalog-encoder LSTM (gate order i|f|g|o)
        enc_w_ih=u(ks[5], (Eo, 4 * H)),
        enc_w_hh=u(ks[6], (H, 4 * H)),
        enc_b_ih=u(ks[7], (1, 4 * H)),
        enc_b_hh=u(ks[8], (1, 4 * H)),
        # decoder LSTM cell + output projection
        dec_w_i2h=u(ks[9], (Eo, 4 * H)),
        dec_b_i2h=u(ks[10], (1, 4 * H)),
        dec_w_h2h=u(ks[11], (H, 4 * H)),
        dec_b_h2h=u(ks[12], (1, 4 * H)),
        dec_w_out=u(ks[13], (2 * H, H)),
        dec_b_out=u(ks[14], (1, H)),
        # pointer attention
        att_w_in=u(ks[15], (H, H)),
        att_b_in=u(ks[16], (1, H)),
        att_w_ctx=u(ks[17], (H, H)),
        att_b_ctx=u(ks[18], (1, H)),
        att_v=jax.random.uniform(ks[19], (1, H), jnp.float32, -1.0, 1.0),
        dec_input0=jax.random.uniform(ks[20], (Eo,), jnp.float32, -1.0, 1.0),
    )


if __name__ == "__main__":
    # small shapes: batch=2 catalogs, 8 offers/catalog, 6 words/offer
    B, S, W = 2, 8, 6
    vocab_size = 50
    word_embedding_dim = 16
    offer_embedding_dim = 32
    hidden_dim = 32

    key = jax.random.PRNGKey(0)
    k_x, k_p = jax.random.split(key)
    X = jax.random.randint(k_x, (B, S, W), 0, vocab_size, dtype=jnp.int32)
    params = init_params(k_p, vocab_size, word_embedding_dim,
                         offer_embedding_dim, hidden_dim)

    fwd = jax.jit(pointer_catalog_forward)
    outputs, pointers = fwd(X, params)
    jax.block_until_ready((outputs, pointers))

    assert outputs.shape == (B, S, S)
    assert pointers.shape == (B, S)
    # sanity: softmax rows sum to 1, and masking => each catalog's pointers
    # form a permutation of the S offers
    assert bool(jnp.all(jnp.abs(jnp.sum(outputs, axis=-1) - 1.0) < 1e-4))
    assert bool(jnp.all(jnp.sort(pointers, axis=1) ==
                        jnp.arange(S, dtype=pointers.dtype)[None, :]))
    print("KERNEL_OK")
</pallas_src>

<mosaic_0001>
module attributes {stable_mosaic.version = 11 : i64} {
  func.func @fused_pointer_catalog_kernel(%arg0: memref<96x16xf32, #tpu.memory_space<vmem>>, %arg1: memref<16x96xf32, #tpu.memory_space<vmem>>, %arg2: memref<1x96xf32, #tpu.memory_space<vmem>>, %arg3: memref<32x96xf32, #tpu.memory_space<vmem>>, %arg4: memref<1x96xf32, #tpu.memory_space<vmem>>, %arg5: memref<32x256xf32, #tpu.memory_space<vmem>>, %arg6: memref<1x256xf32, #tpu.memory_space<vmem>>, %arg7: memref<32x128xf32, #tpu.memory_space<vmem>>, %arg8: memref<1x128xf32, #tpu.memory_space<vmem>>, %arg9: memref<32x32xf32, #tpu.memory_space<vmem>>, %arg10: memref<1x32xf32, #tpu.memory_space<vmem>>, %arg11: memref<32x128xf32, #tpu.memory_space<vmem>>, %arg12: memref<1x128xf32, #tpu.memory_space<vmem>>, %arg13: memref<32x32xf32, #tpu.memory_space<vmem>>, %arg14: memref<1x32xf32, #tpu.memory_space<vmem>>, %arg15: memref<1x32xf32, #tpu.memory_space<vmem>>, %arg16: memref<64x32xf32, #tpu.memory_space<vmem>>, %arg17: memref<1x32xf32, #tpu.memory_space<vmem>>, %arg18: memref<1x32xf32, #tpu.memory_space<vmem>>, %arg19: memref<2x8x8xf32, #tpu.memory_space<vmem>>, %arg20: memref<2x8xi32, #tpu.memory_space<vmem>>, %arg21: memref<2x8x32xf32, #tpu.memory_space<vmem>>, %arg22: memref<2x8x128xf32, #tpu.memory_space<vmem>>) attributes {dimension_semantics = [], scalar_prefetch = 0 : i64, scratch_operands = 2 : i64, tpu.core_type = #tpu.core_type<tc>} {
    %c0 = arith.constant 0 : index
    %c0_0 = arith.constant 0 : index
    %0 = vector.load %arg0[%c0, %c0_0] : memref<96x16xf32, #tpu.memory_space<vmem>>, vector<96x16xf32>
    %c0_1 = arith.constant 0 : index
    %c0_2 = arith.constant 0 : index
    %1 = vector.load %arg1[%c0_1, %c0_2] : memref<16x96xf32, #tpu.memory_space<vmem>>, vector<16x96xf32>
    %cst = arith.constant dense<0.000000e+00> : vector<96x96xf32>
    %2 = tpu.matmul %0, %1, %cst {dimension_numbers = #tpu.dot_dimension_numbers<[1], [0], [0], [1], [0, 0, 1, 1], [], []>} : vector<96x16xf32>, vector<16x96xf32>, vector<96x96xf32> -> vector<96x96xf32>
    %c0_3 = arith.constant 0 : index
    %c0_4 = arith.constant 0 : index
    %3 = vector.load %arg2[%c0_3, %c0_4] : memref<1x96xf32, #tpu.memory_space<vmem>>, vector<1x96xf32>
    %4 = vector.broadcast %3 : vector<1x96xf32> to vector<96x96xf32>
    %5 = arith.addf %2, %4 : vector<96x96xf32>
    %c0_5 = arith.constant 0 : index
    %c0_6 = arith.constant 0 : index
    %6 = vector.load %arg3[%c0_5, %c0_6] : memref<32x96xf32, #tpu.memory_space<vmem>>, vector<32x96xf32>
    %c0_7 = arith.constant 0 : index
    %c0_8 = arith.constant 0 : index
    %7 = vector.load %arg4[%c0_7, %c0_8] : memref<1x96xf32, #tpu.memory_space<vmem>>, vector<1x96xf32>
    %cst_9 = arith.constant 0.000000e+00 : f32
    %8 = vector.broadcast %cst_9 : f32 to vector<16x32xf32>
    %9 = vector.extract_strided_slice %5 {offsets = [0, 0], sizes = [16, 96], strides = [1, 1]} : vector<96x96xf32> to vector<16x96xf32>
    %cst_10 = arith.constant dense<0.000000e+00> : vector<16x96xf32>
    %10 = tpu.matmul %8, %6, %cst_10 {dimension_numbers = #tpu.dot_dimension_numbers<[1], [0], [0], [1], [0, 0, 1, 1], [], []>} : vector<16x32xf32>, vector<32x96xf32>, vector<16x96xf32> -> vector<16x96xf32>
    %11 = vector.broadcast %7 : vector<1x96xf32> to vector<16x96xf32>
    %12 = arith.addf %10, %11 : vector<16x96xf32>
    %13 = vector.extract_strided_slice %9 {offsets = [0, 0], sizes = [16, 32], strides = [1, 1]} : vector<16x96xf32> to vector<16x32xf32>
    %14 = vector.extract_strided_slice %12 {offsets = [0, 0], sizes = [16, 32], strides = [1, 1]} : vector<16x96xf32> to vector<16x32xf32>
    %15 = arith.addf %13, %14 : vector<16x32xf32>
    %16 = arith.negf %15 : vector<16x32xf32>
    %17 = math.exp %16 : vector<16x32xf32>
    %cst_11 = arith.constant 1.000000e+00 : f32
    %18 = vector.broadcast %cst_11 : f32 to vector<16x32xf32>
    %19 = arith.addf %18, %17 : vector<16x32xf32>
    %20 = arith.divf %18, %19 : vector<16x32xf32>
    %21 = vector.extract_strided_slice %9 {offsets = [0, 32], sizes = [16, 32], strides = [1, 1]} : vector<16x96xf32> to vector<16x32xf32>
    %22 = vector.extract_strided_slice %12 {offsets = [0, 32], sizes = [16, 32], strides = [1, 1]} : vector<16x96xf32> to vector<16x32xf32>
    %23 = arith.addf %21, %22 : vector<16x32xf32>
    %24 = arith.negf %23 : vector<16x32xf32>
    %25 = math.exp %24 : vector<16x32xf32>
    %cst_12 = arith.constant 1.000000e+00 : f32
    %26 = vector.broadcast %cst_12 : f32 to vector<16x32xf32>
    %27 = arith.addf %26, %25 : vector<16x32xf32>
    %28 = arith.divf %26, %27 : vector<16x32xf32>
    %29 = vector.extract_strided_slice %9 {offsets = [0, 64], sizes = [16, 32], strides = [1, 1]} : vector<16x96xf32> to vector<16x32xf32>
    %30 = vector.extract_strided_slice %12 {offsets = [0, 64], sizes = [16, 32], strides = [1, 1]} : vector<16x96xf32> to vector<16x32xf32>
    %31 = arith.mulf %20, %30 : vector<16x32xf32>
    %32 = arith.addf %29, %31 : vector<16x32xf32>
    %33 = math.tanh %32 : vector<16x32xf32>
    %cst_13 = arith.constant 1.000000e+00 : f32
    %34 = vector.broadcast %cst_13 : f32 to vector<16x32xf32>
    %35 = arith.subf %34, %28 : vector<16x32xf32>
    %36 = arith.mulf %35, %33 : vector<16x32xf32>
    %37 = arith.mulf %28, %8 : vector<16x32xf32>
    %38 = arith.addf %36, %37 : vector<16x32xf32>
    %39 = vector.extract_strided_slice %5 {offsets = [16, 0], sizes = [16, 96], strides = [1, 1]} : vector<96x96xf32> to vector<16x96xf32>
    %cst_14 = arith.constant dense<0.000000e+00> : vector<16x96xf32>
    %40 = tpu.matmul %38, %6, %cst_14 {dimension_numbers = #tpu.dot_dimension_numbers<[1], [0], [0], [1], [0, 0, 1, 1], [], []>} : vector<16x32xf32>, vector<32x96xf32>, vector<16x96xf32> -> vector<16x96xf32>
    %41 = vector.broadcast %7 : vector<1x96xf32> to vector<16x96xf32>
    %42 = arith.addf %40, %41 : vector<16x96xf32>
    %43 = vector.extract_strided_slice %39 {offsets = [0, 0], sizes = [16, 32], strides = [1, 1]} : vector<16x96xf32> to vector<16x32xf32>
    %44 = vector.extract_strided_slice %42 {offsets = [0, 0], sizes = [16, 32], strides = [1, 1]} : vector<16x96xf32> to vector<16x32xf32>
    %45 = arith.addf %43, %44 : vector<16x32xf32>
    %46 = arith.negf %45 : vector<16x32xf32>
    %47 = math.exp %46 : vector<16x32xf32>
    %cst_15 = arith.constant 1.000000e+00 : f32
    %48 = vector.broadcast %cst_15 : f32 to vector<16x32xf32>
    %49 = arith.addf %48, %47 : vector<16x32xf32>
    %50 = arith.divf %48, %49 : vector<16x32xf32>
    %51 = vector.extract_strided_slice %39 {offsets = [0, 32], sizes = [16, 32], strides = [1, 1]} : vector<16x96xf32> to vector<16x32xf32>
    %52 = vector.extract_strided_slice %42 {offsets = [0, 32], sizes = [16, 32], strides = [1, 1]} : vector<16x96xf32> to vector<16x32xf32>
    %53 = arith.addf %51, %52 : vector<16x32xf32>
    %54 = arith.negf %53 : vector<16x32xf32>
    %55 = math.exp %54 : vector<16x32xf32>
    %cst_16 = arith.constant 1.000000e+00 : f32
    %56 = vector.broadcast %cst_16 : f32 to vector<16x32xf32>
    %57 = arith.addf %56, %55 : vector<16x32xf32>
    %58 = arith.divf %56, %57 : vector<16x32xf32>
    %59 = vector.extract_strided_slice %39 {offsets = [0, 64], sizes = [16, 32], strides = [1, 1]} : vector<16x96xf32> to vector<16x32xf32>
    %60 = vector.extract_strided_slice %42 {offsets = [0, 64], sizes = [16, 32], strides = [1, 1]} : vector<16x96xf32> to vector<16x32xf32>
    %61 = arith.mulf %50, %60 : vector<16x32xf32>
    %62 = arith.addf %59, %61 : vector<16x32xf32>
    %63 = math.tanh %62 : vector<16x32xf32>
    %cst_17 = arith.constant 1.000000e+00 : f32
    %64 = vector.broadcast %cst_17 : f32 to vector<16x32xf32>
    %65 = arith.subf %64, %58 : vector<16x32xf32>
    %66 = arith.mulf %65, %63 : vector<16x32xf32>
    %67 = arith.mulf %58, %38 : vector<16x32xf32>
    %68 = arith.addf %66, %67 : vector<16x32xf32>
    %69 = vector.extract_strided_slice %5 {offsets = [32, 0], sizes = [16, 96], strides = [1, 1]} : vector<96x96xf32> to vector<16x96xf32>
    %cst_18 = arith.constant dense<0.000000e+00> : vector<16x96xf32>
    %70 = tpu.matmul %68, %6, %cst_18 {dimension_numbers = #tpu.dot_dimension_numbers<[1], [0], [0], [1], [0, 0, 1, 1], [], []>} : vector<16x32xf32>, vector<32x96xf32>, vector<16x96xf32> -> vector<16x96xf32>
    %71 = vector.broadcast %7 : vector<1x96xf32> to vector<16x96xf32>
    %72 = arith.addf %70, %71 : vector<16x96xf32>
    %73 = vector.extract_strided_slice %69 {offsets = [0, 0], sizes = [16, 32], strides = [1, 1]} : vector<16x96xf32> to vector<16x32xf32>
    %74 = vector.extract_strided_slice %72 {offsets = [0, 0], sizes = [16, 32], strides = [1, 1]} : vector<16x96xf32> to vector<16x32xf32>
    %75 = arith.addf %73, %74 : vector<16x32xf32>
    %76 = arith.negf %75 : vector<16x32xf32>
    %77 = math.exp %76 : vector<16x32xf32>
    %cst_19 = arith.constant 1.000000e+00 : f32
    %78 = vector.broadcast %cst_19 : f32 to vector<16x32xf32>
    %79 = arith.addf %78, %77 : vector<16x32xf32>
    %80 = arith.divf %78, %79 : vector<16x32xf32>
    %81 = vector.extract_strided_slice %69 {offsets = [0, 32], sizes = [16, 32], strides = [1, 1]} : vector<16x96xf32> to vector<16x32xf32>
    %82 = vector.extract_strided_slice %72 {offsets = [0, 32], sizes = [16, 32], strides = [1, 1]} : vector<16x96xf32> to vector<16x32xf32>
    %83 = arith.addf %81, %82 : vector<16x32xf32>
    %84 = arith.negf %83 : vector<16x32xf32>
    %85 = math.exp %84 : vector<16x32xf32>
    %cst_20 = arith.constant 1.000000e+00 : f32
    %86 = vector.broadcast %cst_20 : f32 to vector<16x32xf32>
    %87 = arith.addf %86, %85 : vector<16x32xf32>
    %88 = arith.divf %86, %87 : vector<16x32xf32>
    %89 = vector.extract_strided_slice %69 {offsets = [0, 64], sizes = [16, 32], strides = [1, 1]} : vector<16x96xf32> to vector<16x32xf32>
    %90 = vector.extract_strided_slice %72 {offsets = [0, 64], sizes = [16, 32], strides = [1, 1]} : vector<16x96xf32> to vector<16x32xf32>
    %91 = arith.mulf %80, %90 : vector<16x32xf32>
    %92 = arith.addf %89, %91 : vector<16x32xf32>
    %93 = math.tanh %92 : vector<16x32xf32>
    %cst_21 = arith.constant 1.000000e+00 : f32
    %94 = vector.broadcast %cst_21 : f32 to vector<16x32xf32>
    %95 = arith.subf %94, %88 : vector<16x32xf32>
    %96 = arith.mulf %95, %93 : vector<16x32xf32>
    %97 = arith.mulf %88, %68 : vector<16x32xf32>
    %98 = arith.addf %96, %97 : vector<16x32xf32>
    %99 = vector.extract_strided_slice %5 {offsets = [48, 0], sizes = [16, 96], strides = [1, 1]} : vector<96x96xf32> to vector<16x96xf32>
    %cst_22 = arith.constant dense<0.000000e+00> : vector<16x96xf32>
    %100 = tpu.matmul %98, %6, %cst_22 {dimension_numbers = #tpu.dot_dimension_numbers<[1], [0], [0], [1], [0, 0, 1, 1], [], []>} : vector<16x32xf32>, vector<32x96xf32>, vector<16x96xf32> -> vector<16x96xf32>
    %101 = vector.broadcast %7 : vector<1x96xf32> to vector<16x96xf32>
    %102 = arith.addf %100, %101 : vector<16x96xf32>
    %103 = vector.extract_strided_slice %99 {offsets = [0, 0], sizes = [16, 32], strides = [1, 1]} : vector<16x96xf32> to vector<16x32xf32>
    %104 = vector.extract_strided_slice %102 {offsets = [0, 0], sizes = [16, 32], strides = [1, 1]} : vector<16x96xf32> to vector<16x32xf32>
    %105 = arith.addf %103, %104 : vector<16x32xf32>
    %106 = arith.negf %105 : vector<16x32xf32>
    %107 = math.exp %106 : vector<16x32xf32>
    %cst_23 = arith.constant 1.000000e+00 : f32
    %108 = vector.broadcast %cst_23 : f32 to vector<16x32xf32>
    %109 = arith.addf %108, %107 : vector<16x32xf32>
    %110 = arith.divf %108, %109 : vector<16x32xf32>
    %111 = vector.extract_strided_slice %99 {offsets = [0, 32], sizes = [16, 32], strides = [1, 1]} : vector<16x96xf32> to vector<16x32xf32>
    %112 = vector.extract_strided_slice %102 {offsets = [0, 32], sizes = [16, 32], strides = [1, 1]} : vector<16x96xf32> to vector<16x32xf32>
    %113 = arith.addf %111, %112 : vector<16x32xf32>
    %114 = arith.negf %113 : vector<16x32xf32>
    %115 = math.exp %114 : vector<16x32xf32>
    %cst_24 = arith.constant 1.000000e+00 : f32
    %116 = vector.broadcast %cst_24 : f32 to vector<16x32xf32>
    %117 = arith.addf %116, %115 : vector<16x32xf32>
    %118 = arith.divf %116, %117 : vector<16x32xf32>
    %119 = vector.extract_strided_slice %99 {offsets = [0, 64], sizes = [16, 32], strides = [1, 1]} : vector<16x96xf32> to vector<16x32xf32>
    %120 = vector.extract_strided_slice %102 {offsets = [0, 64], sizes = [16, 32], strides = [1, 1]} : vector<16x96xf32> to vector<16x32xf32>
    %121 = arith.mulf %110, %120 : vector<16x32xf32>
    %122 = arith.addf %119, %121 : vector<16x32xf32>
    %123 = math.tanh %122 : vector<16x32xf32>
    %cst_25 = arith.constant 1.000000e+00 : f32
    %124 = vector.broadcast %cst_25 : f32 to vector<16x32xf32>
    %125 = arith.subf %124, %118 : vector<16x32xf32>
    %126 = arith.mulf %125, %123 : vector<16x32xf32>
    %127 = arith.mulf %118, %98 : vector<16x32xf32>
    %128 = arith.addf %126, %127 : vector<16x32xf32>
    %129 = vector.extract_strided_slice %5 {offsets = [64, 0], sizes = [16, 96], strides = [1, 1]} : vector<96x96xf32> to vector<16x96xf32>
    %cst_26 = arith.constant dense<0.000000e+00> : vector<16x96xf32>
    %130 = tpu.matmul %128, %6, %cst_26 {dimension_numbers = #tpu.dot_dimension_numbers<[1], [0], [0], [1], [0, 0, 1, 1], [], []>} : vector<16x32xf32>, vector<32x96xf32>, vector<16x96xf32> -> vector<16x96xf32>
    %131 = vector.broadcast %7 : vector<1x96xf32> to vector<16x96xf32>
    %132 = arith.addf %130, %131 : vector<16x96xf32>
    %133 = vector.extract_strided_slice %129 {offsets = [0, 0], sizes = [16, 32], strides = [1, 1]} : vector<16x96xf32> to vector<16x32xf32>
    %134 = vector.extract_strided_slice %132 {offsets = [0, 0], sizes = [16, 32], strides = [1, 1]} : vector<16x96xf32> to vector<16x32xf32>
    %135 = arith.addf %133, %134 : vector<16x32xf32>
    %136 = arith.negf %135 : vector<16x32xf32>
    %137 = math.exp %136 : vector<16x32xf32>
    %cst_27 = arith.constant 1.000000e+00 : f32
    %138 = vector.broadcast %cst_27 : f32 to vector<16x32xf32>
    %139 = arith.addf %138, %137 : vector<16x32xf32>
    %140 = arith.divf %138, %139 : vector<16x32xf32>
    %141 = vector.extract_strided_slice %129 {offsets = [0, 32], sizes = [16, 32], strides = [1, 1]} : vector<16x96xf32> to vector<16x32xf32>
    %142 = vector.extract_strided_slice %132 {offsets = [0, 32], sizes = [16, 32], strides = [1, 1]} : vector<16x96xf32> to vector<16x32xf32>
    %143 = arith.addf %141, %142 : vector<16x32xf32>
    %144 = arith.negf %143 : vector<16x32xf32>
    %145 = math.exp %144 : vector<16x32xf32>
    %cst_28 = arith.constant 1.000000e+00 : f32
    %146 = vector.broadcast %cst_28 : f32 to vector<16x32xf32>
    %147 = arith.addf %146, %145 : vector<16x32xf32>
    %148 = arith.divf %146, %147 : vector<16x32xf32>
    %149 = vector.extract_strided_slice %129 {offsets = [0, 64], sizes = [16, 32], strides = [1, 1]} : vector<16x96xf32> to vector<16x32xf32>
    %150 = vector.extract_strided_slice %132 {offsets = [0, 64], sizes = [16, 32], strides = [1, 1]} : vector<16x96xf32> to vector<16x32xf32>
    %151 = arith.mulf %140, %150 : vector<16x32xf32>
    %152 = arith.addf %149, %151 : vector<16x32xf32>
    %153 = math.tanh %152 : vector<16x32xf32>
    %cst_29 = arith.constant 1.000000e+00 : f32
    %154 = vector.broadcast %cst_29 : f32 to vector<16x32xf32>
    %155 = arith.subf %154, %148 : vector<16x32xf32>
    %156 = arith.mulf %155, %153 : vector<16x32xf32>
    %157 = arith.mulf %148, %128 : vector<16x32xf32>
    %158 = arith.addf %156, %157 : vector<16x32xf32>
    %159 = vector.extract_strided_slice %5 {offsets = [80, 0], sizes = [16, 96], strides = [1, 1]} : vector<96x96xf32> to vector<16x96xf32>
    %cst_30 = arith.constant dense<0.000000e+00> : vector<16x96xf32>
    %160 = tpu.matmul %158, %6, %cst_30 {dimension_numbers = #tpu.dot_dimension_numbers<[1], [0], [0], [1], [0, 0, 1, 1], [], []>} : vector<16x32xf32>, vector<32x96xf32>, vector<16x96xf32> -> vector<16x96xf32>
    %161 = vector.broadcast %7 : vector<1x96xf32> to vector<16x96xf32>
    %162 = arith.addf %160, %161 : vector<16x96xf32>
    %163 = vector.extract_strided_slice %159 {offsets = [0, 0], sizes = [16, 32], strides = [1, 1]} : vector<16x96xf32> to vector<16x32xf32>
    %164 = vector.extract_strided_slice %162 {offsets = [0, 0], sizes = [16, 32], strides = [1, 1]} : vector<16x96xf32> to vector<16x32xf32>
    %165 = arith.addf %163, %164 : vector<16x32xf32>
    %166 = arith.negf %165 : vector<16x32xf32>
    %167 = math.exp %166 : vector<16x32xf32>
    %cst_31 = arith.constant 1.000000e+00 : f32
    %168 = vector.broadcast %cst_31 : f32 to vector<16x32xf32>
    %169 = arith.addf %168, %167 : vector<16x32xf32>
    %170 = arith.divf %168, %169 : vector<16x32xf32>
    %171 = vector.extract_strided_slice %159 {offsets = [0, 32], sizes = [16, 32], strides = [1, 1]} : vector<16x96xf32> to vector<16x32xf32>
    %172 = vector.extract_strided_slice %162 {offsets = [0, 32], sizes = [16, 32], strides = [1, 1]} : vector<16x96xf32> to vector<16x32xf32>
    %173 = arith.addf %171, %172 : vector<16x32xf32>
    %174 = arith.negf %173 : vector<16x32xf32>
    %175 = math.exp %174 : vector<16x32xf32>
    %cst_32 = arith.constant 1.000000e+00 : f32
    %176 = vector.broadcast %cst_32 : f32 to vector<16x32xf32>
    %177 = arith.addf %176, %175 : vector<16x32xf32>
    %178 = arith.divf %176, %177 : vector<16x32xf32>
    %179 = vector.extract_strided_slice %159 {offsets = [0, 64], sizes = [16, 32], strides = [1, 1]} : vector<16x96xf32> to vector<16x32xf32>
    %180 = vector.extract_strided_slice %162 {offsets = [0, 64], sizes = [16, 32], strides = [1, 1]} : vector<16x96xf32> to vector<16x32xf32>
    %181 = arith.mulf %170, %180 : vector<16x32xf32>
    %182 = arith.addf %179, %181 : vector<16x32xf32>
    %183 = math.tanh %182 : vector<16x32xf32>
    %cst_33 = arith.constant 1.000000e+00 : f32
    %184 = vector.broadcast %cst_33 : f32 to vector<16x32xf32>
    %185 = arith.subf %184, %178 : vector<16x32xf32>
    %186 = arith.mulf %185, %183 : vector<16x32xf32>
    %187 = arith.mulf %178, %158 : vector<16x32xf32>
    %188 = arith.addf %186, %187 : vector<16x32xf32>
    %c0_34 = arith.constant 0 : index
    %c0_35 = arith.constant 0 : index
    %189 = vector.load %arg5[%c0_34, %c0_35] : memref<32x256xf32, #tpu.memory_space<vmem>>, vector<32x256xf32>
    %cst_36 = arith.constant dense<0.000000e+00> : vector<16x256xf32>
    %190 = tpu.matmul %188, %189, %cst_36 {dimension_numbers = #tpu.dot_dimension_numbers<[1], [0], [0], [1], [0, 0, 1, 1], [], []>} : vector<16x32xf32>, vector<32x256xf32>, vector<16x256xf32> -> vector<16x256xf32>
    %c0_37 = arith.constant 0 : index
    %c0_38 = arith.constant 0 : index
    %191 = vector.load %arg6[%c0_37, %c0_38] : memref<1x256xf32, #tpu.memory_space<vmem>>, vector<1x256xf32>
    %192 = vector.broadcast %191 : vector<1x256xf32> to vector<16x256xf32>
    %193 = arith.addf %190, %192 : vector<16x256xf32>
    %c0_39 = arith.constant 0 : index
    %c0_40 = arith.constant 0 : index
    %194 = vector.load %arg7[%c0_39, %c0_40] : memref<32x128xf32, #tpu.memory_space<vmem>>, vector<32x128xf32>
    %c0_41 = arith.constant 0 : index
    %c0_42 = arith.constant 0 : index
    %195 = vector.load %arg8[%c0_41, %c0_42] : memref<1x128xf32, #tpu.memory_space<vmem>>, vector<1x128xf32>
    %c0_43 = arith.constant 0 : index
    %c0_44 = arith.constant 0 : index
    %196 = vector.load %arg9[%c0_43, %c0_44] : memref<32x32xf32, #tpu.memory_space<vmem>>, vector<32x32xf32>
    %c0_45 = arith.constant 0 : index
    %c0_46 = arith.constant 0 : index
    %197 = vector.load %arg10[%c0_45, %c0_46] : memref<1x32xf32, #tpu.memory_space<vmem>>, vector<1x32xf32>
    %cst_47 = arith.constant 0.000000e+00 : f32
    %198 = vector.broadcast %cst_47 : f32 to vector<2x32xf32>
    %cst_48 = arith.constant 0.000000e+00 : f32
    %199 = vector.broadcast %cst_48 : f32 to vector<2x32xf32>
    %200 = vector.extract_strided_slice %193 {offsets = [0, 0], sizes = [2, 128], strides = [1, 1]} : vector<16x256xf32> to vector<2x128xf32>
    %cst_49 = arith.constant dense<0.000000e+00> : vector<2x128xf32>
    %201 = tpu.matmul %198, %194, %cst_49 {dimension_numbers = #tpu.dot_dimension_numbers<[1], [0], [0], [1], [0, 0, 1, 1], [], []>} : vector<2x32xf32>, vector<32x128xf32>, vector<2x128xf32> -> vector<2x128xf32>
    %202 = arith.addf %200, %201 : vector<2x128xf32>
    %203 = vector.broadcast %195 : vector<1x128xf32> to vector<2x128xf32>
    %204 = arith.addf %202, %203 : vector<2x128xf32>
    %205 = vector.extract_strided_slice %204 {offsets = [0, 0], sizes = [2, 32], strides = [1, 1]} : vector<2x128xf32> to vector<2x32xf32>
    %206 = arith.negf %205 : vector<2x32xf32>
    %207 = math.exp %206 : vector<2x32xf32>
    %cst_50 = arith.constant 1.000000e+00 : f32
    %208 = vector.broadcast %cst_50 : f32 to vector<2x32xf32>
    %209 = arith.addf %208, %207 : vector<2x32xf32>
    %210 = arith.divf %208, %209 : vector<2x32xf32>
    %211 = vector.extract_strided_slice %204 {offsets = [0, 32], sizes = [2, 32], strides = [1, 1]} : vector<2x128xf32> to vector<2x32xf32>
    %212 = arith.negf %211 : vector<2x32xf32>
    %213 = math.exp %212 : vector<2x32xf32>
    %cst_51 = arith.constant 1.000000e+00 : f32
    %214 = vector.broadcast %cst_51 : f32 to vector<2x32xf32>
    %215 = arith.addf %214, %213 : vector<2x32xf32>
    %216 = arith.divf %214, %215 : vector<2x32xf32>
    %217 = vector.extract_strided_slice %204 {offsets = [0, 64], sizes = [2, 32], strides = [1, 1]} : vector<2x128xf32> to vector<2x32xf32>
    %218 = math.tanh %217 : vector<2x32xf32>
    %219 = vector.extract_strided_slice %204 {offsets = [0, 96], sizes = [2, 32], strides = [1, 1]} : vector<2x128xf32> to vector<2x32xf32>
    %220 = arith.negf %219 : vector<2x32xf32>
    %221 = math.exp %220 : vector<2x32xf32>
    %cst_52 = arith.constant 1.000000e+00 : f32
    %222 = vector.broadcast %cst_52 : f32 to vector<2x32xf32>
    %223 = arith.addf %222, %221 : vector<2x32xf32>
    %224 = arith.divf %222, %223 : vector<2x32xf32>
    %225 = arith.mulf %216, %199 : vector<2x32xf32>
    %226 = arith.mulf %210, %218 : vector<2x32xf32>
    %227 = arith.addf %225, %226 : vector<2x32xf32>
    %228 = math.tanh %227 : vector<2x32xf32>
    %229 = arith.mulf %224, %228 : vector<2x32xf32>
    %cst_53 = arith.constant dense<0.000000e+00> : vector<2x32xf32>
    %230 = tpu.matmul %229, %196, %cst_53 {dimension_numbers = #tpu.dot_dimension_numbers<[1], [0], [0], [1], [0, 0, 1, 1], [], []>} : vector<2x32xf32>, vector<32x32xf32>, vector<2x32xf32> -> vector<2x32xf32>
    %231 = vector.broadcast %197 : vector<1x32xf32> to vector<2x32xf32>
    %232 = arith.addf %230, %231 : vector<2x32xf32>
    %233 = vector.shape_cast %232 : vector<2x32xf32> to vector<2x1x32xf32>
    %c0_54 = arith.constant 0 : index
    %c0_55 = arith.constant 0 : index
    %c0_56 = arith.constant 0 : index
    %234 = vector.load %arg21[%c0_54, %c0_55, %c0_56] : memref<2x8x32xf32, #tpu.memory_space<vmem>>, vector<2x1x32xf32>
    tpu.vector_store %arg21[%c0_54, %c0_55, %c0_56], %233 {strides = array<i32>} : memref<2x8x32xf32, #tpu.memory_space<vmem>>, vector<2x1x32xf32>,
    %235 = vector.extract_strided_slice %193 {offsets = [0, 128], sizes = [2, 128], strides = [1, 1]} : vector<16x256xf32> to vector<2x128xf32>
    %236 = vector.shape_cast %235 : vector<2x128xf32> to vector<2x1x128xf32>
    %c0_57 = arith.constant 0 : index
    %c0_58 = arith.constant 0 : index
    %c0_59 = arith.constant 0 : index
    %237 = vector.load %arg22[%c0_57, %c0_58, %c0_59] : memref<2x8x128xf32, #tpu.memory_space<vmem>>, vector<2x1x128xf32>
    tpu.vector_store %arg22[%c0_57, %c0_58, %c0_59], %236 {strides = array<i32>} : memref<2x8x128xf32, #tpu.memory_space<vmem>>, vector<2x1x128xf32>,
    %238 = vector.extract_strided_slice %193 {offsets = [2, 0], sizes = [2, 128], strides = [1, 1]} : vector<16x256xf32> to vector<2x128xf32>
    %cst_60 = arith.constant dense<0.000000e+00> : vector<2x128xf32>
    %239 = tpu.matmul %229, %194, %cst_60 {dimension_numbers = #tpu.dot_dimension_numbers<[1], [0], [0], [1], [0, 0, 1, 1], [], []>} : vector<2x32xf32>, vector<32x128xf32>, vector<2x128xf32> -> vector<2x128xf32>
    %240 = arith.addf %238, %239 : vector<2x128xf32>
    %241 = vector.broadcast %195 : vector<1x128xf32> to vector<2x128xf32>
    %242 = arith.addf %240, %241 : vector<2x128xf32>
    %243 = vector.extract_strided_slice %242 {offsets = [0, 0], sizes = [2, 32], strides = [1, 1]} : vector<2x128xf32> to vector<2x32xf32>
    %244 = arith.negf %243 : vector<2x32xf32>
    %245 = math.exp %244 : vector<2x32xf32>
    %cst_61 = arith.constant 1.000000e+00 : f32
    %246 = vector.broadcast %cst_61 : f32 to vector<2x32xf32>
    %247 = arith.addf %246, %245 : vector<2x32xf32>
    %248 = arith.divf %246, %247 : vector<2x32xf32>
    %249 = vector.extract_strided_slice %242 {offsets = [0, 32], sizes = [2, 32], strides = [1, 1]} : vector<2x128xf32> to vector<2x32xf32>
    %250 = arith.negf %249 : vector<2x32xf32>
    %251 = math.exp %250 : vector<2x32xf32>
    %cst_62 = arith.constant 1.000000e+00 : f32
    %252 = vector.broadcast %cst_62 : f32 to vector<2x32xf32>
    %253 = arith.addf %252, %251 : vector<2x32xf32>
    %254 = arith.divf %252, %253 : vector<2x32xf32>
    %255 = vector.extract_strided_slice %242 {offsets = [0, 64], sizes = [2, 32], strides = [1, 1]} : vector<2x128xf32> to vector<2x32xf32>
    %256 = math.tanh %255 : vector<2x32xf32>
    %257 = vector.extract_strided_slice %242 {offsets = [0, 96], sizes = [2, 32], strides = [1, 1]} : vector<2x128xf32> to vector<2x32xf32>
    %258 = arith.negf %257 : vector<2x32xf32>
    %259 = math.exp %258 : vector<2x32xf32>
    %cst_63 = arith.constant 1.000000e+00 : f32
    %260 = vector.broadcast %cst_63 : f32 to vector<2x32xf32>
    %261 = arith.addf %260, %259 : vector<2x32xf32>
    %262 = arith.divf %260, %261 : vector<2x32xf32>
    %263 = arith.mulf %254, %227 : vector<2x32xf32>
    %264 = arith.mulf %248, %256 : vector<2x32xf32>
    %265 = arith.addf %263, %264 : vector<2x32xf32>
    %266 = math.tanh %265 : vector<2x32xf32>
    %267 = arith.mulf %262, %266 : vector<2x32xf32>
    %cst_64 = arith.constant dense<0.000000e+00> : vector<2x32xf32>
    %268 = tpu.matmul %267, %196, %cst_64 {dimension_numbers = #tpu.dot_dimension_numbers<[1], [0], [0], [1], [0, 0, 1, 1], [], []>} : vector<2x32xf32>, vector<32x32xf32>, vector<2x32xf32> -> vector<2x32xf32>
    %269 = vector.broadcast %197 : vector<1x32xf32> to vector<2x32xf32>
    %270 = arith.addf %268, %269 : vector<2x32xf32>
    %271 = vector.shape_cast %270 : vector<2x32xf32> to vector<2x1x32xf32>
    %c0_65 = arith.constant 0 : index
    %c1 = arith.constant 1 : index
    %c0_66 = arith.constant 0 : index
    %272 = vector.load %arg21[%c0_65, %c1, %c0_66] : memref<2x8x32xf32, #tpu.memory_space<vmem>>, vector<2x1x32xf32>
    tpu.vector_store %arg21[%c0_65, %c1, %c0_66], %271 {strides = array<i32>} : memref<2x8x32xf32, #tpu.memory_space<vmem>>, vector<2x1x32xf32>,
    %273 = vector.extract_strided_slice %193 {offsets = [2, 128], sizes = [2, 128], strides = [1, 1]} : vector<16x256xf32> to vector<2x128xf32>
    %274 = vector.shape_cast %273 : vector<2x128xf32> to vector<2x1x128xf32>
    %c0_67 = arith.constant 0 : index
    %c1_68 = arith.constant 1 : index
    %c0_69 = arith.constant 0 : index
    %275 = vector.load %arg22[%c0_67, %c1_68, %c0_69] : memref<2x8x128xf32, #tpu.memory_space<vmem>>, vector<2x1x128xf32>
    tpu.vector_store %arg22[%c0_67, %c1_68, %c0_69], %274 {strides = array<i32>} : memref<2x8x128xf32, #tpu.memory_space<vmem>>, vector<2x1x128xf32>,
    %276 = vector.extract_strided_slice %193 {offsets = [4, 0], sizes = [2, 128], strides = [1, 1]} : vector<16x256xf32> to vector<2x128xf32>
    %cst_70 = arith.constant dense<0.000000e+00> : vector<2x128xf32>
    %277 = tpu.matmul %267, %194, %cst_70 {dimension_numbers = #tpu.dot_dimension_numbers<[1], [0], [0], [1], [0, 0, 1, 1], [], []>} : vector<2x32xf32>, vector<32x128xf32>, vector<2x128xf32> -> vector<2x128xf32>
    %278 = arith.addf %276, %277 : vector<2x128xf32>
    %279 = vector.broadcast %195 : vector<1x128xf32> to vector<2x128xf32>
    %280 = arith.addf %278, %279 : vector<2x128xf32>
    %281 = vector.extract_strided_slice %280 {offsets = [0, 0], sizes = [2, 32], strides = [1, 1]} : vector<2x128xf32> to vector<2x32xf32>
    %282 = arith.negf %281 : vector<2x32xf32>
    %283 = math.exp %282 : vector<2x32xf32>
    %cst_71 = arith.constant 1.000000e+00 : f32
    %284 = vector.broadcast %cst_71 : f32 to vector<2x32xf32>
    %285 = arith.addf %284, %283 : vector<2x32xf32>
    %286 = arith.divf %284, %285 : vector<2x32xf32>
    %287 = vector.extract_strided_slice %280 {offsets = [0, 32], sizes = [2, 32], strides = [1, 1]} : vector<2x128xf32> to vector<2x32xf32>
    %288 = arith.negf %287 : vector<2x32xf32>
    %289 = math.exp %288 : vector<2x32xf32>
    %cst_72 = arith.constant 1.000000e+00 : f32
    %290 = vector.broadcast %cst_72 : f32 to vector<2x32xf32>
    %291 = arith.addf %290, %289 : vector<2x32xf32>
    %292 = arith.divf %290, %291 : vector<2x32xf32>
    %293 = vector.extract_strided_slice %280 {offsets = [0, 64], sizes = [2, 32], strides = [1, 1]} : vector<2x128xf32> to vector<2x32xf32>
    %294 = math.tanh %293 : vector<2x32xf32>
    %295 = vector.extract_strided_slice %280 {offsets = [0, 96], sizes = [2, 32], strides = [1, 1]} : vector<2x128xf32> to vector<2x32xf32>
    %296 = arith.negf %295 : vector<2x32xf32>
    %297 = math.exp %296 : vector<2x32xf32>
    %cst_73 = arith.constant 1.000000e+00 : f32
    %298 = vector.broadcast %cst_73 : f32 to vector<2x32xf32>
    %299 = arith.addf %298, %297 : vector<2x32xf32>
    %300 = arith.divf %298, %299 : vector<2x32xf32>
    %301 = arith.mulf %292, %265 : vector<2x32xf32>
    %302 = arith.mulf %286, %294 : vector<2x32xf32>
    %303 = arith.addf %301, %302 : vector<2x32xf32>
    %304 = math.tanh %303 : vector<2x32xf32>
    %305 = arith.mulf %300, %304 : vector<2x32xf32>
    %cst_74 = arith.constant dense<0.000000e+00> : vector<2x32xf32>
    %306 = tpu.matmul %305, %196, %cst_74 {dimension_numbers = #tpu.dot_dimension_numbers<[1], [0], [0], [1], [0, 0, 1, 1], [], []>} : vector<2x32xf32>, vector<32x32xf32>, vector<2x32xf32> -> vector<2x32xf32>
    %307 = vector.broadcast %197 : vector<1x32xf32> to vector<2x32xf32>
    %308 = arith.addf %306, %307 : vector<2x32xf32>
    %309 = vector.shape_cast %308 : vector<2x32xf32> to vector<2x1x32xf32>
    %c0_75 = arith.constant 0 : index
    %c2 = arith.constant 2 : index
    %c0_76 = arith.constant 0 : index
    %310 = vector.load %arg21[%c0_75, %c2, %c0_76] : memref<2x8x32xf32, #tpu.memory_space<vmem>>, vector<2x1x32xf32>
    tpu.vector_store %arg21[%c0_75, %c2, %c0_76], %309 {strides = array<i32>} : memref<2x8x32xf32, #tpu.memory_space<vmem>>, vector<2x1x32xf32>,
    %311 = vector.extract_strided_slice %193 {offsets = [4, 128], sizes = [2, 128], strides = [1, 1]} : vector<16x256xf32> to vector<2x128xf32>
    %312 = vector.shape_cast %311 : vector<2x128xf32> to vector<2x1x128xf32>
    %c0_77 = arith.constant 0 : index
    %c2_78 = arith.constant 2 : index
    %c0_79 = arith.constant 0 : index
    %313 = vector.load %arg22[%c0_77, %c2_78, %c0_79] : memref<2x8x128xf32, #tpu.memory_space<vmem>>, vector<2x1x128xf32>
    tpu.vector_store %arg22[%c0_77, %c2_78, %c0_79], %312 {strides = array<i32>} : memref<2x8x128xf32, #tpu.memory_space<vmem>>, vector<2x1x128xf32>,
    %314 = vector.extract_strided_slice %193 {offsets = [6, 0], sizes = [2, 128], strides = [1, 1]} : vector<16x256xf32> to vector<2x128xf32>
    %cst_80 = arith.constant dense<0.000000e+00> : vector<2x128xf32>
    %315 = tpu.matmul %305, %194, %cst_80 {dimension_numbers = #tpu.dot_dimension_numbers<[1], [0], [0], [1], [0, 0, 1, 1], [], []>} : vector<2x32xf32>, vector<32x128xf32>, vector<2x128xf32> -> vector<2x128xf32>
    %316 = arith.addf %314, %315 : vector<2x128xf32>
    %317 = vector.broadcast %195 : vector<1x128xf32> to vector<2x128xf32>
    %318 = arith.addf %316, %317 : vector<2x128xf32>
    %319 = vector.extract_strided_slice %318 {offsets = [0, 0], sizes = [2, 32], strides = [1, 1]} : vector<2x128xf32> to vector<2x32xf32>
    %320 = arith.negf %319 : vector<2x32xf32>
    %321 = math.exp %320 : vector<2x32xf32>
    %cst_81 = arith.constant 1.000000e+00 : f32
    %322 = vector.broadcast %cst_81 : f32 to vector<2x32xf32>
    %323 = arith.addf %322, %321 : vector<2x32xf32>
    %324 = arith.divf %322, %323 : vector<2x32xf32>
    %325 = vector.extract_strided_slice %318 {offsets = [0, 32], sizes = [2, 32], strides = [1, 1]} : vector<2x128xf32> to vector<2x32xf32>
    %326 = arith.negf %325 : vector<2x32xf32>
    %327 = math.exp %326 : vector<2x32xf32>
    %cst_82 = arith.constant 1.000000e+00 : f32
    %328 = vector.broadcast %cst_82 : f32 to vector<2x32xf32>
    %329 = arith.addf %328, %327 : vector<2x32xf32>
    %330 = arith.divf %328, %329 : vector<2x32xf32>
    %331 = vector.extract_strided_slice %318 {offsets = [0, 64], sizes = [2, 32], strides = [1, 1]} : vector<2x128xf32> to vector<2x32xf32>
    %332 = math.tanh %331 : vector<2x32xf32>
    %333 = vector.extract_strided_slice %318 {offsets = [0, 96], sizes = [2, 32], strides = [1, 1]} : vector<2x128xf32> to vector<2x32xf32>
    %334 = arith.negf %333 : vector<2x32xf32>
    %335 = math.exp %334 : vector<2x32xf32>
    %cst_83 = arith.constant 1.000000e+00 : f32
    %336 = vector.broadcast %cst_83 : f32 to vector<2x32xf32>
    %337 = arith.addf %336, %335 : vector<2x32xf32>
    %338 = arith.divf %336, %337 : vector<2x32xf32>
    %339 = arith.mulf %330, %303 : vector<2x32xf32>
    %340 = arith.mulf %324, %332 : vector<2x32xf32>
    %341 = arith.addf %339, %340 : vector<2x32xf32>
    %342 = math.tanh %341 : vector<2x32xf32>
    %343 = arith.mulf %338, %342 : vector<2x32xf32>
    %cst_84 = arith.constant dense<0.000000e+00> : vector<2x32xf32>
    %344 = tpu.matmul %343, %196, %cst_84 {dimension_numbers = #tpu.dot_dimension_numbers<[1], [0], [0], [1], [0, 0, 1, 1], [], []>} : vector<2x32xf32>, vector<32x32xf32>, vector<2x32xf32> -> vector<2x32xf32>
    %345 = vector.broadcast %197 : vector<1x32xf32> to vector<2x32xf32>
    %346 = arith.addf %344, %345 : vector<2x32xf32>
    %347 = vector.shape_cast %346 : vector<2x32xf32> to vector<2x1x32xf32>
    %c0_85 = arith.constant 0 : index
    %c3 = arith.constant 3 : index
    %c0_86 = arith.constant 0 : index
    %348 = vector.load %arg21[%c0_85, %c3, %c0_86] : memref<2x8x32xf32, #tpu.memory_space<vmem>>, vector<2x1x32xf32>
    tpu.vector_store %arg21[%c0_85, %c3, %c0_86], %347 {strides = array<i32>} : memref<2x8x32xf32, #tpu.memory_space<vmem>>, vector<2x1x32xf32>,
    %349 = vector.extract_strided_slice %193 {offsets = [6, 128], sizes = [2, 128], strides = [1, 1]} : vector<16x256xf32> to vector<2x128xf32>
    %350 = vector.shape_cast %349 : vector<2x128xf32> to vector<2x1x128xf32>
    %c0_87 = arith.constant 0 : index
    %c3_88 = arith.constant 3 : index
    %c0_89 = arith.constant 0 : index
    %351 = vector.load %arg22[%c0_87, %c3_88, %c0_89] : memref<2x8x128xf32, #tpu.memory_space<vmem>>, vector<2x1x128xf32>
    tpu.vector_store %arg22[%c0_87, %c3_88, %c0_89], %350 {strides = array<i32>} : memref<2x8x128xf32, #tpu.memory_space<vmem>>, vector<2x1x128xf32>,
    %352 = vector.extract_strided_slice %193 {offsets = [8, 0], sizes = [2, 128], strides = [1, 1]} : vector<16x256xf32> to vector<2x128xf32>
    %cst_90 = arith.constant dense<0.000000e+00> : vector<2x128xf32>
    %353 = tpu.matmul %343, %194, %cst_90 {dimension_numbers = #tpu.dot_dimension_numbers<[1], [0], [0], [1], [0, 0, 1, 1], [], []>} : vector<2x32xf32>, vector<32x128xf32>, vector<2x128xf32> -> vector<2x128xf32>
    %354 = arith.addf %352, %353 : vector<2x128xf32>
    %355 = vector.broadcast %195 : vector<1x128xf32> to vector<2x128xf32>
    %356 = arith.addf %354, %355 : vector<2x128xf32>
    %357 = vector.extract_strided_slice %356 {offsets = [0, 0], sizes = [2, 32], strides = [1, 1]} : vector<2x128xf32> to vector<2x32xf32>
    %358 = arith.negf %357 : vector<2x32xf32>
    %359 = math.exp %358 : vector<2x32xf32>
    %cst_91 = arith.constant 1.000000e+00 : f32
    %360 = vector.broadcast %cst_91 : f32 to vector<2x32xf32>
    %361 = arith.addf %360, %359 : vector<2x32xf32>
    %362 = arith.divf %360, %361 : vector<2x32xf32>
    %363 = vector.extract_strided_slice %356 {offsets = [0, 32], sizes = [2, 32], strides = [1, 1]} : vector<2x128xf32> to vector<2x32xf32>
    %364 = arith.negf %363 : vector<2x32xf32>
    %365 = math.exp %364 : vector<2x32xf32>
    %cst_92 = arith.constant 1.000000e+00 : f32
    %366 = vector.broadcast %cst_92 : f32 to vector<2x32xf32>
    %367 = arith.addf %366, %365 : vector<2x32xf32>
    %368 = arith.divf %366, %367 : vector<2x32xf32>
    %369 = vector.extract_strided_slice %356 {offsets = [0, 64], sizes = [2, 32], strides = [1, 1]} : vector<2x128xf32> to vector<2x32xf32>
    %370 = math.tanh %369 : vector<2x32xf32>
    %371 = vector.extract_strided_slice %356 {offsets = [0, 96], sizes = [2, 32], strides = [1, 1]} : vector<2x128xf32> to vector<2x32xf32>
    %372 = arith.negf %371 : vector<2x32xf32>
    %373 = math.exp %372 : vector<2x32xf32>
    %cst_93 = arith.constant 1.000000e+00 : f32
    %374 = vector.broadcast %cst_93 : f32 to vector<2x32xf32>
    %375 = arith.addf %374, %373 : vector<2x32xf32>
    %376 = arith.divf %374, %375 : vector<2x32xf32>
    %377 = arith.mulf %368, %341 : vector<2x32xf32>
    %378 = arith.mulf %362, %370 : vector<2x32xf32>
    %379 = arith.addf %377, %378 : vector<2x32xf32>
    %380 = math.tanh %379 : vector<2x32xf32>
    %381 = arith.mulf %376, %380 : vector<2x32xf32>
    %cst_94 = arith.constant dense<0.000000e+00> : vector<2x32xf32>
    %382 = tpu.matmul %381, %196, %cst_94 {dimension_numbers = #tpu.dot_dimension_numbers<[1], [0], [0], [1], [0, 0, 1, 1], [], []>} : vector<2x32xf32>, vector<32x32xf32>, vector<2x32xf32> -> vector<2x32xf32>
    %383 = vector.broadcast %197 : vector<1x32xf32> to vector<2x32xf32>
    %384 = arith.addf %382, %383 : vector<2x32xf32>
    %385 = vector.shape_cast %384 : vector<2x32xf32> to vector<2x1x32xf32>
    %c0_95 = arith.constant 0 : index
    %c4 = arith.constant 4 : index
    %c0_96 = arith.constant 0 : index
    %386 = vector.load %arg21[%c0_95, %c4, %c0_96] : memref<2x8x32xf32, #tpu.memory_space<vmem>>, vector<2x1x32xf32>
    tpu.vector_store %arg21[%c0_95, %c4, %c0_96], %385 {strides = array<i32>} : memref<2x8x32xf32, #tpu.memory_space<vmem>>, vector<2x1x32xf32>,
    %387 = vector.extract_strided_slice %193 {offsets = [8, 128], sizes = [2, 128], strides = [1, 1]} : vector<16x256xf32> to vector<2x128xf32>
    %388 = vector.shape_cast %387 : vector<2x128xf32> to vector<2x1x128xf32>
    %c0_97 = arith.constant 0 : index
    %c4_98 = arith.constant 4 : index
    %c0_99 = arith.constant 0 : index
    %389 = vector.load %arg22[%c0_97, %c4_98, %c0_99] : memref<2x8x128xf32, #tpu.memory_space<vmem>>, vector<2x1x128xf32>
    tpu.vector_store %arg22[%c0_97, %c4_98, %c0_99], %388 {strides = array<i32>} : memref<2x8x128xf32, #tpu.memory_space<vmem>>, vector<2x1x128xf32>,
    %390 = vector.extract_strided_slice %193 {offsets = [10, 0], sizes = [2, 128], strides = [1, 1]} : vector<16x256xf32> to vector<2x128xf32>
    %cst_100 = arith.constant dense<0.000000e+00> : vector<2x128xf32>
    %391 = tpu.matmul %381, %194, %cst_100 {dimension_numbers = #tpu.dot_dimension_numbers<[1], [0], [0], [1], [0, 0, 1, 1], [], []>} : vector<2x32xf32>, vector<32x128xf32>, vector<2x128xf32> -> vector<2x128xf32>
    %392 = arith.addf %390, %391 : vector<2x128xf32>
    %393 = vector.broadcast %195 : vector<1x128xf32> to vector<2x128xf32>
    %394 = arith.addf %392, %393 : vector<2x128xf32>
    %395 = vector.extract_strided_slice %394 {offsets = [0, 0], sizes = [2, 32], strides = [1, 1]} : vector<2x128xf32> to vector<2x32xf32>
    %396 = arith.negf %395 : vector<2x32xf32>
    %397 = math.exp %396 : vector<2x32xf32>
    %cst_101 = arith.constant 1.000000e+00 : f32
    %398 = vector.broadcast %cst_101 : f32 to vector<2x32xf32>
    %399 = arith.addf %398, %397 : vector<2x32xf32>
    %400 = arith.divf %398, %399 : vector<2x32xf32>
    %401 = vector.extract_strided_slice %394 {offsets = [0, 32], sizes = [2, 32], strides = [1, 1]} : vector<2x128xf32> to vector<2x32xf32>
    %402 = arith.negf %401 : vector<2x32xf32>
    %403 = math.exp %402 : vector<2x32xf32>
    %cst_102 = arith.constant 1.000000e+00 : f32
    %404 = vector.broadcast %cst_102 : f32 to vector<2x32xf32>
    %405 = arith.addf %404, %403 : vector<2x32xf32>
    %406 = arith.divf %404, %405 : vector<2x32xf32>
    %407 = vector.extract_strided_slice %394 {offsets = [0, 64], sizes = [2, 32], strides = [1, 1]} : vector<2x128xf32> to vector<2x32xf32>
    %408 = math.tanh %407 : vector<2x32xf32>
    %409 = vector.extract_strided_slice %394 {offsets = [0, 96], sizes = [2, 32], strides = [1, 1]} : vector<2x128xf32> to vector<2x32xf32>
    %410 = arith.negf %409 : vector<2x32xf32>
    %411 = math.exp %410 : vector<2x32xf32>
    %cst_103 = arith.constant 1.000000e+00 : f32
    %412 = vector.broadcast %cst_103 : f32 to vector<2x32xf32>
    %413 = arith.addf %412, %411 : vector<2x32xf32>
    %414 = arith.divf %412, %413 : vector<2x32xf32>
    %415 = arith.mulf %406, %379 : vector<2x32xf32>
    %416 = arith.mulf %400, %408 : vector<2x32xf32>
    %417 = arith.addf %415, %416 : vector<2x32xf32>
    %418 = math.tanh %417 : vector<2x32xf32>
    %419 = arith.mulf %414, %418 : vector<2x32xf32>
    %cst_104 = arith.constant dense<0.000000e+00> : vector<2x32xf32>
    %420 = tpu.matmul %419, %196, %cst_104 {dimension_numbers = #tpu.dot_dimension_numbers<[1], [0], [0], [1], [0, 0, 1, 1], [], []>} : vector<2x32xf32>, vector<32x32xf32>, vector<2x32xf32> -> vector<2x32xf32>
    %421 = vector.broadcast %197 : vector<1x32xf32> to vector<2x32xf32>
    %422 = arith.addf %420, %421 : vector<2x32xf32>
    %423 = vector.shape_cast %422 : vector<2x32xf32> to vector<2x1x32xf32>
    %c0_105 = arith.constant 0 : index
    %c5 = arith.constant 5 : index
    %c0_106 = arith.constant 0 : index
    %424 = vector.load %arg21[%c0_105, %c5, %c0_106] : memref<2x8x32xf32, #tpu.memory_space<vmem>>, vector<2x1x32xf32>
    tpu.vector_store %arg21[%c0_105, %c5, %c0_106], %423 {strides = array<i32>} : memref<2x8x32xf32, #tpu.memory_space<vmem>>, vector<2x1x32xf32>,
    %425 = vector.extract_strided_slice %193 {offsets = [10, 128], sizes = [2, 128], strides = [1, 1]} : vector<16x256xf32> to vector<2x128xf32>
    %426 = vector.shape_cast %425 : vector<2x128xf32> to vector<2x1x128xf32>
    %c0_107 = arith.constant 0 : index
    %c5_108 = arith.constant 5 : index
    %c0_109 = arith.constant 0 : index
    %427 = vector.load %arg22[%c0_107, %c5_108, %c0_109] : memref<2x8x128xf32, #tpu.memory_space<vmem>>, vector<2x1x128xf32>
    tpu.vector_store %arg22[%c0_107, %c5_108, %c0_109], %426 {strides = array<i32>} : memref<2x8x128xf32, #tpu.memory_space<vmem>>, vector<2x1x128xf32>,
    %428 = vector.extract_strided_slice %193 {offsets = [12, 0], sizes = [2, 128], strides = [1, 1]} : vector<16x256xf32> to vector<2x128xf32>
    %cst_110 = arith.constant dense<0.000000e+00> : vector<2x128xf32>
    %429 = tpu.matmul %419, %194, %cst_110 {dimension_numbers = #tpu.dot_dimension_numbers<[1], [0], [0], [1], [0, 0, 1, 1], [], []>} : vector<2x32xf32>, vector<32x128xf32>, vector<2x128xf32> -> vector<2x128xf32>
    %430 = arith.addf %428, %429 : vector<2x128xf32>
    %431 = vector.broadcast %195 : vector<1x128xf32> to vector<2x128xf32>
    %432 = arith.addf %430, %431 : vector<2x128xf32>
    %433 = vector.extract_strided_slice %432 {offsets = [0, 0], sizes = [2, 32], strides = [1, 1]} : vector<2x128xf32> to vector<2x32xf32>
    %434 = arith.negf %433 : vector<2x32xf32>
    %435 = math.exp %434 : vector<2x32xf32>
    %cst_111 = arith.constant 1.000000e+00 : f32
    %436 = vector.broadcast %cst_111 : f32 to vector<2x32xf32>
    %437 = arith.addf %436, %435 : vector<2x32xf32>
    %438 = arith.divf %436, %437 : vector<2x32xf32>
    %439 = vector.extract_strided_slice %432 {offsets = [0, 32], sizes = [2, 32], strides = [1, 1]} : vector<2x128xf32> to vector<2x32xf32>
    %440 = arith.negf %439 : vector<2x32xf32>
    %441 = math.exp %440 : vector<2x32xf32>
    %cst_112 = arith.constant 1.000000e+00 : f32
    %442 = vector.broadcast %cst_112 : f32 to vector<2x32xf32>
    %443 = arith.addf %442, %441 : vector<2x32xf32>
    %444 = arith.divf %442, %443 : vector<2x32xf32>
    %445 = vector.extract_strided_slice %432 {offsets = [0, 64], sizes = [2, 32], strides = [1, 1]} : vector<2x128xf32> to vector<2x32xf32>
    %446 = math.tanh %445 : vector<2x32xf32>
    %447 = vector.extract_strided_slice %432 {offsets = [0, 96], sizes = [2, 32], strides = [1, 1]} : vector<2x128xf32> to vector<2x32xf32>
    %448 = arith.negf %447 : vector<2x32xf32>
    %449 = math.exp %448 : vector<2x32xf32>
    %cst_113 = arith.constant 1.000000e+00 : f32
    %450 = vector.broadcast %cst_113 : f32 to vector<2x32xf32>
    %451 = arith.addf %450, %449 : vector<2x32xf32>
    %452 = arith.divf %450, %451 : vector<2x32xf32>
    %453 = arith.mulf %444, %417 : vector<2x32xf32>
    %454 = arith.mulf %438, %446 : vector<2x32xf32>
    %455 = arith.addf %453, %454 : vector<2x32xf32>
    %456 = math.tanh %455 : vector<2x32xf32>
    %457 = arith.mulf %452, %456 : vector<2x32xf32>
    %cst_114 = arith.constant dense<0.000000e+00> : vector<2x32xf32>
    %458 = tpu.matmul %457, %196, %cst_114 {dimension_numbers = #tpu.dot_dimension_numbers<[1], [0], [0], [1], [0, 0, 1, 1], [], []>} : vector<2x32xf32>, vector<32x32xf32>, vector<2x32xf32> -> vector<2x32xf32>
    %459 = vector.broadcast %197 : vector<1x32xf32> to vector<2x32xf32>
    %460 = arith.addf %458, %459 : vector<2x32xf32>
    %461 = vector.shape_cast %460 : vector<2x32xf32> to vector<2x1x32xf32>
    %c0_115 = arith.constant 0 : index
    %c6 = arith.constant 6 : index
    %c0_116 = arith.constant 0 : index
    %462 = vector.load %arg21[%c0_115, %c6, %c0_116] : memref<2x8x32xf32, #tpu.memory_space<vmem>>, vector<2x1x32xf32>
    tpu.vector_store %arg21[%c0_115, %c6, %c0_116], %461 {strides = array<i32>} : memref<2x8x32xf32, #tpu.memory_space<vmem>>, vector<2x1x32xf32>,
    %463 = vector.extract_strided_slice %193 {offsets = [12, 128], sizes = [2, 128], strides = [1, 1]} : vector<16x256xf32> to vector<2x128xf32>
    %464 = vector.shape_cast %463 : vector<2x128xf32> to vector<2x1x128xf32>
    %c0_117 = arith.constant 0 : index
    %c6_118 = arith.constant 6 : index
    %c0_119 = arith.constant 0 : index
    %465 = vector.load %arg22[%c0_117, %c6_118, %c0_119] : memref<2x8x128xf32, #tpu.memory_space<vmem>>, vector<2x1x128xf32>
    tpu.vector_store %arg22[%c0_117, %c6_118, %c0_119], %464 {strides = array<i32>} : memref<2x8x128xf32, #tpu.memory_space<vmem>>, vector<2x1x128xf32>,
    %466 = vector.extract_strided_slice %193 {offsets = [14, 0], sizes = [2, 128], strides = [1, 1]} : vector<16x256xf32> to vector<2x128xf32>
    %cst_120 = arith.constant dense<0.000000e+00> : vector<2x128xf32>
    %467 = tpu.matmul %457, %194, %cst_120 {dimension_numbers = #tpu.dot_dimension_numbers<[1], [0], [0], [1], [0, 0, 1, 1], [], []>} : vector<2x32xf32>, vector<32x128xf32>, vector<2x128xf32> -> vector<2x128xf32>
    %468 = arith.addf %466, %467 : vector<2x128xf32>
    %469 = vector.broadcast %195 : vector<1x128xf32> to vector<2x128xf32>
    %470 = arith.addf %468, %469 : vector<2x128xf32>
    %471 = vector.extract_strided_slice %470 {offsets = [0, 0], sizes = [2, 32], strides = [1, 1]} : vector<2x128xf32> to vector<2x32xf32>
    %472 = arith.negf %471 : vector<2x32xf32>
    %473 = math.exp %472 : vector<2x32xf32>
    %cst_121 = arith.constant 1.000000e+00 : f32
    %474 = vector.broadcast %cst_121 : f32 to vector<2x32xf32>
    %475 = arith.addf %474, %473 : vector<2x32xf32>
    %476 = arith.divf %474, %475 : vector<2x32xf32>
    %477 = vector.extract_strided_slice %470 {offsets = [0, 32], sizes = [2, 32], strides = [1, 1]} : vector<2x128xf32> to vector<2x32xf32>
    %478 = arith.negf %477 : vector<2x32xf32>
    %479 = math.exp %478 : vector<2x32xf32>
    %cst_122 = arith.constant 1.000000e+00 : f32
    %480 = vector.broadcast %cst_122 : f32 to vector<2x32xf32>
    %481 = arith.addf %480, %479 : vector<2x32xf32>
    %482 = arith.divf %480, %481 : vector<2x32xf32>
    %483 = vector.extract_strided_slice %470 {offsets = [0, 64], sizes = [2, 32], strides = [1, 1]} : vector<2x128xf32> to vector<2x32xf32>
    %484 = math.tanh %483 : vector<2x32xf32>
    %485 = vector.extract_strided_slice %470 {offsets = [0, 96], sizes = [2, 32], strides = [1, 1]} : vector<2x128xf32> to vector<2x32xf32>
    %486 = arith.negf %485 : vector<2x32xf32>
    %487 = math.exp %486 : vector<2x32xf32>
    %cst_123 = arith.constant 1.000000e+00 : f32
    %488 = vector.broadcast %cst_123 : f32 to vector<2x32xf32>
    %489 = arith.addf %488, %487 : vector<2x32xf32>
    %490 = arith.divf %488, %489 : vector<2x32xf32>
    %491 = arith.mulf %482, %455 : vector<2x32xf32>
    %492 = arith.mulf %476, %484 : vector<2x32xf32>
    %493 = arith.addf %491, %492 : vector<2x32xf32>
    %494 = math.tanh %493 : vector<2x32xf32>
    %495 = arith.mulf %490, %494 : vector<2x32xf32>
    %cst_124 = arith.constant dense<0.000000e+00> : vector<2x32xf32>
    %496 = tpu.matmul %495, %196, %cst_124 {dimension_numbers = #tpu.dot_dimension_numbers<[1], [0], [0], [1], [0, 0, 1, 1], [], []>} : vector<2x32xf32>, vector<32x32xf32>, vector<2x32xf32> -> vector<2x32xf32>
    %497 = vector.broadcast %197 : vector<1x32xf32> to vector<2x32xf32>
    %498 = arith.addf %496, %497 : vector<2x32xf32>
    %499 = vector.shape_cast %498 : vector<2x32xf32> to vector<2x1x32xf32>
    %c0_125 = arith.constant 0 : index
    %c7 = arith.constant 7 : index
    %c0_126 = arith.constant 0 : index
    %500 = vector.load %arg21[%c0_125, %c7, %c0_126] : memref<2x8x32xf32, #tpu.memory_space<vmem>>, vector<2x1x32xf32>
    tpu.vector_store %arg21[%c0_125, %c7, %c0_126], %499 {strides = array<i32>} : memref<2x8x32xf32, #tpu.memory_space<vmem>>, vector<2x1x32xf32>,
    %501 = vector.extract_strided_slice %193 {offsets = [14, 128], sizes = [2, 128], strides = [1, 1]} : vector<16x256xf32> to vector<2x128xf32>
    %502 = vector.shape_cast %501 : vector<2x128xf32> to vector<2x1x128xf32>
    %c0_127 = arith.constant 0 : index
    %c7_128 = arith.constant 7 : index
    %c0_129 = arith.constant 0 : index
    %503 = vector.load %arg22[%c0_127, %c7_128, %c0_129] : memref<2x8x128xf32, #tpu.memory_space<vmem>>, vector<2x1x128xf32>
    tpu.vector_store %arg22[%c0_127, %c7_128, %c0_129], %502 {strides = array<i32>} : memref<2x8x128xf32, #tpu.memory_space<vmem>>, vector<2x1x128xf32>,
    %c0_130 = arith.constant 0 : index
    %c0_131 = arith.constant 0 : index
    %c0_132 = arith.constant 0 : index
    %504 = vector.load %arg21[%c0_130, %c0_131, %c0_132] : memref<2x8x32xf32, #tpu.memory_space<vmem>>, vector<2x8x32xf32>
    %c0_133 = arith.constant 0 : index
    %c0_134 = arith.constant 0 : index
    %c0_135 = arith.constant 0 : index
    %505 = vector.load %arg22[%c0_133, %c0_134, %c0_135] : memref<2x8x128xf32, #tpu.memory_space<vmem>>, vector<2x8x128xf32>
    %c0_136 = arith.constant 0 : index
    %c0_137 = arith.constant 0 : index
    %506 = vector.load %arg11[%c0_136, %c0_137] : memref<32x128xf32, #tpu.memory_space<vmem>>, vector<32x128xf32>
    %c0_138 = arith.constant 0 : index
    %c0_139 = arith.constant 0 : index
    %507 = vector.load %arg12[%c0_138, %c0_139] : memref<1x128xf32, #tpu.memory_space<vmem>>, vector<1x128xf32>
    %c0_140 = arith.constant 0 : index
    %c0_141 = arith.constant 0 : index
    %508 = vector.load %arg13[%c0_140, %c0_141] : memref<32x32xf32, #tpu.memory_space<vmem>>, vector<32x32xf32>
    %c0_142 = arith.constant 0 : index
    %c0_143 = arith.constant 0 : index
    %509 = vector.load %arg14[%c0_142, %c0_143] : memref<1x32xf32, #tpu.memory_space<vmem>>, vector<1x32xf32>
    %c0_144 = arith.constant 0 : index
    %c0_145 = arith.constant 0 : index
    %510 = vector.load %arg15[%c0_144, %c0_145] : memref<1x32xf32, #tpu.memory_space<vmem>>, vector<1x32xf32>
    %511 = vector.shape_cast %510 : vector<1x32xf32> to vector<1x1x32xf32>
    %c0_146 = arith.constant 0 : index
    %c0_147 = arith.constant 0 : index
    %512 = vector.load %arg16[%c0_146, %c0_147] : memref<64x32xf32, #tpu.memory_space<vmem>>, vector<64x32xf32>
    %c0_148 = arith.constant 0 : index
    %c0_149 = arith.constant 0 : index
    %513 = vector.load %arg17[%c0_148, %c0_149] : memref<1x32xf32, #tpu.memory_space<vmem>>, vector<1x32xf32>
    %c0_150 = arith.constant 0 : index
    %c0_151 = arith.constant 0 : index
    %514 = vector.load %arg18[%c0_150, %c0_151] : memref<1x32xf32, #tpu.memory_space<vmem>>, vector<1x32xf32>
    %c0_152 = arith.constant 0 : index
    %c0_153 = arith.constant 0 : index
    %515 = vector.load %arg5[%c0_152, %c0_153] : memref<32x256xf32, #tpu.memory_space<vmem>>, vector<32x256xf32>
    %516 = vector.extract_strided_slice %515 {offsets = [0, 128], sizes = [32, 128], strides = [1, 1]} : vector<32x256xf32> to vector<32x128xf32>
    %cst_154 = arith.constant dense<0.000000e+00> : vector<1x128xf32>
    %517 = tpu.matmul %514, %516, %cst_154 {dimension_numbers = #tpu.dot_dimension_numbers<[1], [0], [0], [1], [0, 0, 1, 1], [], []>} : vector<1x32xf32>, vector<32x128xf32>, vector<1x128xf32> -> vector<1x128xf32>
    %c0_155 = arith.constant 0 : index
    %c0_156 = arith.constant 0 : index
    %518 = vector.load %arg6[%c0_155, %c0_156] : memref<1x256xf32, #tpu.memory_space<vmem>>, vector<1x256xf32>
    %519 = vector.extract_strided_slice %518 {offsets = [0, 128], sizes = [1, 128], strides = [1, 1]} : vector<1x256xf32> to vector<1x128xf32>
    %520 = arith.addf %517, %519 : vector<1x128xf32>
    %521 = vector.shape_cast %520 : vector<1x128xf32> to vector<1x128xf32>
    %522 = vector.broadcast %521 : vector<1x128xf32> to vector<2x128xf32>
    %cst_157 = arith.constant 1.000000e+00 : f32
    %523 = vector.broadcast %cst_157 : f32 to vector<2x8xf32>
    %524 = tpu.iota {dimensions = array<i32: 1>} : vector<2x8xi32>
    %cst_158 = arith.constant dense<0.000000e+00> : vector<2x128xf32>
    %525 = tpu.matmul %495, %506, %cst_158 {dimension_numbers = #tpu.dot_dimension_numbers<[1], [0], [0], [1], [0, 0, 1, 1], [], []>} : vector<2x32xf32>, vector<32x128xf32>, vector<2x128xf32> -> vector<2x128xf32>
    %526 = arith.addf %522, %525 : vector<2x128xf32>
    %527 = vector.broadcast %507 : vector<1x128xf32> to vector<2x128xf32>
    %528 = arith.addf %526, %527 : vector<2x128xf32>
    %529 = vector.extract_strided_slice %528 {offsets = [0, 0], sizes = [2, 32], strides = [1, 1]} : vector<2x128xf32> to vector<2x32xf32>
    %530 = arith.negf %529 : vector<2x32xf32>
    %531 = math.exp %530 : vector<2x32xf32>
    %cst_159 = arith.constant 1.000000e+00 : f32
    %532 = vector.broadcast %cst_159 : f32 to vector<2x32xf32>
    %533 = arith.addf %532, %531 : vector<2x32xf32>
    %534 = arith.divf %532, %533 : vector<2x32xf32>
    %535 = vector.extract_strided_slice %528 {offsets = [0, 32], sizes = [2, 32], strides = [1, 1]} : vector<2x128xf32> to vector<2x32xf32>
    %536 = arith.negf %535 : vector<2x32xf32>
    %537 = math.exp %536 : vector<2x32xf32>
    %cst_160 = arith.constant 1.000000e+00 : f32
    %538 = vector.broadcast %cst_160 : f32 to vector<2x32xf32>
    %539 = arith.addf %538, %537 : vector<2x32xf32>
    %540 = arith.divf %538, %539 : vector<2x32xf32>
    %541 = vector.extract_strided_slice %528 {offsets = [0, 64], sizes = [2, 32], strides = [1, 1]} : vector<2x128xf32> to vector<2x32xf32>
    %542 = math.tanh %541 : vector<2x32xf32>
    %543 = vector.extract_strided_slice %528 {offsets = [0, 96], sizes = [2, 32], strides = [1, 1]} : vector<2x128xf32> to vector<2x32xf32>
    %544 = arith.negf %543 : vector<2x32xf32>
    %545 = math.exp %544 : vector<2x32xf32>
    %cst_161 = arith.constant 1.000000e+00 : f32
    %546 = vector.broadcast %cst_161 : f32 to vector<2x32xf32>
    %547 = arith.addf %546, %545 : vector<2x32xf32>
    %548 = arith.divf %546, %547 : vector<2x32xf32>
    %549 = arith.mulf %540, %493 : vector<2x32xf32>
    %550 = arith.mulf %534, %542 : vector<2x32xf32>
    %551 = arith.addf %549, %550 : vector<2x32xf32>
    %552 = math.tanh %551 : vector<2x32xf32>
    %553 = arith.mulf %548, %552 : vector<2x32xf32>
    %cst_162 = arith.constant dense<0.000000e+00> : vector<2x32xf32>
    %554 = tpu.matmul %553, %508, %cst_162 {dimension_numbers = #tpu.dot_dimension_numbers<[1], [0], [0], [1], [0, 0, 1, 1], [], []>} : vector<2x32xf32>, vector<32x32xf32>, vector<2x32xf32> -> vector<2x32xf32>
    %555 = vector.broadcast %509 : vector<1x32xf32> to vector<2x32xf32>
    %556 = arith.addf %554, %555 : vector<2x32xf32>
    %557 = vector.shape_cast %556 : vector<2x32xf32> to vector<2x1x32xf32>
    %558 = vector.broadcast %557 : vector<2x1x32xf32> to vector<2x8x32xf32>
    %559 = arith.addf %558, %504 : vector<2x8x32xf32>
    %560 = math.tanh %559 : vector<2x8x32xf32>
    %561 = vector.broadcast %511 : vector<1x1x32xf32> to vector<2x8x32xf32>
    %562 = arith.mulf %560, %561 : vector<2x8x32xf32>
    %cst_163 = arith.constant dense<0.000000e+00> : vector<2x8xf32>
    %563 = vector.multi_reduction <add>, %562, %cst_163 [2] : vector<2x8x32xf32> to vector<2x8xf32>
    %cst_164 = arith.constant 0.000000e+00 : f32
    %564 = vector.broadcast %cst_164 : f32 to vector<2x8xf32>
    %565 = arith.cmpf ogt, %523, %564 : vector<2x8xf32>
    %cst_165 = arith.constant -1.000000e+30 : f32
    %566 = vector.broadcast %cst_165 : f32 to vector<2x8xf32>
    %567 = arith.select %565, %563, %566 : vector<2x8xi1>, vector<2x8xf32>
    %cst_166 = arith.constant dense<0xFF800000> : vector<2xf32>
    %568 = vector.multi_reduction <maximumf>, %567, %cst_166 [1] : vector<2x8xf32> to vector<2xf32>
    %569 = vector.shape_cast %568 : vector<2xf32> to vector<2x1xf32>
    %570 = vector.broadcast %569 : vector<2x1xf32> to vector<2x8xf32>
    %571 = arith.subf %567, %570 : vector<2x8xf32>
    %572 = math.exp %571 : vector<2x8xf32>
    %cst_167 = arith.constant dense<0.000000e+00> : vector<2xf32>
    %573 = vector.multi_reduction <add>, %572, %cst_167 [1] : vector<2x8xf32> to vector<2xf32>
    %574 = vector.shape_cast %573 : vector<2xf32> to vector<2x1xf32>
    %575 = vector.broadcast %574 : vector<2x1xf32> to vector<2x8xf32>
    %576 = arith.divf %572, %575 : vector<2x8xf32>
    %577 = vector.shape_cast %576 : vector<2x8xf32> to vector<2x8x1xf32>
    %578 = vector.broadcast %577 : vector<2x8x1xf32> to vector<2x8x32xf32>
    %579 = arith.mulf %504, %578 : vector<2x8x32xf32>
    %cst_168 = arith.constant dense<0.000000e+00> : vector<2x32xf32>
    %580 = vector.multi_reduction <add>, %579, %cst_168 [1] : vector<2x8x32xf32> to vector<2x32xf32>
    %581 = tpu.concatenate %580, %553 in 1 : vector<2x32xf32>, vector<2x32xf32> -> vector<2x64xf32>
    %cst_169 = arith.constant dense<0.000000e+00> : vector<2x32xf32>
    %582 = tpu.matmul %581, %512, %cst_169 {dimension_numbers = #tpu.dot_dimension_numbers<[1], [0], [0], [1], [0, 0, 1, 1], [], []>} : vector<2x64xf32>, vector<64x32xf32>, vector<2x32xf32> -> vector<2x32xf32>
    %583 = vector.broadcast %513 : vector<1x32xf32> to vector<2x32xf32>
    %584 = arith.addf %582, %583 : vector<2x32xf32>
    %585 = math.tanh %584 : vector<2x32xf32>
    %586 = arith.mulf %576, %523 : vector<2x8xf32>
    %cst_170 = arith.constant dense<0xFF800000> : vector<2xf32>
    %587 = vector.multi_reduction <maximumf>, %586, %cst_170 [1] : vector<2x8xf32> to vector<2xf32>
    %588 = vector.shape_cast %587 : vector<2xf32> to vector<2x1xf32>
    %589 = vector.broadcast %588 : vector<2x1xf32> to vector<2x8xf32>
    %590 = arith.cmpf oeq, %586, %589 : vector<2x8xf32>
    %c8_i32 = arith.constant 8 : i32
    %591 = vector.broadcast %c8_i32 : i32 to vector<2x8xi32>
    %592 = arith.select %590, %524, %591 : vector<2x8xi1>, vector<2x8xi32>
    %cst_171 = arith.constant dense<2147483647> : vector<2xi32>
    %593 = vector.multi_reduction <minsi>, %592, %cst_171 [1] : vector<2x8xi32> to vector<2xi32>
    %594 = vector.shape_cast %593 : vector<2xi32> to vector<2x1xi32>
    %595 = vector.broadcast %594 : vector<2x1xi32> to vector<2x8xi32>
    %596 = arith.cmpi eq, %524, %595 : vector<2x8xi32>
    %597 = arith.extui %596 : vector<2x8xi1> to vector<2x8xi32>
    %598 = arith.sitofp %597 : vector<2x8xi32> to vector<2x8xf32>
    %cst_172 = arith.constant 1.000000e+00 : f32
    %599 = vector.broadcast %cst_172 : f32 to vector<2x8xf32>
    %600 = arith.subf %599, %598 : vector<2x8xf32>
    %601 = arith.mulf %523, %600 : vector<2x8xf32>
    %602 = vector.shape_cast %598 : vector<2x8xf32> to vector<2x8x1xf32>
    %603 = vector.broadcast %602 : vector<2x8x1xf32> to vector<2x8x128xf32>
    %604 = arith.mulf %505, %603 : vector<2x8x128xf32>
    %cst_173 = arith.constant dense<0.000000e+00> : vector<2x128xf32>
    %605 = vector.multi_reduction <add>, %604, %cst_173 [1] : vector<2x8x128xf32> to vector<2x128xf32>
    %606 = vector.shape_cast %576 : vector<2x8xf32> to vector<2x1x8xf32>
    %c0_174 = arith.constant 0 : index
    %c0_175 = arith.constant 0 : index
    %c0_176 = arith.constant 0 : index
    %607 = vector.load %arg19[%c0_174, %c0_175, %c0_176] : memref<2x8x8xf32, #tpu.memory_space<vmem>>, vector<2x1x8xf32>
    tpu.vector_store %arg19[%c0_174, %c0_175, %c0_176], %606 {strides = array<i32>} : memref<2x8x8xf32, #tpu.memory_space<vmem>>, vector<2x1x8xf32>,
    %c0_177 = arith.constant 0 : index
    %c0_178 = arith.constant 0 : index
    %608 = vector.load %arg20[%c0_177, %c0_178] : memref<2x8xi32, #tpu.memory_space<vmem>>, vector<2x1xi32>
    tpu.vector_store %arg20[%c0_177, %c0_178], %594 {strides = array<i32>} : memref<2x8xi32, #tpu.memory_space<vmem>>, vector<2x1xi32>,
    %cst_179 = arith.constant dense<0.000000e+00> : vector<2x128xf32>
    %609 = tpu.matmul %585, %506, %cst_179 {dimension_numbers = #tpu.dot_dimension_numbers<[1], [0], [0], [1], [0, 0, 1, 1], [], []>} : vector<2x32xf32>, vector<32x128xf32>, vector<2x128xf32> -> vector<2x128xf32>
    %610 = arith.addf %605, %609 : vector<2x128xf32>
    %611 = vector.broadcast %507 : vector<1x128xf32> to vector<2x128xf32>
    %612 = arith.addf %610, %611 : vector<2x128xf32>
    %613 = vector.extract_strided_slice %612 {offsets = [0, 0], sizes = [2, 32], strides = [1, 1]} : vector<2x128xf32> to vector<2x32xf32>
    %614 = arith.negf %613 : vector<2x32xf32>
    %615 = math.exp %614 : vector<2x32xf32>
    %cst_180 = arith.constant 1.000000e+00 : f32
    %616 = vector.broadcast %cst_180 : f32 to vector<2x32xf32>
    %617 = arith.addf %616, %615 : vector<2x32xf32>
    %618 = arith.divf %616, %617 : vector<2x32xf32>
    %619 = vector.extract_strided_slice %612 {offsets = [0, 32], sizes = [2, 32], strides = [1, 1]} : vector<2x128xf32> to vector<2x32xf32>
    %620 = arith.negf %619 : vector<2x32xf32>
    %621 = math.exp %620 : vector<2x32xf32>
    %cst_181 = arith.constant 1.000000e+00 : f32
    %622 = vector.broadcast %cst_181 : f32 to vector<2x32xf32>
    %623 = arith.addf %622, %621 : vector<2x32xf32>
    %624 = arith.divf %622, %623 : vector<2x32xf32>
    %625 = vector.extract_strided_slice %612 {offsets = [0, 64], sizes = [2, 32], strides = [1, 1]} : vector<2x128xf32> to vector<2x32xf32>
    %626 = math.tanh %625 : vector<2x32xf32>
    %627 = vector.extract_strided_slice %612 {offsets = [0, 96], sizes = [2, 32], strides = [1, 1]} : vector<2x128xf32> to vector<2x32xf32>
    %628 = arith.negf %627 : vector<2x32xf32>
    %629 = math.exp %628 : vector<2x32xf32>
    %cst_182 = arith.constant 1.000000e+00 : f32
    %630 = vector.broadcast %cst_182 : f32 to vector<2x32xf32>
    %631 = arith.addf %630, %629 : vector<2x32xf32>
    %632 = arith.divf %630, %631 : vector<2x32xf32>
    %633 = arith.mulf %624, %551 : vector<2x32xf32>
    %634 = arith.mulf %618, %626 : vector<2x32xf32>
    %635 = arith.addf %633, %634 : vector<2x32xf32>
    %636 = math.tanh %635 : vector<2x32xf32>
    %637 = arith.mulf %632, %636 : vector<2x32xf32>
    %cst_183 = arith.constant dense<0.000000e+00> : vector<2x32xf32>
    %638 = tpu.matmul %637, %508, %cst_183 {dimension_numbers = #tpu.dot_dimension_numbers<[1], [0], [0], [1], [0, 0, 1, 1], [], []>} : vector<2x32xf32>, vector<32x32xf32>, vector<2x32xf32> -> vector<2x32xf32>
    %639 = vector.broadcast %509 : vector<1x32xf32> to vector<2x32xf32>
    %640 = arith.addf %638, %639 : vector<2x32xf32>
    %641 = vector.shape_cast %640 : vector<2x32xf32> to vector<2x1x32xf32>
    %642 = vector.broadcast %641 : vector<2x1x32xf32> to vector<2x8x32xf32>
    %643 = arith.addf %642, %504 : vector<2x8x32xf32>
    %644 = math.tanh %643 : vector<2x8x32xf32>
    %645 = vector.broadcast %511 : vector<1x1x32xf32> to vector<2x8x32xf32>
    %646 = arith.mulf %644, %645 : vector<2x8x32xf32>
    %cst_184 = arith.constant dense<0.000000e+00> : vector<2x8xf32>
    %647 = vector.multi_reduction <add>, %646, %cst_184 [2] : vector<2x8x32xf32> to vector<2x8xf32>
    %cst_185 = arith.constant 0.000000e+00 : f32
    %648 = vector.broadcast %cst_185 : f32 to vector<2x8xf32>
    %649 = arith.cmpf ogt, %601, %648 : vector<2x8xf32>
    %cst_186 = arith.constant -1.000000e+30 : f32
    %650 = vector.broadcast %cst_186 : f32 to vector<2x8xf32>
    %651 = arith.select %649, %647, %650 : vector<2x8xi1>, vector<2x8xf32>
    %cst_187 = arith.constant dense<0xFF800000> : vector<2xf32>
    %652 = vector.multi_reduction <maximumf>, %651, %cst_187 [1] : vector<2x8xf32> to vector<2xf32>
    %653 = vector.shape_cast %652 : vector<2xf32> to vector<2x1xf32>
    %654 = vector.broadcast %653 : vector<2x1xf32> to vector<2x8xf32>
    %655 = arith.subf %651, %654 : vector<2x8xf32>
    %656 = math.exp %655 : vector<2x8xf32>
    %cst_188 = arith.constant dense<0.000000e+00> : vector<2xf32>
    %657 = vector.multi_reduction <add>, %656, %cst_188 [1] : vector<2x8xf32> to vector<2xf32>
    %658 = vector.shape_cast %657 : vector<2xf32> to vector<2x1xf32>
    %659 = vector.broadcast %658 : vector<2x1xf32> to vector<2x8xf32>
    %660 = arith.divf %656, %659 : vector<2x8xf32>
    %661 = vector.shape_cast %660 : vector<2x8xf32> to vector<2x8x1xf32>
    %662 = vector.broadcast %661 : vector<2x8x1xf32> to vector<2x8x32xf32>
    %663 = arith.mulf %504, %662 : vector<2x8x32xf32>
    %cst_189 = arith.constant dense<0.000000e+00> : vector<2x32xf32>
    %664 = vector.multi_reduction <add>, %663, %cst_189 [1] : vector<2x8x32xf32> to vector<2x32xf32>
    %665 = tpu.concatenate %664, %637 in 1 : vector<2x32xf32>, vector<2x32xf32> -> vector<2x64xf32>
    %cst_190 = arith.constant dense<0.000000e+00> : vector<2x32xf32>
    %666 = tpu.matmul %665, %512, %cst_190 {dimension_numbers = #tpu.dot_dimension_numbers<[1], [0], [0], [1], [0, 0, 1, 1], [], []>} : vector<2x64xf32>, vector<64x32xf32>, vector<2x32xf32> -> vector<2x32xf32>
    %667 = vector.broadcast %513 : vector<1x32xf32> to vector<2x32xf32>
    %668 = arith.addf %666, %667 : vector<2x32xf32>
    %669 = math.tanh %668 : vector<2x32xf32>
    %670 = arith.mulf %660, %601 : vector<2x8xf32>
    %cst_191 = arith.constant dense<0xFF800000> : vector<2xf32>
    %671 = vector.multi_reduction <maximumf>, %670, %cst_191 [1] : vector<2x8xf32> to vector<2xf32>
    %672 = vector.shape_cast %671 : vector<2xf32> to vector<2x1xf32>
    %673 = vector.broadcast %672 : vector<2x1xf32> to vector<2x8xf32>
    %674 = arith.cmpf oeq, %670, %673 : vector<2x8xf32>
    %c8_i32_192 = arith.constant 8 : i32
    %675 = vector.broadcast %c8_i32_192 : i32 to vector<2x8xi32>
    %676 = arith.select %674, %524, %675 : vector<2x8xi1>, vector<2x8xi32>
    %cst_193 = arith.constant dense<2147483647> : vector<2xi32>
    %677 = vector.multi_reduction <minsi>, %676, %cst_193 [1] : vector<2x8xi32> to vector<2xi32>
    %678 = vector.shape_cast %677 : vector<2xi32> to vector<2x1xi32>
    %679 = vector.broadcast %678 : vector<2x1xi32> to vector<2x8xi32>
    %680 = arith.cmpi eq, %524, %679 : vector<2x8xi32>
    %681 = arith.extui %680 : vector<2x8xi1> to vector<2x8xi32>
    %682 = arith.sitofp %681 : vector<2x8xi32> to vector<2x8xf32>
    %cst_194 = arith.constant 1.000000e+00 : f32
    %683 = vector.broadcast %cst_194 : f32 to vector<2x8xf32>
    %684 = arith.subf %683, %682 : vector<2x8xf32>
    %685 = arith.mulf %601, %684 : vector<2x8xf32>
    %686 = vector.shape_cast %682 : vector<2x8xf32> to vector<2x8x1xf32>
    %687 = vector.broadcast %686 : vector<2x8x1xf32> to vector<2x8x128xf32>
    %688 = arith.mulf %505, %687 : vector<2x8x128xf32>
    %cst_195 = arith.constant dense<0.000000e+00> : vector<2x128xf32>
    %689 = vector.multi_reduction <add>, %688, %cst_195 [1] : vector<2x8x128xf32> to vector<2x128xf32>
    %690 = vector.shape_cast %660 : vector<2x8xf32> to vector<2x1x8xf32>
    %c0_196 = arith.constant 0 : index
    %c1_197 = arith.constant 1 : index
    %c0_198 = arith.constant 0 : index
    %691 = vector.load %arg19[%c0_196, %c1_197, %c0_198] : memref<2x8x8xf32, #tpu.memory_space<vmem>>, vector<2x1x8xf32>
    tpu.vector_store %arg19[%c0_196, %c1_197, %c0_198], %690 {strides = array<i32>} : memref<2x8x8xf32, #tpu.memory_space<vmem>>, vector<2x1x8xf32>,
    %c0_199 = arith.constant 0 : index
    %c1_200 = arith.constant 1 : index
    %692 = vector.load %arg20[%c0_199, %c1_200] : memref<2x8xi32, #tpu.memory_space<vmem>>, vector<2x1xi32>
    tpu.vector_store %arg20[%c0_199, %c1_200], %678 {strides = array<i32>} : memref<2x8xi32, #tpu.memory_space<vmem>>, vector<2x1xi32>,
    %cst_201 = arith.constant dense<0.000000e+00> : vector<2x128xf32>
    %693 = tpu.matmul %669, %506, %cst_201 {dimension_numbers = #tpu.dot_dimension_numbers<[1], [0], [0], [1], [0, 0, 1, 1], [], []>} : vector<2x32xf32>, vector<32x128xf32>, vector<2x128xf32> -> vector<2x128xf32>
    %694 = arith.addf %689, %693 : vector<2x128xf32>
    %695 = vector.broadcast %507 : vector<1x128xf32> to vector<2x128xf32>
    %696 = arith.addf %694, %695 : vector<2x128xf32>
    %697 = vector.extract_strided_slice %696 {offsets = [0, 0], sizes = [2, 32], strides = [1, 1]} : vector<2x128xf32> to vector<2x32xf32>
    %698 = arith.negf %697 : vector<2x32xf32>
    %699 = math.exp %698 : vector<2x32xf32>
    %cst_202 = arith.constant 1.000000e+00 : f32
    %700 = vector.broadcast %cst_202 : f32 to vector<2x32xf32>
    %701 = arith.addf %700, %699 : vector<2x32xf32>
    %702 = arith.divf %700, %701 : vector<2x32xf32>
    %703 = vector.extract_strided_slice %696 {offsets = [0, 32], sizes = [2, 32], strides = [1, 1]} : vector<2x128xf32> to vector<2x32xf32>
    %704 = arith.negf %703 : vector<2x32xf32>
    %705 = math.exp %704 : vector<2x32xf32>
    %cst_203 = arith.constant 1.000000e+00 : f32
    %706 = vector.broadcast %cst_203 : f32 to vector<2x32xf32>
    %707 = arith.addf %706, %705 : vector<2x32xf32>
    %708 = arith.divf %706, %707 : vector<2x32xf32>
    %709 = vector.extract_strided_slice %696 {offsets = [0, 64], sizes = [2, 32], strides = [1, 1]} : vector<2x128xf32> to vector<2x32xf32>
    %710 = math.tanh %709 : vector<2x32xf32>
    %711 = vector.extract_strided_slice %696 {offsets = [0, 96], sizes = [2, 32], strides = [1, 1]} : vector<2x128xf32> to vector<2x32xf32>
    %712 = arith.negf %711 : vector<2x32xf32>
    %713 = math.exp %712 : vector<2x32xf32>
    %cst_204 = arith.constant 1.000000e+00 : f32
    %714 = vector.broadcast %cst_204 : f32 to vector<2x32xf32>
    %715 = arith.addf %714, %713 : vector<2x32xf32>
    %716 = arith.divf %714, %715 : vector<2x32xf32>
    %717 = arith.mulf %708, %635 : vector<2x32xf32>
    %718 = arith.mulf %702, %710 : vector<2x32xf32>
    %719 = arith.addf %717, %718 : vector<2x32xf32>
    %720 = math.tanh %719 : vector<2x32xf32>
    %721 = arith.mulf %716, %720 : vector<2x32xf32>
    %cst_205 = arith.constant dense<0.000000e+00> : vector<2x32xf32>
    %722 = tpu.matmul %721, %508, %cst_205 {dimension_numbers = #tpu.dot_dimension_numbers<[1], [0], [0], [1], [0, 0, 1, 1], [], []>} : vector<2x32xf32>, vector<32x32xf32>, vector<2x32xf32> -> vector<2x32xf32>
    %723 = vector.broadcast %509 : vector<1x32xf32> to vector<2x32xf32>
    %724 = arith.addf %722, %723 : vector<2x32xf32>
    %725 = vector.shape_cast %724 : vector<2x32xf32> to vector<2x1x32xf32>
    %726 = vector.broadcast %725 : vector<2x1x32xf32> to vector<2x8x32xf32>
    %727 = arith.addf %726, %504 : vector<2x8x32xf32>
    %728 = math.tanh %727 : vector<2x8x32xf32>
    %729 = vector.broadcast %511 : vector<1x1x32xf32> to vector<2x8x32xf32>
    %730 = arith.mulf %728, %729 : vector<2x8x32xf32>
    %cst_206 = arith.constant dense<0.000000e+00> : vector<2x8xf32>
    %731 = vector.multi_reduction <add>, %730, %cst_206 [2] : vector<2x8x32xf32> to vector<2x8xf32>
    %cst_207 = arith.constant 0.000000e+00 : f32
    %732 = vector.broadcast %cst_207 : f32 to vector<2x8xf32>
    %733 = arith.cmpf ogt, %685, %732 : vector<2x8xf32>
    %cst_208 = arith.constant -1.000000e+30 : f32
    %734 = vector.broadcast %cst_208 : f32 to vector<2x8xf32>
    %735 = arith.select %733, %731, %734 : vector<2x8xi1>, vector<2x8xf32>
    %cst_209 = arith.constant dense<0xFF800000> : vector<2xf32>
    %736 = vector.multi_reduction <maximumf>, %735, %cst_209 [1] : vector<2x8xf32> to vector<2xf32>
    %737 = vector.shape_cast %736 : vector<2xf32> to vector<2x1xf32>
    %738 = vector.broadcast %737 : vector<2x1xf32> to vector<2x8xf32>
    %739 = arith.subf %735, %738 : vector<2x8xf32>
    %740 = math.exp %739 : vector<2x8xf32>
    %cst_210 = arith.constant dense<0.000000e+00> : vector<2xf32>
    %741 = vector.multi_reduction <add>, %740, %cst_210 [1] : vector<2x8xf32> to vector<2xf32>
    %742 = vector.shape_cast %741 : vector<2xf32> to vector<2x1xf32>
    %743 = vector.broadcast %742 : vector<2x1xf32> to vector<2x8xf32>
    %744 = arith.divf %740, %743 : vector<2x8xf32>
    %745 = vector.shape_cast %744 : vector<2x8xf32> to vector<2x8x1xf32>
    %746 = vector.broadcast %745 : vector<2x8x1xf32> to vector<2x8x32xf32>
    %747 = arith.mulf %504, %746 : vector<2x8x32xf32>
    %cst_211 = arith.constant dense<0.000000e+00> : vector<2x32xf32>
    %748 = vector.multi_reduction <add>, %747, %cst_211 [1] : vector<2x8x32xf32> to vector<2x32xf32>
    %749 = tpu.concatenate %748, %721 in 1 : vector<2x32xf32>, vector<2x32xf32> -> vector<2x64xf32>
    %cst_212 = arith.constant dense<0.000000e+00> : vector<2x32xf32>
    %750 = tpu.matmul %749, %512, %cst_212 {dimension_numbers = #tpu.dot_dimension_numbers<[1], [0], [0], [1], [0, 0, 1, 1], [], []>} : vector<2x64xf32>, vector<64x32xf32>, vector<2x32xf32> -> vector<2x32xf32>
    %751 = vector.broadcast %513 : vector<1x32xf32> to vector<2x32xf32>
    %752 = arith.addf %750, %751 : vector<2x32xf32>
    %753 = math.tanh %752 : vector<2x32xf32>
    %754 = arith.mulf %744, %685 : vector<2x8xf32>
    %cst_213 = arith.constant dense<0xFF800000> : vector<2xf32>
    %755 = vector.multi_reduction <maximumf>, %754, %cst_213 [1] : vector<2x8xf32> to vector<2xf32>
    %756 = vector.shape_cast %755 : vector<2xf32> to vector<2x1xf32>
    %757 = vector.broadcast %756 : vector<2x1xf32> to vector<2x8xf32>
    %758 = arith.cmpf oeq, %754, %757 : vector<2x8xf32>
    %c8_i32_214 = arith.constant 8 : i32
    %759 = vector.broadcast %c8_i32_214 : i32 to vector<2x8xi32>
    %760 = arith.select %758, %524, %759 : vector<2x8xi1>, vector<2x8xi32>
    %cst_215 = arith.constant dense<2147483647> : vector<2xi32>
    %761 = vector.multi_reduction <minsi>, %760, %cst_215 [1] : vector<2x8xi32> to vector<2xi32>
    %762 = vector.shape_cast %761 : vector<2xi32> to vector<2x1xi32>
    %763 = vector.broadcast %762 : vector<2x1xi32> to vector<2x8xi32>
    %764 = arith.cmpi eq, %524, %763 : vector<2x8xi32>
    %765 = arith.extui %764 : vector<2x8xi1> to vector<2x8xi32>
    %766 = arith.sitofp %765 : vector<2x8xi32> to vector<2x8xf32>
    %cst_216 = arith.constant 1.000000e+00 : f32
    %767 = vector.broadcast %cst_216 : f32 to vector<2x8xf32>
    %768 = arith.subf %767, %766 : vector<2x8xf32>
    %769 = arith.mulf %685, %768 : vector<2x8xf32>
    %770 = vector.shape_cast %766 : vector<2x8xf32> to vector<2x8x1xf32>
    %771 = vector.broadcast %770 : vector<2x8x1xf32> to vector<2x8x128xf32>
    %772 = arith.mulf %505, %771 : vector<2x8x128xf32>
    %cst_217 = arith.constant dense<0.000000e+00> : vector<2x128xf32>
    %773 = vector.multi_reduction <add>, %772, %cst_217 [1] : vector<2x8x128xf32> to vector<2x128xf32>
    %774 = vector.shape_cast %744 : vector<2x8xf32> to vector<2x1x8xf32>
    %c0_218 = arith.constant 0 : index
    %c2_219 = arith.constant 2 : index
    %c0_220 = arith.constant 0 : index
    %775 = vector.load %arg19[%c0_218, %c2_219, %c0_220] : memref<2x8x8xf32, #tpu.memory_space<vmem>>, vector<2x1x8xf32>
    tpu.vector_store %arg19[%c0_218, %c2_219, %c0_220], %774 {strides = array<i32>} : memref<2x8x8xf32, #tpu.memory_space<vmem>>, vector<2x1x8xf32>,
    %c0_221 = arith.constant 0 : index
    %c2_222 = arith.constant 2 : index
    %776 = vector.load %arg20[%c0_221, %c2_222] : memref<2x8xi32, #tpu.memory_space<vmem>>, vector<2x1xi32>
    tpu.vector_store %arg20[%c0_221, %c2_222], %762 {strides = array<i32>} : memref<2x8xi32, #tpu.memory_space<vmem>>, vector<2x1xi32>,
    %cst_223 = arith.constant dense<0.000000e+00> : vector<2x128xf32>
    %777 = tpu.matmul %753, %506, %cst_223 {dimension_numbers = #tpu.dot_dimension_numbers<[1], [0], [0], [1], [0, 0, 1, 1], [], []>} : vector<2x32xf32>, vector<32x128xf32>, vector<2x128xf32> -> vector<2x128xf32>
    %778 = arith.addf %773, %777 : vector<2x128xf32>
    %779 = vector.broadcast %507 : vector<1x128xf32> to vector<2x128xf32>
    %780 = arith.addf %778, %779 : vector<2x128xf32>
    %781 = vector.extract_strided_slice %780 {offsets = [0, 0], sizes = [2, 32], strides = [1, 1]} : vector<2x128xf32> to vector<2x32xf32>
    %782 = arith.negf %781 : vector<2x32xf32>
    %783 = math.exp %782 : vector<2x32xf32>
    %cst_224 = arith.constant 1.000000e+00 : f32
    %784 = vector.broadcast %cst_224 : f32 to vector<2x32xf32>
    %785 = arith.addf %784, %783 : vector<2x32xf32>
    %786 = arith.divf %784, %785 : vector<2x32xf32>
    %787 = vector.extract_strided_slice %780 {offsets = [0, 32], sizes = [2, 32], strides = [1, 1]} : vector<2x128xf32> to vector<2x32xf32>
    %788 = arith.negf %787 : vector<2x32xf32>
    %789 = math.exp %788 : vector<2x32xf32>
    %cst_225 = arith.constant 1.000000e+00 : f32
    %790 = vector.broadcast %cst_225 : f32 to vector<2x32xf32>
    %791 = arith.addf %790, %789 : vector<2x32xf32>
    %792 = arith.divf %790, %791 : vector<2x32xf32>
    %793 = vector.extract_strided_slice %780 {offsets = [0, 64], sizes = [2, 32], strides = [1, 1]} : vector<2x128xf32> to vector<2x32xf32>
    %794 = math.tanh %793 : vector<2x32xf32>
    %795 = vector.extract_strided_slice %780 {offsets = [0, 96], sizes = [2, 32], strides = [1, 1]} : vector<2x128xf32> to vector<2x32xf32>
    %796 = arith.negf %795 : vector<2x32xf32>
    %797 = math.exp %796 : vector<2x32xf32>
    %cst_226 = arith.constant 1.000000e+00 : f32
    %798 = vector.broadcast %cst_226 : f32 to vector<2x32xf32>
    %799 = arith.addf %798, %797 : vector<2x32xf32>
    %800 = arith.divf %798, %799 : vector<2x32xf32>
    %801 = arith.mulf %792, %719 : vector<2x32xf32>
    %802 = arith.mulf %786, %794 : vector<2x32xf32>
    %803 = arith.addf %801, %802 : vector<2x32xf32>
    %804 = math.tanh %803 : vector<2x32xf32>
    %805 = arith.mulf %800, %804 : vector<2x32xf32>
    %cst_227 = arith.constant dense<0.000000e+00> : vector<2x32xf32>
    %806 = tpu.matmul %805, %508, %cst_227 {dimension_numbers = #tpu.dot_dimension_numbers<[1], [0], [0], [1], [0, 0, 1, 1], [], []>} : vector<2x32xf32>, vector<32x32xf32>, vector<2x32xf32> -> vector<2x32xf32>
    %807 = vector.broadcast %509 : vector<1x32xf32> to vector<2x32xf32>
    %808 = arith.addf %806, %807 : vector<2x32xf32>
    %809 = vector.shape_cast %808 : vector<2x32xf32> to vector<2x1x32xf32>
    %810 = vector.broadcast %809 : vector<2x1x32xf32> to vector<2x8x32xf32>
    %811 = arith.addf %810, %504 : vector<2x8x32xf32>
    %812 = math.tanh %811 : vector<2x8x32xf32>
    %813 = vector.broadcast %511 : vector<1x1x32xf32> to vector<2x8x32xf32>
    %814 = arith.mulf %812, %813 : vector<2x8x32xf32>
    %cst_228 = arith.constant dense<0.000000e+00> : vector<2x8xf32>
    %815 = vector.multi_reduction <add>, %814, %cst_228 [2] : vector<2x8x32xf32> to vector<2x8xf32>
    %cst_229 = arith.constant 0.000000e+00 : f32
    %816 = vector.broadcast %cst_229 : f32 to vector<2x8xf32>
    %817 = arith.cmpf ogt, %769, %816 : vector<2x8xf32>
    %cst_230 = arith.constant -1.000000e+30 : f32
    %818 = vector.broadcast %cst_230 : f32 to vector<2x8xf32>
    %819 = arith.select %817, %815, %818 : vector<2x8xi1>, vector<2x8xf32>
    %cst_231 = arith.constant dense<0xFF800000> : vector<2xf32>
    %820 = vector.multi_reduction <maximumf>, %819, %cst_231 [1] : vector<2x8xf32> to vector<2xf32>
    %821 = vector.shape_cast %820 : vector<2xf32> to vector<2x1xf32>
    %822 = vector.broadcast %821 : vector<2x1xf32> to vector<2x8xf32>
    %823 = arith.subf %819, %822 : vector<2x8xf32>
    %824 = math.exp %823 : vector<2x8xf32>
    %cst_232 = arith.constant dense<0.000000e+00> : vector<2xf32>
    %825 = vector.multi_reduction <add>, %824, %cst_232 [1] : vector<2x8xf32> to vector<2xf32>
    %826 = vector.shape_cast %825 : vector<2xf32> to vector<2x1xf32>
    %827 = vector.broadcast %826 : vector<2x1xf32> to vector<2x8xf32>
    %828 = arith.divf %824, %827 : vector<2x8xf32>
    %829 = vector.shape_cast %828 : vector<2x8xf32> to vector<2x8x1xf32>
    %830 = vector.broadcast %829 : vector<2x8x1xf32> to vector<2x8x32xf32>
    %831 = arith.mulf %504, %830 : vector<2x8x32xf32>
    %cst_233 = arith.constant dense<0.000000e+00> : vector<2x32xf32>
    %832 = vector.multi_reduction <add>, %831, %cst_233 [1] : vector<2x8x32xf32> to vector<2x32xf32>
    %833 = tpu.concatenate %832, %805 in 1 : vector<2x32xf32>, vector<2x32xf32> -> vector<2x64xf32>
    %cst_234 = arith.constant dense<0.000000e+00> : vector<2x32xf32>
    %834 = tpu.matmul %833, %512, %cst_234 {dimension_numbers = #tpu.dot_dimension_numbers<[1], [0], [0], [1], [0, 0, 1, 1], [], []>} : vector<2x64xf32>, vector<64x32xf32>, vector<2x32xf32> -> vector<2x32xf32>
    %835 = vector.broadcast %513 : vector<1x32xf32> to vector<2x32xf32>
    %836 = arith.addf %834, %835 : vector<2x32xf32>
    %837 = math.tanh %836 : vector<2x32xf32>
    %838 = arith.mulf %828, %769 : vector<2x8xf32>
    %cst_235 = arith.constant dense<0xFF800000> : vector<2xf32>
    %839 = vector.multi_reduction <maximumf>, %838, %cst_235 [1] : vector<2x8xf32> to vector<2xf32>
    %840 = vector.shape_cast %839 : vector<2xf32> to vector<2x1xf32>
    %841 = vector.broadcast %840 : vector<2x1xf32> to vector<2x8xf32>
    %842 = arith.cmpf oeq, %838, %841 : vector<2x8xf32>
    %c8_i32_236 = arith.constant 8 : i32
    %843 = vector.broadcast %c8_i32_236 : i32 to vector<2x8xi32>
    %844 = arith.select %842, %524, %843 : vector<2x8xi1>, vector<2x8xi32>
    %cst_237 = arith.constant dense<2147483647> : vector<2xi32>
    %845 = vector.multi_reduction <minsi>, %844, %cst_237 [1] : vector<2x8xi32> to vector<2xi32>
    %846 = vector.shape_cast %845 : vector<2xi32> to vector<2x1xi32>
    %847 = vector.broadcast %846 : vector<2x1xi32> to vector<2x8xi32>
    %848 = arith.cmpi eq, %524, %847 : vector<2x8xi32>
    %849 = arith.extui %848 : vector<2x8xi1> to vector<2x8xi32>
    %850 = arith.sitofp %849 : vector<2x8xi32> to vector<2x8xf32>
    %cst_238 = arith.constant 1.000000e+00 : f32
    %851 = vector.broadcast %cst_238 : f32 to vector<2x8xf32>
    %852 = arith.subf %851, %850 : vector<2x8xf32>
    %853 = arith.mulf %769, %852 : vector<2x8xf32>
    %854 = vector.shape_cast %850 : vector<2x8xf32> to vector<2x8x1xf32>
    %855 = vector.broadcast %854 : vector<2x8x1xf32> to vector<2x8x128xf32>
    %856 = arith.mulf %505, %855 : vector<2x8x128xf32>
    %cst_239 = arith.constant dense<0.000000e+00> : vector<2x128xf32>
    %857 = vector.multi_reduction <add>, %856, %cst_239 [1] : vector<2x8x128xf32> to vector<2x128xf32>
    %858 = vector.shape_cast %828 : vector<2x8xf32> to vector<2x1x8xf32>
    %c0_240 = arith.constant 0 : index
    %c3_241 = arith.constant 3 : index
    %c0_242 = arith.constant 0 : index
    %859 = vector.load %arg19[%c0_240, %c3_241, %c0_242] : memref<2x8x8xf32, #tpu.memory_space<vmem>>, vector<2x1x8xf32>
    tpu.vector_store %arg19[%c0_240, %c3_241, %c0_242], %858 {strides = array<i32>} : memref<2x8x8xf32, #tpu.memory_space<vmem>>, vector<2x1x8xf32>,
    %c0_243 = arith.constant 0 : index
    %c3_244 = arith.constant 3 : index
    %860 = vector.load %arg20[%c0_243, %c3_244] : memref<2x8xi32, #tpu.memory_space<vmem>>, vector<2x1xi32>
    tpu.vector_store %arg20[%c0_243, %c3_244], %846 {strides = array<i32>} : memref<2x8xi32, #tpu.memory_space<vmem>>, vector<2x1xi32>,
    %cst_245 = arith.constant dense<0.000000e+00> : vector<2x128xf32>
    %861 = tpu.matmul %837, %506, %cst_245 {dimension_numbers = #tpu.dot_dimension_numbers<[1], [0], [0], [1], [0, 0, 1, 1], [], []>} : vector<2x32xf32>, vector<32x128xf32>, vector<2x128xf32> -> vector<2x128xf32>
    %862 = arith.addf %857, %861 : vector<2x128xf32>
    %863 = vector.broadcast %507 : vector<1x128xf32> to vector<2x128xf32>
    %864 = arith.addf %862, %863 : vector<2x128xf32>
    %865 = vector.extract_strided_slice %864 {offsets = [0, 0], sizes = [2, 32], strides = [1, 1]} : vector<2x128xf32> to vector<2x32xf32>
    %866 = arith.negf %865 : vector<2x32xf32>
    %867 = math.exp %866 : vector<2x32xf32>
    %cst_246 = arith.constant 1.000000e+00 : f32
    %868 = vector.broadcast %cst_246 : f32 to vector<2x32xf32>
    %869 = arith.addf %868, %867 : vector<2x32xf32>
    %870 = arith.divf %868, %869 : vector<2x32xf32>
    %871 = vector.extract_strided_slice %864 {offsets = [0, 32], sizes = [2, 32], strides = [1, 1]} : vector<2x128xf32> to vector<2x32xf32>
    %872 = arith.negf %871 : vector<2x32xf32>
    %873 = math.exp %872 : vector<2x32xf32>
    %cst_247 = arith.constant 1.000000e+00 : f32
    %874 = vector.broadcast %cst_247 : f32 to vector<2x32xf32>
    %875 = arith.addf %874, %873 : vector<2x32xf32>
    %876 = arith.divf %874, %875 : vector<2x32xf32>
    %877 = vector.extract_strided_slice %864 {offsets = [0, 64], sizes = [2, 32], strides = [1, 1]} : vector<2x128xf32> to vector<2x32xf32>
    %878 = math.tanh %877 : vector<2x32xf32>
    %879 = vector.extract_strided_slice %864 {offsets = [0, 96], sizes = [2, 32], strides = [1, 1]} : vector<2x128xf32> to vector<2x32xf32>
    %880 = arith.negf %879 : vector<2x32xf32>
    %881 = math.exp %880 : vector<2x32xf32>
    %cst_248 = arith.constant 1.000000e+00 : f32
    %882 = vector.broadcast %cst_248 : f32 to vector<2x32xf32>
    %883 = arith.addf %882, %881 : vector<2x32xf32>
    %884 = arith.divf %882, %883 : vector<2x32xf32>
    %885 = arith.mulf %876, %803 : vector<2x32xf32>
    %886 = arith.mulf %870, %878 : vector<2x32xf32>
    %887 = arith.addf %885, %886 : vector<2x32xf32>
    %888 = math.tanh %887 : vector<2x32xf32>
    %889 = arith.mulf %884, %888 : vector<2x32xf32>
    %cst_249 = arith.constant dense<0.000000e+00> : vector<2x32xf32>
    %890 = tpu.matmul %889, %508, %cst_249 {dimension_numbers = #tpu.dot_dimension_numbers<[1], [0], [0], [1], [0, 0, 1, 1], [], []>} : vector<2x32xf32>, vector<32x32xf32>, vector<2x32xf32> -> vector<2x32xf32>
    %891 = vector.broadcast %509 : vector<1x32xf32> to vector<2x32xf32>
    %892 = arith.addf %890, %891 : vector<2x32xf32>
    %893 = vector.shape_cast %892 : vector<2x32xf32> to vector<2x1x32xf32>
    %894 = vector.broadcast %893 : vector<2x1x32xf32> to vector<2x8x32xf32>
    %895 = arith.addf %894, %504 : vector<2x8x32xf32>
    %896 = math.tanh %895 : vector<2x8x32xf32>
    %897 = vector.broadcast %511 : vector<1x1x32xf32> to vector<2x8x32xf32>
    %898 = arith.mulf %896, %897 : vector<2x8x32xf32>
    %cst_250 = arith.constant dense<0.000000e+00> : vector<2x8xf32>
    %899 = vector.multi_reduction <add>, %898, %cst_250 [2] : vector<2x8x32xf32> to vector<2x8xf32>
    %cst_251 = arith.constant 0.000000e+00 : f32
    %900 = vector.broadcast %cst_251 : f32 to vector<2x8xf32>
    %901 = arith.cmpf ogt, %853, %900 : vector<2x8xf32>
    %cst_252 = arith.constant -1.000000e+30 : f32
    %902 = vector.broadcast %cst_252 : f32 to vector<2x8xf32>
    %903 = arith.select %901, %899, %902 : vector<2x8xi1>, vector<2x8xf32>
    %cst_253 = arith.constant dense<0xFF800000> : vector<2xf32>
    %904 = vector.multi_reduction <maximumf>, %903, %cst_253 [1] : vector<2x8xf32> to vector<2xf32>
    %905 = vector.shape_cast %904 : vector<2xf32> to vector<2x1xf32>
    %906 = vector.broadcast %905 : vector<2x1xf32> to vector<2x8xf32>
    %907 = arith.subf %903, %906 : vector<2x8xf32>
    %908 = math.exp %907 : vector<2x8xf32>
    %cst_254 = arith.constant dense<0.000000e+00> : vector<2xf32>
    %909 = vector.multi_reduction <add>, %908, %cst_254 [1] : vector<2x8xf32> to vector<2xf32>
    %910 = vector.shape_cast %909 : vector<2xf32> to vector<2x1xf32>
    %911 = vector.broadcast %910 : vector<2x1xf32> to vector<2x8xf32>
    %912 = arith.divf %908, %911 : vector<2x8xf32>
    %913 = vector.shape_cast %912 : vector<2x8xf32> to vector<2x8x1xf32>
    %914 = vector.broadcast %913 : vector<2x8x1xf32> to vector<2x8x32xf32>
    %915 = arith.mulf %504, %914 : vector<2x8x32xf32>
    %cst_255 = arith.constant dense<0.000000e+00> : vector<2x32xf32>
    %916 = vector.multi_reduction <add>, %915, %cst_255 [1] : vector<2x8x32xf32> to vector<2x32xf32>
    %917 = tpu.concatenate %916, %889 in 1 : vector<2x32xf32>, vector<2x32xf32> -> vector<2x64xf32>
    %cst_256 = arith.constant dense<0.000000e+00> : vector<2x32xf32>
    %918 = tpu.matmul %917, %512, %cst_256 {dimension_numbers = #tpu.dot_dimension_numbers<[1], [0], [0], [1], [0, 0, 1, 1], [], []>} : vector<2x64xf32>, vector<64x32xf32>, vector<2x32xf32> -> vector<2x32xf32>
    %919 = vector.broadcast %513 : vector<1x32xf32> to vector<2x32xf32>
    %920 = arith.addf %918, %919 : vector<2x32xf32>
    %921 = math.tanh %920 : vector<2x32xf32>
    %922 = arith.mulf %912, %853 : vector<2x8xf32>
    %cst_257 = arith.constant dense<0xFF800000> : vector<2xf32>
    %923 = vector.multi_reduction <maximumf>, %922, %cst_257 [1] : vector<2x8xf32> to vector<2xf32>
    %924 = vector.shape_cast %923 : vector<2xf32> to vector<2x1xf32>
    %925 = vector.broadcast %924 : vector<2x1xf32> to vector<2x8xf32>
    %926 = arith.cmpf oeq, %922, %925 : vector<2x8xf32>
    %c8_i32_258 = arith.constant 8 : i32
    %927 = vector.broadcast %c8_i32_258 : i32 to vector<2x8xi32>
    %928 = arith.select %926, %524, %927 : vector<2x8xi1>, vector<2x8xi32>
    %cst_259 = arith.constant dense<2147483647> : vector<2xi32>
    %929 = vector.multi_reduction <minsi>, %928, %cst_259 [1] : vector<2x8xi32> to vector<2xi32>
    %930 = vector.shape_cast %929 : vector<2xi32> to vector<2x1xi32>
    %931 = vector.broadcast %930 : vector<2x1xi32> to vector<2x8xi32>
    %932 = arith.cmpi eq, %524, %931 : vector<2x8xi32>
    %933 = arith.extui %932 : vector<2x8xi1> to vector<2x8xi32>
    %934 = arith.sitofp %933 : vector<2x8xi32> to vector<2x8xf32>
    %cst_260 = arith.constant 1.000000e+00 : f32
    %935 = vector.broadcast %cst_260 : f32 to vector<2x8xf32>
    %936 = arith.subf %935, %934 : vector<2x8xf32>
    %937 = arith.mulf %853, %936 : vector<2x8xf32>
    %938 = vector.shape_cast %934 : vector<2x8xf32> to vector<2x8x1xf32>
    %939 = vector.broadcast %938 : vector<2x8x1xf32> to vector<2x8x128xf32>
    %940 = arith.mulf %505, %939 : vector<2x8x128xf32>
    %cst_261 = arith.constant dense<0.000000e+00> : vector<2x128xf32>
    %941 = vector.multi_reduction <add>, %940, %cst_261 [1] : vector<2x8x128xf32> to vector<2x128xf32>
    %942 = vector.shape_cast %912 : vector<2x8xf32> to vector<2x1x8xf32>
    %c0_262 = arith.constant 0 : index
    %c4_263 = arith.constant 4 : index
    %c0_264 = arith.constant 0 : index
    %943 = vector.load %arg19[%c0_262, %c4_263, %c0_264] : memref<2x8x8xf32, #tpu.memory_space<vmem>>, vector<2x1x8xf32>
    tpu.vector_store %arg19[%c0_262, %c4_263, %c0_264], %942 {strides = array<i32>} : memref<2x8x8xf32, #tpu.memory_space<vmem>>, vector<2x1x8xf32>,
    %c0_265 = arith.constant 0 : index
    %c4_266 = arith.constant 4 : index
    %944 = vector.load %arg20[%c0_265, %c4_266] : memref<2x8xi32, #tpu.memory_space<vmem>>, vector<2x1xi32>
    tpu.vector_store %arg20[%c0_265, %c4_266], %930 {strides = array<i32>} : memref<2x8xi32, #tpu.memory_space<vmem>>, vector<2x1xi32>,
    %cst_267 = arith.constant dense<0.000000e+00> : vector<2x128xf32>
    %945 = tpu.matmul %921, %506, %cst_267 {dimension_numbers = #tpu.dot_dimension_numbers<[1], [0], [0], [1], [0, 0, 1, 1], [], []>} : vector<2x32xf32>, vector<32x128xf32>, vector<2x128xf32> -> vector<2x128xf32>
    %946 = arith.addf %941, %945 : vector<2x128xf32>
    %947 = vector.broadcast %507 : vector<1x128xf32> to vector<2x128xf32>
    %948 = arith.addf %946, %947 : vector<2x128xf32>
    %949 = vector.extract_strided_slice %948 {offsets = [0, 0], sizes = [2, 32], strides = [1, 1]} : vector<2x128xf32> to vector<2x32xf32>
    %950 = arith.negf %949 : vector<2x32xf32>
    %951 = math.exp %950 : vector<2x32xf32>
    %cst_268 = arith.constant 1.000000e+00 : f32
    %952 = vector.broadcast %cst_268 : f32 to vector<2x32xf32>
    %953 = arith.addf %952, %951 : vector<2x32xf32>
    %954 = arith.divf %952, %953 : vector<2x32xf32>
    %955 = vector.extract_strided_slice %948 {offsets = [0, 32], sizes = [2, 32], strides = [1, 1]} : vector<2x128xf32> to vector<2x32xf32>
    %956 = arith.negf %955 : vector<2x32xf32>
    %957 = math.exp %956 : vector<2x32xf32>
    %cst_269 = arith.constant 1.000000e+00 : f32
    %958 = vector.broadcast %cst_269 : f32 to vector<2x32xf32>
    %959 = arith.addf %958, %957 : vector<2x32xf32>
    %960 = arith.divf %958, %959 : vector<2x32xf32>
    %961 = vector.extract_strided_slice %948 {offsets = [0, 64], sizes = [2, 32], strides = [1, 1]} : vector<2x128xf32> to vector<2x32xf32>
    %962 = math.tanh %961 : vector<2x32xf32>
    %963 = vector.extract_strided_slice %948 {offsets = [0, 96], sizes = [2, 32], strides = [1, 1]} : vector<2x128xf32> to vector<2x32xf32>
    %964 = arith.negf %963 : vector<2x32xf32>
    %965 = math.exp %964 : vector<2x32xf32>
    %cst_270 = arith.constant 1.000000e+00 : f32
    %966 = vector.broadcast %cst_270 : f32 to vector<2x32xf32>
    %967 = arith.addf %966, %965 : vector<2x32xf32>
    %968 = arith.divf %966, %967 : vector<2x32xf32>
    %969 = arith.mulf %960, %887 : vector<2x32xf32>
    %970 = arith.mulf %954, %962 : vector<2x32xf32>
    %971 = arith.addf %969, %970 : vector<2x32xf32>
    %972 = math.tanh %971 : vector<2x32xf32>
    %973 = arith.mulf %968, %972 : vector<2x32xf32>
    %cst_271 = arith.constant dense<0.000000e+00> : vector<2x32xf32>
    %974 = tpu.matmul %973, %508, %cst_271 {dimension_numbers = #tpu.dot_dimension_numbers<[1], [0], [0], [1], [0, 0, 1, 1], [], []>} : vector<2x32xf32>, vector<32x32xf32>, vector<2x32xf32> -> vector<2x32xf32>
    %975 = vector.broadcast %509 : vector<1x32xf32> to vector<2x32xf32>
    %976 = arith.addf %974, %975 : vector<2x32xf32>
    %977 = vector.shape_cast %976 : vector<2x32xf32> to vector<2x1x32xf32>
    %978 = vector.broadcast %977 : vector<2x1x32xf32> to vector<2x8x32xf32>
    %979 = arith.addf %978, %504 : vector<2x8x32xf32>
    %980 = math.tanh %979 : vector<2x8x32xf32>
    %981 = vector.broadcast %511 : vector<1x1x32xf32> to vector<2x8x32xf32>
    %982 = arith.mulf %980, %981 : vector<2x8x32xf32>
    %cst_272 = arith.constant dense<0.000000e+00> : vector<2x8xf32>
    %983 = vector.multi_reduction <add>, %982, %cst_272 [2] : vector<2x8x32xf32> to vector<2x8xf32>
    %cst_273 = arith.constant 0.000000e+00 : f32
    %984 = vector.broadcast %cst_273 : f32 to vector<2x8xf32>
    %985 = arith.cmpf ogt, %937, %984 : vector<2x8xf32>
    %cst_274 = arith.constant -1.000000e+30 : f32
    %986 = vector.broadcast %cst_274 : f32 to vector<2x8xf32>
    %987 = arith.select %985, %983, %986 : vector<2x8xi1>, vector<2x8xf32>
    %cst_275 = arith.constant dense<0xFF800000> : vector<2xf32>
    %988 = vector.multi_reduction <maximumf>, %987, %cst_275 [1] : vector<2x8xf32> to vector<2xf32>
    %989 = vector.shape_cast %988 : vector<2xf32> to vector<2x1xf32>
    %990 = vector.broadcast %989 : vector<2x1xf32> to vector<2x8xf32>
    %991 = arith.subf %987, %990 : vector<2x8xf32>
    %992 = math.exp %991 : vector<2x8xf32>
    %cst_276 = arith.constant dense<0.000000e+00> : vector<2xf32>
    %993 = vector.multi_reduction <add>, %992, %cst_276 [1] : vector<2x8xf32> to vector<2xf32>
    %994 = vector.shape_cast %993 : vector<2xf32> to vector<2x1xf32>
    %995 = vector.broadcast %994 : vector<2x1xf32> to vector<2x8xf32>
    %996 = arith.divf %992, %995 : vector<2x8xf32>
    %997 = vector.shape_cast %996 : vector<2x8xf32> to vector<2x8x1xf32>
    %998 = vector.broadcast %997 : vector<2x8x1xf32> to vector<2x8x32xf32>
    %999 = arith.mulf %504, %998 : vector<2x8x32xf32>
    %cst_277 = arith.constant dense<0.000000e+00> : vector<2x32xf32>
    %1000 = vector.multi_reduction <add>, %999, %cst_277 [1] : vector<2x8x32xf32> to vector<2x32xf32>
    %1001 = tpu.concatenate %1000, %973 in 1 : vector<2x32xf32>, vector<2x32xf32> -> vector<2x64xf32>
    %cst_278 = arith.constant dense<0.000000e+00> : vector<2x32xf32>
    %1002 = tpu.matmul %1001, %512, %cst_278 {dimension_numbers = #tpu.dot_dimension_numbers<[1], [0], [0], [1], [0, 0, 1, 1], [], []>} : vector<2x64xf32>, vector<64x32xf32>, vector<2x32xf32> -> vector<2x32xf32>
    %1003 = vector.broadcast %513 : vector<1x32xf32> to vector<2x32xf32>
    %1004 = arith.addf %1002, %1003 : vector<2x32xf32>
    %1005 = math.tanh %1004 : vector<2x32xf32>
    %1006 = arith.mulf %996, %937 : vector<2x8xf32>
    %cst_279 = arith.constant dense<0xFF800000> : vector<2xf32>
    %1007 = vector.multi_reduction <maximumf>, %1006, %cst_279 [1] : vector<2x8xf32> to vector<2xf32>
    %1008 = vector.shape_cast %1007 : vector<2xf32> to vector<2x1xf32>
    %1009 = vector.broadcast %1008 : vector<2x1xf32> to vector<2x8xf32>
    %1010 = arith.cmpf oeq, %1006, %1009 : vector<2x8xf32>
    %c8_i32_280 = arith.constant 8 : i32
    %1011 = vector.broadcast %c8_i32_280 : i32 to vector<2x8xi32>
    %1012 = arith.select %1010, %524, %1011 : vector<2x8xi1>, vector<2x8xi32>
    %cst_281 = arith.constant dense<2147483647> : vector<2xi32>
    %1013 = vector.multi_reduction <minsi>, %1012, %cst_281 [1] : vector<2x8xi32> to vector<2xi32>
    %1014 = vector.shape_cast %1013 : vector<2xi32> to vector<2x1xi32>
    %1015 = vector.broadcast %1014 : vector<2x1xi32> to vector<2x8xi32>
    %1016 = arith.cmpi eq, %524, %1015 : vector<2x8xi32>
    %1017 = arith.extui %1016 : vector<2x8xi1> to vector<2x8xi32>
    %1018 = arith.sitofp %1017 : vector<2x8xi32> to vector<2x8xf32>
    %cst_282 = arith.constant 1.000000e+00 : f32
    %1019 = vector.broadcast %cst_282 : f32 to vector<2x8xf32>
    %1020 = arith.subf %1019, %1018 : vector<2x8xf32>
    %1021 = arith.mulf %937, %1020 : vector<2x8xf32>
    %1022 = vector.shape_cast %1018 : vector<2x8xf32> to vector<2x8x1xf32>
    %1023 = vector.broadcast %1022 : vector<2x8x1xf32> to vector<2x8x128xf32>
    %1024 = arith.mulf %505, %1023 : vector<2x8x128xf32>
    %cst_283 = arith.constant dense<0.000000e+00> : vector<2x128xf32>
    %1025 = vector.multi_reduction <add>, %1024, %cst_283 [1] : vector<2x8x128xf32> to vector<2x128xf32>
    %1026 = vector.shape_cast %996 : vector<2x8xf32> to vector<2x1x8xf32>
    %c0_284 = arith.constant 0 : index
    %c5_285 = arith.constant 5 : index
    %c0_286 = arith.constant 0 : index
    %1027 = vector.load %arg19[%c0_284, %c5_285, %c0_286] : memref<2x8x8xf32, #tpu.memory_space<vmem>>, vector<2x1x8xf32>
    tpu.vector_store %arg19[%c0_284, %c5_285, %c0_286], %1026 {strides = array<i32>} : memref<2x8x8xf32, #tpu.memory_space<vmem>>, vector<2x1x8xf32>,
    %c0_287 = arith.constant 0 : index
    %c5_288 = arith.constant 5 : index
    %1028 = vector.load %arg20[%c0_287, %c5_288] : memref<2x8xi32, #tpu.memory_space<vmem>>, vector<2x1xi32>
    tpu.vector_store %arg20[%c0_287, %c5_288], %1014 {strides = array<i32>} : memref<2x8xi32, #tpu.memory_space<vmem>>, vector<2x1xi32>,
    %cst_289 = arith.constant dense<0.000000e+00> : vector<2x128xf32>
    %1029 = tpu.matmul %1005, %506, %cst_289 {dimension_numbers = #tpu.dot_dimension_numbers<[1], [0], [0], [1], [0, 0, 1, 1], [], []>} : vector<2x32xf32>, vector<32x128xf32>, vector<2x128xf32> -> vector<2x128xf32>
    %1030 = arith.addf %1025, %1029 : vector<2x128xf32>
    %1031 = vector.broadcast %507 : vector<1x128xf32> to vector<2x128xf32>
    %1032 = arith.addf %1030, %1031 : vector<2x128xf32>
    %1033 = vector.extract_strided_slice %1032 {offsets = [0, 0], sizes = [2, 32], strides = [1, 1]} : vector<2x128xf32> to vector<2x32xf32>
    %1034 = arith.negf %1033 : vector<2x32xf32>
    %1035 = math.exp %1034 : vector<2x32xf32>
    %cst_290 = arith.constant 1.000000e+00 : f32
    %1036 = vector.broadcast %cst_290 : f32 to vector<2x32xf32>
    %1037 = arith.addf %1036, %1035 : vector<2x32xf32>
    %1038 = arith.divf %1036, %1037 : vector<2x32xf32>
    %1039 = vector.extract_strided_slice %1032 {offsets = [0, 32], sizes = [2, 32], strides = [1, 1]} : vector<2x128xf32> to vector<2x32xf32>
    %1040 = arith.negf %1039 : vector<2x32xf32>
    %1041 = math.exp %1040 : vector<2x32xf32>
    %cst_291 = arith.constant 1.000000e+00 : f32
    %1042 = vector.broadcast %cst_291 : f32 to vector<2x32xf32>
    %1043 = arith.addf %1042, %1041 : vector<2x32xf32>
    %1044 = arith.divf %1042, %1043 : vector<2x32xf32>
    %1045 = vector.extract_strided_slice %1032 {offsets = [0, 64], sizes = [2, 32], strides = [1, 1]} : vector<2x128xf32> to vector<2x32xf32>
    %1046 = math.tanh %1045 : vector<2x32xf32>
    %1047 = vector.extract_strided_slice %1032 {offsets = [0, 96], sizes = [2, 32], strides = [1, 1]} : vector<2x128xf32> to vector<2x32xf32>
    %1048 = arith.negf %1047 : vector<2x32xf32>
    %1049 = math.exp %1048 : vector<2x32xf32>
    %cst_292 = arith.constant 1.000000e+00 : f32
    %1050 = vector.broadcast %cst_292 : f32 to vector<2x32xf32>
    %1051 = arith.addf %1050, %1049 : vector<2x32xf32>
    %1052 = arith.divf %1050, %1051 : vector<2x32xf32>
    %1053 = arith.mulf %1044, %971 : vector<2x32xf32>
    %1054 = arith.mulf %1038, %1046 : vector<2x32xf32>
    %1055 = arith.addf %1053, %1054 : vector<2x32xf32>
    %1056 = math.tanh %1055 : vector<2x32xf32>
    %1057 = arith.mulf %1052, %1056 : vector<2x32xf32>
    %cst_293 = arith.constant dense<0.000000e+00> : vector<2x32xf32>
    %1058 = tpu.matmul %1057, %508, %cst_293 {dimension_numbers = #tpu.dot_dimension_numbers<[1], [0], [0], [1], [0, 0, 1, 1], [], []>} : vector<2x32xf32>, vector<32x32xf32>, vector<2x32xf32> -> vector<2x32xf32>
    %1059 = vector.broadcast %509 : vector<1x32xf32> to vector<2x32xf32>
    %1060 = arith.addf %1058, %1059 : vector<2x32xf32>
    %1061 = vector.shape_cast %1060 : vector<2x32xf32> to vector<2x1x32xf32>
    %1062 = vector.broadcast %1061 : vector<2x1x32xf32> to vector<2x8x32xf32>
    %1063 = arith.addf %1062, %504 : vector<2x8x32xf32>
    %1064 = math.tanh %1063 : vector<2x8x32xf32>
    %1065 = vector.broadcast %511 : vector<1x1x32xf32> to vector<2x8x32xf32>
    %1066 = arith.mulf %1064, %1065 : vector<2x8x32xf32>
    %cst_294 = arith.constant dense<0.000000e+00> : vector<2x8xf32>
    %1067 = vector.multi_reduction <add>, %1066, %cst_294 [2] : vector<2x8x32xf32> to vector<2x8xf32>
    %cst_295 = arith.constant 0.000000e+00 : f32
    %1068 = vector.broadcast %cst_295 : f32 to vector<2x8xf32>
    %1069 = arith.cmpf ogt, %1021, %1068 : vector<2x8xf32>
    %cst_296 = arith.constant -1.000000e+30 : f32
    %1070 = vector.broadcast %cst_296 : f32 to vector<2x8xf32>
    %1071 = arith.select %1069, %1067, %1070 : vector<2x8xi1>, vector<2x8xf32>
    %cst_297 = arith.constant dense<0xFF800000> : vector<2xf32>
    %1072 = vector.multi_reduction <maximumf>, %1071, %cst_297 [1] : vector<2x8xf32> to vector<2xf32>
    %1073 = vector.shape_cast %1072 : vector<2xf32> to vector<2x1xf32>
    %1074 = vector.broadcast %1073 : vector<2x1xf32> to vector<2x8xf32>
    %1075 = arith.subf %1071, %1074 : vector<2x8xf32>
    %1076 = math.exp %1075 : vector<2x8xf32>
    %cst_298 = arith.constant dense<0.000000e+00> : vector<2xf32>
    %1077 = vector.multi_reduction <add>, %1076, %cst_298 [1] : vector<2x8xf32> to vector<2xf32>
    %1078 = vector.shape_cast %1077 : vector<2xf32> to vector<2x1xf32>
    %1079 = vector.broadcast %1078 : vector<2x1xf32> to vector<2x8xf32>
    %1080 = arith.divf %1076, %1079 : vector<2x8xf32>
    %1081 = vector.shape_cast %1080 : vector<2x8xf32> to vector<2x8x1xf32>
    %1082 = vector.broadcast %1081 : vector<2x8x1xf32> to vector<2x8x32xf32>
    %1083 = arith.mulf %504, %1082 : vector<2x8x32xf32>
    %cst_299 = arith.constant dense<0.000000e+00> : vector<2x32xf32>
    %1084 = vector.multi_reduction <add>, %1083, %cst_299 [1] : vector<2x8x32xf32> to vector<2x32xf32>
    %1085 = tpu.concatenate %1084, %1057 in 1 : vector<2x32xf32>, vector<2x32xf32> -> vector<2x64xf32>
    %cst_300 = arith.constant dense<0.000000e+00> : vector<2x32xf32>
    %1086 = tpu.matmul %1085, %512, %cst_300 {dimension_numbers = #tpu.dot_dimension_numbers<[1], [0], [0], [1], [0, 0, 1, 1], [], []>} : vector<2x64xf32>, vector<64x32xf32>, vector<2x32xf32> -> vector<2x32xf32>
    %1087 = vector.broadcast %513 : vector<1x32xf32> to vector<2x32xf32>
    %1088 = arith.addf %1086, %1087 : vector<2x32xf32>
    %1089 = math.tanh %1088 : vector<2x32xf32>
    %1090 = arith.mulf %1080, %1021 : vector<2x8xf32>
    %cst_301 = arith.constant dense<0xFF800000> : vector<2xf32>
    %1091 = vector.multi_reduction <maximumf>, %1090, %cst_301 [1] : vector<2x8xf32> to vector<2xf32>
    %1092 = vector.shape_cast %1091 : vector<2xf32> to vector<2x1xf32>
    %1093 = vector.broadcast %1092 : vector<2x1xf32> to vector<2x8xf32>
    %1094 = arith.cmpf oeq, %1090, %1093 : vector<2x8xf32>
    %c8_i32_302 = arith.constant 8 : i32
    %1095 = vector.broadcast %c8_i32_302 : i32 to vector<2x8xi32>
    %1096 = arith.select %1094, %524, %1095 : vector<2x8xi1>, vector<2x8xi32>
    %cst_303 = arith.constant dense<2147483647> : vector<2xi32>
    %1097 = vector.multi_reduction <minsi>, %1096, %cst_303 [1] : vector<2x8xi32> to vector<2xi32>
    %1098 = vector.shape_cast %1097 : vector<2xi32> to vector<2x1xi32>
    %1099 = vector.broadcast %1098 : vector<2x1xi32> to vector<2x8xi32>
    %1100 = arith.cmpi eq, %524, %1099 : vector<2x8xi32>
    %1101 = arith.extui %1100 : vector<2x8xi1> to vector<2x8xi32>
    %1102 = arith.sitofp %1101 : vector<2x8xi32> to vector<2x8xf32>
    %cst_304 = arith.constant 1.000000e+00 : f32
    %1103 = vector.broadcast %cst_304 : f32 to vector<2x8xf32>
    %1104 = arith.subf %1103, %1102 : vector<2x8xf32>
    %1105 = arith.mulf %1021, %1104 : vector<2x8xf32>
    %1106 = vector.shape_cast %1102 : vector<2x8xf32> to vector<2x8x1xf32>
    %1107 = vector.broadcast %1106 : vector<2x8x1xf32> to vector<2x8x128xf32>
    %1108 = arith.mulf %505, %1107 : vector<2x8x128xf32>
    %cst_305 = arith.constant dense<0.000000e+00> : vector<2x128xf32>
    %1109 = vector.multi_reduction <add>, %1108, %cst_305 [1] : vector<2x8x128xf32> to vector<2x128xf32>
    %1110 = vector.shape_cast %1080 : vector<2x8xf32> to vector<2x1x8xf32>
    %c0_306 = arith.constant 0 : index
    %c6_307 = arith.constant 6 : index
    %c0_308 = arith.constant 0 : index
    %1111 = vector.load %arg19[%c0_306, %c6_307, %c0_308] : memref<2x8x8xf32, #tpu.memory_space<vmem>>, vector<2x1x8xf32>
    tpu.vector_store %arg19[%c0_306, %c6_307, %c0_308], %1110 {strides = array<i32>} : memref<2x8x8xf32, #tpu.memory_space<vmem>>, vector<2x1x8xf32>,
    %c0_309 = arith.constant 0 : index
    %c6_310 = arith.constant 6 : index
    %1112 = vector.load %arg20[%c0_309, %c6_310] : memref<2x8xi32, #tpu.memory_space<vmem>>, vector<2x1xi32>
    tpu.vector_store %arg20[%c0_309, %c6_310], %1098 {strides = array<i32>} : memref<2x8xi32, #tpu.memory_space<vmem>>, vector<2x1xi32>,
    %cst_311 = arith.constant dense<0.000000e+00> : vector<2x128xf32>
    %1113 = tpu.matmul %1089, %506, %cst_311 {dimension_numbers = #tpu.dot_dimension_numbers<[1], [0], [0], [1], [0, 0, 1, 1], [], []>} : vector<2x32xf32>, vector<32x128xf32>, vector<2x128xf32> -> vector<2x128xf32>
    %1114 = arith.addf %1109, %1113 : vector<2x128xf32>
    %1115 = vector.broadcast %507 : vector<1x128xf32> to vector<2x128xf32>
    %1116 = arith.addf %1114, %1115 : vector<2x128xf32>
    %1117 = vector.extract_strided_slice %1116 {offsets = [0, 0], sizes = [2, 32], strides = [1, 1]} : vector<2x128xf32> to vector<2x32xf32>
    %1118 = arith.negf %1117 : vector<2x32xf32>
    %1119 = math.exp %1118 : vector<2x32xf32>
    %cst_312 = arith.constant 1.000000e+00 : f32
    %1120 = vector.broadcast %cst_312 : f32 to vector<2x32xf32>
    %1121 = arith.addf %1120, %1119 : vector<2x32xf32>
    %1122 = arith.divf %1120, %1121 : vector<2x32xf32>
    %1123 = vector.extract_strided_slice %1116 {offsets = [0, 32], sizes = [2, 32], strides = [1, 1]} : vector<2x128xf32> to vector<2x32xf32>
    %1124 = arith.negf %1123 : vector<2x32xf32>
    %1125 = math.exp %1124 : vector<2x32xf32>
    %cst_313 = arith.constant 1.000000e+00 : f32
    %1126 = vector.broadcast %cst_313 : f32 to vector<2x32xf32>
    %1127 = arith.addf %1126, %1125 : vector<2x32xf32>
    %1128 = arith.divf %1126, %1127 : vector<2x32xf32>
    %1129 = vector.extract_strided_slice %1116 {offsets = [0, 64], sizes = [2, 32], strides = [1, 1]} : vector<2x128xf32> to vector<2x32xf32>
    %1130 = math.tanh %1129 : vector<2x32xf32>
    %1131 = vector.extract_strided_slice %1116 {offsets = [0, 96], sizes = [2, 32], strides = [1, 1]} : vector<2x128xf32> to vector<2x32xf32>
    %1132 = arith.negf %1131 : vector<2x32xf32>
    %1133 = math.exp %1132 : vector<2x32xf32>
    %cst_314 = arith.constant 1.000000e+00 : f32
    %1134 = vector.broadcast %cst_314 : f32 to vector<2x32xf32>
    %1135 = arith.addf %1134, %1133 : vector<2x32xf32>
    %1136 = arith.divf %1134, %1135 : vector<2x32xf32>
    %1137 = arith.mulf %1128, %1055 : vector<2x32xf32>
    %1138 = arith.mulf %1122, %1130 : vector<2x32xf32>
    %1139 = arith.addf %1137, %1138 : vector<2x32xf32>
    %1140 = math.tanh %1139 : vector<2x32xf32>
    %1141 = arith.mulf %1136, %1140 : vector<2x32xf32>
    %cst_315 = arith.constant dense<0.000000e+00> : vector<2x32xf32>
    %1142 = tpu.matmul %1141, %508, %cst_315 {dimension_numbers = #tpu.dot_dimension_numbers<[1], [0], [0], [1], [0, 0, 1, 1], [], []>} : vector<2x32xf32>, vector<32x32xf32>, vector<2x32xf32> -> vector<2x32xf32>
    %1143 = vector.broadcast %509 : vector<1x32xf32> to vector<2x32xf32>
    %1144 = arith.addf %1142, %1143 : vector<2x32xf32>
    %1145 = vector.shape_cast %1144 : vector<2x32xf32> to vector<2x1x32xf32>
    %1146 = vector.broadcast %1145 : vector<2x1x32xf32> to vector<2x8x32xf32>
    %1147 = arith.addf %1146, %504 : vector<2x8x32xf32>
    %1148 = math.tanh %1147 : vector<2x8x32xf32>
    %1149 = vector.broadcast %511 : vector<1x1x32xf32> to vector<2x8x32xf32>
    %1150 = arith.mulf %1148, %1149 : vector<2x8x32xf32>
    %cst_316 = arith.constant dense<0.000000e+00> : vector<2x8xf32>
    %1151 = vector.multi_reduction <add>, %1150, %cst_316 [2] : vector<2x8x32xf32> to vector<2x8xf32>
    %cst_317 = arith.constant 0.000000e+00 : f32
    %1152 = vector.broadcast %cst_317 : f32 to vector<2x8xf32>
    %1153 = arith.cmpf ogt, %1105, %1152 : vector<2x8xf32>
    %cst_318 = arith.constant -1.000000e+30 : f32
    %1154 = vector.broadcast %cst_318 : f32 to vector<2x8xf32>
    %1155 = arith.select %1153, %1151, %1154 : vector<2x8xi1>, vector<2x8xf32>
    %cst_319 = arith.constant dense<0xFF800000> : vector<2xf32>
    %1156 = vector.multi_reduction <maximumf>, %1155, %cst_319 [1] : vector<2x8xf32> to vector<2xf32>
    %1157 = vector.shape_cast %1156 : vector<2xf32> to vector<2x1xf32>
    %1158 = vector.broadcast %1157 : vector<2x1xf32> to vector<2x8xf32>
    %1159 = arith.subf %1155, %1158 : vector<2x8xf32>
    %1160 = math.exp %1159 : vector<2x8xf32>
    %cst_320 = arith.constant dense<0.000000e+00> : vector<2xf32>
    %1161 = vector.multi_reduction <add>, %1160, %cst_320 [1] : vector<2x8xf32> to vector<2xf32>
    %1162 = vector.shape_cast %1161 : vector<2xf32> to vector<2x1xf32>
    %1163 = vector.broadcast %1162 : vector<2x1xf32> to vector<2x8xf32>
    %1164 = arith.divf %1160, %1163 : vector<2x8xf32>
    %1165 = arith.mulf %1164, %1105 : vector<2x8xf32>
    %cst_321 = arith.constant dense<0xFF800000> : vector<2xf32>
    %1166 = vector.multi_reduction <maximumf>, %1165, %cst_321 [1] : vector<2x8xf32> to vector<2xf32>
    %1167 = vector.shape_cast %1166 : vector<2xf32> to vector<2x1xf32>
    %1168 = vector.broadcast %1167 : vector<2x1xf32> to vector<2x8xf32>
    %1169 = arith.cmpf oeq, %1165, %1168 : vector<2x8xf32>
    %c8_i32_322 = arith.constant 8 : i32
    %1170 = vector.broadcast %c8_i32_322 : i32 to vector<2x8xi32>
    %1171 = arith.select %1169, %524, %1170 : vector<2x8xi1>, vector<2x8xi32>
    %cst_323 = arith.constant dense<2147483647> : vector<2xi32>
    %1172 = vector.multi_reduction <minsi>, %1171, %cst_323 [1] : vector<2x8xi32> to vector<2xi32>
    %1173 = vector.shape_cast %1172 : vector<2xi32> to vector<2x1xi32>
    %1174 = vector.shape_cast %1164 : vector<2x8xf32> to vector<2x1x8xf32>
    %c0_324 = arith.constant 0 : index
    %c7_325 = arith.constant 7 : index
    %c0_326 = arith.constant 0 : index
    %1175 = vector.load %arg19[%c0_324, %c7_325, %c0_326] : memref<2x8x8xf32, #tpu.memory_space<vmem>>, vector<2x1x8xf32>
    tpu.vector_store %arg19[%c0_324, %c7_325, %c0_326], %1174 {strides = array<i32>} : memref<2x8x8xf32, #tpu.memory_space<vmem>>, vector<2x1x8xf32>,
    %c0_327 = arith.constant 0 : index
    %c7_328 = arith.constant 7 : index
    %1176 = vector.load %arg20[%c0_327, %c7_328] : memref<2x8xi32, #tpu.memory_space<vmem>>, vector<2x1xi32>
    tpu.vector_store %arg20[%c0_327, %c7_328], %1173 {strides = array<i32>} : memref<2x8xi32, #tpu.memory_space<vmem>>, vector<2x1xi32>,
    return
  }
}

</mosaic_0001>

<llo_original>
// kernel: pointer_catalog_forward.1
$region0: #{pointer_catalog_forward.1}
  #allocation0 [shape = 'u32[]', space=smem, size = 0x4, offset = 0x4, fixed_abs, tag = 'smem constant byte address 0x4 - core index']
  #allocation1 [shape = 'u32[144,128]{1,0:T(1,128)}', space=vmem, size = 0x12000, scoped, tag = 'internal scratch']
  #allocation2 [shape = 'f32[2,8,32]{2,1,0:T(8,128)}', space=vmem, size = 0x2000, scoped, tag = 'scratch operand']
  #allocation3 [shape = 'f32[2,8,128]{2,1,0:T(8,128)}', space=vmem, size = 0x2000, scoped, tag = 'scratch operand']
  %s0 = inlined_call_operand.vmem [shape: f32[96,16], index: 0, kind: input, shape index: {}]
  %s1 = inlined_call_operand.vmem [shape: f32[16,96], index: 1, kind: input, shape index: {}]
  %s2 = inlined_call_operand.vmem [shape: f32[1,96], index: 2, kind: input, shape index: {}]
  %s3 = inlined_call_operand.vmem [shape: f32[32,96], index: 3, kind: input, shape index: {}]
  %s4 = inlined_call_operand.vmem [shape: f32[1,96], index: 4, kind: input, shape index: {}]
  %s5 = inlined_call_operand.vmem [shape: f32[32,256], index: 5, kind: input, shape index: {}]
  %s6 = inlined_call_operand.vmem [shape: f32[1,256], index: 6, kind: input, shape index: {}]
  %s7 = inlined_call_operand.vmem [shape: f32[32,128], index: 7, kind: input, shape index: {}]
  %s8 = inlined_call_operand.vmem [shape: f32[1,128], index: 8, kind: input, shape index: {}]
  %s9 = inlined_call_operand.vmem [shape: f32[32,32], index: 9, kind: input, shape index: {}]
  %s10 = inlined_call_operand.vmem [shape: f32[1,32], index: 10, kind: input, shape index: {}]
  %s11 = inlined_call_operand.vmem [shape: f32[32,128], index: 11, kind: input, shape index: {}]
  %s12 = inlined_call_operand.vmem [shape: f32[1,128], index: 12, kind: input, shape index: {}]
  %s13 = inlined_call_operand.vmem [shape: f32[32,32], index: 13, kind: input, shape index: {}]
  %s14 = inlined_call_operand.vmem [shape: f32[1,32], index: 14, kind: input, shape index: {}]
  %s15 = inlined_call_operand.vmem [shape: f32[1,32], index: 15, kind: input, shape index: {}]
  %s16 = inlined_call_operand.vmem [shape: f32[64,32], index: 16, kind: input, shape index: {}]
  %s17 = inlined_call_operand.vmem [shape: f32[1,32], index: 17, kind: input, shape index: {}]
  %s18 = inlined_call_operand.vmem [shape: f32[1,32], index: 18, kind: input, shape index: {}]
  %s19 = inlined_call_operand.hbm [shape: f32[2,8,8], index: 19, kind: output, shape index: {0}]
  %s20 = inlined_call_operand.hbm [shape: s32[2,8], index: 20, kind: output, shape index: {1}]
  %21 = xla_tuple %s19, %s20
  %s22 = sld [smem:[#allocation0]]
  $region94: #{pointer_catalog_forward.1} parent=0
    _
  %s24 = ssub.s32 1, %s22
  %s25 = scalar_select 0, %s24, %s22
  $region1: #{pointer_catalog_forward.1} parent=0
    #allocation4 [shape = 'u8[8192]{0}', space=vmem, size = 0x2000, scoped, tag = 'output window, operand 0, single buffered']
    #allocation5 [shape = 's32[1]{0}', space=sflag, size = 0x4, scoped, tag = 'scoped memory for pointer_catalog_forward.1']
    #allocation6 [shape = 'u8[1024]{0}', space=vmem, size = 0x400, scoped, tag = 'output window, operand 1, single buffered']
    #allocation7 [shape = 's32[1]{0}', space=sflag, size = 0x4, scoped, tag = 'scoped memory for pointer_catalog_forward.1']
    %26 = vsyncpa [#allocation5], 0
    %27 = vsyncpa [#allocation7], 0
    // Predicated region
    $region2: #{pointer_catalog_forward.1} parent=1 // pred_check
      _
    $region3: #{pointer_catalog_forward.1} parent=1 // pred_check_branch
      %29 = sbr.rel (0) target = $region5
    $region4: #{pointer_catalog_forward.1} parent=1 // pred_region
      _
    $region5: #{pointer_catalog_forward.1} parent=1 // pred_fallthru
      _
    // Predicated region
    $region6: #{pointer_catalog_forward.1} parent=1 // pred_check
      _
    $region7: #{pointer_catalog_forward.1} parent=1 // pred_check_branch
      %31 = sbr.rel (0) target = $region9
    $region8: #{pointer_catalog_forward.1} parent=1 // pred_region
      _
    $region9: #{pointer_catalog_forward.1} parent=1 // pred_fallthru
      _
    // Predicated region
    $region10: #{pointer_catalog_forward.1} parent=1 // pred_check
      _
    $region11: #{pointer_catalog_forward.1} parent=1 // pred_check_branch
      %33 = sbr.rel (0) target = $region13
    $region12: #{pointer_catalog_forward.1} parent=1 // pred_region
      _
    $region13: #{pointer_catalog_forward.1} parent=1 // pred_fallthru
      _
    // Predicated region
    $region14: #{pointer_catalog_forward.1} parent=1 // pred_check
      _
    $region15: #{pointer_catalog_forward.1} parent=1 // pred_check_branch
      %35 = sbr.rel (0) target = $region17
    $region16: #{pointer_catalog_forward.1} parent=1 // pred_region
      _
    $region17: #{pointer_catalog_forward.1} parent=1 // pred_fallthru
      _
    // Predicated region
    $region18: #{pointer_catalog_forward.1} parent=1 // pred_check
      _
    $region19: #{pointer_catalog_forward.1} parent=1 // pred_check_branch
      %37 = sbr.rel (0) target = $region21
    $region20: #{pointer_catalog_forward.1} parent=1 // pred_region
      _
    $region21: #{pointer_catalog_forward.1} parent=1 // pred_fallthru
      _
    // Predicated region
    $region22: #{pointer_catalog_forward.1} parent=1 // pred_check
      _
    $region23: #{pointer_catalog_forward.1} parent=1 // pred_check_branch
      %39 = sbr.rel (0) target = $region25
    $region24: #{pointer_catalog_forward.1} parent=1 // pred_region
      _
    $region25: #{pointer_catalog_forward.1} parent=1 // pred_fallthru
      _
    // Predicated region
    $region26: #{pointer_catalog_forward.1} parent=1 // pred_check
      _
    $region27: #{pointer_catalog_forward.1} parent=1 // pred_check_branch
      %41 = sbr.rel (0) target = $region29
    $region28: #{pointer_catalog_forward.1} parent=1 // pred_region
      _
    $region29: #{pointer_catalog_forward.1} parent=1 // pred_fallthru
      _
    // Predicated region
    $region30: #{pointer_catalog_forward.1} parent=1 // pred_check
      _
    $region31: #{pointer_catalog_forward.1} parent=1 // pred_check_branch
      %43 = sbr.rel (0) target = $region33
    $region32: #{pointer_catalog_forward.1} parent=1 // pred_region
      _
    $region33: #{pointer_catalog_forward.1} parent=1 // pred_fallthru
      _
    // Predicated region
    $region34: #{pointer_catalog_forward.1} parent=1 // pred_check
      _
    $region35: #{pointer_catalog_forward.1} parent=1 // pred_check_branch
      %45 = sbr.rel (0) target = $region37
    $region36: #{pointer_catalog_forward.1} parent=1 // pred_region
      _
    $region37: #{pointer_catalog_forward.1} parent=1 // pred_fallthru
      _
    // Predicated region
    $region38: #{pointer_catalog_forward.1} parent=1 // pred_check
      _
    $region39: #{pointer_catalog_forward.1} parent=1 // pred_check_branch
      %47 = sbr.rel (0) target = $region41
    $region40: #{pointer_catalog_forward.1} parent=1 // pred_region
      _
    $region41: #{pointer_catalog_forward.1} parent=1 // pred_fallthru
      _
    // Predicated region
    $region42: #{pointer_catalog_forward.1} parent=1 // pred_check
      _
    $region43: #{pointer_catalog_forward.1} parent=1 // pred_check_branch
      %49 = sbr.rel (0) target = $region45
    $region44: #{pointer_catalog_forward.1} parent=1 // pred_region
      _
    $region45: #{pointer_catalog_forward.1} parent=1 // pred_fallthru
      _
    // Predicated region
    $region46: #{pointer_catalog_forward.1} parent=1 // pred_check
      _
    $region47: #{pointer_catalog_forward.1} parent=1 // pred_check_branch
      %51 = sbr.rel (0) target = $region49
    $region48: #{pointer_catalog_forward.1} parent=1 // pred_region
      _
    $region49: #{pointer_catalog_forward.1} parent=1 // pred_fallthru
      _
    // Predicated region
    $region50: #{pointer_catalog_forward.1} parent=1 // pred_check
      _
    $region51: #{pointer_catalog_forward.1} parent=1 // pred_check_branch
      %53 = sbr.rel (0) target = $region53
    $region52: #{pointer_catalog_forward.1} parent=1 // pred_region
      _
    $region53: #{pointer_catalog_forward.1} parent=1 // pred_fallthru
      _
    // Predicated region
    $region54: #{pointer_catalog_forward.1} parent=1 // pred_check
      _
    $region55: #{pointer_catalog_forward.1} parent=1 // pred_check_branch
      %55 = sbr.rel (0) target = $region57
    $region56: #{pointer_catalog_forward.1} parent=1 // pred_region
      _
    $region57: #{pointer_catalog_forward.1} parent=1 // pred_fallthru
      _
    // Predicated region
    $region58: #{pointer_catalog_forward.1} parent=1 // pred_check
      _
    $region59: #{pointer_catalog_forward.1} parent=1 // pred_check_branch
      %57 = sbr.rel (0) target = $region61
    $region60: #{pointer_catalog_forward.1} parent=1 // pred_region
      _
    $region61: #{pointer_catalog_forward.1} parent=1 // pred_fallthru
      _
    // Predicated region
    $region62: #{pointer_catalog_forward.1} parent=1 // pred_check
      _
    $region63: #{pointer_catalog_forward.1} parent=1 // pred_check_branch
      %59 = sbr.rel (0) target = $region65
    $region64: #{pointer_catalog_forward.1} parent=1 // pred_region
      _
    $region65: #{pointer_catalog_forward.1} parent=1 // pred_fallthru
      _
    // Predicated region
    $region66: #{pointer_catalog_forward.1} parent=1 // pred_check
      _
    $region67: #{pointer_catalog_forward.1} parent=1 // pred_check_branch
      %61 = sbr.rel (0) target = $region69
    $region68: #{pointer_catalog_forward.1} parent=1 // pred_region
      _
    $region69: #{pointer_catalog_forward.1} parent=1 // pred_fallthru
      _
    // Predicated region
    $region70: #{pointer_catalog_forward.1} parent=1 // pred_check
      _
    $region71: #{pointer_catalog_forward.1} parent=1 // pred_check_branch
      %63 = sbr.rel (0) target = $region73
    $region72: #{pointer_catalog_forward.1} parent=1 // pred_region
      _
    $region73: #{pointer_catalog_forward.1} parent=1 // pred_fallthru
      _
    // Predicated region
    $region74: #{pointer_catalog_forward.1} parent=1 // pred_check
      _
    $region75: #{pointer_catalog_forward.1} parent=1 // pred_check_branch
      %65 = sbr.rel (0) target = $region77
    $region76: #{pointer_catalog_forward.1} parent=1 // pred_region
      _
    $region77: #{pointer_catalog_forward.1} parent=1 // pred_fallthru
      _
    %v66 = vld [vmem:[%s0] sm:$0xff]
    %v67 = vld [vmem:[%s0 + $0x8] sm:$0xff]
    %v68 = vld [vmem:[%s0 + $0x10] sm:$0xff]
    %v69 = vld [vmem:[%s0 + $0x18] sm:$0xff]
    %v70 = vld [vmem:[%s0 + $0x20] sm:$0xff]
    %v71 = vld [vmem:[%s0 + $0x28] sm:$0xff]
    %v72 = vld [vmem:[%s0 + $0x30] sm:$0xff]
    %v73 = vld [vmem:[%s0 + $0x38] sm:$0xff]
    %v74 = vld [vmem:[%s0 + $0x40] sm:$0xff]
    %v75 = vld [vmem:[%s0 + $0x48] sm:$0xff]
    %v76 = vld [vmem:[%s0 + $0x50] sm:$0xff]
    %v77 = vld [vmem:[%s0 + $0x58] sm:$0xff]
    %v78 = vld [vmem:[%s1] sm:$0xff]
    %v79 = vld [vmem:[%s1 + $0x8] sm:$0xff]
    %v80 = vld [vmem:[%s2] sm:$0x1]
    %v82 = vlaneseq
    %v83 = vshrl.u32 %v82, 7
    %v84 = vsub.s32 0, %v83
    %v85 = vrot.slane %v80, %v84
    %vm87 = vcmask 130048
    %v89 = vsel %vm87, %v66, 0
    %v92 = vsel %vm87, %v67, 0
    %v95 = vsel %vm87, %v68, 0
    %v98 = vsel %vm87, %v69, 0
    %v101 = vsel %vm87, %v70, 0
    %v104 = vsel %vm87, %v71, 0
    %v107 = vsel %vm87, %v72, 0
    %v110 = vsel %vm87, %v73, 0
    %v113 = vsel %vm87, %v74, 0
    %v116 = vsel %vm87, %v75, 0
    %v119 = vsel %vm87, %v76, 0
    %v122 = vsel %vm87, %v77, 0
    %124 = vmatprep.subr.mxu0 0.0
    %125 = vmatpush1.msra.mxu0 0.0
    %126 = vmatprep.subr.mxu0 0.0
    %127 = vmatpush1.msra.mxu0 0.0
    %128 = vmatprep.subr.mxu0 0.0
    %129 = vmatpush1.msra.mxu0 0.0
    %130 = vmatprep.subr.mxu0 0.0
    %131 = vmatpush1.msra.mxu0 0.0
    %132 = vmatprep.subr.mxu0 0.0
    %133 = vmatpush1.msra.mxu0 0.0
    %134 = vmatprep.subr.mxu0 0.0
    %135 = vmatpush1.msra.mxu0 0.0
    %136 = vmatprep.subr.mxu0 0.0
    %137 = vmatpush1.msra.mxu0 0.0
    %138 = vmatprep.subr.mxu0 0.0
    %139 = vmatpush1.msra.mxu0 0.0
    %140 = vmatprep.subr.mxu0 0.0
    %141 = vmatpush1.msra.mxu0 0.0
    %142 = vmatprep.subr.mxu0 0.0
    %143 = vmatpush1.msra.mxu0 0.0
    %144 = vmatprep.subr.mxu0 0.0
    %145 = vmatpush1.msra.mxu0 0.0
    %146 = vmatprep.subr.mxu0 0.0
    %147 = vmatpush1.msra.mxu0 0.0
    %148 = vmatprep.subr.mxu0 0.0
    %149 = vmatpush1.msra.mxu0 0.0
    %150 = vmatprep.subr.mxu0 0.0
    %151 = vmatpush1.msra.mxu0 0.0
    %152 = vmatprep.subr.mxu0 0.0
    %153 = vmatpush1.msra.mxu0 %v79
    %154 = vmatprep.subr.mxu0 0.0
    %155 = vmatpush1.msra.mxu0 %v78
    %156 = vmatprep.subr.mxu0 0.0
    %157 = vmatpush2.msra.mxu0 0.0
    %158 = vmatprep.subr.mxu0 0.0
    %159 = vmatpush2.msra.mxu0 0.0
    %160 = vmatprep.subr.mxu0 0.0
    %161 = vmatpush2.msra.mxu0 0.0
    %162 = vmatprep.subr.mxu0 0.0
    %163 = vmatpush2.msra.mxu0 0.0
    %164 = vmatprep.subr.mxu0 0.0
    %165 = vmatpush2.msra.mxu0 0.0
    %166 = vmatprep.subr.mxu0 0.0
    %167 = vmatpush2.msra.mxu0 0.0
    %168 = vmatprep.subr.mxu0 0.0
    %169 = vmatpush2.msra.mxu0 0.0
    %170 = vmatprep.subr.mxu0 0.0
    %171 = vmatpush2.msra.mxu0 0.0
    %172 = vmatprep.subr.mxu0 0.0
    %173 = vmatpush2.msra.mxu0 0.0
    %174 = vmatprep.subr.mxu0 0.0
    %175 = vmatpush2.msra.mxu0 0.0
    %176 = vmatprep.subr.mxu0 0.0
    %177 = vmatpush2.msra.mxu0 0.0
    %178 = vmatprep.subr.mxu0 0.0
    %179 = vmatpush2.msra.mxu0 0.0
    %180 = vmatprep.subr.mxu0 0.0
    %181 = vmatpush2.msra.mxu0 0.0
    %182 = vmatprep.subr.mxu0 0.0
    %183 = vmatpush2.msra.mxu0 0.0
    %184 = vmatprep.subr.mxu0 0.0
    %185 = vmatpush2.msra.mxu0 0.0
    %186 = vmatprep.subr.mxu0 0.0
    %187 = vmatpush2.msra.mxu0 0.0
    %188 = vmatprep.mubr.f32.mxu0 0.0
    %189 = vmatmul.mubr.f32.gmra.mxu0 %v89
    %v190 = vpop.f32.mrf.mxu0
    %v191 = vadd.f32 %v85, %v190
    %v192 = vpop.f32.mrf.mxu0
    %193 = vmatprep.mubr.f32.mxu0 0.0
    %194 = vmatmul.mubr.f32.gmra.mxu0 %v92
    %v195 = vpop.f32.mrf.mxu0
    %v196 = vadd.f32 %v85, %v195
    %v197 = vpop.f32.mrf.mxu0
    %198 = vmatprep.mubr.f32.mxu0 0.0
    %199 = vmatmul.mubr.f32.gmra.mxu0 %v95
    %v200 = vpop.f32.mrf.mxu0
    %v201 = vadd.f32 %v85, %v200
    %v202 = vpop.f32.mrf.mxu0
    %203 = vmatprep.mubr.f32.mxu0 0.0
    %204 = vmatmul.mubr.f32.gmra.mxu0 %v98
    %v205 = vpop.f32.mrf.mxu0
    %v206 = vadd.f32 %v85, %v205
    %v207 = vpop.f32.mrf.mxu0
    %208 = vmatprep.mubr.f32.mxu0 0.0
    %209 = vmatmul.mubr.f32.gmra.mxu0 %v101
    %v210 = vpop.f32.mrf.mxu0
    %v211 = vadd.f32 %v85, %v210
    %v212 = vpop.f32.mrf.mxu0
    %213 = vmatprep.mubr.f32.mxu0 0.0
    %214 = vmatmul.mubr.f32.gmra.mxu0 %v104
    %v215 = vpop.f32.mrf.mxu0
    %v216 = vadd.f32 %v85, %v215
    %v217 = vpop.f32.mrf.mxu0
    %218 = vmatprep.mubr.f32.mxu0 0.0
    %219 = vmatmul.mubr.f32.gmra.mxu0 %v107
    %v220 = vpop.f32.mrf.mxu0
    %v221 = vadd.f32 %v85, %v220
    %v222 = vpop.f32.mrf.mxu0
    %223 = vmatprep.mubr.f32.mxu0 0.0
    %224 = vmatmul.mubr.f32.gmra.mxu0 %v110
    %v225 = vpop.f32.mrf.mxu0
    %v226 = vadd.f32 %v85, %v225
    %v227 = vpop.f32.mrf.mxu0
    %228 = vmatprep.mubr.f32.mxu0 0.0
    %229 = vmatmul.mubr.f32.gmra.mxu0 %v113
    %v230 = vpop.f32.mrf.mxu0
    %v231 = vadd.f32 %v85, %v230
    %v232 = vpop.f32.mrf.mxu0
    %233 = vmatprep.mubr.f32.mxu0 0.0
    %234 = vmatmul.mubr.f32.gmra.mxu0 %v116
    %v235 = vpop.f32.mrf.mxu0
    %v236 = vadd.f32 %v85, %v235
    %v237 = vpop.f32.mrf.mxu0
    %238 = vmatprep.mubr.f32.mxu0 0.0
    %239 = vmatmul.mubr.f32.gmra.mxu0 %v119
    %v240 = vpop.f32.mrf.mxu0
    %v241 = vadd.f32 %v85, %v240
    %v242 = vpop.f32.mrf.mxu0
    %243 = vmatprep.mubr.f32.mxu0 0.0
    %244 = vmatmul.mubr.f32.gmra.mxu0 %v122
    %v245 = vpop.f32.mrf.mxu0
    %v246 = vadd.f32 %v85, %v245
    %v247 = vpop.f32.mrf.mxu0
    %248 = vdwg.mxu0
    %v249 = vld [vmem:[%s3] sm:$0xff]
    %v250 = vld [vmem:[%s3 + $0x8] sm:$0xff]
    %v251 = vld [vmem:[%s3 + $0x10] sm:$0xff]
    %v252 = vld [vmem:[%s3 + $0x18] sm:$0xff]
    %v253 = vld [vmem:[%s4] sm:$0x1]
    %v255 = vlaneseq
    %v256 = vshrl.u32 %v255, 7
    %v257 = vsub.s32 0, %v256
    %v258 = vrot.slane %v253, %v257
    %vm260 = vcmask 261120
    %v262 = vsel %vm260, 0.0, 0
    %264 = vmatprep.subr.mxu0 0.0
    %265 = vmatpush1.msra.mxu0 0.0
    %266 = vmatprep.subr.mxu0 0.0
    %267 = vmatpush1.msra.mxu0 0.0
    %268 = vmatprep.subr.mxu0 0.0
    %269 = vmatpush1.msra.mxu0 0.0
    %270 = vmatprep.subr.mxu0 0.0
    %271 = vmatpush1.msra.mxu0 0.0
    %272 = vmatprep.subr.mxu0 0.0
    %273 = vmatpush1.msra.mxu0 0.0
    %274 = vmatprep.subr.mxu0 0.0
    %275 = vmatpush1.msra.mxu0 0.0
    %276 = vmatprep.subr.mxu0 0.0
    %277 = vmatpush1.msra.mxu0 0.0
    %278 = vmatprep.subr.mxu0 0.0
    %279 = vmatpush1.msra.mxu0 0.0
    %280 = vmatprep.subr.mxu0 0.0
    %281 = vmatpush1.msra.mxu0 0.0
    %282 = vmatprep.subr.mxu0 0.0
    %283 = vmatpush1.msra.mxu0 0.0
    %284 = vmatprep.subr.mxu0 0.0
    %285 = vmatpush1.msra.mxu0 0.0
    %286 = vmatprep.subr.mxu0 0.0
    %287 = vmatpush1.msra.mxu0 0.0
    %288 = vmatprep.subr.mxu0 0.0
    %289 = vmatpush1.msra.mxu0 %v252
    %290 = vmatprep.subr.mxu0 0.0
    %291 = vmatpush1.msra.mxu0 %v251
    %292 = vmatprep.subr.mxu0 0.0
    %293 = vmatpush1.msra.mxu0 %v250
    %294 = vmatprep.subr.mxu0 0.0
    %295 = vmatpush1.msra.mxu0 %v249
    %296 = vmatprep.subr.mxu0 0.0
    %297 = vmatpush2.msra.mxu0 0.0
    %298 = vmatprep.subr.mxu0 0.0
    %299 = vmatpush2.msra.mxu0 0.0
    %300 = vmatprep.subr.mxu0 0.0
    %301 = vmatpush2.msra.mxu0 0.0
    %302 = vmatprep.subr.mxu0 0.0
    %303 = vmatpush2.msra.mxu0 0.0
    %304 = vmatprep.subr.mxu0 0.0
    %305 = vmatpush2.msra.mxu0 0.0
    %306 = vmatprep.subr.mxu0 0.0
    %307 = vmatpush2.msra.mxu0 0.0
    %308 = vmatprep.subr.mxu0 0.0
    %309 = vmatpush2.msra.mxu0 0.0
    %310 = vmatprep.subr.mxu0 0.0
    %311 = vmatpush2.msra.mxu0 0.0
    %312 = vmatprep.subr.mxu0 0.0
    %313 = vmatpush2.msra.mxu0 0.0
    %314 = vmatprep.subr.mxu0 0.0
    %315 = vmatpush2.msra.mxu0 0.0
    %316 = vmatprep.subr.mxu0 0.0
    %317 = vmatpush2.msra.mxu0 0.0
    %318 = vmatprep.subr.mxu0 0.0
    %319 = vmatpush2.msra.mxu0 0.0
    %320 = vmatprep.subr.mxu0 0.0
    %321 = vmatpush2.msra.mxu0 0.0
    %322 = vmatprep.subr.mxu0 0.0
    %323 = vmatpush2.msra.mxu0 0.0
    %324 = vmatprep.subr.mxu0 0.0
    %325 = vmatpush2.msra.mxu0 0.0
    %326 = vmatprep.subr.mxu0 0.0
    %327 = vmatpush2.msra.mxu0 0.0
    %328 = vmatprep.mubr.f32.mxu0 0.0
    %329 = vmatmul.mubr.f32.gmra.mxu0 %v262
    %v330 = vpop.f32.mrf.mxu0
    %v331 = vadd.f32 %v258, %v330
    %v332 = vpop.f32.mrf.mxu0
    %333 = vmatprep.mubr.f32.mxu0 0.0
    %334 = vmatmul.mubr.f32.gmra.mxu0 %v262
    %v335 = vpop.f32.mrf.mxu0
    %v336 = vadd.f32 %v258, %v335
    %v337 = vpop.f32.mrf.mxu0
    %338 = vdwg.mxu0
    %v339 = vadd.f32 %v191, %v331
    %v340 = vadd.f32 %v196, %v336
    %v341 = vxor.u32 %v339, 2147483648
    %v342 = vxor.u32 %v340, 2147483648
    %v343 = vmul.f32 %v341, 1.442695
    %v344 = vpow.pop %v343
    %v345 = vmul.f32 %v342, 1.442695
    %v346 = vpow.pop %v345
    %v347 = vadd.f32 %v344, 1.0
    %v348 = vadd.f32 %v346, 1.0
    %v349 = vrcp.pop %v347
    %v350 = vmul.f32 1.0, %v349
    %v351 = vrcp.pop %v348
    %v352 = vmul.f32 1.0, %v351
    %355 = vrot.lane.b32.xlu0 %v331, 64
    %v356 = vpop.permute.xlu0 %355
    %357 = vrot.lane.b32.xlu0 %v336, 64
    %v358 = vpop.permute.xlu0 %357
    %v361 = vmul.f32 %v350, %v356
    %v362 = vmul.f32 %v352, %v358
    %365 = vrot.lane.b32.xlu0 %v361, 64
    %v366 = vpop.permute.xlu0 %365
    %367 = vrot.lane.b32.xlu0 %v362, 64
    %v368 = vpop.permute.xlu0 %367
    %v371 = vadd.f32 %v191, %v366
    %v372 = vadd.f32 %v196, %v368
    %v373 = vtanh.pop %v371
    %v374 = vtanh.pop %v372
    %v375 = vsub.f32 1.0, %v350
    %v376 = vsub.f32 1.0, %v352
    %379 = vrot.lane.b32.xlu0 %v373, 96
    %v380 = vpop.permute.xlu0 %379
    %381 = vrot.lane.b32.xlu0 %v374, 96
    %v382 = vpop.permute.xlu0 %381
    %v385 = vmul.f32 %v375, %v380
    %v386 = vmul.f32 %v376, %v382
    %v387 = vmul.f32 %v350, 0.0
    %v388 = vmul.f32 %v352, 0.0
    %v389 = vadd.f32 %v385, %v387
    %v390 = vadd.f32 %v386, %v388
    %393 = vrot.lane.b32.xlu0 %v389, 96
    %v394 = vpop.permute.xlu0 %393
    %395 = vrot.lane.b32.xlu0 %v390, 96
    %v396 = vpop.permute.xlu0 %395
    %v397 = vsel %vm260, %v394, 0
    %v399 = vsel %vm260, %v396, 0
    %401 = vmatprep.subr.mxu0 0.0
    %402 = vmatpush1.msra.mxu0 0.0
    %403 = vmatprep.subr.mxu0 0.0
    %404 = vmatpush1.msra.mxu0 0.0
    %405 = vmatprep.subr.mxu0 0.0
    %406 = vmatpush1.msra.mxu0 0.0
    %407 = vmatprep.subr.mxu0 0.0
    %408 = vmatpush1.msra.mxu0 0.0
    %409 = vmatprep.subr.mxu0 0.0
    %410 = vmatpush1.msra.mxu0 0.0
    %411 = vmatprep.subr.mxu0 0.0
    %412 = vmatpush1.msra.mxu0 0.0
    %413 = vmatprep.subr.mxu0 0.0
    %414 = vmatpush1.msra.mxu0 0.0
    %415 = vmatprep.subr.mxu0 0.0
    %416 = vmatpush1.msra.mxu0 0.0
    %417 = vmatprep.subr.mxu0 0.0
    %418 = vmatpush1.msra.mxu0 0.0
    %419 = vmatprep.subr.mxu0 0.0
    %420 = vmatpush1.msra.mxu0 0.0
    %421 = vmatprep.subr.mxu0 0.0
    %422 = vmatpush1.msra.mxu0 0.0
    %423 = vmatprep.subr.mxu0 0.0
    %424 = vmatpush1.msra.mxu0 0.0
    %425 = vmatprep.subr.mxu0 0.0
    %426 = vmatpush1.msra.mxu0 %v252
    %427 = vmatprep.subr.mxu0 0.0
    %428 = vmatpush1.msra.mxu0 %v251
    %429 = vmatprep.subr.mxu0 0.0
    %430 = vmatpush1.msra.mxu0 %v250
    %431 = vmatprep.subr.mxu0 0.0
    %432 = vmatpush1.msra.mxu0 %v249
    %433 = vmatprep.subr.mxu0 0.0
    %434 = vmatpush2.msra.mxu0 0.0
    %435 = vmatprep.subr.mxu0 0.0
    %436 = vmatpush2.msra.mxu0 0.0
    %437 = vmatprep.subr.mxu0 0.0
    %438 = vmatpush2.msra.mxu0 0.0
    %439 = vmatprep.subr.mxu0 0.0
    %440 = vmatpush2.msra.mxu0 0.0
    %441 = vmatprep.subr.mxu0 0.0
    %442 = vmatpush2.msra.mxu0 0.0
    %443 = vmatprep.subr.mxu0 0.0
    %444 = vmatpush2.msra.mxu0 0.0
    %445 = vmatprep.subr.mxu0 0.0
    %446 = vmatpush2.msra.mxu0 0.0
    %447 = vmatprep.subr.mxu0 0.0
    %448 = vmatpush2.msra.mxu0 0.0
    %449 = vmatprep.subr.mxu0 0.0
    %450 = vmatpush2.msra.mxu0 0.0
    %451 = vmatprep.subr.mxu0 0.0
    %452 = vmatpush2.msra.mxu0 0.0
    %453 = vmatprep.subr.mxu0 0.0
    %454 = vmatpush2.msra.mxu0 0.0
    %455 = vmatprep.subr.mxu0 0.0
    %456 = vmatpush2.msra.mxu0 0.0
    %457 = vmatprep.subr.mxu0 0.0
    %458 = vmatpush2.msra.mxu0 0.0
    %459 = vmatprep.subr.mxu0 0.0
    %460 = vmatpush2.msra.mxu0 0.0
    %461 = vmatprep.subr.mxu0 0.0
    %462 = vmatpush2.msra.mxu0 0.0
    %463 = vmatprep.subr.mxu0 0.0
    %464 = vmatpush2.msra.mxu0 0.0
    %465 = vmatprep.mubr.f32.mxu0 0.0
    %466 = vmatmul.mubr.f32.gmra.mxu0 %v397
    %v467 = vpop.f32.mrf.mxu0
    %v468 = vadd.f32 %v258, %v467
    %v469 = vpop.f32.mrf.mxu0
    %470 = vmatprep.mubr.f32.mxu0 0.0
    %471 = vmatmul.mubr.f32.gmra.mxu0 %v399
    %v472 = vpop.f32.mrf.mxu0
    %v473 = vadd.f32 %v258, %v472
    %v474 = vpop.f32.mrf.mxu0
    %475 = vdwg.mxu0
    %v476 = vadd.f32 %v201, %v468
    %v477 = vadd.f32 %v206, %v473
    %v478 = vxor.u32 %v476, 2147483648
    %v479 = vxor.u32 %v477, 2147483648
    %v480 = vmul.f32 %v478, 1.442695
    %v481 = vpow.pop %v480
    %v482 = vmul.f32 %v479, 1.442695
    %v483 = vpow.pop %v482
    %v484 = vadd.f32 %v481, 1.0
    %v485 = vadd.f32 %v483, 1.0
    %v486 = vrcp.pop %v484
    %v487 = vmul.f32 1.0, %v486
    %v488 = vrcp.pop %v485
    %v489 = vmul.f32 1.0, %v488
    %492 = vrot.lane.b32.xlu0 %v468, 64
    %v493 = vpop.permute.xlu0 %492
    %494 = vrot.lane.b32.xlu0 %v473, 64
    %v495 = vpop.permute.xlu0 %494
    %v498 = vmul.f32 %v487, %v493
    %v499 = vmul.f32 %v489, %v495
    %502 = vrot.lane.b32.xlu0 %v498, 64
    %v503 = vpop.permute.xlu0 %502
    %504 = vrot.lane.b32.xlu0 %v499, 64
    %v505 = vpop.permute.xlu0 %504
    %v508 = vadd.f32 %v201, %v503
    %v509 = vadd.f32 %v206, %v505
    %v510 = vtanh.pop %v508
    %v511 = vtanh.pop %v509
    %v512 = vsub.f32 1.0, %v487
    %v513 = vsub.f32 1.0, %v489
    %516 = vrot.lane.b32.xlu0 %v510, 96
    %v517 = vpop.permute.xlu0 %516
    %518 = vrot.lane.b32.xlu0 %v511, 96
    %v519 = vpop.permute.xlu0 %518
    %v522 = vmul.f32 %v512, %v517
    %v523 = vmul.f32 %v513, %v519
    %v524 = vmul.f32 %v487, %v389
    %v525 = vmul.f32 %v489, %v390
    %v526 = vadd.f32 %v522, %v524
    %v527 = vadd.f32 %v523, %v525
    %530 = vrot.lane.b32.xlu0 %v526, 96
    %v531 = vpop.permute.xlu0 %530
    %532 = vrot.lane.b32.xlu0 %v527, 96
    %v533 = vpop.permute.xlu0 %532
    %v534 = vsel %vm260, %v531, 0
    %v536 = vsel %vm260, %v533, 0
    %538 = vmatprep.subr.mxu0 0.0
    %539 = vmatpush1.msra.mxu0 0.0
    %540 = vmatprep.subr.mxu0 0.0
    %541 = vmatpush1.msra.mxu0 0.0
    %542 = vmatprep.subr.mxu0 0.0
    %543 = vmatpush1.msra.mxu0 0.0
    %544 = vmatprep.subr.mxu0 0.0
    %545 = vmatpush1.msra.mxu0 0.0
    %546 = vmatprep.subr.mxu0 0.0
    %547 = vmatpush1.msra.mxu0 0.0
    %548 = vmatprep.subr.mxu0 0.0
    %549 = vmatpush1.msra.mxu0 0.0
    %550 = vmatprep.subr.mxu0 0.0
    %551 = vmatpush1.msra.mxu0 0.0
    %552 = vmatprep.subr.mxu0 0.0
    %553 = vmatpush1.msra.mxu0 0.0
    %554 = vmatprep.subr.mxu0 0.0
    %555 = vmatpush1.msra.mxu0 0.0
    %556 = vmatprep.subr.mxu0 0.0
    %557 = vmatpush1.msra.mxu0 0.0
    %558 = vmatprep.subr.mxu0 0.0
    %559 = vmatpush1.msra.mxu0 0.0
    %560 = vmatprep.subr.mxu0 0.0
    %561 = vmatpush1.msra.mxu0 0.0
    %562 = vmatprep.subr.mxu0 0.0
    %563 = vmatpush1.msra.mxu0 %v252
    %564 = vmatprep.subr.mxu0 0.0
    %565 = vmatpush1.msra.mxu0 %v251
    %566 = vmatprep.subr.mxu0 0.0
    %567 = vmatpush1.msra.mxu0 %v250
    %568 = vmatprep.subr.mxu0 0.0
    %569 = vmatpush1.msra.mxu0 %v249
    %570 = vmatprep.subr.mxu0 0.0
    %571 = vmatpush2.msra.mxu0 0.0
    %572 = vmatprep.subr.mxu0 0.0
    %573 = vmatpush2.msra.mxu0 0.0
    %574 = vmatprep.subr.mxu0 0.0
    %575 = vmatpush2.msra.mxu0 0.0
    %576 = vmatprep.subr.mxu0 0.0
    %577 = vmatpush2.msra.mxu0 0.0
    %578 = vmatprep.subr.mxu0 0.0
    %579 = vmatpush2.msra.mxu0 0.0
    %580 = vmatprep.subr.mxu0 0.0
    %581 = vmatpush2.msra.mxu0 0.0
    %582 = vmatprep.subr.mxu0 0.0
    %583 = vmatpush2.msra.mxu0 0.0
    %584 = vmatprep.subr.mxu0 0.0
    %585 = vmatpush2.msra.mxu0 0.0
    %586 = vmatprep.subr.mxu0 0.0
    %587 = vmatpush2.msra.mxu0 0.0
    %588 = vmatprep.subr.mxu0 0.0
    %589 = vmatpush2.msra.mxu0 0.0
    %590 = vmatprep.subr.mxu0 0.0
    %591 = vmatpush2.msra.mxu0 0.0
    %592 = vmatprep.subr.mxu0 0.0
    %593 = vmatpush2.msra.mxu0 0.0
    %594 = vmatprep.subr.mxu0 0.0
    %595 = vmatpush2.msra.mxu0 0.0
    %596 = vmatprep.subr.mxu0 0.0
    %597 = vmatpush2.msra.mxu0 0.0
    %598 = vmatprep.subr.mxu0 0.0
    %599 = vmatpush2.msra.mxu0 0.0
    %600 = vmatprep.subr.mxu0 0.0
    %601 = vmatpush2.msra.mxu0 0.0
    %602 = vmatprep.mubr.f32.mxu0 0.0
    %603 = vmatmul.mubr.f32.gmra.mxu0 %v534
    %v604 = vpop.f32.mrf.mxu0
    %v605 = vadd.f32 %v258, %v604
    %v606 = vpop.f32.mrf.mxu0
    %607 = vmatprep.mubr.f32.mxu0 0.0
    %608 = vmatmul.mubr.f32.gmra.mxu0 %v536
    %v609 = vpop.f32.mrf.mxu0
    %v610 = vadd.f32 %v258, %v609
    %v611 = vpop.f32.mrf.mxu0
    %612 = vdwg.mxu0
    %v613 = vadd.f32 %v211, %v605
    %v614 = vadd.f32 %v216, %v610
    %v615 = vxor.u32 %v613, 2147483648
    %v616 = vxor.u32 %v614, 2147483648
    %v617 = vmul.f32 %v615, 1.442695
    %v618 = vpow.pop %v617
    %v619 = vmul.f32 %v616, 1.442695
    %v620 = vpow.pop %v619
    %v621 = vadd.f32 %v618, 1.0
    %v622 = vadd.f32 %v620, 1.0
    %v623 = vrcp.pop %v621
    %v624 = vmul.f32 1.0, %v623
    %v625 = vrcp.pop %v622
    %v626 = vmul.f32 1.0, %v625
    %629 = vrot.lane.b32.xlu0 %v605, 64
    %v630 = vpop.permute.xlu0 %629
    %631 = vrot.lane.b32.xlu0 %v610, 64
    %v632 = vpop.permute.xlu0 %631
    %v635 = vmul.f32 %v624, %v630
    %v636 = vmul.f32 %v626, %v632
    %639 = vrot.lane.b32.xlu0 %v635, 64
    %v640 = vpop.permute.xlu0 %639
    %641 = vrot.lane.b32.xlu0 %v636, 64
    %v642 = vpop.permute.xlu0 %641
    %v645 = vadd.f32 %v211, %v640
    %v646 = vadd.f32 %v216, %v642
    %v647 = vtanh.pop %v645
    %v648 = vtanh.pop %v646
    %v649 = vsub.f32 1.0, %v624
    %v650 = vsub.f32 1.0, %v626
    %653 = vrot.lane.b32.xlu0 %v647, 96
    %v654 = vpop.permute.xlu0 %653
    %655 = vrot.lane.b32.xlu0 %v648, 96
    %v656 = vpop.permute.xlu0 %655
    %v659 = vmul.f32 %v649, %v654
    %v660 = vmul.f32 %v650, %v656
    %v661 = vmul.f32 %v624, %v526
    %v662 = vmul.f32 %v626, %v527
    %v663 = vadd.f32 %v659, %v661
    %v664 = vadd.f32 %v660, %v662
    %667 = vrot.lane.b32.xlu0 %v663, 96
    %v668 = vpop.permute.xlu0 %667
    %669 = vrot.lane.b32.xlu0 %v664, 96
    %v670 = vpop.permute.xlu0 %669
    %v671 = vsel %vm260, %v668, 0
    %v673 = vsel %vm260, %v670, 0
    %675 = vmatprep.subr.mxu0 0.0
    %676 = vmatpush1.msra.mxu0 0.0
    %677 = vmatprep.subr.mxu0 0.0
    %678 = vmatpush1.msra.mxu0 0.0
    %679 = vmatprep.subr.mxu0 0.0
    %680 = vmatpush1.msra.mxu0 0.0
    %681 = vmatprep.subr.mxu0 0.0
    %682 = vmatpush1.msra.mxu0 0.0
    %683 = vmatprep.subr.mxu0 0.0
    %684 = vmatpush1.msra.mxu0 0.0
    %685 = vmatprep.subr.mxu0 0.0
    %686 = vmatpush1.msra.mxu0 0.0
    %687 = vmatprep.subr.mxu0 0.0
    %688 = vmatpush1.msra.mxu0 0.0
    %689 = vmatprep.subr.mxu0 0.0
    %690 = vmatpush1.msra.mxu0 0.0
    %691 = vmatprep.subr.mxu0 0.0
    %692 = vmatpush1.msra.mxu0 0.0
    %693 = vmatprep.subr.mxu0 0.0
    %694 = vmatpush1.msra.mxu0 0.0
    %695 = vmatprep.subr.mxu0 0.0
    %696 = vmatpush1.msra.mxu0 0.0
    %697 = vmatprep.subr.mxu0 0.0
    %698 = vmatpush1.msra.mxu0 0.0
    %699 = vmatprep.subr.mxu0 0.0
    %700 = vmatpush1.msra.mxu0 %v252
    %701 = vmatprep.subr.mxu0 0.0
    %702 = vmatpush1.msra.mxu0 %v251
    %703 = vmatprep.subr.mxu0 0.0
    %704 = vmatpush1.msra.mxu0 %v250
    %705 = vmatprep.subr.mxu0 0.0
    %706 = vmatpush1.msra.mxu0 %v249
    %707 = vmatprep.subr.mxu0 0.0
    %708 = vmatpush2.msra.mxu0 0.0
    %709 = vmatprep.subr.mxu0 0.0
    %710 = vmatpush2.msra.mxu0 0.0
    %711 = vmatprep.subr.mxu0 0.0
    %712 = vmatpush2.msra.mxu0 0.0
    %713 = vmatprep.subr.mxu0 0.0
    %714 = vmatpush2.msra.mxu0 0.0
    %715 = vmatprep.subr.mxu0 0.0
    %716 = vmatpush2.msra.mxu0 0.0
    %717 = vmatprep.subr.mxu0 0.0
    %718 = vmatpush2.msra.mxu0 0.0
    %719 = vmatprep.subr.mxu0 0.0
    %720 = vmatpush2.msra.mxu0 0.0
    %721 = vmatprep.subr.mxu0 0.0
    %722 = vmatpush2.msra.mxu0 0.0
    %723 = vmatprep.subr.mxu0 0.0
    %724 = vmatpush2.msra.mxu0 0.0
    %725 = vmatprep.subr.mxu0 0.0
    %726 = vmatpush2.msra.mxu0 0.0
    %727 = vmatprep.subr.mxu0 0.0
    %728 = vmatpush2.msra.mxu0 0.0
    %729 = vmatprep.subr.mxu0 0.0
    %730 = vmatpush2.msra.mxu0 0.0
    %731 = vmatprep.subr.mxu0 0.0
    %732 = vmatpush2.msra.mxu0 0.0
    %733 = vmatprep.subr.mxu0 0.0
    %734 = vmatpush2.msra.mxu0 0.0
    %735 = vmatprep.subr.mxu0 0.0
    %736 = vmatpush2.msra.mxu0 0.0
    %737 = vmatprep.subr.mxu0 0.0
    %738 = vmatpush2.msra.mxu0 0.0
    %739 = vmatprep.mubr.f32.mxu0 0.0
    %740 = vmatmul.mubr.f32.gmra.mxu0 %v671
    %v741 = vpop.f32.mrf.mxu0
    %v742 = vadd.f32 %v258, %v741
    %v743 = vpop.f32.mrf.mxu0
    %744 = vmatprep.mubr.f32.mxu0 0.0
    %745 = vmatmul.mubr.f32.gmra.mxu0 %v673
    %v746 = vpop.f32.mrf.mxu0
    %v747 = vadd.f32 %v258, %v746
    %v748 = vpop.f32.mrf.mxu0
    %749 = vdwg.mxu0
    %v750 = vadd.f32 %v221, %v742
    %v751 = vadd.f32 %v226, %v747
    %v752 = vxor.u32 %v750, 2147483648
    %v753 = vxor.u32 %v751, 2147483648
    %v754 = vmul.f32 %v752, 1.442695
    %v755 = vpow.pop %v754
    %v756 = vmul.f32 %v753, 1.442695
    %v757 = vpow.pop %v756
    %v758 = vadd.f32 %v755, 1.0
    %v759 = vadd.f32 %v757, 1.0
    %v760 = vrcp.pop %v758
    %v761 = vmul.f32 1.0, %v760
    %v762 = vrcp.pop %v759
    %v763 = vmul.f32 1.0, %v762
    %766 = vrot.lane.b32.xlu0 %v742, 64
    %v767 = vpop.permute.xlu0 %766
    %768 = vrot.lane.b32.xlu0 %v747, 64
    %v769 = vpop.permute.xlu0 %768
    %v772 = vmul.f32 %v761, %v767
    %v773 = vmul.f32 %v763, %v769
    %776 = vrot.lane.b32.xlu0 %v772, 64
    %v777 = vpop.permute.xlu0 %776
    %778 = vrot.lane.b32.xlu0 %v773, 64
    %v779 = vpop.permute.xlu0 %778
    %v782 = vadd.f32 %v221, %v777
    %v783 = vadd.f32 %v226, %v779
    %v784 = vtanh.pop %v782
    %v785 = vtanh.pop %v783
    %v786 = vsub.f32 1.0, %v761
    %v787 = vsub.f32 1.0, %v763
    %790 = vrot.lane.b32.xlu0 %v784, 96
    %v791 = vpop.permute.xlu0 %790
    %792 = vrot.lane.b32.xlu0 %v785, 96
    %v793 = vpop.permute.xlu0 %792
    %v796 = vmul.f32 %v786, %v791
    %v797 = vmul.f32 %v787, %v793
    %v798 = vmul.f32 %v761, %v663
    %v799 = vmul.f32 %v763, %v664
    %v800 = vadd.f32 %v796, %v798
    %v801 = vadd.f32 %v797, %v799
    %804 = vrot.lane.b32.xlu0 %v800, 96
    %v805 = vpop.permute.xlu0 %804
    %806 = vrot.lane.b32.xlu0 %v801, 96
    %v807 = vpop.permute.xlu0 %806
    %v808 = vsel %vm260, %v805, 0
    %v810 = vsel %vm260, %v807, 0
    %812 = vmatprep.subr.mxu0 0.0
    %813 = vmatpush1.msra.mxu0 0.0
    %814 = vmatprep.subr.mxu0 0.0
    %815 = vmatpush1.msra.mxu0 0.0
    %816 = vmatprep.subr.mxu0 0.0
    %817 = vmatpush1.msra.mxu0 0.0
    %818 = vmatprep.subr.mxu0 0.0
    %819 = vmatpush1.msra.mxu0 0.0
    %820 = vmatprep.subr.mxu0 0.0
    %821 = vmatpush1.msra.mxu0 0.0
    %822 = vmatprep.subr.mxu0 0.0
    %823 = vmatpush1.msra.mxu0 0.0
    %824 = vmatprep.subr.mxu0 0.0
    %825 = vmatpush1.msra.mxu0 0.0
    %826 = vmatprep.subr.mxu0 0.0
    %827 = vmatpush1.msra.mxu0 0.0
    %828 = vmatprep.subr.mxu0 0.0
    %829 = vmatpush1.msra.mxu0 0.0
    %830 = vmatprep.subr.mxu0 0.0
    %831 = vmatpush1.msra.mxu0 0.0
    %832 = vmatprep.subr.mxu0 0.0
    %833 = vmatpush1.msra.mxu0 0.0
    %834 = vmatprep.subr.mxu0 0.0
    %835 = vmatpush1.msra.mxu0 0.0
    %836 = vmatprep.subr.mxu0 0.0
    %837 = vmatpush1.msra.mxu0 %v252
    %838 = vmatprep.subr.mxu0 0.0
    %839 = vmatpush1.msra.mxu0 %v251
    %840 = vmatprep.subr.mxu0 0.0
    %841 = vmatpush1.msra.mxu0 %v250
    %842 = vmatprep.subr.mxu0 0.0
    %843 = vmatpush1.msra.mxu0 %v249
    %844 = vmatprep.subr.mxu0 0.0
    %845 = vmatpush2.msra.mxu0 0.0
    %846 = vmatprep.subr.mxu0 0.0
    %847 = vmatpush2.msra.mxu0 0.0
    %848 = vmatprep.subr.mxu0 0.0
    %849 = vmatpush2.msra.mxu0 0.0
    %850 = vmatprep.subr.mxu0 0.0
    %851 = vmatpush2.msra.mxu0 0.0
    %852 = vmatprep.subr.mxu0 0.0
    %853 = vmatpush2.msra.mxu0 0.0
    %854 = vmatprep.subr.mxu0 0.0
    %855 = vmatpush2.msra.mxu0 0.0
    %856 = vmatprep.subr.mxu0 0.0
    %857 = vmatpush2.msra.mxu0 0.0
    %858 = vmatprep.subr.mxu0 0.0
    %859 = vmatpush2.msra.mxu0 0.0
    %860 = vmatprep.subr.mxu0 0.0
    %861 = vmatpush2.msra.mxu0 0.0
    %862 = vmatprep.subr.mxu0 0.0
    %863 = vmatpush2.msra.mxu0 0.0
    %864 = vmatprep.subr.mxu0 0.0
    %865 = vmatpush2.msra.mxu0 0.0
    %866 = vmatprep.subr.mxu0 0.0
    %867 = vmatpush2.msra.mxu0 0.0
    %868 = vmatprep.subr.mxu0 0.0
    %869 = vmatpush2.msra.mxu0 0.0
    %870 = vmatprep.subr.mxu0 0.0
    %871 = vmatpush2.msra.mxu0 0.0
    %872 = vmatprep.subr.mxu0 0.0
    %873 = vmatpush2.msra.mxu0 0.0
    %874 = vmatprep.subr.mxu0 0.0
    %875 = vmatpush2.msra.mxu0 0.0
    %876 = vmatprep.mubr.f32.mxu0 0.0
    %877 = vmatmul.mubr.f32.gmra.mxu0 %v808
    %v878 = vpop.f32.mrf.mxu0
    %v879 = vadd.f32 %v258, %v878
    %v880 = vpop.f32.mrf.mxu0
    %881 = vmatprep.mubr.f32.mxu0 0.0
    %882 = vmatmul.mubr.f32.gmra.mxu0 %v810
    %v883 = vpop.f32.mrf.mxu0
    %v884 = vadd.f32 %v258, %v883
    %v885 = vpop.f32.mrf.mxu0
    %886 = vdwg.mxu0
    %v887 = vadd.f32 %v231, %v879
    %v888 = vadd.f32 %v236, %v884
    %v889 = vxor.u32 %v887, 2147483648
    %v890 = vxor.u32 %v888, 2147483648
    %v891 = vmul.f32 %v889, 1.442695
    %v892 = vpow.pop %v891
    %v893 = vmul.f32 %v890, 1.442695
    %v894 = vpow.pop %v893
    %v895 = vadd.f32 %v892, 1.0
    %v896 = vadd.f32 %v894, 1.0
    %v897 = vrcp.pop %v895
    %v898 = vmul.f32 1.0, %v897
    %v899 = vrcp.pop %v896
    %v900 = vmul.f32 1.0, %v899
    %903 = vrot.lane.b32.xlu0 %v879, 64
    %v904 = vpop.permute.xlu0 %903
    %905 = vrot.lane.b32.xlu0 %v884, 64
    %v906 = vpop.permute.xlu0 %905
    %v909 = vmul.f32 %v898, %v904
    %v910 = vmul.f32 %v900, %v906
    %913 = vrot.lane.b32.xlu0 %v909, 64
    %v914 = vpop.permute.xlu0 %913
    %915 = vrot.lane.b32.xlu0 %v910, 64
    %v916 = vpop.permute.xlu0 %915
    %v919 = vadd.f32 %v231, %v914
    %v920 = vadd.f32 %v236, %v916
    %v921 = vtanh.pop %v919
    %v922 = vtanh.pop %v920
    %v923 = vsub.f32 1.0, %v898
    %v924 = vsub.f32 1.0, %v900
    %927 = vrot.lane.b32.xlu0 %v921, 96
    %v928 = vpop.permute.xlu0 %927
    %929 = vrot.lane.b32.xlu0 %v922, 96
    %v930 = vpop.permute.xlu0 %929
    %v933 = vmul.f32 %v923, %v928
    %v934 = vmul.f32 %v924, %v930
    %v935 = vmul.f32 %v898, %v800
    %v936 = vmul.f32 %v900, %v801
    %v937 = vadd.f32 %v933, %v935
    %v938 = vadd.f32 %v934, %v936
    %941 = vrot.lane.b32.xlu0 %v937, 96
    %v942 = vpop.permute.xlu0 %941
    %943 = vrot.lane.b32.xlu0 %v938, 96
    %v944 = vpop.permute.xlu0 %943
    %v945 = vsel %vm260, %v942, 0
    %v947 = vsel %vm260, %v944, 0
    %949 = vmatprep.subr.mxu0 0.0
    %950 = vmatpush1.msra.mxu0 0.0
    %951 = vmatprep.subr.mxu0 0.0
    %952 = vmatpush1.msra.mxu0 0.0
    %953 = vmatprep.subr.mxu0 0.0
    %954 = vmatpush1.msra.mxu0 0.0
    %955 = vmatprep.subr.mxu0 0.0
    %956 = vmatpush1.msra.mxu0 0.0
    %957 = vmatprep.subr.mxu0 0.0
    %958 = vmatpush1.msra.mxu0 0.0
    %959 = vmatprep.subr.mxu0 0.0
    %960 = vmatpush1.msra.mxu0 0.0
    %961 = vmatprep.subr.mxu0 0.0
    %962 = vmatpush1.msra.mxu0 0.0
    %963 = vmatprep.subr.mxu0 0.0
    %964 = vmatpush1.msra.mxu0 0.0
    %965 = vmatprep.subr.mxu0 0.0
    %966 = vmatpush1.msra.mxu0 0.0
    %967 = vmatprep.subr.mxu0 0.0
    %968 = vmatpush1.msra.mxu0 0.0
    %969 = vmatprep.subr.mxu0 0.0
    %970 = vmatpush1.msra.mxu0 0.0
    %971 = vmatprep.subr.mxu0 0.0
    %972 = vmatpush1.msra.mxu0 0.0
    %973 = vmatprep.subr.mxu0 0.0
    %974 = vmatpush1.msra.mxu0 %v252
    %975 = vmatprep.subr.mxu0 0.0
    %976 = vmatpush1.msra.mxu0 %v251
    %977 = vmatprep.subr.mxu0 0.0
    %978 = vmatpush1.msra.mxu0 %v250
    %979 = vmatprep.subr.mxu0 0.0
    %980 = vmatpush1.msra.mxu0 %v249
    %981 = vmatprep.subr.mxu0 0.0
    %982 = vmatpush2.msra.mxu0 0.0
    %983 = vmatprep.subr.mxu0 0.0
    %984 = vmatpush2.msra.mxu0 0.0
    %985 = vmatprep.subr.mxu0 0.0
    %986 = vmatpush2.msra.mxu0 0.0
    %987 = vmatprep.subr.mxu0 0.0
    %988 = vmatpush2.msra.mxu0 0.0
    %989 = vmatprep.subr.mxu0 0.0
    %990 = vmatpush2.msra.mxu0 0.0
    %991 = vmatprep.subr.mxu0 0.0
    %992 = vmatpush2.msra.mxu0 0.0
    %993 = vmatprep.subr.mxu0 0.0
    %994 = vmatpush2.msra.mxu0 0.0
    %995 = vmatprep.subr.mxu0 0.0
    %996 = vmatpush2.msra.mxu0 0.0
    %997 = vmatprep.subr.mxu0 0.0
    %998 = vmatpush2.msra.mxu0 0.0
    %999 = vmatprep.subr.mxu0 0.0
    %1000 = vmatpush2.msra.mxu0 0.0
    %1001 = vmatprep.subr.mxu0 0.0
    %1002 = vmatpush2.msra.mxu0 0.0
    %1003 = vmatprep.subr.mxu0 0.0
    %1004 = vmatpush2.msra.mxu0 0.0
    %1005 = vmatprep.subr.mxu0 0.0
    %1006 = vmatpush2.msra.mxu0 0.0
    %1007 = vmatprep.subr.mxu0 0.0
    %1008 = vmatpush2.msra.mxu0 0.0
    %1009 = vmatprep.subr.mxu0 0.0
    %1010 = vmatpush2.msra.mxu0 0.0
    %1011 = vmatprep.subr.mxu0 0.0
    %1012 = vmatpush2.msra.mxu0 0.0
    %1013 = vmatprep.mubr.f32.mxu0 0.0
    %1014 = vmatmul.mubr.f32.gmra.mxu0 %v945
    %v1015 = vpop.f32.mrf.mxu0
    %v1016 = vadd.f32 %v258, %v1015
    %v1017 = vpop.f32.mrf.mxu0
    %1018 = vmatprep.mubr.f32.mxu0 0.0
    %1019 = vmatmul.mubr.f32.gmra.mxu0 %v947
    %v1020 = vpop.f32.mrf.mxu0
    %v1021 = vadd.f32 %v258, %v1020
    %v1022 = vpop.f32.mrf.mxu0
    %1023 = vdwg.mxu0
    %v1024 = vadd.f32 %v241, %v1016
    %v1025 = vadd.f32 %v246, %v1021
    %v1026 = vxor.u32 %v1024, 2147483648
    %v1027 = vxor.u32 %v1025, 2147483648
    %v1028 = vmul.f32 %v1026, 1.442695
    %v1029 = vpow.pop %v1028
    %v1030 = vmul.f32 %v1027, 1.442695
    %v1031 = vpow.pop %v1030
    %v1032 = vadd.f32 %v1029, 1.0
    %v1033 = vadd.f32 %v1031, 1.0
    %v1034 = vrcp.pop %v1032
    %v1035 = vmul.f32 1.0, %v1034
    %v1036 = vrcp.pop %v1033
    %v1037 = vmul.f32 1.0, %v1036
    %1040 = vrot.lane.b32.xlu0 %v1016, 64
    %v1041 = vpop.permute.xlu0 %1040
    %1042 = vrot.lane.b32.xlu0 %v1021, 64
    %v1043 = vpop.permute.xlu0 %1042
    %v1046 = vmul.f32 %v1035, %v1041
    %v1047 = vmul.f32 %v1037, %v1043
    %1050 = vrot.lane.b32.xlu0 %v1046, 64
    %v1051 = vpop.permute.xlu0 %1050
    %1052 = vrot.lane.b32.xlu0 %v1047, 64
    %v1053 = vpop.permute.xlu0 %1052
    %v1056 = vadd.f32 %v241, %v1051
    %v1057 = vadd.f32 %v246, %v1053
    %v1058 = vtanh.pop %v1056
    %v1059 = vtanh.pop %v1057
    %v1060 = vsub.f32 1.0, %v1035
    %v1061 = vsub.f32 1.0, %v1037
    %1064 = vrot.lane.b32.xlu0 %v1058, 96
    %v1065 = vpop.permute.xlu0 %1064
    %1066 = vrot.lane.b32.xlu0 %v1059, 96
    %v1067 = vpop.permute.xlu0 %1066
    %v1070 = vmul.f32 %v1060, %v1065
    %v1071 = vmul.f32 %v1061, %v1067
    %v1072 = vmul.f32 %v1035, %v937
    %v1073 = vmul.f32 %v1037, %v938
    %v1074 = vadd.f32 %v1070, %v1072
    %v1075 = vadd.f32 %v1071, %v1073
    %v1076 = vld [vmem:[%s5] sm:$0xff]
    %v1077 = vld [vmem:[%s5 + $0x8] sm:$0xff]
    %v1078 = vld [vmem:[%s5 + $0x10] sm:$0xff]
    %v1079 = vld [vmem:[%s5 + $0x18] sm:$0xff]
    %v1080 = vld [vmem:[%s5 + $0x20] sm:$0xff]
    %v1081 = vld [vmem:[%s5 + $0x28] sm:$0xff]
    %v1082 = vld [vmem:[%s5 + $0x30] sm:$0xff]
    %v1083 = vld [vmem:[%s5 + $0x38] sm:$0xff]
    %v1084 = vld [vmem:[%s6] sm:$0x3]
    %v1086 = vlaneseq
    %v1087 = vshrl.u32 %v1086, 7
    %v1088 = vsub.s32 0, %v1087
    %v1089 = vrot.slane %v1084, %v1088
    %v1090 = vlaneseq
    %v1091 = vshrl.u32 %v1090, 7
    %v1092 = vsub.s32 1, %v1091
    %v1093 = vrot.slane %v1084, %v1092
    %1098 = vrot.lane.b32.xlu0 %v1074, 96
    %v1099 = vpop.permute.xlu0 %1098
    %1100 = vrot.lane.b32.xlu0 %v1075, 96
    %v1101 = vpop.permute.xlu0 %1100
    %v1102 = vsel %vm260, %v1099, 0
    %v1104 = vsel %vm260, %v1101, 0
    %1106 = vmatprep.subr.mxu0 0.0
    %1107 = vmatpush1.msra.mxu0 0.0
    %1108 = vmatprep.subr.mxu0 0.0
    %1109 = vmatpush1.msra.mxu0 0.0
    %1110 = vmatprep.subr.mxu0 0.0
    %1111 = vmatpush1.msra.mxu0 0.0
    %1112 = vmatprep.subr.mxu0 0.0
    %1113 = vmatpush1.msra.mxu0 0.0
    %1114 = vmatprep.subr.mxu0 0.0
    %1115 = vmatpush1.msra.mxu0 0.0
    %1116 = vmatprep.subr.mxu0 0.0
    %1117 = vmatpush1.msra.mxu0 0.0
    %1118 = vmatprep.subr.mxu0 0.0
    %1119 = vmatpush1.msra.mxu0 0.0
    %1120 = vmatprep.subr.mxu0 0.0
    %1121 = vmatpush1.msra.mxu0 0.0
    %1122 = vmatprep.subr.mxu0 0.0
    %1123 = vmatpush1.msra.mxu0 0.0
    %1124 = vmatprep.subr.mxu0 0.0
    %1125 = vmatpush1.msra.mxu0 0.0
    %1126 = vmatprep.subr.mxu0 0.0
    %1127 = vmatpush1.msra.mxu0 0.0
    %1128 = vmatprep.subr.mxu0 0.0
    %1129 = vmatpush1.msra.mxu0 0.0
    %1130 = vmatprep.subr.mxu0 %v1083
    %1131 = vmatpush1.msra.mxu0 %v1082
    %1132 = vmatprep.subr.mxu0 %v1081
    %1133 = vmatpush1.msra.mxu0 %v1080
    %1134 = vmatprep.subr.mxu0 %v1079
    %1135 = vmatpush1.msra.mxu0 %v1078
    %1136 = vmatprep.subr.mxu0 %v1077
    %1137 = vmatpush1.msra.mxu0 %v1076
    %1138 = vmatprep.subr.mxu0 0.0
    %1139 = vmatpush2.msra.mxu0 0.0
    %1140 = vmatprep.subr.mxu0 0.0
    %1141 = vmatpush2.msra.mxu0 0.0
    %1142 = vmatprep.subr.mxu0 0.0
    %1143 = vmatpush2.msra.mxu0 0.0
    %1144 = vmatprep.subr.mxu0 0.0
    %1145 = vmatpush2.msra.mxu0 0.0
    %1146 = vmatprep.subr.mxu0 0.0
    %1147 = vmatpush2.msra.mxu0 0.0
    %1148 = vmatprep.subr.mxu0 0.0
    %1149 = vmatpush2.msra.mxu0 0.0
    %1150 = vmatprep.subr.mxu0 0.0
    %1151 = vmatpush2.msra.mxu0 0.0
    %1152 = vmatprep.subr.mxu0 0.0
    %1153 = vmatpush2.msra.mxu0 0.0
    %1154 = vmatprep.subr.mxu0 0.0
    %1155 = vmatpush2.msra.mxu0 0.0
    %1156 = vmatprep.subr.mxu0 0.0
    %1157 = vmatpush2.msra.mxu0 0.0
    %1158 = vmatprep.subr.mxu0 0.0
    %1159 = vmatpush2.msra.mxu0 0.0
    %1160 = vmatprep.subr.mxu0 0.0
    %1161 = vmatpush2.msra.mxu0 0.0
    %1162 = vmatprep.subr.mxu0 0.0
    %1163 = vmatpush2.msra.mxu0 0.0
    %1164 = vmatprep.subr.mxu0 0.0
    %1165 = vmatpush2.msra.mxu0 0.0
    %1166 = vmatprep.subr.mxu0 0.0
    %1167 = vmatpush2.msra.mxu0 0.0
    %1168 = vmatprep.subr.mxu0 0.0
    %1169 = vmatpush2.msra.mxu0 0.0
    %1170 = vmatprep.mubr.f32.mxu0 0.0
    %1171 = vmatmul.mubr.f32.gmra.mxu0 %v1102
    %v1172 = vpop.f32.mrf.mxu0
    %v1173 = vadd.f32 %v1089, %v1172
    %v1174 = vpop.f32.mrf.mxu0
    %v1175 = vadd.f32 %v1093, %v1174
    %1176 = vmatprep.mubr.f32.mxu0 0.0
    %1177 = vmatmul.mubr.f32.gmra.mxu0 %v1104
    %v1178 = vpop.f32.mrf.mxu0
    %v1179 = vadd.f32 %v1089, %v1178
    %v1180 = vpop.f32.mrf.mxu0
    %v1181 = vadd.f32 %v1093, %v1180
    %1182 = vdwg.mxu0
    %v1183 = vld [vmem:[%s7] sm:$0xff]
    %v1184 = vld [vmem:[%s7 + $0x8] sm:$0xff]
    %v1185 = vld [vmem:[%s7 + $0x10] sm:$0xff]
    %v1186 = vld [vmem:[%s7 + $0x18] sm:$0xff]
    %v1187 = vld [vmem:[%s8] sm:$0x1]
    %v1188 = vld [vmem:[%s9] sm:$0xff]
    %v1189 = vld [vmem:[%s9 + $0x8] sm:$0xff]
    %v1190 = vld [vmem:[%s9 + $0x10] sm:$0xff]
    %v1191 = vld [vmem:[%s9 + $0x18] sm:$0xff]
    %v1192 = vld [vmem:[%s10] sm:$0x1]
    %1193 = vmatprep.subr.mxu0 0.0
    %1194 = vmatpush1.msra.mxu0 0.0
    %1195 = vmatprep.subr.mxu0 0.0
    %1196 = vmatpush1.msra.mxu0 0.0
    %1197 = vmatprep.subr.mxu0 0.0
    %1198 = vmatpush1.msra.mxu0 0.0
    %1199 = vmatprep.subr.mxu0 0.0
    %1200 = vmatpush1.msra.mxu0 0.0
    %1201 = vmatprep.subr.mxu0 0.0
    %1202 = vmatpush1.msra.mxu0 0.0
    %1203 = vmatprep.subr.mxu0 0.0
    %1204 = vmatpush1.msra.mxu0 0.0
    %1205 = vmatprep.subr.mxu0 0.0
    %1206 = vmatpush1.msra.mxu0 0.0
    %1207 = vmatprep.subr.mxu0 0.0
    %1208 = vmatpush1.msra.mxu0 0.0
    %1209 = vmatprep.subr.mxu0 0.0
    %1210 = vmatpush1.msra.mxu0 0.0
    %1211 = vmatprep.subr.mxu0 0.0
    %1212 = vmatpush1.msra.mxu0 0.0
    %1213 = vmatprep.subr.mxu0 0.0
    %1214 = vmatpush1.msra.mxu0 0.0
    %1215 = vmatprep.subr.mxu0 0.0
    %1216 = vmatpush1.msra.mxu0 0.0
    %1217 = vmatprep.subr.mxu0 0.0
    %1218 = vmatpush1.msra.mxu0 %v1186
    %1219 = vmatprep.subr.mxu0 0.0
    %1220 = vmatpush1.msra.mxu0 %v1185
    %1221 = vmatprep.subr.mxu0 0.0
    %1222 = vmatpush1.msra.mxu0 %v1184
    %1223 = vmatprep.subr.mxu0 0.0
    %1224 = vmatpush1.msra.mxu0 %v1183
    %1225 = vmatprep.subr.mxu0 0.0
    %1226 = vmatpush2.msra.mxu0 0.0
    %1227 = vmatprep.subr.mxu0 0.0
    %1228 = vmatpush2.msra.mxu0 0.0
    %1229 = vmatprep.subr.mxu0 0.0
    %1230 = vmatpush2.msra.mxu0 0.0
    %1231 = vmatprep.subr.mxu0 0.0
    %1232 = vmatpush2.msra.mxu0 0.0
    %1233 = vmatprep.subr.mxu0 0.0
    %1234 = vmatpush2.msra.mxu0 0.0
    %1235 = vmatprep.subr.mxu0 0.0
    %1236 = vmatpush2.msra.mxu0 0.0
    %1237 = vmatprep.subr.mxu0 0.0
    %1238 = vmatpush2.msra.mxu0 0.0
    %1239 = vmatprep.subr.mxu0 0.0
    %1240 = vmatpush2.msra.mxu0 0.0
    %1241 = vmatprep.subr.mxu0 0.0
    %1242 = vmatpush2.msra.mxu0 0.0
    %1243 = vmatprep.subr.mxu0 0.0
    %1244 = vmatpush2.msra.mxu0 0.0
    %1245 = vmatprep.subr.mxu0 0.0
    %1246 = vmatpush2.msra.mxu0 0.0
    %1247 = vmatprep.subr.mxu0 0.0
    %1248 = vmatpush2.msra.mxu0 0.0
    %1249 = vmatprep.subr.mxu0 0.0
    %1250 = vmatpush2.msra.mxu0 0.0
    %1251 = vmatprep.subr.mxu0 0.0
    %1252 = vmatpush2.msra.mxu0 0.0
    %1253 = vmatprep.subr.mxu0 0.0
    %1254 = vmatpush2.msra.mxu0 0.0
    %1255 = vmatprep.subr.mxu0 0.0
    %1256 = vmatpush2.msra.mxu0 0.0
    %1257 = vmatprep.mubr.f32.mxu0 0.0
    %1258 = vmatmul.mubr.f32.gmra.mxu0 %v262
    %v1259 = vpop.f32.mrf.mxu0
    %v1260 = vadd.f32 0.0, %v1259
    %v1261 = vpop.f32.mrf.mxu0
    %1262 = vdwg.mxu0
    %v1263 = vadd.f32 %v1173, %v1260
    %v1265 = vlaneseq
    %v1266 = vshrl.u32 %v1265, 7
    %v1267 = vsub.s32 0, %v1266
    %v1268 = vrot.slane %v1187, %v1267
    %v1270 = vadd.f32 %v1263, %v1268
    %v1271 = vxor.u32 %v1270, 2147483648
    %v1272 = vmul.f32 %v1271, 1.442695
    %v1273 = vpow.pop %v1272
    %v1274 = vadd.f32 %v1273, 1.0
    %v1275 = vrcp.pop %v1274
    %v1276 = vmul.f32 1.0, %v1275
    %v1277 = vtanh.pop %v1270
    %v1278 = vmul.f32 %v1276, 0.0
    %1280 = vrot.lane.b32.xlu0 %v1277, 64
    %v1281 = vpop.permute.xlu0 %1280
    %v1283 = vmul.f32 %v1276, %v1281
    %1285 = vrot.lane.b32.xlu0 %v1283, 32
    %v1286 = vpop.permute.xlu0 %1285
    %v1288 = vadd.f32 %v1278, %v1286
    %v1289 = vtanh.pop %v1288
    %1291 = vrot.lane.b32.xlu0 %v1289, 64
    %v1292 = vpop.permute.xlu0 %1291
    %v1294 = vmul.f32 %v1276, %v1292
    %v1296 = vlaneseq
    %v1297 = vshrl.u32 %v1296, 7
    %v1298 = vsub.s32 0, %v1297
    %v1299 = vrot.slane %v1192, %v1298
    %1302 = vrot.lane.b32.xlu0 %v1294, 32
    %v1303 = vpop.permute.xlu0 %1302
    %v1304 = vsel %vm260, %v1303, 0
    %1306 = vmatprep.subr.mxu0 0.0
    %1307 = vmatpush1.msra.mxu0 0.0
    %1308 = vmatprep.subr.mxu0 0.0
    %1309 = vmatpush1.msra.mxu0 0.0
    %1310 = vmatprep.subr.mxu0 0.0
    %1311 = vmatpush1.msra.mxu0 0.0
    %1312 = vmatprep.subr.mxu0 0.0
    %1313 = vmatpush1.msra.mxu0 0.0
    %1314 = vmatprep.subr.mxu0 0.0
    %1315 = vmatpush1.msra.mxu0 0.0
    %1316 = vmatprep.subr.mxu0 0.0
    %1317 = vmatpush1.msra.mxu0 0.0
    %1318 = vmatprep.subr.mxu0 0.0
    %1319 = vmatpush1.msra.mxu0 0.0
    %1320 = vmatprep.subr.mxu0 0.0
    %1321 = vmatpush1.msra.mxu0 0.0
    %1322 = vmatprep.subr.mxu0 0.0
    %1323 = vmatpush1.msra.mxu0 0.0
    %1324 = vmatprep.subr.mxu0 0.0
    %1325 = vmatpush1.msra.mxu0 0.0
    %1326 = vmatprep.subr.mxu0 0.0
    %1327 = vmatpush1.msra.mxu0 0.0
    %1328 = vmatprep.subr.mxu0 0.0
    %1329 = vmatpush1.msra.mxu0 0.0
    %1330 = vmatprep.subr.mxu0 0.0
    %1331 = vmatpush1.msra.mxu0 %v1191
    %1332 = vmatprep.subr.mxu0 0.0
    %1333 = vmatpush1.msra.mxu0 %v1190
    %1334 = vmatprep.subr.mxu0 0.0
    %1335 = vmatpush1.msra.mxu0 %v1189
    %1336 = vmatprep.subr.mxu0 0.0
    %1337 = vmatpush1.msra.mxu0 %v1188
    %1338 = vmatprep.subr.mxu0 0.0
    %1339 = vmatpush2.msra.mxu0 0.0
    %1340 = vmatprep.subr.mxu0 0.0
    %1341 = vmatpush2.msra.mxu0 0.0
    %1342 = vmatprep.subr.mxu0 0.0
    %1343 = vmatpush2.msra.mxu0 0.0
    %1344 = vmatprep.subr.mxu0 0.0
    %1345 = vmatpush2.msra.mxu0 0.0
    %1346 = vmatprep.subr.mxu0 0.0
    %1347 = vmatpush2.msra.mxu0 0.0
    %1348 = vmatprep.subr.mxu0 0.0
    %1349 = vmatpush2.msra.mxu0 0.0
    %1350 = vmatprep.subr.mxu0 0.0
    %1351 = vmatpush2.msra.mxu0 0.0
    %1352 = vmatprep.subr.mxu0 0.0
    %1353 = vmatpush2.msra.mxu0 0.0
    %1354 = vmatprep.subr.mxu0 0.0
    %1355 = vmatpush2.msra.mxu0 0.0
    %1356 = vmatprep.subr.mxu0 0.0
    %1357 = vmatpush2.msra.mxu0 0.0
    %1358 = vmatprep.subr.mxu0 0.0
    %1359 = vmatpush2.msra.mxu0 0.0
    %1360 = vmatprep.subr.mxu0 0.0
    %1361 = vmatpush2.msra.mxu0 0.0
    %1362 = vmatprep.subr.mxu0 0.0
    %1363 = vmatpush2.msra.mxu0 0.0
    %1364 = vmatprep.subr.mxu0 0.0
    %1365 = vmatpush2.msra.mxu0 0.0
    %1366 = vmatprep.subr.mxu0 0.0
    %1367 = vmatpush2.msra.mxu0 0.0
    %1368 = vmatprep.subr.mxu0 0.0
    %1369 = vmatpush2.msra.mxu0 0.0
    %1370 = vmatprep.mubr.f32.mxu0 0.0
    %1371 = vmatmul.mubr.f32.gmra.mxu0 %v1304
    %v1372 = vpop.f32.mrf.mxu0
    %v1373 = vadd.f32 %v1299, %v1372
    %v1374 = vpop.f32.mrf.mxu0
    %1375 = vdwg.mxu0
    %v1378 = vunpack.c.l.s4 1966171168
    %v1379 = vunpack.c.0.s8 %v1378
    %v1380 = vlaneseq
    %v1381 = vshrl.u32 %v1380, 7
    %v1382 = vsub.s32 %v1379, %v1381
    %v1383 = vrot.slane %v1373, %v1382
    %v1384 = vcombine.high %v1383, %v1383
    %v1386 = vunpack.c.l.s4 1966171168
    %v1387 = vunpack.c.0.s8 %v1386
    %v1388 = vlaneseq
    %v1389 = vshrl.u32 %v1388, 7
    %v1390 = vsub.s32 %v1387, %v1389
    %v1391 = vrot.slane %v1383, %v1390
    %v1393 = vunpack.c.l.s4 1966171168
    %v1394 = vunpack.c.0.s8 %v1393
    %v1395 = vlaneseq
    %v1396 = vshrl.u32 %v1395, 7
    %v1397 = vsub.s32 %v1394, %v1396
    %v1398 = vrot.slane %v1384, %v1397
    %vm1401 = vcmask 253952
    %1402 = vst.msk [vmem:[#allocation2] sm:$0x1] %vm1401, %v1391
    %1403 = vst.msk [vmem:[#allocation2 + $0x8] sm:$0x1] %vm1401, %v1398
    %v1406 = vunpack.c.l.s4 1966171168
    %v1407 = vunpack.c.0.s8 %v1406
    %v1408 = vlaneseq
    %v1409 = vshrl.u32 %v1408, 7
    %v1410 = vsub.s32 %v1407, %v1409
    %v1411 = vrot.slane %v1175, %v1410
    %v1412 = vcombine.high %v1411, %v1411
    %v1414 = vunpack.c.l.s4 1966171168
    %v1415 = vunpack.c.0.s8 %v1414
    %v1416 = vlaneseq
    %v1417 = vshrl.u32 %v1416, 7
    %v1418 = vsub.s32 %v1415, %v1417
    %v1419 = vrot.slane %v1411, %v1418
    %v1421 = vunpack.c.l.s4 1966171168
    %v1422 = vunpack.c.0.s8 %v1421
    %v1423 = vlaneseq
    %v1424 = vshrl.u32 %v1423, 7
    %v1425 = vsub.s32 %v1422, %v1424
    %v1426 = vrot.slane %v1412, %v1425
    %1429 = vst [vmem:[#allocation3] sm:$0x1] %v1419
    %1430 = vst [vmem:[#allocation3 + $0x8] sm:$0x1] %v1426
    %1431 = vmatprep.subr.mxu0 0.0
    %1432 = vmatpush1.msra.mxu0 0.0
    %1433 = vmatprep.subr.mxu0 0.0
    %1434 = vmatpush1.msra.mxu0 0.0
    %1435 = vmatprep.subr.mxu0 0.0
    %1436 = vmatpush1.msra.mxu0 0.0
    %1437 = vmatprep.subr.mxu0 0.0
    %1438 = vmatpush1.msra.mxu0 0.0
    %1439 = vmatprep.subr.mxu0 0.0
    %1440 = vmatpush1.msra.mxu0 0.0
    %1441 = vmatprep.subr.mxu0 0.0
    %1442 = vmatpush1.msra.mxu0 0.0
    %1443 = vmatprep.subr.mxu0 0.0
    %1444 = vmatpush1.msra.mxu0 0.0
    %1445 = vmatprep.subr.mxu0 0.0
    %1446 = vmatpush1.msra.mxu0 0.0
    %1447 = vmatprep.subr.mxu0 0.0
    %1448 = vmatpush1.msra.mxu0 0.0
    %1449 = vmatprep.subr.mxu0 0.0
    %1450 = vmatpush1.msra.mxu0 0.0
    %1451 = vmatprep.subr.mxu0 0.0
    %1452 = vmatpush1.msra.mxu0 0.0
    %1453 = vmatprep.subr.mxu0 0.0
    %1454 = vmatpush1.msra.mxu0 0.0
    %1455 = vmatprep.subr.mxu0 0.0
    %1456 = vmatpush1.msra.mxu0 %v1186
    %1457 = vmatprep.subr.mxu0 0.0
    %1458 = vmatpush1.msra.mxu0 %v1185
    %1459 = vmatprep.subr.mxu0 0.0
    %1460 = vmatpush1.msra.mxu0 %v1184
    %1461 = vmatprep.subr.mxu0 0.0
    %1462 = vmatpush1.msra.mxu0 %v1183
    %1463 = vmatprep.subr.mxu0 0.0
    %1464 = vmatpush2.msra.mxu0 0.0
    %1465 = vmatprep.subr.mxu0 0.0
    %1466 = vmatpush2.msra.mxu0 0.0
    %1467 = vmatprep.subr.mxu0 0.0
    %1468 = vmatpush2.msra.mxu0 0.0
    %1469 = vmatprep.subr.mxu0 0.0
    %1470 = vmatpush2.msra.mxu0 0.0
    %1471 = vmatprep.subr.mxu0 0.0
    %1472 = vmatpush2.msra.mxu0 0.0
    %1473 = vmatprep.subr.mxu0 0.0
    %1474 = vmatpush2.msra.mxu0 0.0
    %1475 = vmatprep.subr.mxu0 0.0
    %1476 = vmatpush2.msra.mxu0 0.0
    %1477 = vmatprep.subr.mxu0 0.0
    %1478 = vmatpush2.msra.mxu0 0.0
    %1479 = vmatprep.subr.mxu0 0.0
    %1480 = vmatpush2.msra.mxu0 0.0
    %1481 = vmatprep.subr.mxu0 0.0
    %1482 = vmatpush2.msra.mxu0 0.0
    %1483 = vmatprep.subr.mxu0 0.0
    %1484 = vmatpush2.msra.mxu0 0.0
    %1485 = vmatprep.subr.mxu0 0.0
    %1486 = vmatpush2.msra.mxu0 0.0
    %1487 = vmatprep.subr.mxu0 0.0
    %1488 = vmatpush2.msra.mxu0 0.0
    %1489 = vmatprep.subr.mxu0 0.0
    %1490 = vmatpush2.msra.mxu0 0.0
    %1491 = vmatprep.subr.mxu0 0.0
    %1492 = vmatpush2.msra.mxu0 0.0
    %1493 = vmatprep.subr.mxu0 0.0
    %1494 = vmatpush2.msra.mxu0 0.0
    %1495 = vmatprep.mubr.f32.mxu0 0.0
    %1496 = vmatmul.mubr.f32.gmra.mxu0 %v1304
    %v1497 = vpop.f32.mrf.mxu0
    %v1498 = vadd.f32 0.0, %v1497
    %v1499 = vpop.f32.mrf.mxu0
    %1500 = vdwg.mxu0
    %v1502 = vrot.slane %v1498, 6
    %v1504 = vadd.f32 %v1173, %v1502
    %v1505 = vadd.f32 %v1504, %v1268
    %v1506 = vxor.u32 %v1505, 2147483648
    %v1507 = vmul.f32 %v1506, 1.442695
    %v1508 = vpow.pop %v1507
    %v1509 = vadd.f32 %v1508, 1.0
    %v1510 = vrcp.pop %v1509
    %v1511 = vmul.f32 1.0, %v1510
    %v1512 = vtanh.pop %v1505
    %v1514 = vrot.slane %v1288, 6
    %v1516 = vmul.f32 %v1511, %v1514
    %1518 = vrot.lane.b32.xlu0 %v1512, 64
    %v1519 = vpop.permute.xlu0 %1518
    %v1521 = vmul.f32 %v1511, %v1519
    %1523 = vrot.lane.b32.xlu0 %v1521, 32
    %v1524 = vpop.permute.xlu0 %1523
    %v1526 = vadd.f32 %v1516, %v1524
    %v1527 = vtanh.pop %v1526
    %1529 = vrot.lane.b32.xlu0 %v1527, 64
    %v1530 = vpop.permute.xlu0 %1529
    %v1532 = vmul.f32 %v1511, %v1530
    %v1534 = vrot.slane %v1532, 2
    %1535 = vrot.lane.b32.xlu0 %v1534, 32
    %v1536 = vpop.permute.xlu0 %1535
    %v1537 = vsel %vm260, %v1536, 0
    %1539 = vmatprep.subr.mxu0 0.0
    %1540 = vmatpush1.msra.mxu0 0.0
    %1541 = vmatprep.subr.mxu0 0.0
    %1542 = vmatpush1.msra.mxu0 0.0
    %1543 = vmatprep.subr.mxu0 0.0
    %1544 = vmatpush1.msra.mxu0 0.0
    %1545 = vmatprep.subr.mxu0 0.0
    %1546 = vmatpush1.msra.mxu0 0.0
    %1547 = vmatprep.subr.mxu0 0.0
    %1548 = vmatpush1.msra.mxu0 0.0
    %1549 = vmatprep.subr.mxu0 0.0
    %1550 = vmatpush1.msra.mxu0 0.0
    %1551 = vmatprep.subr.mxu0 0.0
    %1552 = vmatpush1.msra.mxu0 0.0
    %1553 = vmatprep.subr.mxu0 0.0
    %1554 = vmatpush1.msra.mxu0 0.0
    %1555 = vmatprep.subr.mxu0 0.0
    %1556 = vmatpush1.msra.mxu0 0.0
    %1557 = vmatprep.subr.mxu0 0.0
    %1558 = vmatpush1.msra.mxu0 0.0
    %1559 = vmatprep.subr.mxu0 0.0
    %1560 = vmatpush1.msra.mxu0 0.0
    %1561 = vmatprep.subr.mxu0 0.0
    %1562 = vmatpush1.msra.mxu0 0.0
    %1563 = vmatprep.subr.mxu0 0.0
    %1564 = vmatpush1.msra.mxu0 %v1191
    %1565 = vmatprep.subr.mxu0 0.0
    %1566 = vmatpush1.msra.mxu0 %v1190
    %1567 = vmatprep.subr.mxu0 0.0
    %1568 = vmatpush1.msra.mxu0 %v1189
    %1569 = vmatprep.subr.mxu0 0.0
    %1570 = vmatpush1.msra.mxu0 %v1188
    %1571 = vmatprep.subr.mxu0 0.0
    %1572 = vmatpush2.msra.mxu0 0.0
    %1573 = vmatprep.subr.mxu0 0.0
    %1574 = vmatpush2.msra.mxu0 0.0
    %1575 = vmatprep.subr.mxu0 0.0
    %1576 = vmatpush2.msra.mxu0 0.0
    %1577 = vmatprep.subr.mxu0 0.0
    %1578 = vmatpush2.msra.mxu0 0.0
    %1579 = vmatprep.subr.mxu0 0.0
    %1580 = vmatpush2.msra.mxu0 0.0
    %1581 = vmatprep.subr.mxu0 0.0
    %1582 = vmatpush2.msra.mxu0 0.0
    %1583 = vmatprep.subr.mxu0 0.0
    %1584 = vmatpush2.msra.mxu0 0.0
    %1585 = vmatprep.subr.mxu0 0.0
    %1586 = vmatpush2.msra.mxu0 0.0
    %1587 = vmatprep.subr.mxu0 0.0
    %1588 = vmatpush2.msra.mxu0 0.0
    %1589 = vmatprep.subr.mxu0 0.0
    %1590 = vmatpush2.msra.mxu0 0.0
    %1591 = vmatprep.subr.mxu0 0.0
    %1592 = vmatpush2.msra.mxu0 0.0
    %1593 = vmatprep.subr.mxu0 0.0
    %1594 = vmatpush2.msra.mxu0 0.0
    %1595 = vmatprep.subr.mxu0 0.0
    %1596 = vmatpush2.msra.mxu0 0.0
    %1597 = vmatprep.subr.mxu0 0.0
    %1598 = vmatpush2.msra.mxu0 0.0
    %1599 = vmatprep.subr.mxu0 0.0
    %1600 = vmatpush2.msra.mxu0 0.0
    %1601 = vmatprep.subr.mxu0 0.0
    %1602 = vmatpush2.msra.mxu0 0.0
    %1603 = vmatprep.mubr.f32.mxu0 0.0
    %1604 = vmatmul.mubr.f32.gmra.mxu0 %v1537
    %v1605 = vpop.f32.mrf.mxu0
    %v1606 = vadd.f32 %v1299, %v1605
    %v1607 = vpop.f32.mrf.mxu0
    %1608 = vdwg.mxu0
    %v1611 = vunpack.c.l.s4 1966171168
    %v1612 = vunpack.c.0.s8 %v1611
    %v1613 = vlaneseq
    %v1614 = vshrl.u32 %v1613, 7
    %v1615 = vsub.s32 %v1612, %v1614
    %v1616 = vrot.slane %v1606, %v1615
    %v1617 = vcombine.high %v1616, %v1616
    %v1619 = vunpack.c.l.s4 1966171168
    %v1620 = vunpack.c.0.s8 %v1619
    %v1621 = vlaneseq
    %v1622 = vshrl.u32 %v1621, 7
    %v1623 = vsub.s32 %v1620, %v1622
    %v1624 = vrot.slane %v1616, %v1623
    %v1626 = vunpack.c.l.s4 1966171168
    %v1627 = vunpack.c.0.s8 %v1626
    %v1628 = vlaneseq
    %v1629 = vshrl.u32 %v1628, 7
    %v1630 = vsub.s32 %v1627, %v1629
    %v1631 = vrot.slane %v1617, %v1630
    %1634 = vst.msk [vmem:[#allocation2 + $0x1] sm:$0x1] %vm1401, %v1624
    %1635 = vst.msk [vmem:[#allocation2 + $0x9] sm:$0x1] %vm1401, %v1631
    %v1636 = vcombine.high %v1419, %v1419
    %v1637 = vcombine.high %v1426, %v1426
    %1640 = vst [vmem:[#allocation3 + $0x1] sm:$0x1] %v1636
    %1641 = vst [vmem:[#allocation3 + $0x9] sm:$0x1] %v1637
    %1642 = vmatprep.subr.mxu0 0.0
    %1643 = vmatpush1.msra.mxu0 0.0
    %1644 = vmatprep.subr.mxu0 0.0
    %1645 = vmatpush1.msra.mxu0 0.0
    %1646 = vmatprep.subr.mxu0 0.0
    %1647 = vmatpush1.msra.mxu0 0.0
    %1648 = vmatprep.subr.mxu0 0.0
    %1649 = vmatpush1.msra.mxu0 0.0
    %1650 = vmatprep.subr.mxu0 0.0
    %1651 = vmatpush1.msra.mxu0 0.0
    %1652 = vmatprep.subr.mxu0 0.0
    %1653 = vmatpush1.msra.mxu0 0.0
    %1654 = vmatprep.subr.mxu0 0.0
    %1655 = vmatpush1.msra.mxu0 0.0
    %1656 = vmatprep.subr.mxu0 0.0
    %1657 = vmatpush1.msra.mxu0 0.0
    %1658 = vmatprep.subr.mxu0 0.0
    %1659 = vmatpush1.msra.mxu0 0.0
    %1660 = vmatprep.subr.mxu0 0.0
    %1661 = vmatpush1.msra.mxu0 0.0
    %1662 = vmatprep.subr.mxu0 0.0
    %1663 = vmatpush1.msra.mxu0 0.0
    %1664 = vmatprep.subr.mxu0 0.0
    %1665 = vmatpush1.msra.mxu0 0.0
    %1666 = vmatprep.subr.mxu0 0.0
    %1667 = vmatpush1.msra.mxu0 %v1186
    %1668 = vmatprep.subr.mxu0 0.0
    %1669 = vmatpush1.msra.mxu0 %v1185
    %1670 = vmatprep.subr.mxu0 0.0
    %1671 = vmatpush1.msra.mxu0 %v1184
    %1672 = vmatprep.subr.mxu0 0.0
    %1673 = vmatpush1.msra.mxu0 %v1183
    %1674 = vmatprep.subr.mxu0 0.0
    %1675 = vmatpush2.msra.mxu0 0.0
    %1676 = vmatprep.subr.mxu0 0.0
    %1677 = vmatpush2.msra.mxu0 0.0
    %1678 = vmatprep.subr.mxu0 0.0
    %1679 = vmatpush2.msra.mxu0 0.0
    %1680 = vmatprep.subr.mxu0 0.0
    %1681 = vmatpush2.msra.mxu0 0.0
    %1682 = vmatprep.subr.mxu0 0.0
    %1683 = vmatpush2.msra.mxu0 0.0
    %1684 = vmatprep.subr.mxu0 0.0
    %1685 = vmatpush2.msra.mxu0 0.0
    %1686 = vmatprep.subr.mxu0 0.0
    %1687 = vmatpush2.msra.mxu0 0.0
    %1688 = vmatprep.subr.mxu0 0.0
    %1689 = vmatpush2.msra.mxu0 0.0
    %1690 = vmatprep.subr.mxu0 0.0
    %1691 = vmatpush2.msra.mxu0 0.0
    %1692 = vmatprep.subr.mxu0 0.0
    %1693 = vmatpush2.msra.mxu0 0.0
    %1694 = vmatprep.subr.mxu0 0.0
    %1695 = vmatpush2.msra.mxu0 0.0
    %1696 = vmatprep.subr.mxu0 0.0
    %1697 = vmatpush2.msra.mxu0 0.0
    %1698 = vmatprep.subr.mxu0 0.0
    %1699 = vmatpush2.msra.mxu0 0.0
    %1700 = vmatprep.subr.mxu0 0.0
    %1701 = vmatpush2.msra.mxu0 0.0
    %1702 = vmatprep.subr.mxu0 0.0
    %1703 = vmatpush2.msra.mxu0 0.0
    %1704 = vmatprep.subr.mxu0 0.0
    %1705 = vmatpush2.msra.mxu0 0.0
    %1706 = vmatprep.mubr.f32.mxu0 0.0
    %1707 = vmatmul.mubr.f32.gmra.mxu0 %v1537
    %v1708 = vpop.f32.mrf.mxu0
    %v1709 = vadd.f32 0.0, %v1708
    %v1710 = vpop.f32.mrf.mxu0
    %1711 = vdwg.mxu0
    %v1713 = vrot.slane %v1709, 4
    %v1715 = vadd.f32 %v1173, %v1713
    %v1716 = vadd.f32 %v1715, %v1268
    %v1717 = vxor.u32 %v1716, 2147483648
    %v1718 = vmul.f32 %v1717, 1.442695
    %v1719 = vpow.pop %v1718
    %v1720 = vadd.f32 %v1719, 1.0
    %v1721 = vrcp.pop %v1720
    %v1722 = vmul.f32 1.0, %v1721
    %v1723 = vtanh.pop %v1716
    %v1725 = vrot.slane %v1526, 6
    %v1727 = vmul.f32 %v1722, %v1725
    %1729 = vrot.lane.b32.xlu0 %v1723, 64
    %v1730 = vpop.permute.xlu0 %1729
    %v1732 = vmul.f32 %v1722, %v1730
    %1734 = vrot.lane.b32.xlu0 %v1732, 32
    %v1735 = vpop.permute.xlu0 %1734
    %v1737 = vadd.f32 %v1727, %v1735
    %v1738 = vtanh.pop %v1737
    %1740 = vrot.lane.b32.xlu0 %v1738, 64
    %v1741 = vpop.permute.xlu0 %1740
    %v1743 = vmul.f32 %v1722, %v1741
    %v1745 = vrot.slane %v1743, 4
    %1746 = vrot.lane.b32.xlu0 %v1745, 32
    %v1747 = vpop.permute.xlu0 %1746
    %v1748 = vsel %vm260, %v1747, 0
    %1750 = vmatprep.subr.mxu0 0.0
    %1751 = vmatpush1.msra.mxu0 0.0
    %1752 = vmatprep.subr.mxu0 0.0
    %1753 = vmatpush1.msra.mxu0 0.0
    %1754 = vmatprep.subr.mxu0 0.0
    %1755 = vmatpush1.msra.mxu0 0.0
    %1756 = vmatprep.subr.mxu0 0.0
    %1757 = vmatpush1.msra.mxu0 0.0
    %1758 = vmatprep.subr.mxu0 0.0
    %1759 = vmatpush1.msra.mxu0 0.0
    %1760 = vmatprep.subr.mxu0 0.0
    %1761 = vmatpush1.msra.mxu0 0.0
    %1762 = vmatprep.subr.mxu0 0.0
    %1763 = vmatpush1.msra.mxu0 0.0
    %1764 = vmatprep.subr.mxu0 0.0
    %1765 = vmatpush1.msra.mxu0 0.0
    %1766 = vmatprep.subr.mxu0 0.0
    %1767 = vmatpush1.msra.mxu0 0.0
    %1768 = vmatprep.subr.mxu0 0.0
    %1769 = vmatpush1.msra.mxu0 0.0
    %1770 = vmatprep.subr.mxu0 0.0
    %1771 = vmatpush1.msra.mxu0 0.0
    %1772 = vmatprep.subr.mxu0 0.0
    %1773 = vmatpush1.msra.mxu0 0.0
    %1774 = vmatprep.subr.mxu0 0.0
    %1775 = vmatpush1.msra.mxu0 %v1191
    %1776 = vmatprep.subr.mxu0 0.0
    %1777 = vmatpush1.msra.mxu0 %v1190
    %1778 = vmatprep.subr.mxu0 0.0
    %1779 = vmatpush1.msra.mxu0 %v1189
    %1780 = vmatprep.subr.mxu0 0.0
    %1781 = vmatpush1.msra.mxu0 %v1188
    %1782 = vmatprep.subr.mxu0 0.0
    %1783 = vmatpush2.msra.mxu0 0.0
    %1784 = vmatprep.subr.mxu0 0.0
    %1785 = vmatpush2.msra.mxu0 0.0
    %1786 = vmatprep.subr.mxu0 0.0
    %1787 = vmatpush2.msra.mxu0 0.0
    %1788 = vmatprep.subr.mxu0 0.0
    %1789 = vmatpush2.msra.mxu0 0.0
    %1790 = vmatprep.subr.mxu0 0.0
    %1791 = vmatpush2.msra.mxu0 0.0
    %1792 = vmatprep.subr.mxu0 0.0
    %1793 = vmatpush2.msra.mxu0 0.0
    %1794 = vmatprep.subr.mxu0 0.0
    %1795 = vmatpush2.msra.mxu0 0.0
    %1796 = vmatprep.subr.mxu0 0.0
    %1797 = vmatpush2.msra.mxu0 0.0
    %1798 = vmatprep.subr.mxu0 0.0
    %1799 = vmatpush2.msra.mxu0 0.0
    %1800 = vmatprep.subr.mxu0 0.0
    %1801 = vmatpush2.msra.mxu0 0.0
    %1802 = vmatprep.subr.mxu0 0.0
    %1803 = vmatpush2.msra.mxu0 0.0
    %1804 = vmatprep.subr.mxu0 0.0
    %1805 = vmatpush2.msra.mxu0 0.0
    %1806 = vmatprep.subr.mxu0 0.0
    %1807 = vmatpush2.msra.mxu0 0.0
    %1808 = vmatprep.subr.mxu0 0.0
    %1809 = vmatpush2.msra.mxu0 0.0
    %1810 = vmatprep.subr.mxu0 0.0
    %1811 = vmatpush2.msra.mxu0 0.0
    %1812 = vmatprep.subr.mxu0 0.0
    %1813 = vmatpush2.msra.mxu0 0.0
    %1814 = vmatprep.mubr.f32.mxu0 0.0
    %1815 = vmatmul.mubr.f32.gmra.mxu0 %v1748
    %v1816 = vpop.f32.mrf.mxu0
    %v1817 = vadd.f32 %v1299, %v1816
    %v1818 = vpop.f32.mrf.mxu0
    %1819 = vdwg.mxu0
    %v1822 = vunpack.c.l.s4 1966171168
    %v1823 = vunpack.c.0.s8 %v1822
    %v1824 = vlaneseq
    %v1825 = vshrl.u32 %v1824, 7
    %v1826 = vsub.s32 %v1823, %v1825
    %v1827 = vrot.slane %v1817, %v1826
    %v1828 = vcombine.high %v1827, %v1827
    %v1830 = vunpack.c.l.s4 1966171168
    %v1831 = vunpack.c.0.s8 %v1830
    %v1832 = vlaneseq
    %v1833 = vshrl.u32 %v1832, 7
    %v1834 = vsub.s32 %v1831, %v1833
    %v1835 = vrot.slane %v1827, %v1834
    %v1837 = vunpack.c.l.s4 1966171168
    %v1838 = vunpack.c.0.s8 %v1837
    %v1839 = vlaneseq
    %v1840 = vshrl.u32 %v1839, 7
    %v1841 = vsub.s32 %v1838, %v1840
    %v1842 = vrot.slane %v1828, %v1841
    %1845 = vst.msk [vmem:[#allocation2 + $0x2] sm:$0x1] %vm1401, %v1835
    %1846 = vst.msk [vmem:[#allocation2 + $0xa] sm:$0x1] %vm1401, %v1842
    %v1847 = vcombine.high %v1175, %v1175
    %v1849 = vunpack.c.l.s4 1966171168
    %v1850 = vunpack.c.0.s8 %v1849
    %v1851 = vlaneseq
    %v1852 = vshrl.u32 %v1851, 7
    %v1853 = vsub.s32 %v1850, %v1852
    %v1854 = vrot.slane %v1847, %v1853
    %v1855 = vcombine.high %v1854, %v1854
    %v1857 = vunpack.c.l.s4 1966171168
    %v1858 = vunpack.c.0.s8 %v1857
    %v1859 = vlaneseq
    %v1860 = vshrl.u32 %v1859, 7
    %v1861 = vsub.s32 %v1858, %v1860
    %v1862 = vrot.slane %v1854, %v1861
    %v1864 = vunpack.c.l.s4 1966171168
    %v1865 = vunpack.c.0.s8 %v1864
    %v1866 = vlaneseq
    %v1867 = vshrl.u32 %v1866, 7
    %v1868 = vsub.s32 %v1865, %v1867
    %v1869 = vrot.slane %v1855, %v1868
    %1872 = vst [vmem:[#allocation3 + $0x2] sm:$0x1] %v1862
    %1873 = vst [vmem:[#allocation3 + $0xa] sm:$0x1] %v1869
    %1874 = vmatprep.subr.mxu0 0.0
    %1875 = vmatpush1.msra.mxu0 0.0
    %1876 = vmatprep.subr.mxu0 0.0
    %1877 = vmatpush1.msra.mxu0 0.0
    %1878 = vmatprep.subr.mxu0 0.0
    %1879 = vmatpush1.msra.mxu0 0.0
    %1880 = vmatprep.subr.mxu0 0.0
    %1881 = vmatpush1.msra.mxu0 0.0
    %1882 = vmatprep.subr.mxu0 0.0
    %1883 = vmatpush1.msra.mxu0 0.0
    %1884 = vmatprep.subr.mxu0 0.0
    %1885 = vmatpush1.msra.mxu0 0.0
    %1886 = vmatprep.subr.mxu0 0.0
    %1887 = vmatpush1.msra.mxu0 0.0
    %1888 = vmatprep.subr.mxu0 0.0
    %1889 = vmatpush1.msra.mxu0 0.0
    %1890 = vmatprep.subr.mxu0 0.0
    %1891 = vmatpush1.msra.mxu0 0.0
    %1892 = vmatprep.subr.mxu0 0.0
    %1893 = vmatpush1.msra.mxu0 0.0
    %1894 = vmatprep.subr.mxu0 0.0
    %1895 = vmatpush1.msra.mxu0 0.0
    %1896 = vmatprep.subr.mxu0 0.0
    %1897 = vmatpush1.msra.mxu0 0.0
    %1898 = vmatprep.subr.mxu0 0.0
    %1899 = vmatpush1.msra.mxu0 %v1186
    %1900 = vmatprep.subr.mxu0 0.0
    %1901 = vmatpush1.msra.mxu0 %v1185
    %1902 = vmatprep.subr.mxu0 0.0
    %1903 = vmatpush1.msra.mxu0 %v1184
    %1904 = vmatprep.subr.mxu0 0.0
    %1905 = vmatpush1.msra.mxu0 %v1183
    %1906 = vmatprep.subr.mxu0 0.0
    %1907 = vmatpush2.msra.mxu0 0.0
    %1908 = vmatprep.subr.mxu0 0.0
    %1909 = vmatpush2.msra.mxu0 0.0
    %1910 = vmatprep.subr.mxu0 0.0
    %1911 = vmatpush2.msra.mxu0 0.0
    %1912 = vmatprep.subr.mxu0 0.0
    %1913 = vmatpush2.msra.mxu0 0.0
    %1914 = vmatprep.subr.mxu0 0.0
    %1915 = vmatpush2.msra.mxu0 0.0
    %1916 = vmatprep.subr.mxu0 0.0
    %1917 = vmatpush2.msra.mxu0 0.0
    %1918 = vmatprep.subr.mxu0 0.0
    %1919 = vmatpush2.msra.mxu0 0.0
    %1920 = vmatprep.subr.mxu0 0.0
    %1921 = vmatpush2.msra.mxu0 0.0
    %1922 = vmatprep.subr.mxu0 0.0
    %1923 = vmatpush2.msra.mxu0 0.0
    %1924 = vmatprep.subr.mxu0 0.0
    %1925 = vmatpush2.msra.mxu0 0.0
    %1926 = vmatprep.subr.mxu0 0.0
    %1927 = vmatpush2.msra.mxu0 0.0
    %1928 = vmatprep.subr.mxu0 0.0
    %1929 = vmatpush2.msra.mxu0 0.0
    %1930 = vmatprep.subr.mxu0 0.0
    %1931 = vmatpush2.msra.mxu0 0.0
    %1932 = vmatprep.subr.mxu0 0.0
    %1933 = vmatpush2.msra.mxu0 0.0
    %1934 = vmatprep.subr.mxu0 0.0
    %1935 = vmatpush2.msra.mxu0 0.0
    %1936 = vmatprep.subr.mxu0 0.0
    %1937 = vmatpush2.msra.mxu0 0.0
    %1938 = vmatprep.mubr.f32.mxu0 0.0
    %1939 = vmatmul.mubr.f32.gmra.mxu0 %v1748
    %v1940 = vpop.f32.mrf.mxu0
    %v1941 = vadd.f32 0.0, %v1940
    %v1942 = vpop.f32.mrf.mxu0
    %1943 = vdwg.mxu0
    %v1945 = vrot.slane %v1941, 2
    %v1947 = vadd.f32 %v1173, %v1945
    %v1948 = vadd.f32 %v1947, %v1268
    %v1949 = vxor.u32 %v1948, 2147483648
    %v1950 = vmul.f32 %v1949, 1.442695
    %v1951 = vpow.pop %v1950
    %v1952 = vadd.f32 %v1951, 1.0
    %v1953 = vrcp.pop %v1952
    %v1954 = vmul.f32 1.0, %v1953
    %v1955 = vtanh.pop %v1948
    %v1957 = vrot.slane %v1737, 6
    %v1959 = vmul.f32 %v1954, %v1957
    %1961 = vrot.lane.b32.xlu0 %v1955, 64
    %v1962 = vpop.permute.xlu0 %1961
    %v1964 = vmul.f32 %v1954, %v1962
    %1966 = vrot.lane.b32.xlu0 %v1964, 32
    %v1967 = vpop.permute.xlu0 %1966
    %v1969 = vadd.f32 %v1959, %v1967
    %v1970 = vtanh.pop %v1969
    %1972 = vrot.lane.b32.xlu0 %v1970, 64
    %v1973 = vpop.permute.xlu0 %1972
    %v1975 = vmul.f32 %v1954, %v1973
    %v1977 = vrot.slane %v1975, 6
    %1978 = vrot.lane.b32.xlu0 %v1977, 32
    %v1979 = vpop.permute.xlu0 %1978
    %v1980 = vsel %vm260, %v1979, 0
    %1982 = vmatprep.subr.mxu0 0.0
    %1983 = vmatpush1.msra.mxu0 0.0
    %1984 = vmatprep.subr.mxu0 0.0
    %1985 = vmatpush1.msra.mxu0 0.0
    %1986 = vmatprep.subr.mxu0 0.0
    %1987 = vmatpush1.msra.mxu0 0.0
    %1988 = vmatprep.subr.mxu0 0.0
    %1989 = vmatpush1.msra.mxu0 0.0
    %1990 = vmatprep.subr.mxu0 0.0
    %1991 = vmatpush1.msra.mxu0 0.0
    %1992 = vmatprep.subr.mxu0 0.0
    %1993 = vmatpush1.msra.mxu0 0.0
    %1994 = vmatprep.subr.mxu0 0.0
    %1995 = vmatpush1.msra.mxu0 0.0
    %1996 = vmatprep.subr.mxu0 0.0
    %1997 = vmatpush1.msra.mxu0 0.0
    %1998 = vmatprep.subr.mxu0 0.0
    %1999 = vmatpush1.msra.mxu0 0.0
    %2000 = vmatprep.subr.mxu0 0.0
    %2001 = vmatpush1.msra.mxu0 0.0
    %2002 = vmatprep.subr.mxu0 0.0
    %2003 = vmatpush1.msra.mxu0 0.0
    %2004 = vmatprep.subr.mxu0 0.0
    %2005 = vmatpush1.msra.mxu0 0.0
    %2006 = vmatprep.subr.mxu0 0.0
    %2007 = vmatpush1.msra.mxu0 %v1191
    %2008 = vmatprep.subr.mxu0 0.0
    %2009 = vmatpush1.msra.mxu0 %v1190
    %2010 = vmatprep.subr.mxu0 0.0
    %2011 = vmatpush1.msra.mxu0 %v1189
    %2012 = vmatprep.subr.mxu0 0.0
    %2013 = vmatpush1.msra.mxu0 %v1188
    %2014 = vmatprep.subr.mxu0 0.0
    %2015 = vmatpush2.msra.mxu0 0.0
    %2016 = vmatprep.subr.mxu0 0.0
    %2017 = vmatpush2.msra.mxu0 0.0
    %2018 = vmatprep.subr.mxu0 0.0
    %2019 = vmatpush2.msra.mxu0 0.0
    %2020 = vmatprep.subr.mxu0 0.0
    %2021 = vmatpush2.msra.mxu0 0.0
    %2022 = vmatprep.subr.mxu0 0.0
    %2023 = vmatpush2.msra.mxu0 0.0
    %2024 = vmatprep.subr.mxu0 0.0
    %2025 = vmatpush2.msra.mxu0 0.0
    %2026 = vmatprep.subr.mxu0 0.0
    %2027 = vmatpush2.msra.mxu0 0.0
    %2028 = vmatprep.subr.mxu0 0.0
    %2029 = vmatpush2.msra.mxu0 0.0
    %2030 = vmatprep.subr.mxu0 0.0
    %2031 = vmatpush2.msra.mxu0 0.0
    %2032 = vmatprep.subr.mxu0 0.0
    %2033 = vmatpush2.msra.mxu0 0.0
    %2034 = vmatprep.subr.mxu0 0.0
    %2035 = vmatpush2.msra.mxu0 0.0
    %2036 = vmatprep.subr.mxu0 0.0
    %2037 = vmatpush2.msra.mxu0 0.0
    %2038 = vmatprep.subr.mxu0 0.0
    %2039 = vmatpush2.msra.mxu0 0.0
    %2040 = vmatprep.subr.mxu0 0.0
    %2041 = vmatpush2.msra.mxu0 0.0
    %2042 = vmatprep.subr.mxu0 0.0
    %2043 = vmatpush2.msra.mxu0 0.0
    %2044 = vmatprep.subr.mxu0 0.0
    %2045 = vmatpush2.msra.mxu0 0.0
    %2046 = vmatprep.mubr.f32.mxu0 0.0
    %2047 = vmatmul.mubr.f32.gmra.mxu0 %v1980
    %v2048 = vpop.f32.mrf.mxu0
    %v2049 = vadd.f32 %v1299, %v2048
    %v2050 = vpop.f32.mrf.mxu0
    %2051 = vdwg.mxu0
    %v2054 = vunpack.c.l.s4 1966171168
    %v2055 = vunpack.c.0.s8 %v2054
    %v2056 = vlaneseq
    %v2057 = vshrl.u32 %v2056, 7
    %v2058 = vsub.s32 %v2055, %v2057
    %v2059 = vrot.slane %v2049, %v2058
    %v2060 = vcombine.high %v2059, %v2059
    %v2062 = vunpack.c.l.s4 1966171168
    %v2063 = vunpack.c.0.s8 %v2062
    %v2064 = vlaneseq
    %v2065 = vshrl.u32 %v2064, 7
    %v2066 = vsub.s32 %v2063, %v2065
    %v2067 = vrot.slane %v2059, %v2066
    %v2069 = vunpack.c.l.s4 1966171168
    %v2070 = vunpack.c.0.s8 %v2069
    %v2071 = vlaneseq
    %v2072 = vshrl.u32 %v2071, 7
    %v2073 = vsub.s32 %v2070, %v2072
    %v2074 = vrot.slane %v2060, %v2073
    %2077 = vst.msk [vmem:[#allocation2 + $0x3] sm:$0x1] %vm1401, %v2067
    %2078 = vst.msk [vmem:[#allocation2 + $0xb] sm:$0x1] %vm1401, %v2074
    %v2079 = vcombine.high %v1862, %v1862
    %v2080 = vcombine.high %v1869, %v1869
    %2083 = vst [vmem:[#allocation3 + $0x3] sm:$0x1] %v2079
    %2084 = vst [vmem:[#allocation3 + $0xb] sm:$0x1] %v2080
    %2085 = vmatprep.subr.mxu0 0.0
    %2086 = vmatpush1.msra.mxu0 0.0
    %2087 = vmatprep.subr.mxu0 0.0
    %2088 = vmatpush1.msra.mxu0 0.0
    %2089 = vmatprep.subr.mxu0 0.0
    %2090 = vmatpush1.msra.mxu0 0.0
    %2091 = vmatprep.subr.mxu0 0.0
    %2092 = vmatpush1.msra.mxu0 0.0
    %2093 = vmatprep.subr.mxu0 0.0
    %2094 = vmatpush1.msra.mxu0 0.0
    %2095 = vmatprep.subr.mxu0 0.0
    %2096 = vmatpush1.msra.mxu0 0.0
    %2097 = vmatprep.subr.mxu0 0.0
    %2098 = vmatpush1.msra.mxu0 0.0
    %2099 = vmatprep.subr.mxu0 0.0
    %2100 = vmatpush1.msra.mxu0 0.0
    %2101 = vmatprep.subr.mxu0 0.0
    %2102 = vmatpush1.msra.mxu0 0.0
    %2103 = vmatprep.subr.mxu0 0.0
    %2104 = vmatpush1.msra.mxu0 0.0
    %2105 = vmatprep.subr.mxu0 0.0
    %2106 = vmatpush1.msra.mxu0 0.0
    %2107 = vmatprep.subr.mxu0 0.0
    %2108 = vmatpush1.msra.mxu0 0.0
    %2109 = vmatprep.subr.mxu0 0.0
    %2110 = vmatpush1.msra.mxu0 %v1186
    %2111 = vmatprep.subr.mxu0 0.0
    %2112 = vmatpush1.msra.mxu0 %v1185
    %2113 = vmatprep.subr.mxu0 0.0
    %2114 = vmatpush1.msra.mxu0 %v1184
    %2115 = vmatprep.subr.mxu0 0.0
    %2116 = vmatpush1.msra.mxu0 %v1183
    %2117 = vmatprep.subr.mxu0 0.0
    %2118 = vmatpush2.msra.mxu0 0.0
    %2119 = vmatprep.subr.mxu0 0.0
    %2120 = vmatpush2.msra.mxu0 0.0
    %2121 = vmatprep.subr.mxu0 0.0
    %2122 = vmatpush2.msra.mxu0 0.0
    %2123 = vmatprep.subr.mxu0 0.0
    %2124 = vmatpush2.msra.mxu0 0.0
    %2125 = vmatprep.subr.mxu0 0.0
    %2126 = vmatpush2.msra.mxu0 0.0
    %2127 = vmatprep.subr.mxu0 0.0
    %2128 = vmatpush2.msra.mxu0 0.0
    %2129 = vmatprep.subr.mxu0 0.0
    %2130 = vmatpush2.msra.mxu0 0.0
    %2131 = vmatprep.subr.mxu0 0.0
    %2132 = vmatpush2.msra.mxu0 0.0
    %2133 = vmatprep.subr.mxu0 0.0
    %2134 = vmatpush2.msra.mxu0 0.0
    %2135 = vmatprep.subr.mxu0 0.0
    %2136 = vmatpush2.msra.mxu0 0.0
    %2137 = vmatprep.subr.mxu0 0.0
    %2138 = vmatpush2.msra.mxu0 0.0
    %2139 = vmatprep.subr.mxu0 0.0
    %2140 = vmatpush2.msra.mxu0 0.0
    %2141 = vmatprep.subr.mxu0 0.0
    %2142 = vmatpush2.msra.mxu0 0.0
    %2143 = vmatprep.subr.mxu0 0.0
    %2144 = vmatpush2.msra.mxu0 0.0
    %2145 = vmatprep.subr.mxu0 0.0
    %2146 = vmatpush2.msra.mxu0 0.0
    %2147 = vmatprep.subr.mxu0 0.0
    %2148 = vmatpush2.msra.mxu0 0.0
    %2149 = vmatprep.mubr.f32.mxu0 0.0
    %2150 = vmatmul.mubr.f32.gmra.mxu0 %v1980
    %v2151 = vpop.f32.mrf.mxu0
    %v2152 = vadd.f32 0.0, %v2151
    %v2153 = vpop.f32.mrf.mxu0
    %2154 = vdwg.mxu0
    %v2155 = vadd.f32 %v1179, %v2152
    %v2156 = vadd.f32 %v2155, %v1268
    %v2157 = vxor.u32 %v2156, 2147483648
    %v2158 = vmul.f32 %v2157, 1.442695
    %v2159 = vpow.pop %v2158
    %v2160 = vadd.f32 %v2159, 1.0
    %v2161 = vrcp.pop %v2160
    %v2162 = vmul.f32 1.0, %v2161
    %v2163 = vtanh.pop %v2156
    %v2165 = vrot.slane %v1969, 6
    %v2167 = vmul.f32 %v2162, %v2165
    %2169 = vrot.lane.b32.xlu0 %v2163, 64
    %v2170 = vpop.permute.xlu0 %2169
    %v2172 = vmul.f32 %v2162, %v2170
    %2174 = vrot.lane.b32.xlu0 %v2172, 32
    %v2175 = vpop.permute.xlu0 %2174
    %v2177 = vadd.f32 %v2167, %v2175
    %v2178 = vtanh.pop %v2177
    %2180 = vrot.lane.b32.xlu0 %v2178, 64
    %v2181 = vpop.permute.xlu0 %2180
    %v2183 = vmul.f32 %v2162, %v2181
    %2185 = vrot.lane.b32.xlu0 %v2183, 32
    %v2186 = vpop.permute.xlu0 %2185
    %v2187 = vsel %vm260, %v2186, 0
    %2189 = vmatprep.subr.mxu0 0.0
    %2190 = vmatpush1.msra.mxu0 0.0
    %2191 = vmatprep.subr.mxu0 0.0
    %2192 = vmatpush1.msra.mxu0 0.0
    %2193 = vmatprep.subr.mxu0 0.0
    %2194 = vmatpush1.msra.mxu0 0.0
    %2195 = vmatprep.subr.mxu0 0.0
    %2196 = vmatpush1.msra.mxu0 0.0
    %2197 = vmatprep.subr.mxu0 0.0
    %2198 = vmatpush1.msra.mxu0 0.0
    %2199 = vmatprep.subr.mxu0 0.0
    %2200 = vmatpush1.msra.mxu0 0.0
    %2201 = vmatprep.subr.mxu0 0.0
    %2202 = vmatpush1.msra.mxu0 0.0
    %2203 = vmatprep.subr.mxu0 0.0
    %2204 = vmatpush1.msra.mxu0 0.0
    %2205 = vmatprep.subr.mxu0 0.0
    %2206 = vmatpush1.msra.mxu0 0.0
    %2207 = vmatprep.subr.mxu0 0.0
    %2208 = vmatpush1.msra.mxu0 0.0
    %2209 = vmatprep.subr.mxu0 0.0
    %2210 = vmatpush1.msra.mxu0 0.0
    %2211 = vmatprep.subr.mxu0 0.0
    %2212 = vmatpush1.msra.mxu0 0.0
    %2213 = vmatprep.subr.mxu0 0.0
    %2214 = vmatpush1.msra.mxu0 %v1191
    %2215 = vmatprep.subr.mxu0 0.0
    %2216 = vmatpush1.msra.mxu0 %v1190
    %2217 = vmatprep.subr.mxu0 0.0
    %2218 = vmatpush1.msra.mxu0 %v1189
    %2219 = vmatprep.subr.mxu0 0.0
    %2220 = vmatpush1.msra.mxu0 %v1188
    %2221 = vmatprep.subr.mxu0 0.0
    %2222 = vmatpush2.msra.mxu0 0.0
    %2223 = vmatprep.subr.mxu0 0.0
    %2224 = vmatpush2.msra.mxu0 0.0
    %2225 = vmatprep.subr.mxu0 0.0
    %2226 = vmatpush2.msra.mxu0 0.0
    %2227 = vmatprep.subr.mxu0 0.0
    %2228 = vmatpush2.msra.mxu0 0.0
    %2229 = vmatprep.subr.mxu0 0.0
    %2230 = vmatpush2.msra.mxu0 0.0
    %2231 = vmatprep.subr.mxu0 0.0
    %2232 = vmatpush2.msra.mxu0 0.0
    %2233 = vmatprep.subr.mxu0 0.0
    %2234 = vmatpush2.msra.mxu0 0.0
    %2235 = vmatprep.subr.mxu0 0.0
    %2236 = vmatpush2.msra.mxu0 0.0
    %2237 = vmatprep.subr.mxu0 0.0
    %2238 = vmatpush2.msra.mxu0 0.0
    %2239 = vmatprep.subr.mxu0 0.0
    %2240 = vmatpush2.msra.mxu0 0.0
    %2241 = vmatprep.subr.mxu0 0.0
    %2242 = vmatpush2.msra.mxu0 0.0
    %2243 = vmatprep.subr.mxu0 0.0
    %2244 = vmatpush2.msra.mxu0 0.0
    %2245 = vmatprep.subr.mxu0 0.0
    %2246 = vmatpush2.msra.mxu0 0.0
    %2247 = vmatprep.subr.mxu0 0.0
    %2248 = vmatpush2.msra.mxu0 0.0
    %2249 = vmatprep.subr.mxu0 0.0
    %2250 = vmatpush2.msra.mxu0 0.0
    %2251 = vmatprep.subr.mxu0 0.0
    %2252 = vmatpush2.msra.mxu0 0.0
    %2253 = vmatprep.mubr.f32.mxu0 0.0
    %2254 = vmatmul.mubr.f32.gmra.mxu0 %v2187
    %v2255 = vpop.f32.mrf.mxu0
    %v2256 = vadd.f32 %v1299, %v2255
    %v2257 = vpop.f32.mrf.mxu0
    %2258 = vdwg.mxu0
    %v2261 = vunpack.c.l.s4 1966171168
    %v2262 = vunpack.c.0.s8 %v2261
    %v2263 = vlaneseq
    %v2264 = vshrl.u32 %v2263, 7
    %v2265 = vsub.s32 %v2262, %v2264
    %v2266 = vrot.slane %v2256, %v2265
    %v2267 = vcombine.high %v2266, %v2266
    %v2269 = vunpack.c.l.s4 1966171168
    %v2270 = vunpack.c.0.s8 %v2269
    %v2271 = vlaneseq
    %v2272 = vshrl.u32 %v2271, 7
    %v2273 = vsub.s32 %v2270, %v2272
    %v2274 = vrot.slane %v2266, %v2273
    %v2276 = vunpack.c.l.s4 1966171168
    %v2277 = vunpack.c.0.s8 %v2276
    %v2278 = vlaneseq
    %v2279 = vshrl.u32 %v2278, 7
    %v2280 = vsub.s32 %v2277, %v2279
    %v2281 = vrot.slane %v2267, %v2280
    %2284 = vst.msk [vmem:[#allocation2 + $0x4] sm:$0x1] %vm1401, %v2274
    %2285 = vst.msk [vmem:[#allocation2 + $0xc] sm:$0x1] %vm1401, %v2281
    %v2288 = vunpack.c.l.s4 1966171168
    %v2289 = vunpack.c.0.s8 %v2288
    %v2290 = vlaneseq
    %v2291 = vshrl.u32 %v2290, 7
    %v2292 = vsub.s32 %v2289, %v2291
    %v2293 = vrot.slane %v1181, %v2292
    %v2294 = vcombine.high %v2293, %v2293
    %v2296 = vunpack.c.l.s4 1966171168
    %v2297 = vunpack.c.0.s8 %v2296
    %v2298 = vlaneseq
    %v2299 = vshrl.u32 %v2298, 7
    %v2300 = vsub.s32 %v2297, %v2299
    %v2301 = vrot.slane %v2293, %v2300
    %v2303 = vunpack.c.l.s4 1966171168
    %v2304 = vunpack.c.0.s8 %v2303
    %v2305 = vlaneseq
    %v2306 = vshrl.u32 %v2305, 7
    %v2307 = vsub.s32 %v2304, %v2306
    %v2308 = vrot.slane %v2294, %v2307
    %2311 = vst [vmem:[#allocation3 + $0x4] sm:$0x1] %v2301
    %2312 = vst [vmem:[#allocation3 + $0xc] sm:$0x1] %v2308
    %2313 = vmatprep.subr.mxu0 0.0
    %2314 = vmatpush1.msra.mxu0 0.0
    %2315 = vmatprep.subr.mxu0 0.0
    %2316 = vmatpush1.msra.mxu0 0.0
    %2317 = vmatprep.subr.mxu0 0.0
    %2318 = vmatpush1.msra.mxu0 0.0
    %2319 = vmatprep.subr.mxu0 0.0
    %2320 = vmatpush1.msra.mxu0 0.0
    %2321 = vmatprep.subr.mxu0 0.0
    %2322 = vmatpush1.msra.mxu0 0.0
    %2323 = vmatprep.subr.mxu0 0.0
    %2324 = vmatpush1.msra.mxu0 0.0
    %2325 = vmatprep.subr.mxu0 0.0
    %2326 = vmatpush1.msra.mxu0 0.0
    %2327 = vmatprep.subr.mxu0 0.0
    %2328 = vmatpush1.msra.mxu0 0.0
    %2329 = vmatprep.subr.mxu0 0.0
    %2330 = vmatpush1.msra.mxu0 0.0
    %2331 = vmatprep.subr.mxu0 0.0
    %2332 = vmatpush1.msra.mxu0 0.0
    %2333 = vmatprep.subr.mxu0 0.0
    %2334 = vmatpush1.msra.mxu0 0.0
    %2335 = vmatprep.subr.mxu0 0.0
    %2336 = vmatpush1.msra.mxu0 0.0
    %2337 = vmatprep.subr.mxu0 0.0
    %2338 = vmatpush1.msra.mxu0 %v1186
    %2339 = vmatprep.subr.mxu0 0.0
    %2340 = vmatpush1.msra.mxu0 %v1185
    %2341 = vmatprep.subr.mxu0 0.0
    %2342 = vmatpush1.msra.mxu0 %v1184
    %2343 = vmatprep.subr.mxu0 0.0
    %2344 = vmatpush1.msra.mxu0 %v1183
    %2345 = vmatprep.subr.mxu0 0.0
    %2346 = vmatpush2.msra.mxu0 0.0
    %2347 = vmatprep.subr.mxu0 0.0
    %2348 = vmatpush2.msra.mxu0 0.0
    %2349 = vmatprep.subr.mxu0 0.0
    %2350 = vmatpush2.msra.mxu0 0.0
    %2351 = vmatprep.subr.mxu0 0.0
    %2352 = vmatpush2.msra.mxu0 0.0
    %2353 = vmatprep.subr.mxu0 0.0
    %2354 = vmatpush2.msra.mxu0 0.0
    %2355 = vmatprep.subr.mxu0 0.0
    %2356 = vmatpush2.msra.mxu0 0.0
    %2357 = vmatprep.subr.mxu0 0.0
    %2358 = vmatpush2.msra.mxu0 0.0
    %2359 = vmatprep.subr.mxu0 0.0
    %2360 = vmatpush2.msra.mxu0 0.0
    %2361 = vmatprep.subr.mxu0 0.0
    %2362 = vmatpush2.msra.mxu0 0.0
    %2363 = vmatprep.subr.mxu0 0.0
    %2364 = vmatpush2.msra.mxu0 0.0
    %2365 = vmatprep.subr.mxu0 0.0
    %2366 = vmatpush2.msra.mxu0 0.0
    %2367 = vmatprep.subr.mxu0 0.0
    %2368 = vmatpush2.msra.mxu0 0.0
    %2369 = vmatprep.subr.mxu0 0.0
    %2370 = vmatpush2.msra.mxu0 0.0
    %2371 = vmatprep.subr.mxu0 0.0
    %2372 = vmatpush2.msra.mxu0 0.0
    %2373 = vmatprep.subr.mxu0 0.0
    %2374 = vmatpush2.msra.mxu0 0.0
    %2375 = vmatprep.subr.mxu0 0.0
    %2376 = vmatpush2.msra.mxu0 0.0
    %2377 = vmatprep.mubr.f32.mxu0 0.0
    %2378 = vmatmul.mubr.f32.gmra.mxu0 %v2187
    %v2379 = vpop.f32.mrf.mxu0
    %v2380 = vadd.f32 0.0, %v2379
    %v2381 = vpop.f32.mrf.mxu0
    %2382 = vdwg.mxu0
    %v2384 = vrot.slane %v2380, 6
    %v2386 = vadd.f32 %v1179, %v2384
    %v2387 = vadd.f32 %v2386, %v1268
    %v2388 = vxor.u32 %v2387, 2147483648
    %v2389 = vmul.f32 %v2388, 1.442695
    %v2390 = vpow.pop %v2389
    %v2391 = vadd.f32 %v2390, 1.0
    %v2392 = vrcp.pop %v2391
    %v2393 = vmul.f32 1.0, %v2392
    %v2394 = vtanh.pop %v2387
    %v2396 = vrot.slane %v2177, 6
    %v2398 = vmul.f32 %v2393, %v2396
    %2400 = vrot.lane.b32.xlu0 %v2394, 64
    %v2401 = vpop.permute.xlu0 %2400
    %v2403 = vmul.f32 %v2393, %v2401
    %2405 = vrot.lane.b32.xlu0 %v2403, 32
    %v2406 = vpop.permute.xlu0 %2405
    %v2408 = vadd.f32 %v2398, %v2406
    %v2409 = vtanh.pop %v2408
    %2411 = vrot.lane.b32.xlu0 %v2409, 64
    %v2412 = vpop.permute.xlu0 %2411
    %v2414 = vmul.f32 %v2393, %v2412
    %v2416 = vrot.slane %v2414, 2
    %2417 = vrot.lane.b32.xlu0 %v2416, 32
    %v2418 = vpop.permute.xlu0 %2417
    %v2419 = vsel %vm260, %v2418, 0
    %2421 = vmatprep.subr.mxu0 0.0
    %2422 = vmatpush1.msra.mxu0 0.0
    %2423 = vmatprep.subr.mxu0 0.0
    %2424 = vmatpush1.msra.mxu0 0.0
    %2425 = vmatprep.subr.mxu0 0.0
    %2426 = vmatpush1.msra.mxu0 0.0
    %2427 = vmatprep.subr.mxu0 0.0
    %2428 = vmatpush1.msra.mxu0 0.0
    %2429 = vmatprep.subr.mxu0 0.0
    %2430 = vmatpush1.msra.mxu0 0.0
    %2431 = vmatprep.subr.mxu0 0.0
    %2432 = vmatpush1.msra.mxu0 0.0
    %2433 = vmatprep.subr.mxu0 0.0
    %2434 = vmatpush1.msra.mxu0 0.0
    %2435 = vmatprep.subr.mxu0 0.0
    %2436 = vmatpush1.msra.mxu0 0.0
    %2437 = vmatprep.subr.mxu0 0.0
    %2438 = vmatpush1.msra.mxu0 0.0
    %2439 = vmatprep.subr.mxu0 0.0
    %2440 = vmatpush1.msra.mxu0 0.0
    %2441 = vmatprep.subr.mxu0 0.0
    %2442 = vmatpush1.msra.mxu0 0.0
    %2443 = vmatprep.subr.mxu0 0.0
    %2444 = vmatpush1.msra.mxu0 0.0
    %2445 = vmatprep.subr.mxu0 0.0
    %2446 = vmatpush1.msra.mxu0 %v1191
    %2447 = vmatprep.subr.mxu0 0.0
    %2448 = vmatpush1.msra.mxu0 %v1190
    %2449 = vmatprep.subr.mxu0 0.0
    %2450 = vmatpush1.msra.mxu0 %v1189
    %2451 = vmatprep.subr.mxu0 0.0
    %2452 = vmatpush1.msra.mxu0 %v1188
    %2453 = vmatprep.subr.mxu0 0.0
    %2454 = vmatpush2.msra.mxu0 0.0
    %2455 = vmatprep.subr.mxu0 0.0
    %2456 = vmatpush2.msra.mxu0 0.0
    %2457 = vmatprep.subr.mxu0 0.0
    %2458 = vmatpush2.msra.mxu0 0.0
    %2459 = vmatprep.subr.mxu0 0.0
    %2460 = vmatpush2.msra.mxu0 0.0
    %2461 = vmatprep.subr.mxu0 0.0
    %2462 = vmatpush2.msra.mxu0 0.0
    %2463 = vmatprep.subr.mxu0 0.0
    %2464 = vmatpush2.msra.mxu0 0.0
    %2465 = vmatprep.subr.mxu0 0.0
    %2466 = vmatpush2.msra.mxu0 0.0
    %2467 = vmatprep.subr.mxu0 0.0
    %2468 = vmatpush2.msra.mxu0 0.0
    %2469 = vmatprep.subr.mxu0 0.0
    %2470 = vmatpush2.msra.mxu0 0.0
    %2471 = vmatprep.subr.mxu0 0.0
    %2472 = vmatpush2.msra.mxu0 0.0
    %2473 = vmatprep.subr.mxu0 0.0
    %2474 = vmatpush2.msra.mxu0 0.0
    %2475 = vmatprep.subr.mxu0 0.0
    %2476 = vmatpush2.msra.mxu0 0.0
    %2477 = vmatprep.subr.mxu0 0.0
    %2478 = vmatpush2.msra.mxu0 0.0
    %2479 = vmatprep.subr.mxu0 0.0
    %2480 = vmatpush2.msra.mxu0 0.0
    %2481 = vmatprep.subr.mxu0 0.0
    %2482 = vmatpush2.msra.mxu0 0.0
    %2483 = vmatprep.subr.mxu0 0.0
    %2484 = vmatpush2.msra.mxu0 0.0
    %2485 = vmatprep.mubr.f32.mxu0 0.0
    %2486 = vmatmul.mubr.f32.gmra.mxu0 %v2419
    %v2487 = vpop.f32.mrf.mxu0
    %v2488 = vadd.f32 %v1299, %v2487
    %v2489 = vpop.f32.mrf.mxu0
    %2490 = vdwg.mxu0
    %v2493 = vunpack.c.l.s4 1966171168
    %v2494 = vunpack.c.0.s8 %v2493
    %v2495 = vlaneseq
    %v2496 = vshrl.u32 %v2495, 7
    %v2497 = vsub.s32 %v2494, %v2496
    %v2498 = vrot.slane %v2488, %v2497
    %v2499 = vcombine.high %v2498, %v2498
    %v2501 = vunpack.c.l.s4 1966171168
    %v2502 = vunpack.c.0.s8 %v2501
    %v2503 = vlaneseq
    %v2504 = vshrl.u32 %v2503, 7
    %v2505 = vsub.s32 %v2502, %v2504
    %v2506 = vrot.slane %v2498, %v2505
    %v2508 = vunpack.c.l.s4 1966171168
    %v2509 = vunpack.c.0.s8 %v2508
    %v2510 = vlaneseq
    %v2511 = vshrl.u32 %v2510, 7
    %v2512 = vsub.s32 %v2509, %v2511
    %v2513 = vrot.slane %v2499, %v2512
    %2516 = vst.msk [vmem:[#allocation2 + $0x5] sm:$0x1] %vm1401, %v2506
    %2517 = vst.msk [vmem:[#allocation2 + $0xd] sm:$0x1] %vm1401, %v2513
    %v2518 = vcombine.high %v2301, %v2301
    %v2519 = vcombine.high %v2308, %v2308
    %2522 = vst [vmem:[#allocation3 + $0x5] sm:$0x1] %v2518
    %2523 = vst [vmem:[#allocation3 + $0xd] sm:$0x1] %v2519
    %2524 = vmatprep.subr.mxu0 0.0
    %2525 = vmatpush1.msra.mxu0 0.0
    %2526 = vmatprep.subr.mxu0 0.0
    %2527 = vmatpush1.msra.mxu0 0.0
    %2528 = vmatprep.subr.mxu0 0.0
    %2529 = vmatpush1.msra.mxu0 0.0
    %2530 = vmatprep.subr.mxu0 0.0
    %2531 = vmatpush1.msra.mxu0 0.0
    %2532 = vmatprep.subr.mxu0 0.0
    %2533 = vmatpush1.msra.mxu0 0.0
    %2534 = vmatprep.subr.mxu0 0.0
    %2535 = vmatpush1.msra.mxu0 0.0
    %2536 = vmatprep.subr.mxu0 0.0
    %2537 = vmatpush1.msra.mxu0 0.0
    %2538 = vmatprep.subr.mxu0 0.0
    %2539 = vmatpush1.msra.mxu0 0.0
    %2540 = vmatprep.subr.mxu0 0.0
    %2541 = vmatpush1.msra.mxu0 0.0
    %2542 = vmatprep.subr.mxu0 0.0
    %2543 = vmatpush1.msra.mxu0 0.0
    %2544 = vmatprep.subr.mxu0 0.0
    %2545 = vmatpush1.msra.mxu0 0.0
    %2546 = vmatprep.subr.mxu0 0.0
    %2547 = vmatpush1.msra.mxu0 0.0
    %2548 = vmatprep.subr.mxu0 0.0
    %2549 = vmatpush1.msra.mxu0 %v1186
    %2550 = vmatprep.subr.mxu0 0.0
    %2551 = vmatpush1.msra.mxu0 %v1185
    %2552 = vmatprep.subr.mxu0 0.0
    %2553 = vmatpush1.msra.mxu0 %v1184
    %2554 = vmatprep.subr.mxu0 0.0
    %2555 = vmatpush1.msra.mxu0 %v1183
    %2556 = vmatprep.subr.mxu0 0.0
    %2557 = vmatpush2.msra.mxu0 0.0
    %2558 = vmatprep.subr.mxu0 0.0
    %2559 = vmatpush2.msra.mxu0 0.0
    %2560 = vmatprep.subr.mxu0 0.0
    %2561 = vmatpush2.msra.mxu0 0.0
    %2562 = vmatprep.subr.mxu0 0.0
    %2563 = vmatpush2.msra.mxu0 0.0
    %2564 = vmatprep.subr.mxu0 0.0
    %2565 = vmatpush2.msra.mxu0 0.0
    %2566 = vmatprep.subr.mxu0 0.0
    %2567 = vmatpush2.msra.mxu0 0.0
    %2568 = vmatprep.subr.mxu0 0.0
    %2569 = vmatpush2.msra.mxu0 0.0
    %2570 = vmatprep.subr.mxu0 0.0
    %2571 = vmatpush2.msra.mxu0 0.0
    %2572 = vmatprep.subr.mxu0 0.0
    %2573 = vmatpush2.msra.mxu0 0.0
    %2574 = vmatprep.subr.mxu0 0.0
    %2575 = vmatpush2.msra.mxu0 0.0
    %2576 = vmatprep.subr.mxu0 0.0
    %2577 = vmatpush2.msra.mxu0 0.0
    %2578 = vmatprep.subr.mxu0 0.0
    %2579 = vmatpush2.msra.mxu0 0.0
    %2580 = vmatprep.subr.mxu0 0.0
    %2581 = vmatpush2.msra.mxu0 0.0
    %2582 = vmatprep.subr.mxu0 0.0
    %2583 = vmatpush2.msra.mxu0 0.0
    %2584 = vmatprep.subr.mxu0 0.0
    %2585 = vmatpush2.msra.mxu0 0.0
    %2586 = vmatprep.subr.mxu0 0.0
    %2587 = vmatpush2.msra.mxu0 0.0
    %2588 = vmatprep.mubr.f32.mxu0 0.0
    %2589 = vmatmul.mubr.f32.gmra.mxu0 %v2419
    %v2590 = vpop.f32.mrf.mxu0
    %v2591 = vadd.f32 0.0, %v2590
    %v2592 = vpop.f32.mrf.mxu0
    %2593 = vdwg.mxu0
    %v2595 = vrot.slane %v2591, 4
    %v2597 = vadd.f32 %v1179, %v2595
    %v2598 = vadd.f32 %v2597, %v1268
    %v2599 = vxor.u32 %v2598, 2147483648
    %v2600 = vmul.f32 %v2599, 1.442695
    %v2601 = vpow.pop %v2600
    %v2602 = vadd.f32 %v2601, 1.0
    %v2603 = vrcp.pop %v2602
    %v2604 = vmul.f32 1.0, %v2603
    %v2605 = vtanh.pop %v2598
    %v2607 = vrot.slane %v2408, 6
    %v2609 = vmul.f32 %v2604, %v2607
    %2611 = vrot.lane.b32.xlu0 %v2605, 64
    %v2612 = vpop.permute.xlu0 %2611
    %v2614 = vmul.f32 %v2604, %v2612
    %2616 = vrot.lane.b32.xlu0 %v2614, 32
    %v2617 = vpop.permute.xlu0 %2616
    %v2619 = vadd.f32 %v2609, %v2617
    %v2620 = vtanh.pop %v2619
    %2622 = vrot.lane.b32.xlu0 %v2620, 64
    %v2623 = vpop.permute.xlu0 %2622
    %v2625 = vmul.f32 %v2604, %v2623
    %v2627 = vrot.slane %v2625, 4
    %2628 = vrot.lane.b32.xlu0 %v2627, 32
    %v2629 = vpop.permute.xlu0 %2628
    %v2630 = vsel %vm260, %v2629, 0
    %2632 = vmatprep.subr.mxu0 0.0
    %2633 = vmatpush1.msra.mxu0 0.0
    %2634 = vmatprep.subr.mxu0 0.0
    %2635 = vmatpush1.msra.mxu0 0.0
    %2636 = vmatprep.subr.mxu0 0.0
    %2637 = vmatpush1.msra.mxu0 0.0
    %2638 = vmatprep.subr.mxu0 0.0
    %2639 = vmatpush1.msra.mxu0 0.0
    %2640 = vmatprep.subr.mxu0 0.0
    %2641 = vmatpush1.msra.mxu0 0.0
    %2642 = vmatprep.subr.mxu0 0.0
    %2643 = vmatpush1.msra.mxu0 0.0
    %2644 = vmatprep.subr.mxu0 0.0
    %2645 = vmatpush1.msra.mxu0 0.0
    %2646 = vmatprep.subr.mxu0 0.0
    %2647 = vmatpush1.msra.mxu0 0.0
    %2648 = vmatprep.subr.mxu0 0.0
    %2649 = vmatpush1.msra.mxu0 0.0
    %2650 = vmatprep.subr.mxu0 0.0
    %2651 = vmatpush1.msra.mxu0 0.0
    %2652 = vmatprep.subr.mxu0 0.0
    %2653 = vmatpush1.msra.mxu0 0.0
    %2654 = vmatprep.subr.mxu0 0.0
    %2655 = vmatpush1.msra.mxu0 0.0
    %2656 = vmatprep.subr.mxu0 0.0
    %2657 = vmatpush1.msra.mxu0 %v1191
    %2658 = vmatprep.subr.mxu0 0.0
    %2659 = vmatpush1.msra.mxu0 %v1190
    %2660 = vmatprep.subr.mxu0 0.0
    %2661 = vmatpush1.msra.mxu0 %v1189
    %2662 = vmatprep.subr.mxu0 0.0
    %2663 = vmatpush1.msra.mxu0 %v1188
    %2664 = vmatprep.subr.mxu0 0.0
    %2665 = vmatpush2.msra.mxu0 0.0
    %2666 = vmatprep.subr.mxu0 0.0
    %2667 = vmatpush2.msra.mxu0 0.0
    %2668 = vmatprep.subr.mxu0 0.0
    %2669 = vmatpush2.msra.mxu0 0.0
    %2670 = vmatprep.subr.mxu0 0.0
    %2671 = vmatpush2.msra.mxu0 0.0
    %2672 = vmatprep.subr.mxu0 0.0
    %2673 = vmatpush2.msra.mxu0 0.0
    %2674 = vmatprep.subr.mxu0 0.0
    %2675 = vmatpush2.msra.mxu0 0.0
    %2676 = vmatprep.subr.mxu0 0.0
    %2677 = vmatpush2.msra.mxu0 0.0
    %2678 = vmatprep.subr.mxu0 0.0
    %2679 = vmatpush2.msra.mxu0 0.0
    %2680 = vmatprep.subr.mxu0 0.0
    %2681 = vmatpush2.msra.mxu0 0.0
    %2682 = vmatprep.subr.mxu0 0.0
    %2683 = vmatpush2.msra.mxu0 0.0
    %2684 = vmatprep.subr.mxu0 0.0
    %2685 = vmatpush2.msra.mxu0 0.0
    %2686 = vmatprep.subr.mxu0 0.0
    %2687 = vmatpush2.msra.mxu0 0.0
    %2688 = vmatprep.subr.mxu0 0.0
    %2689 = vmatpush2.msra.mxu0 0.0
    %2690 = vmatprep.subr.mxu0 0.0
    %2691 = vmatpush2.msra.mxu0 0.0
    %2692 = vmatprep.subr.mxu0 0.0
    %2693 = vmatpush2.msra.mxu0 0.0
    %2694 = vmatprep.subr.mxu0 0.0
    %2695 = vmatpush2.msra.mxu0 0.0
    %2696 = vmatprep.mubr.f32.mxu0 0.0
    %2697 = vmatmul.mubr.f32.gmra.mxu0 %v2630
    %v2698 = vpop.f32.mrf.mxu0
    %v2699 = vadd.f32 %v1299, %v2698
    %v2700 = vpop.f32.mrf.mxu0
    %2701 = vdwg.mxu0
    %v2704 = vunpack.c.l.s4 1966171168
    %v2705 = vunpack.c.0.s8 %v2704
    %v2706 = vlaneseq
    %v2707 = vshrl.u32 %v2706, 7
    %v2708 = vsub.s32 %v2705, %v2707
    %v2709 = vrot.slane %v2699, %v2708
    %v2710 = vcombine.high %v2709, %v2709
    %v2712 = vunpack.c.l.s4 1966171168
    %v2713 = vunpack.c.0.s8 %v2712
    %v2714 = vlaneseq
    %v2715 = vshrl.u32 %v2714, 7
    %v2716 = vsub.s32 %v2713, %v2715
    %v2717 = vrot.slane %v2709, %v2716
    %v2719 = vunpack.c.l.s4 1966171168
    %v2720 = vunpack.c.0.s8 %v2719
    %v2721 = vlaneseq
    %v2722 = vshrl.u32 %v2721, 7
    %v2723 = vsub.s32 %v2720, %v2722
    %v2724 = vrot.slane %v2710, %v2723
    %2727 = vst.msk [vmem:[#allocation2 + $0x6] sm:$0x1] %vm1401, %v2717
    %2728 = vst.msk [vmem:[#allocation2 + $0xe] sm:$0x1] %vm1401, %v2724
    %v2729 = vcombine.high %v1181, %v1181
    %v2731 = vunpack.c.l.s4 1966171168
    %v2732 = vunpack.c.0.s8 %v2731
    %v2733 = vlaneseq
    %v2734 = vshrl.u32 %v2733, 7
    %v2735 = vsub.s32 %v2732, %v2734
    %v2736 = vrot.slane %v2729, %v2735
    %v2737 = vcombine.high %v2736, %v2736
    %v2739 = vunpack.c.l.s4 1966171168
    %v2740 = vunpack.c.0.s8 %v2739
    %v2741 = vlaneseq
    %v2742 = vshrl.u32 %v2741, 7
    %v2743 = vsub.s32 %v2740, %v2742
    %v2744 = vrot.slane %v2736, %v2743
    %v2746 = vunpack.c.l.s4 1966171168
    %v2747 = vunpack.c.0.s8 %v2746
    %v2748 = vlaneseq
    %v2749 = vshrl.u32 %v2748, 7
    %v2750 = vsub.s32 %v2747, %v2749
    %v2751 = vrot.slane %v2737, %v2750
    %2754 = vst [vmem:[#allocation3 + $0x6] sm:$0x1] %v2744
    %2755 = vst [vmem:[#allocation3 + $0xe] sm:$0x1] %v2751
    %2756 = vmatprep.subr.mxu0 0.0
    %2757 = vmatpush1.msra.mxu0 0.0
    %2758 = vmatprep.subr.mxu0 0.0
    %2759 = vmatpush1.msra.mxu0 0.0
    %2760 = vmatprep.subr.mxu0 0.0
    %2761 = vmatpush1.msra.mxu0 0.0
    %2762 = vmatprep.subr.mxu0 0.0
    %2763 = vmatpush1.msra.mxu0 0.0
    %2764 = vmatprep.subr.mxu0 0.0
    %2765 = vmatpush1.msra.mxu0 0.0
    %2766 = vmatprep.subr.mxu0 0.0
    %2767 = vmatpush1.msra.mxu0 0.0
    %2768 = vmatprep.subr.mxu0 0.0
    %2769 = vmatpush1.msra.mxu0 0.0
    %2770 = vmatprep.subr.mxu0 0.0
    %2771 = vmatpush1.msra.mxu0 0.0
    %2772 = vmatprep.subr.mxu0 0.0
    %2773 = vmatpush1.msra.mxu0 0.0
    %2774 = vmatprep.subr.mxu0 0.0
    %2775 = vmatpush1.msra.mxu0 0.0
    %2776 = vmatprep.subr.mxu0 0.0
    %2777 = vmatpush1.msra.mxu0 0.0
    %2778 = vmatprep.subr.mxu0 0.0
    %2779 = vmatpush1.msra.mxu0 0.0
    %2780 = vmatprep.subr.mxu0 0.0
    %2781 = vmatpush1.msra.mxu0 %v1186
    %2782 = vmatprep.subr.mxu0 0.0
    %2783 = vmatpush1.msra.mxu0 %v1185
    %2784 = vmatprep.subr.mxu0 0.0
    %2785 = vmatpush1.msra.mxu0 %v1184
    %2786 = vmatprep.subr.mxu0 0.0
    %2787 = vmatpush1.msra.mxu0 %v1183
    %2788 = vmatprep.subr.mxu0 0.0
    %2789 = vmatpush2.msra.mxu0 0.0
    %2790 = vmatprep.subr.mxu0 0.0
    %2791 = vmatpush2.msra.mxu0 0.0
    %2792 = vmatprep.subr.mxu0 0.0
    %2793 = vmatpush2.msra.mxu0 0.0
    %2794 = vmatprep.subr.mxu0 0.0
    %2795 = vmatpush2.msra.mxu0 0.0
    %2796 = vmatprep.subr.mxu0 0.0
    %2797 = vmatpush2.msra.mxu0 0.0
    %2798 = vmatprep.subr.mxu0 0.0
    %2799 = vmatpush2.msra.mxu0 0.0
    %2800 = vmatprep.subr.mxu0 0.0
    %2801 = vmatpush2.msra.mxu0 0.0
    %2802 = vmatprep.subr.mxu0 0.0
    %2803 = vmatpush2.msra.mxu0 0.0
    %2804 = vmatprep.subr.mxu0 0.0
    %2805 = vmatpush2.msra.mxu0 0.0
    %2806 = vmatprep.subr.mxu0 0.0
    %2807 = vmatpush2.msra.mxu0 0.0
    %2808 = vmatprep.subr.mxu0 0.0
    %2809 = vmatpush2.msra.mxu0 0.0
    %2810 = vmatprep.subr.mxu0 0.0
    %2811 = vmatpush2.msra.mxu0 0.0
    %2812 = vmatprep.subr.mxu0 0.0
    %2813 = vmatpush2.msra.mxu0 0.0
    %2814 = vmatprep.subr.mxu0 0.0
    %2815 = vmatpush2.msra.mxu0 0.0
    %2816 = vmatprep.subr.mxu0 0.0
    %2817 = vmatpush2.msra.mxu0 0.0
    %2818 = vmatprep.subr.mxu0 0.0
    %2819 = vmatpush2.msra.mxu0 0.0
    %2820 = vmatprep.mubr.f32.mxu0 0.0
    %2821 = vmatmul.mubr.f32.gmra.mxu0 %v2630
    %v2822 = vpop.f32.mrf.mxu0
    %v2823 = vadd.f32 0.0, %v2822
    %v2824 = vpop.f32.mrf.mxu0
    %2825 = vdwg.mxu0
    %v2827 = vrot.slane %v2823, 2
    %v2829 = vadd.f32 %v1179, %v2827
    %v2830 = vadd.f32 %v2829, %v1268
    %v2831 = vxor.u32 %v2830, 2147483648
    %v2832 = vmul.f32 %v2831, 1.442695
    %v2833 = vpow.pop %v2832
    %v2834 = vadd.f32 %v2833, 1.0
    %v2835 = vrcp.pop %v2834
    %v2836 = vmul.f32 1.0, %v2835
    %v2837 = vtanh.pop %v2830
    %v2839 = vrot.slane %v2619, 6
    %v2841 = vmul.f32 %v2836, %v2839
    %2843 = vrot.lane.b32.xlu0 %v2837, 64
    %v2844 = vpop.permute.xlu0 %2843
    %v2846 = vmul.f32 %v2836, %v2844
    %2848 = vrot.lane.b32.xlu0 %v2846, 32
    %v2849 = vpop.permute.xlu0 %2848
    %v2851 = vadd.f32 %v2841, %v2849
    %v2852 = vtanh.pop %v2851
    %2854 = vrot.lane.b32.xlu0 %v2852, 64
    %v2855 = vpop.permute.xlu0 %2854
    %v2857 = vmul.f32 %v2836, %v2855
    %v2859 = vrot.slane %v2857, 6
    %2860 = vrot.lane.b32.xlu0 %v2859, 32
    %v2861 = vpop.permute.xlu0 %2860
    %v2862 = vsel %vm260, %v2861, 0
    %2864 = vmatprep.subr.mxu0 0.0
    %2865 = vmatpush1.msra.mxu0 0.0
    %2866 = vmatprep.subr.mxu0 0.0
    %2867 = vmatpush1.msra.mxu0 0.0
    %2868 = vmatprep.subr.mxu0 0.0
    %2869 = vmatpush1.msra.mxu0 0.0
    %2870 = vmatprep.subr.mxu0 0.0
    %2871 = vmatpush1.msra.mxu0 0.0
    %2872 = vmatprep.subr.mxu0 0.0
    %2873 = vmatpush1.msra.mxu0 0.0
    %2874 = vmatprep.subr.mxu0 0.0
    %2875 = vmatpush1.msra.mxu0 0.0
    %2876 = vmatprep.subr.mxu0 0.0
    %2877 = vmatpush1.msra.mxu0 0.0
    %2878 = vmatprep.subr.mxu0 0.0
    %2879 = vmatpush1.msra.mxu0 0.0
    %2880 = vmatprep.subr.mxu0 0.0
    %2881 = vmatpush1.msra.mxu0 0.0
    %2882 = vmatprep.subr.mxu0 0.0
    %2883 = vmatpush1.msra.mxu0 0.0
    %2884 = vmatprep.subr.mxu0 0.0
    %2885 = vmatpush1.msra.mxu0 0.0
    %2886 = vmatprep.subr.mxu0 0.0
    %2887 = vmatpush1.msra.mxu0 0.0
    %2888 = vmatprep.subr.mxu0 0.0
    %2889 = vmatpush1.msra.mxu0 %v1191
    %2890 = vmatprep.subr.mxu0 0.0
    %2891 = vmatpush1.msra.mxu0 %v1190
    %2892 = vmatprep.subr.mxu0 0.0
    %2893 = vmatpush1.msra.mxu0 %v1189
    %2894 = vmatprep.subr.mxu0 0.0
    %2895 = vmatpush1.msra.mxu0 %v1188
    %2896 = vmatprep.subr.mxu0 0.0
    %2897 = vmatpush2.msra.mxu0 0.0
    %2898 = vmatprep.subr.mxu0 0.0
    %2899 = vmatpush2.msra.mxu0 0.0
    %2900 = vmatprep.subr.mxu0 0.0
    %2901 = vmatpush2.msra.mxu0 0.0
    %2902 = vmatprep.subr.mxu0 0.0
    %2903 = vmatpush2.msra.mxu0 0.0
    %2904 = vmatprep.subr.mxu0 0.0
    %2905 = vmatpush2.msra.mxu0 0.0
    %2906 = vmatprep.subr.mxu0 0.0
    %2907 = vmatpush2.msra.mxu0 0.0
    %2908 = vmatprep.subr.mxu0 0.0
    %2909 = vmatpush2.msra.mxu0 0.0
    %2910 = vmatprep.subr.mxu0 0.0
    %2911 = vmatpush2.msra.mxu0 0.0
    %2912 = vmatprep.subr.mxu0 0.0
    %2913 = vmatpush2.msra.mxu0 0.0
    %2914 = vmatprep.subr.mxu0 0.0
    %2915 = vmatpush2.msra.mxu0 0.0
    %2916 = vmatprep.subr.mxu0 0.0
    %2917 = vmatpush2.msra.mxu0 0.0
    %2918 = vmatprep.subr.mxu0 0.0
    %2919 = vmatpush2.msra.mxu0 0.0
    %2920 = vmatprep.subr.mxu0 0.0
    %2921 = vmatpush2.msra.mxu0 0.0
    %2922 = vmatprep.subr.mxu0 0.0
    %2923 = vmatpush2.msra.mxu0 0.0
    %2924 = vmatprep.subr.mxu0 0.0
    %2925 = vmatpush2.msra.mxu0 0.0
    %2926 = vmatprep.subr.mxu0 0.0
    %2927 = vmatpush2.msra.mxu0 0.0
    %2928 = vmatprep.mubr.f32.mxu0 0.0
    %2929 = vmatmul.mubr.f32.gmra.mxu0 %v2862
    %v2930 = vpop.f32.mrf.mxu0
    %v2931 = vadd.f32 %v1299, %v2930
    %v2932 = vpop.f32.mrf.mxu0
    %2933 = vdwg.mxu0
    %v2936 = vunpack.c.l.s4 1966171168
    %v2937 = vunpack.c.0.s8 %v2936
    %v2938 = vlaneseq
    %v2939 = vshrl.u32 %v2938, 7
    %v2940 = vsub.s32 %v2937, %v2939
    %v2941 = vrot.slane %v2931, %v2940
    %v2942 = vcombine.high %v2941, %v2941
    %v2944 = vunpack.c.l.s4 1966171168
    %v2945 = vunpack.c.0.s8 %v2944
    %v2946 = vlaneseq
    %v2947 = vshrl.u32 %v2946, 7
    %v2948 = vsub.s32 %v2945, %v2947
    %v2949 = vrot.slane %v2941, %v2948
    %v2951 = vunpack.c.l.s4 1966171168
    %v2952 = vunpack.c.0.s8 %v2951
    %v2953 = vlaneseq
    %v2954 = vshrl.u32 %v2953, 7
    %v2955 = vsub.s32 %v2952, %v2954
    %v2956 = vrot.slane %v2942, %v2955
    %2959 = vst.msk [vmem:[#allocation2 + $0x7] sm:$0x1] %vm1401, %v2949
    %2960 = vst.msk [vmem:[#allocation2 + $0xf] sm:$0x1] %vm1401, %v2956
    %v2961 = vcombine.high %v2744, %v2744
    %v2962 = vcombine.high %v2751, %v2751
    %2965 = vst [vmem:[#allocation3 + $0x7] sm:$0x1] %v2961
    %2966 = vst [vmem:[#allocation3 + $0xf] sm:$0x1] %v2962
    %v2967 = vld [vmem:[#allocation2] sm:$0xff]
    %v2968 = vld [vmem:[#allocation2 + $0x8] sm:$0xff]
    %v2969 = vld [vmem:[#allocation3] sm:$0xff]
    %v2970 = vld [vmem:[#allocation3 + $0x8] sm:$0xff]
    %v2971 = vld [vmem:[%s11] sm:$0xff]
    %v2972 = vld [vmem:[%s11 + $0x8] sm:$0xff]
    %v2973 = vld [vmem:[%s11 + $0x10] sm:$0xff]
    %v2974 = vld [vmem:[%s11 + $0x18] sm:$0xff]
    %v2975 = vld [vmem:[%s12] sm:$0x1]
    %v2976 = vld [vmem:[%s13] sm:$0xff]
    %v2977 = vld [vmem:[%s13 + $0x8] sm:$0xff]
    %v2978 = vld [vmem:[%s13 + $0x10] sm:$0xff]
    %v2979 = vld [vmem:[%s13 + $0x18] sm:$0xff]
    %v2980 = vld [vmem:[%s14] sm:$0x1]
    %v2981 = vld [vmem:[%s15] sm:$0x1]
    %v2982 = vld [vmem:[%s16] sm:$0xff]
    %v2983 = vld [vmem:[%s16 + $0x8] sm:$0xff]
    %v2984 = vld [vmem:[%s16 + $0x10] sm:$0xff]
    %v2985 = vld [vmem:[%s16 + $0x18] sm:$0xff]
    %v2986 = vld [vmem:[%s16 + $0x20] sm:$0xff]
    %v2987 = vld [vmem:[%s16 + $0x28] sm:$0xff]
    %v2988 = vld [vmem:[%s16 + $0x30] sm:$0xff]
    %v2989 = vld [vmem:[%s16 + $0x38] sm:$0xff]
    %v2990 = vld [vmem:[%s17] sm:$0x1]
    %v2991 = vld [vmem:[%s18] sm:$0x1]
    %v2992 = vld [vmem:[%s5 + $0x8] sm:$0xff]
    %v2993 = vld [vmem:[%s5 + $0x18] sm:$0xff]
    %v2994 = vld [vmem:[%s5 + $0x28] sm:$0xff]
    %v2995 = vld [vmem:[%s5 + $0x38] sm:$0xff]
    %v2996 = vld [vmem:[%s6] sm:$0x3]
    %v2998 = vlaneseq
    %v2999 = vshrl.u32 %v2998, 7
    %v3000 = vsub.s32 1, %v2999
    %v3001 = vrot.slane %v2996, %v3000
    %v3004 = vsel %vm260, %v2991, 0
    %3006 = vmatprep.subr.mxu0 0.0
    %3007 = vmatpush1.msra.mxu0 0.0
    %3008 = vmatprep.subr.mxu0 0.0
    %3009 = vmatpush1.msra.mxu0 0.0
    %3010 = vmatprep.subr.mxu0 0.0
    %3011 = vmatpush1.msra.mxu0 0.0
    %3012 = vmatprep.subr.mxu0 0.0
    %3013 = vmatpush1.msra.mxu0 0.0
    %3014 = vmatprep.subr.mxu0 0.0
    %3015 = vmatpush1.msra.mxu0 0.0
    %3016 = vmatprep.subr.mxu0 0.0
    %3017 = vmatpush1.msra.mxu0 0.0
    %3018 = vmatprep.subr.mxu0 0.0
    %3019 = vmatpush1.msra.mxu0 0.0
    %3020 = vmatprep.subr.mxu0 0.0
    %3021 = vmatpush1.msra.mxu0 0.0
    %3022 = vmatprep.subr.mxu0 0.0
    %3023 = vmatpush1.msra.mxu0 0.0
    %3024 = vmatprep.subr.mxu0 0.0
    %3025 = vmatpush1.msra.mxu0 0.0
    %3026 = vmatprep.subr.mxu0 0.0
    %3027 = vmatpush1.msra.mxu0 0.0
    %3028 = vmatprep.subr.mxu0 0.0
    %3029 = vmatpush1.msra.mxu0 0.0
    %3030 = vmatprep.subr.mxu0 0.0
    %3031 = vmatpush1.msra.mxu0 %v2995
    %3032 = vmatprep.subr.mxu0 0.0
    %3033 = vmatpush1.msra.mxu0 %v2994
    %3034 = vmatprep.subr.mxu0 0.0
    %3035 = vmatpush1.msra.mxu0 %v2993
    %3036 = vmatprep.subr.mxu0 0.0
    %3037 = vmatpush1.msra.mxu0 %v2992
    %3038 = vmatprep.subr.mxu0 0.0
    %3039 = vmatpush2.msra.mxu0 0.0
    %3040 = vmatprep.subr.mxu0 0.0
    %3041 = vmatpush2.msra.mxu0 0.0
    %3042 = vmatprep.subr.mxu0 0.0
    %3043 = vmatpush2.msra.mxu0 0.0
    %3044 = vmatprep.subr.mxu0 0.0
    %3045 = vmatpush2.msra.mxu0 0.0
    %3046 = vmatprep.subr.mxu0 0.0
    %3047 = vmatpush2.msra.mxu0 0.0
    %3048 = vmatprep.subr.mxu0 0.0
    %3049 = vmatpush2.msra.mxu0 0.0
    %3050 = vmatprep.subr.mxu0 0.0
    %3051 = vmatpush2.msra.mxu0 0.0
    %3052 = vmatprep.subr.mxu0 0.0
    %3053 = vmatpush2.msra.mxu0 0.0
    %3054 = vmatprep.subr.mxu0 0.0
    %3055 = vmatpush2.msra.mxu0 0.0
    %3056 = vmatprep.subr.mxu0 0.0
    %3057 = vmatpush2.msra.mxu0 0.0
    %3058 = vmatprep.subr.mxu0 0.0
    %3059 = vmatpush2.msra.mxu0 0.0
    %3060 = vmatprep.subr.mxu0 0.0
    %3061 = vmatpush2.msra.mxu0 0.0
    %3062 = vmatprep.subr.mxu0 0.0
    %3063 = vmatpush2.msra.mxu0 0.0
    %3064 = vmatprep.subr.mxu0 0.0
    %3065 = vmatpush2.msra.mxu0 0.0
    %3066 = vmatprep.subr.mxu0 0.0
    %3067 = vmatpush2.msra.mxu0 0.0
    %3068 = vmatprep.subr.mxu0 0.0
    %3069 = vmatpush2.msra.mxu0 0.0
    %3070 = vmatprep.mubr.f32.mxu0 0.0
    %3071 = vmatmul.mubr.f32.gmra.mxu0 %v3004
    %v3072 = vpop.f32.mrf.mxu0
    %v3073 = vadd.f32 %v3001, %v3072
    %v3074 = vpop.f32.mrf.mxu0
    %3075 = vdwg.mxu0
    %v3076 = vlaneseq
    %v3077 = vshrl.u32 %v3076, 7
    %v3078 = vsub.s32 0, %v3077
    %v3079 = vrot.slane %v3073, %v3078
    %v3080 = vlaneseq
    %v3081 = vand.u32 %v3080, 127
    %3082 = vmatprep.subr.mxu0 0.0
    %3083 = vmatpush1.msra.mxu0 0.0
    %3084 = vmatprep.subr.mxu0 0.0
    %3085 = vmatpush1.msra.mxu0 0.0
    %3086 = vmatprep.subr.mxu0 0.0
    %3087 = vmatpush1.msra.mxu0 0.0
    %3088 = vmatprep.subr.mxu0 0.0
    %3089 = vmatpush1.msra.mxu0 0.0
    %3090 = vmatprep.subr.mxu0 0.0
    %3091 = vmatpush1.msra.mxu0 0.0
    %3092 = vmatprep.subr.mxu0 0.0
    %3093 = vmatpush1.msra.mxu0 0.0
    %3094 = vmatprep.subr.mxu0 0.0
    %3095 = vmatpush1.msra.mxu0 0.0
    %3096 = vmatprep.subr.mxu0 0.0
    %3097 = vmatpush1.msra.mxu0 0.0
    %3098 = vmatprep.subr.mxu0 0.0
    %3099 = vmatpush1.msra.mxu0 0.0
    %3100 = vmatprep.subr.mxu0 0.0
    %3101 = vmatpush1.msra.mxu0 0.0
    %3102 = vmatprep.subr.mxu0 0.0
    %3103 = vmatpush1.msra.mxu0 0.0
    %3104 = vmatprep.subr.mxu0 0.0
    %3105 = vmatpush1.msra.mxu0 0.0
    %3106 = vmatprep.subr.mxu0 0.0
    %3107 = vmatpush1.msra.mxu0 %v2974
    %3108 = vmatprep.subr.mxu0 0.0
    %3109 = vmatpush1.msra.mxu0 %v2973
    %3110 = vmatprep.subr.mxu0 0.0
    %3111 = vmatpush1.msra.mxu0 %v2972
    %3112 = vmatprep.subr.mxu0 0.0
    %3113 = vmatpush1.msra.mxu0 %v2971
    %3114 = vmatprep.subr.mxu0 0.0
    %3115 = vmatpush2.msra.mxu0 0.0
    %3116 = vmatprep.subr.mxu0 0.0
    %3117 = vmatpush2.msra.mxu0 0.0
    %3118 = vmatprep.subr.mxu0 0.0
    %3119 = vmatpush2.msra.mxu0 0.0
    %3120 = vmatprep.subr.mxu0 0.0
    %3121 = vmatpush2.msra.mxu0 0.0
    %3122 = vmatprep.subr.mxu0 0.0
    %3123 = vmatpush2.msra.mxu0 0.0
    %3124 = vmatprep.subr.mxu0 0.0
    %3125 = vmatpush2.msra.mxu0 0.0
    %3126 = vmatprep.subr.mxu0 0.0
    %3127 = vmatpush2.msra.mxu0 0.0
    %3128 = vmatprep.subr.mxu0 0.0
    %3129 = vmatpush2.msra.mxu0 0.0
    %3130 = vmatprep.subr.mxu0 0.0
    %3131 = vmatpush2.msra.mxu0 0.0
    %3132 = vmatprep.subr.mxu0 0.0
    %3133 = vmatpush2.msra.mxu0 0.0
    %3134 = vmatprep.subr.mxu0 0.0
    %3135 = vmatpush2.msra.mxu0 0.0
    %3136 = vmatprep.subr.mxu0 0.0
    %3137 = vmatpush2.msra.mxu0 0.0
    %3138 = vmatprep.subr.mxu0 0.0
    %3139 = vmatpush2.msra.mxu0 0.0
    %3140 = vmatprep.subr.mxu0 0.0
    %3141 = vmatpush2.msra.mxu0 0.0
    %3142 = vmatprep.subr.mxu0 0.0
    %3143 = vmatpush2.msra.mxu0 0.0
    %3144 = vmatprep.subr.mxu0 0.0
    %3145 = vmatpush2.msra.mxu0 0.0
    %3146 = vmatprep.mubr.f32.mxu0 0.0
    %3147 = vmatmul.mubr.f32.gmra.mxu0 %v2862
    %v3148 = vpop.f32.mrf.mxu0
    %v3149 = vadd.f32 0.0, %v3148
    %v3150 = vpop.f32.mrf.mxu0
    %3151 = vdwg.mxu0
    %v3152 = vadd.f32 %v3079, %v3149
    %v3154 = vlaneseq
    %v3155 = vshrl.u32 %v3154, 7
    %v3156 = vsub.s32 0, %v3155
    %v3157 = vrot.slane %v2975, %v3156
    %v3159 = vadd.f32 %v3152, %v3157
    %v3160 = vxor.u32 %v3159, 2147483648
    %v3161 = vmul.f32 %v3160, 1.442695
    %v3162 = vpow.pop %v3161
    %v3163 = vadd.f32 %v3162, 1.0
    %v3164 = vrcp.pop %v3163
    %v3165 = vmul.f32 1.0, %v3164
    %v3166 = vtanh.pop %v3159
    %v3168 = vrot.slane %v2851, 6
    %v3170 = vmul.f32 %v3165, %v3168
    %3172 = vrot.lane.b32.xlu0 %v3166, 64
    %v3173 = vpop.permute.xlu0 %3172
    %v3175 = vmul.f32 %v3165, %v3173
    %3177 = vrot.lane.b32.xlu0 %v3175, 32
    %v3178 = vpop.permute.xlu0 %3177
    %v3180 = vadd.f32 %v3170, %v3178
    %v3181 = vtanh.pop %v3180
    %3183 = vrot.lane.b32.xlu0 %v3181, 64
    %v3184 = vpop.permute.xlu0 %3183
    %v3186 = vmul.f32 %v3165, %v3184
    %v3188 = vlaneseq
    %v3189 = vshrl.u32 %v3188, 7
    %v3190 = vsub.s32 0, %v3189
    %v3191 = vrot.slane %v2980, %v3190
    %3194 = vrot.lane.b32.xlu0 %v3186, 32
    %v3195 = vpop.permute.xlu0 %3194
    %v3196 = vsel %vm260, %v3195, 0
    %3198 = vmatprep.subr.mxu0 0.0
    %3199 = vmatpush1.msra.mxu0 0.0
    %3200 = vmatprep.subr.mxu0 0.0
    %3201 = vmatpush1.msra.mxu0 0.0
    %3202 = vmatprep.subr.mxu0 0.0
    %3203 = vmatpush1.msra.mxu0 0.0
    %3204 = vmatprep.subr.mxu0 0.0
    %3205 = vmatpush1.msra.mxu0 0.0
    %3206 = vmatprep.subr.mxu0 0.0
    %3207 = vmatpush1.msra.mxu0 0.0
    %3208 = vmatprep.subr.mxu0 0.0
    %3209 = vmatpush1.msra.mxu0 0.0
    %3210 = vmatprep.subr.mxu0 0.0
    %3211 = vmatpush1.msra.mxu0 0.0
    %3212 = vmatprep.subr.mxu0 0.0
    %3213 = vmatpush1.msra.mxu0 0.0
    %3214 = vmatprep.subr.mxu0 0.0
    %3215 = vmatpush1.msra.mxu0 0.0
    %3216 = vmatprep.subr.mxu0 0.0
    %3217 = vmatpush1.msra.mxu0 0.0
    %3218 = vmatprep.subr.mxu0 0.0
    %3219 = vmatpush1.msra.mxu0 0.0
    %3220 = vmatprep.subr.mxu0 0.0
    %3221 = vmatpush1.msra.mxu0 0.0
    %3222 = vmatprep.subr.mxu0 0.0
    %3223 = vmatpush1.msra.mxu0 %v2979
    %3224 = vmatprep.subr.mxu0 0.0
    %3225 = vmatpush1.msra.mxu0 %v2978
    %3226 = vmatprep.subr.mxu0 0.0
    %3227 = vmatpush1.msra.mxu0 %v2977
    %3228 = vmatprep.subr.mxu0 0.0
    %3229 = vmatpush1.msra.mxu0 %v2976
    %3230 = vmatprep.subr.mxu0 0.0
    %3231 = vmatpush2.msra.mxu0 0.0
    %3232 = vmatprep.subr.mxu0 0.0
    %3233 = vmatpush2.msra.mxu0 0.0
    %3234 = vmatprep.subr.mxu0 0.0
    %3235 = vmatpush2.msra.mxu0 0.0
    %3236 = vmatprep.subr.mxu0 0.0
    %3237 = vmatpush2.msra.mxu0 0.0
    %3238 = vmatprep.subr.mxu0 0.0
    %3239 = vmatpush2.msra.mxu0 0.0
    %3240 = vmatprep.subr.mxu0 0.0
    %3241 = vmatpush2.msra.mxu0 0.0
    %3242 = vmatprep.subr.mxu0 0.0
    %3243 = vmatpush2.msra.mxu0 0.0
    %3244 = vmatprep.subr.mxu0 0.0
    %3245 = vmatpush2.msra.mxu0 0.0
    %3246 = vmatprep.subr.mxu0 0.0
    %3247 = vmatpush2.msra.mxu0 0.0
    %3248 = vmatprep.subr.mxu0 0.0
    %3249 = vmatpush2.msra.mxu0 0.0
    %3250 = vmatprep.subr.mxu0 0.0
    %3251 = vmatpush2.msra.mxu0 0.0
    %3252 = vmatprep.subr.mxu0 0.0
    %3253 = vmatpush2.msra.mxu0 0.0
    %3254 = vmatprep.subr.mxu0 0.0
    %3255 = vmatpush2.msra.mxu0 0.0
    %3256 = vmatprep.subr.mxu0 0.0
    %3257 = vmatpush2.msra.mxu0 0.0
    %3258 = vmatprep.subr.mxu0 0.0
    %3259 = vmatpush2.msra.mxu0 0.0
    %3260 = vmatprep.subr.mxu0 0.0
    %3261 = vmatpush2.msra.mxu0 0.0
    %3262 = vmatprep.mubr.f32.mxu0 0.0
    %3263 = vmatmul.mubr.f32.gmra.mxu0 %v3196
    %v3264 = vpop.f32.mrf.mxu0
    %v3265 = vadd.f32 %v3191, %v3264
    %v3266 = vpop.f32.mrf.mxu0
    %3267 = vdwg.mxu0
    %v3270 = vunpack.c.l.s4 1966171168
    %v3271 = vunpack.c.0.s8 %v3270
    %v3272 = vlaneseq
    %v3273 = vshrl.u32 %v3272, 7
    %v3274 = vsub.s32 %v3271, %v3273
    %v3275 = vrot.slane %v3265, %v3274
    %v3276 = vcombine.high %v3275, %v3275
    %v3278 = vunpack.c.l.s4 1966171168
    %v3279 = vunpack.c.0.s8 %v3278
    %v3280 = vlaneseq
    %v3281 = vshrl.u32 %v3280, 7
    %v3282 = vsub.s32 %v3279, %v3281
    %v3283 = vrot.slane %v3275, %v3282
    %v3285 = vunpack.c.l.s4 1966171168
    %v3286 = vunpack.c.0.s8 %v3285
    %v3287 = vlaneseq
    %v3288 = vshrl.u32 %v3287, 7
    %v3289 = vsub.s32 %v3286, %v3288
    %v3290 = vrot.slane %v3276, %v3289
    %v3291 = vlaneseq
    %v3292 = vshrl.u32 %v3291, 7
    %v3293 = vsub.s32 0, %v3292
    %v3294 = vrot.slane %v3283, %v3293
    %v3295 = vlaneseq
    %v3296 = vshrl.u32 %v3295, 7
    %v3297 = vsub.s32 0, %v3296
    %v3298 = vrot.slane %v3290, %v3297
    %v3301 = vadd.f32 %v3294, %v2967
    %v3302 = vadd.f32 %v3298, %v2968
    %v3303 = vtanh.pop %v3301
    %v3304 = vtanh.pop %v3302
    %v3306 = vlaneseq
    %v3307 = vshrl.u32 %v3306, 7
    %v3308 = vsub.s32 0, %v3307
    %v3309 = vrot.slane %v2981, %v3308
    %v3311 = vmul.f32 %v3303, %v3309
    %v3312 = vmul.f32 %v3304, %v3309
    %v3313 = vsel %vm260, %v3311, 0.0
    %3314 = vadd.xlane.f32.xlu0 %v3313
    %v3315 = vpop.xlane.xlu0 %3314
    %v3316 = vsel %vm260, %v3312, 0.0
    %3317 = vadd.xlane.f32.xlu0 %v3316
    %v3318 = vpop.xlane.xlu0 %3317
    %vm3319 = vcmp.gt.f32.partialorder 1.0, 0.0
    %v3320 = vsel %vm3319, %v3315, -1e+30
    %v3321 = vsel %vm3319, %v3318, -1e+30
    %v3324 = vlaneseq
    %v3325 = vshrl.u32 %v3324, 7
    %v3326 = vsub.s32 %v3081, %v3325
    %v3327 = vrot.slane %v3320, %v3326
    %v3328 = vlaneseq
    %v3329 = vshrl.u32 %v3328, 7
    %v3330 = vsub.s32 %v3081, %v3329
    %v3331 = vrot.slane %v3321, %v3330
    %vm3332 = vcmask 1041409
    %v3333 = vsel %vm3332, %v3331, %v3327
    %vm3335 = vcmask 58368
    %v3336 = vsel %vm3335, %v3333, -inf
    %3337 = vmax.xlane.f32.xlu0 %v3336
    %v3338 = vpop.xlane.xlu0 %3337
    %v3340 = vlaneseq
    %v3341 = vshrl.u32 %v3340, 7
    %v3342 = vsub.s32 0, %v3341
    %v3343 = vrot.slane %v3338, %v3342
    %v3344 = vlaneseq
    %v3345 = vshrl.u32 %v3344, 7
    %v3346 = vsub.s32 1, %v3345
    %v3347 = vrot.slane %v3338, %v3346
    %v3350 = vsub.f32 %v3320, %v3343
    %v3351 = vsub.f32 %v3321, %v3347
    %v3352 = vmul.f32 %v3350, 1.442695
    %v3353 = vpow.pop %v3352
    %v3354 = vmul.f32 %v3351, 1.442695
    %v3355 = vpow.pop %v3354
    %3358 = vset.pattern.permute.xlu0 0
    %3359 = vperm.xlu0 %3358, %v3353
    %v3360 = vpop.permute.xlu0 %3359
    %3361 = vset.pattern.permute.xlu0 0
    %3362 = vperm.xlu0 %3361, %v3355
    %v3363 = vpop.permute.xlu0 %3362
    %v3364 = vlaneseq
    %v3365 = vshrl.u32 %v3364, 7
    %v3366 = vsub.s32 %v3081, %v3365
    %v3367 = vrot.slane %v3360, %v3366
    %v3368 = vlaneseq
    %v3369 = vshrl.u32 %v3368, 7
    %v3370 = vsub.s32 %v3081, %v3369
    %v3371 = vrot.slane %v3363, %v3370
    %v3372 = vsel %vm3332, %v3371, %v3367
    %v3374 = vsel %vm3335, %v3372, 0.0
    %3375 = vadd.xlane.f32.xlu0 %v3374
    %v3376 = vpop.xlane.xlu0 %3375
    %v3378 = vlaneseq
    %v3379 = vshrl.u32 %v3378, 7
    %v3380 = vsub.s32 0, %v3379
    %v3381 = vrot.slane %v3376, %v3380
    %v3382 = vlaneseq
    %v3383 = vshrl.u32 %v3382, 7
    %v3384 = vsub.s32 1, %v3383
    %v3385 = vrot.slane %v3376, %v3384
    %v3388 = vrcp.pop %v3381
    %v3389 = vmul.f32 %v3353, %v3388
    %v3390 = vrcp.pop %v3385
    %v3391 = vmul.f32 %v3355, %v3390
    %3393 = vset.pattern.permute.xlu0 0
    %3394 = vperm.xlu0 %3393, %v3389
    %v3395 = vpop.permute.xlu0 %3394
    %3398 = vset.pattern.permute.xlu0 0
    %3399 = vperm.xlu0 %3398, %v3391
    %v3400 = vpop.permute.xlu0 %3399
    %v3402 = vmul.f32 %v2967, %v3395
    %v3403 = vmul.f32 %v2968, %v3400
    %v3404 = vsel %vm260, %v3402, 0.0
    %v3405 = vrot.slane %v3404, 4
    %v3406 = vadd.f32 %v3404, %v3405
    %v3407 = vrot.slane %v3406, 2
    %v3408 = vadd.f32 %v3406, %v3407
    %v3409 = vrot.slane %v3408, 1
    %v3410 = vadd.f32 %v3408, %v3409
    %v3411 = vsel %vm260, %v3403, 0.0
    %v3412 = vrot.slane %v3411, 4
    %v3413 = vadd.f32 %v3411, %v3412
    %v3414 = vrot.slane %v3413, 2
    %v3415 = vadd.f32 %v3413, %v3414
    %v3416 = vrot.slane %v3415, 1
    %v3417 = vadd.f32 %v3415, %v3416
    %v3420 = vsel %vm3332, %v3417, %v3410
    %3422 = vrot.lane.b32.xlu0 %v3186, 64
    %v3423 = vpop.permute.xlu0 %3422
    %v3425 = vsel %vm260, %v3420, %v3423
    %v3427 = vlaneseq
    %v3428 = vshrl.u32 %v3427, 7
    %v3429 = vsub.s32 0, %v3428
    %v3430 = vrot.slane %v2990, %v3429
    %vm3432 = vcmask 523264
    %v3434 = vsel %vm3432, %v3425, 0
    %3436 = vmatprep.subr.mxu0 0.0
    %3437 = vmatpush1.msra.mxu0 0.0
    %3438 = vmatprep.subr.mxu0 0.0
    %3439 = vmatpush1.msra.mxu0 0.0
    %3440 = vmatprep.subr.mxu0 0.0
    %3441 = vmatpush1.msra.mxu0 0.0
    %3442 = vmatprep.subr.mxu0 0.0
    %3443 = vmatpush1.msra.mxu0 0.0
    %3444 = vmatprep.subr.mxu0 0.0
    %3445 = vmatpush1.msra.mxu0 0.0
    %3446 = vmatprep.subr.mxu0 0.0
    %3447 = vmatpush1.msra.mxu0 0.0
    %3448 = vmatprep.subr.mxu0 0.0
    %3449 = vmatpush1.msra.mxu0 0.0
    %3450 = vmatprep.subr.mxu0 0.0
    %3451 = vmatpush1.msra.mxu0 0.0
    %3452 = vmatprep.subr.mxu0 0.0
    %3453 = vmatpush1.msra.mxu0 %v2989
    %3454 = vmatprep.subr.mxu0 0.0
    %3455 = vmatpush1.msra.mxu0 %v2988
    %3456 = vmatprep.subr.mxu0 0.0
    %3457 = vmatpush1.msra.mxu0 %v2987
    %3458 = vmatprep.subr.mxu0 0.0
    %3459 = vmatpush1.msra.mxu0 %v2986
    %3460 = vmatprep.subr.mxu0 0.0
    %3461 = vmatpush1.msra.mxu0 %v2985
    %3462 = vmatprep.subr.mxu0 0.0
    %3463 = vmatpush1.msra.mxu0 %v2984
    %3464 = vmatprep.subr.mxu0 0.0
    %3465 = vmatpush1.msra.mxu0 %v2983
    %3466 = vmatprep.subr.mxu0 0.0
    %3467 = vmatpush1.msra.mxu0 %v2982
    %3468 = vmatprep.subr.mxu0 0.0
    %3469 = vmatpush2.msra.mxu0 0.0
    %3470 = vmatprep.subr.mxu0 0.0
    %3471 = vmatpush2.msra.mxu0 0.0
    %3472 = vmatprep.subr.mxu0 0.0
    %3473 = vmatpush2.msra.mxu0 0.0
    %3474 = vmatprep.subr.mxu0 0.0
    %3475 = vmatpush2.msra.mxu0 0.0
    %3476 = vmatprep.subr.mxu0 0.0
    %3477 = vmatpush2.msra.mxu0 0.0
    %3478 = vmatprep.subr.mxu0 0.0
    %3479 = vmatpush2.msra.mxu0 0.0
    %3480 = vmatprep.subr.mxu0 0.0
    %3481 = vmatpush2.msra.mxu0 0.0
    %3482 = vmatprep.subr.mxu0 0.0
    %3483 = vmatpush2.msra.mxu0 0.0
    %3484 = vmatprep.subr.mxu0 0.0
    %3485 = vmatpush2.msra.mxu0 0.0
    %3486 = vmatprep.subr.mxu0 0.0
    %3487 = vmatpush2.msra.mxu0 0.0
    %3488 = vmatprep.subr.mxu0 0.0
    %3489 = vmatpush2.msra.mxu0 0.0
    %3490 = vmatprep.subr.mxu0 0.0
    %3491 = vmatpush2.msra.mxu0 0.0
    %3492 = vmatprep.subr.mxu0 0.0
    %3493 = vmatpush2.msra.mxu0 0.0
    %3494 = vmatprep.subr.mxu0 0.0
    %3495 = vmatpush2.msra.mxu0 0.0
    %3496 = vmatprep.subr.mxu0 0.0
    %3497 = vmatpush2.msra.mxu0 0.0
    %3498 = vmatprep.subr.mxu0 0.0
    %3499 = vmatpush2.msra.mxu0 0.0
    %3500 = vmatprep.mubr.f32.mxu0 0.0
    %3501 = vmatmul.mubr.f32.gmra.mxu0 %v3434
    %v3502 = vpop.f32.mrf.mxu0
    %v3503 = vadd.f32 %v3430, %v3502
    %v3504 = vpop.f32.mrf.mxu0
    %3505 = vdwg.mxu0
    %v3506 = vtanh.pop %v3503
    %v3507 = vlaneseq
    %v3508 = vshrl.u32 %v3507, 7
    %v3509 = vsub.s32 %v3081, %v3508
    %v3510 = vrot.slane %v3395, %v3509
    %v3511 = vlaneseq
    %v3512 = vshrl.u32 %v3511, 7
    %v3513 = vsub.s32 %v3081, %v3512
    %v3514 = vrot.slane %v3400, %v3513
    %v3515 = vsel %vm3332, %v3514, %v3510
    %v3517 = vsel %vm3335, %v3515, -inf
    %3518 = vmax.xlane.f32.xlu0 %v3517
    %v3519 = vpop.xlane.xlu0 %3518
    %v3521 = vlaneseq
    %v3522 = vshrl.u32 %v3521, 7
    %v3523 = vsub.s32 0, %v3522
    %v3524 = vrot.slane %v3519, %v3523
    %v3525 = vlaneseq
    %v3526 = vshrl.u32 %v3525, 7
    %v3527 = vsub.s32 1, %v3526
    %v3528 = vrot.slane %v3519, %v3527
    %vm3531 = vcmp.eq.f32.partialorder %v3389, %v3524
    %vm3532 = vcmp.eq.f32.partialorder %v3391, %v3528
    %3534 = vbcast.lane.b32.xlu0 %v3081, 256
    %v3535 = vpop.permute.xlu0 %3534
    %v3536 = vsel %vm3531, %v3535, 8
    %v3537 = vsel %vm3532, %v3535, 8
    %3538 = vset.pattern.permute.xlu0 0
    %3539 = vperm.xlu0 %3538, %v3536
    %v3540 = vpop.permute.xlu0 %3539
    %3541 = vset.pattern.permute.xlu0 0
    %3542 = vperm.xlu0 %3541, %v3537
    %v3543 = vpop.permute.xlu0 %3542
    %v3544 = vlaneseq
    %v3545 = vshrl.u32 %v3544, 7
    %v3546 = vsub.s32 %v3081, %v3545
    %v3547 = vrot.slane %v3540, %v3546
    %v3548 = vlaneseq
    %v3549 = vshrl.u32 %v3548, 7
    %v3550 = vsub.s32 %v3081, %v3549
    %v3551 = vrot.slane %v3543, %v3550
    %v3552 = vsel %vm3332, %v3551, %v3547
    %v3553 = vsel %vm3335, %v3552, 2147483647
    %v3554 = vand.u32 %v3553, 65535
    %v3555 = vshra.s32 %v3553, 16
    %v3556 = vcvt.s32.f32 %v3554
    %v3557 = vcvt.s32.f32 %v3555
    %3558 = vmin.xlane.f32.xlu0 %v3557
    %v3559 = vpop.xlane.xlu0 %3558
    %vm3560 = vcmp.eq.f32.partialorder %v3557, %v3559
    %v3561 = vsel %vm3560, %v3556, inf
    %3562 = vmin.xlane.f32.xlu0 %v3561
    %v3563 = vpop.xlane.xlu0 %3562
    %v3564 = vcvt.f32.s32 %v3563
    %v3565 = vcvt.f32.s32 %v3559
    %v3566 = vshll.u32 %v3565, 16
    %v3567 = vadd.s32 %v3566, %v3564
    %vm3568 = vcmp.eq.s32.totalorder %v3081, %v3567
    %v3569 = vsel %vm3568, 1, 0
    %v3570 = vcvt.s32.f32 %v3569
    %v3571 = vsub.f32 1.0, %v3570
    %v3572 = vlaneseq
    %v3573 = vshrl.u32 %v3572, 7
    %v3574 = vsub.s32 0, %v3573
    %v3575 = vrot.slane %v3570, %v3574
    %3577 = vbcast.lane.b32.xlu0 %v3575, 256
    %v3578 = vpop.permute.xlu0 %3577
    %v3579 = vlaneseq
    %v3580 = vshrl.u32 %v3579, 7
    %v3581 = vsub.s32 1, %v3580
    %v3582 = vrot.slane %v3570, %v3581
    %3584 = vbcast.lane.b32.xlu0 %v3582, 256
    %v3585 = vpop.permute.xlu0 %3584
    %v3586 = vmul.f32 %v2969, %v3578
    %v3587 = vmul.f32 %v2970, %v3585
    %v3588 = vrot.slane %v3586, 4
    %v3589 = vadd.f32 %v3586, %v3588
    %v3590 = vrot.slane %v3589, 2
    %v3591 = vadd.f32 %v3589, %v3590
    %v3592 = vrot.slane %v3591, 1
    %v3593 = vadd.f32 %v3591, %v3592
    %v3594 = vrot.slane %v3587, 4
    %v3595 = vadd.f32 %v3587, %v3594
    %v3596 = vrot.slane %v3595, 2
    %v3597 = vadd.f32 %v3595, %v3596
    %v3598 = vrot.slane %v3597, 1
    %v3599 = vadd.f32 %v3597, %v3598
    %vm3602 = vcmask 57344
    %3603 = vst.msk [vmem:[#allocation4] sm:$0x1] %vm3602, %v3510
    %3604 = vst.msk [vmem:[#allocation4 + $0x8] sm:$0x1] %vm3602, %v3514
    %vm3605 = vcmask 1024
    %3606 = vst.msk [vmem:[#allocation6] sm:$0x3] %vm3605, %v3567
    %v3608 = vsel %vm260, %v3506, 0
    %3610 = vmatprep.subr.mxu0 0.0
    %3611 = vmatpush1.msra.mxu0 0.0
    %3612 = vmatprep.subr.mxu0 0.0
    %3613 = vmatpush1.msra.mxu0 0.0
    %3614 = vmatprep.subr.mxu0 0.0
    %3615 = vmatpush1.msra.mxu0 0.0
    %3616 = vmatprep.subr.mxu0 0.0
    %3617 = vmatpush1.msra.mxu0 0.0
    %3618 = vmatprep.subr.mxu0 0.0
    %3619 = vmatpush1.msra.mxu0 0.0
    %3620 = vmatprep.subr.mxu0 0.0
    %3621 = vmatpush1.msra.mxu0 0.0
    %3622 = vmatprep.subr.mxu0 0.0
    %3623 = vmatpush1.msra.mxu0 0.0
    %3624 = vmatprep.subr.mxu0 0.0
    %3625 = vmatpush1.msra.mxu0 0.0
    %3626 = vmatprep.subr.mxu0 0.0
    %3627 = vmatpush1.msra.mxu0 0.0
    %3628 = vmatprep.subr.mxu0 0.0
    %3629 = vmatpush1.msra.mxu0 0.0
    %3630 = vmatprep.subr.mxu0 0.0
    %3631 = vmatpush1.msra.mxu0 0.0
    %3632 = vmatprep.subr.mxu0 0.0
    %3633 = vmatpush1.msra.mxu0 0.0
    %3634 = vmatprep.subr.mxu0 0.0
    %3635 = vmatpush1.msra.mxu0 %v2974
    %3636 = vmatprep.subr.mxu0 0.0
    %3637 = vmatpush1.msra.mxu0 %v2973
    %3638 = vmatprep.subr.mxu0 0.0
    %3639 = vmatpush1.msra.mxu0 %v2972
    %3640 = vmatprep.subr.mxu0 0.0
    %3641 = vmatpush1.msra.mxu0 %v2971
    %3642 = vmatprep.subr.mxu0 0.0
    %3643 = vmatpush2.msra.mxu0 0.0
    %3644 = vmatprep.subr.mxu0 0.0
    %3645 = vmatpush2.msra.mxu0 0.0
    %3646 = vmatprep.subr.mxu0 0.0
    %3647 = vmatpush2.msra.mxu0 0.0
    %3648 = vmatprep.subr.mxu0 0.0
    %3649 = vmatpush2.msra.mxu0 0.0
    %3650 = vmatprep.subr.mxu0 0.0
    %3651 = vmatpush2.msra.mxu0 0.0
    %3652 = vmatprep.subr.mxu0 0.0
    %3653 = vmatpush2.msra.mxu0 0.0
    %3654 = vmatprep.subr.mxu0 0.0
    %3655 = vmatpush2.msra.mxu0 0.0
    %3656 = vmatprep.subr.mxu0 0.0
    %3657 = vmatpush2.msra.mxu0 0.0
    %3658 = vmatprep.subr.mxu0 0.0
    %3659 = vmatpush2.msra.mxu0 0.0
    %3660 = vmatprep.subr.mxu0 0.0
    %3661 = vmatpush2.msra.mxu0 0.0
    %3662 = vmatprep.subr.mxu0 0.0
    %3663 = vmatpush2.msra.mxu0 0.0
    %3664 = vmatprep.subr.mxu0 0.0
    %3665 = vmatpush2.msra.mxu0 0.0
    %3666 = vmatprep.subr.mxu0 0.0
    %3667 = vmatpush2.msra.mxu0 0.0
    %3668 = vmatprep.subr.mxu0 0.0
    %3669 = vmatpush2.msra.mxu0 0.0
    %3670 = vmatprep.subr.mxu0 0.0
    %3671 = vmatpush2.msra.mxu0 0.0
    %3672 = vmatprep.subr.mxu0 0.0
    %3673 = vmatpush2.msra.mxu0 0.0
    %3674 = vmatprep.mubr.f32.mxu0 0.0
    %3675 = vmatmul.mubr.f32.gmra.mxu0 %v3608
    %v3676 = vpop.f32.mrf.mxu0
    %v3677 = vadd.f32 0.0, %v3676
    %v3678 = vpop.f32.mrf.mxu0
    %3679 = vdwg.mxu0
    %v3681 = vrot.slane %v3677, 1
    %v3684 = vadd.f32 %v3593, %v3677
    %v3685 = vadd.f32 %v3599, %v3681
    %v3686 = vadd.f32 %v3684, %v3157
    %v3687 = vadd.f32 %v3685, %v3157
    %v3688 = vxor.u32 %v3686, 2147483648
    %v3689 = vxor.u32 %v3687, 2147483648
    %v3690 = vmul.f32 %v3688, 1.442695
    %v3691 = vpow.pop %v3690
    %v3692 = vmul.f32 %v3689, 1.442695
    %v3693 = vpow.pop %v3692
    %v3694 = vadd.f32 %v3691, 1.0
    %v3695 = vadd.f32 %v3693, 1.0
    %v3696 = vrcp.pop %v3694
    %v3697 = vmul.f32 1.0, %v3696
    %v3698 = vrcp.pop %v3695
    %v3699 = vmul.f32 1.0, %v3698
    %v3700 = vtanh.pop %v3686
    %v3701 = vtanh.pop %v3687
    %v3703 = vrot.slane %v3180, 1
    %v3706 = vmul.f32 %v3697, %v3180
    %v3707 = vmul.f32 %v3699, %v3703
    %3710 = vrot.lane.b32.xlu0 %v3700, 64
    %v3711 = vpop.permute.xlu0 %3710
    %3712 = vrot.lane.b32.xlu0 %v3701, 64
    %v3713 = vpop.permute.xlu0 %3712
    %v3716 = vmul.f32 %v3697, %v3711
    %v3717 = vmul.f32 %v3699, %v3713
    %3720 = vrot.lane.b32.xlu0 %v3716, 32
    %v3721 = vpop.permute.xlu0 %3720
    %3722 = vrot.lane.b32.xlu0 %v3717, 32
    %v3723 = vpop.permute.xlu0 %3722
    %v3726 = vadd.f32 %v3706, %v3721
    %v3727 = vadd.f32 %v3707, %v3723
    %v3728 = vtanh.pop %v3726
    %v3729 = vtanh.pop %v3727
    %3732 = vrot.lane.b32.xlu0 %v3728, 64
    %v3733 = vpop.permute.xlu0 %3732
    %3734 = vrot.lane.b32.xlu0 %v3729, 64
    %v3735 = vpop.permute.xlu0 %3734
    %v3738 = vmul.f32 %v3697, %v3733
    %v3739 = vmul.f32 %v3699, %v3735
    %v3742 = vrot.slane %v3739, 7
    %v3743 = vsel %vm3332, %v3742, %v3738
    %3744 = vrot.lane.b32.xlu0 %v3743, 32
    %v3745 = vpop.permute.xlu0 %3744
    %v3746 = vsel %vm260, %v3745, 0
    %3748 = vmatprep.subr.mxu0 0.0
    %3749 = vmatpush1.msra.mxu0 0.0
    %3750 = vmatprep.subr.mxu0 0.0
    %3751 = vmatpush1.msra.mxu0 0.0
    %3752 = vmatprep.subr.mxu0 0.0
    %3753 = vmatpush1.msra.mxu0 0.0
    %3754 = vmatprep.subr.mxu0 0.0
    %3755 = vmatpush1.msra.mxu0 0.0
    %3756 = vmatprep.subr.mxu0 0.0
    %3757 = vmatpush1.msra.mxu0 0.0
    %3758 = vmatprep.subr.mxu0 0.0
    %3759 = vmatpush1.msra.mxu0 0.0
    %3760 = vmatprep.subr.mxu0 0.0
    %3761 = vmatpush1.msra.mxu0 0.0
    %3762 = vmatprep.subr.mxu0 0.0
    %3763 = vmatpush1.msra.mxu0 0.0
    %3764 = vmatprep.subr.mxu0 0.0
    %3765 = vmatpush1.msra.mxu0 0.0
    %3766 = vmatprep.subr.mxu0 0.0
    %3767 = vmatpush1.msra.mxu0 0.0
    %3768 = vmatprep.subr.mxu0 0.0
    %3769 = vmatpush1.msra.mxu0 0.0
    %3770 = vmatprep.subr.mxu0 0.0
    %3771 = vmatpush1.msra.mxu0 0.0
    %3772 = vmatprep.subr.mxu0 0.0
    %3773 = vmatpush1.msra.mxu0 %v2979
    %3774 = vmatprep.subr.mxu0 0.0
    %3775 = vmatpush1.msra.mxu0 %v2978
    %3776 = vmatprep.subr.mxu0 0.0
    %3777 = vmatpush1.msra.mxu0 %v2977
    %3778 = vmatprep.subr.mxu0 0.0
    %3779 = vmatpush1.msra.mxu0 %v2976
    %3780 = vmatprep.subr.mxu0 0.0
    %3781 = vmatpush2.msra.mxu0 0.0
    %3782 = vmatprep.subr.mxu0 0.0
    %3783 = vmatpush2.msra.mxu0 0.0
    %3784 = vmatprep.subr.mxu0 0.0
    %3785 = vmatpush2.msra.mxu0 0.0
    %3786 = vmatprep.subr.mxu0 0.0
    %3787 = vmatpush2.msra.mxu0 0.0
    %3788 = vmatprep.subr.mxu0 0.0
    %3789 = vmatpush2.msra.mxu0 0.0
    %3790 = vmatprep.subr.mxu0 0.0
    %3791 = vmatpush2.msra.mxu0 0.0
    %3792 = vmatprep.subr.mxu0 0.0
    %3793 = vmatpush2.msra.mxu0 0.0
    %3794 = vmatprep.subr.mxu0 0.0
    %3795 = vmatpush2.msra.mxu0 0.0
    %3796 = vmatprep.subr.mxu0 0.0
    %3797 = vmatpush2.msra.mxu0 0.0
    %3798 = vmatprep.subr.mxu0 0.0
    %3799 = vmatpush2.msra.mxu0 0.0
    %3800 = vmatprep.subr.mxu0 0.0
    %3801 = vmatpush2.msra.mxu0 0.0
    %3802 = vmatprep.subr.mxu0 0.0
    %3803 = vmatpush2.msra.mxu0 0.0
    %3804 = vmatprep.subr.mxu0 0.0
    %3805 = vmatpush2.msra.mxu0 0.0
    %3806 = vmatprep.subr.mxu0 0.0
    %3807 = vmatpush2.msra.mxu0 0.0
    %3808 = vmatprep.subr.mxu0 0.0
    %3809 = vmatpush2.msra.mxu0 0.0
    %3810 = vmatprep.subr.mxu0 0.0
    %3811 = vmatpush2.msra.mxu0 0.0
    %3812 = vmatprep.mubr.f32.mxu0 0.0
    %3813 = vmatmul.mubr.f32.gmra.mxu0 %v3746
    %v3814 = vpop.f32.mrf.mxu0
    %v3815 = vadd.f32 %v3191, %v3814
    %v3816 = vpop.f32.mrf.mxu0
    %3817 = vdwg.mxu0
    %v3820 = vunpack.c.l.s4 1966171168
    %v3821 = vunpack.c.0.s8 %v3820
    %v3822 = vlaneseq
    %v3823 = vshrl.u32 %v3822, 7
    %v3824 = vsub.s32 %v3821, %v3823
    %v3825 = vrot.slane %v3815, %v3824
    %v3826 = vcombine.high %v3825, %v3825
    %v3828 = vunpack.c.l.s4 1966171168
    %v3829 = vunpack.c.0.s8 %v3828
    %v3830 = vlaneseq
    %v3831 = vshrl.u32 %v3830, 7
    %v3832 = vsub.s32 %v3829, %v3831
    %v3833 = vrot.slane %v3825, %v3832
    %v3835 = vunpack.c.l.s4 1966171168
    %v3836 = vunpack.c.0.s8 %v3835
    %v3837 = vlaneseq
    %v3838 = vshrl.u32 %v3837, 7
    %v3839 = vsub.s32 %v3836, %v3838
    %v3840 = vrot.slane %v3826, %v3839
    %v3841 = vlaneseq
    %v3842 = vshrl.u32 %v3841, 7
    %v3843 = vsub.s32 0, %v3842
    %v3844 = vrot.slane %v3833, %v3843
    %v3845 = vlaneseq
    %v3846 = vshrl.u32 %v3845, 7
    %v3847 = vsub.s32 0, %v3846
    %v3848 = vrot.slane %v3840, %v3847
    %v3851 = vadd.f32 %v3844, %v2967
    %v3852 = vadd.f32 %v3848, %v2968
    %v3853 = vtanh.pop %v3851
    %v3854 = vtanh.pop %v3852
    %v3855 = vmul.f32 %v3853, %v3309
    %v3856 = vmul.f32 %v3854, %v3309
    %v3857 = vsel %vm260, %v3855, 0.0
    %3858 = vadd.xlane.f32.xlu0 %v3857
    %v3859 = vpop.xlane.xlu0 %3858
    %v3860 = vsel %vm260, %v3856, 0.0
    %3861 = vadd.xlane.f32.xlu0 %v3860
    %v3862 = vpop.xlane.xlu0 %3861
    %vm3863 = vcmp.gt.f32.partialorder %v3571, 0.0
    %v3866 = vlaneseq
    %v3867 = vshrl.u32 %v3866, 7
    %v3868 = vsub.s32 %v3081, %v3867
    %v3869 = vrot.slane %v3859, %v3868
    %v3870 = vlaneseq
    %v3871 = vshrl.u32 %v3870, 7
    %v3872 = vsub.s32 %v3081, %v3871
    %v3873 = vrot.slane %v3862, %v3872
    %v3874 = vsel %vm3332, %v3873, %v3869
    %v3876 = vsel %vm3863, %v3874, -1e+30
    %v3877 = vsel %vm3335, %v3876, -inf
    %3878 = vmax.xlane.f32.xlu0 %v3877
    %v3879 = vpop.xlane.xlu0 %3878
    %v3880 = vsub.f32 %v3876, %v3879
    %v3881 = vmul.f32 %v3880, 1.442695
    %v3882 = vpow.pop %v3881
    %v3883 = vsel %vm3335, %v3882, 0.0
    %3884 = vadd.xlane.f32.xlu0 %v3883
    %v3885 = vpop.xlane.xlu0 %3884
    %v3886 = vrcp.pop %v3885
    %v3887 = vmul.f32 %v3882, %v3886
    %v3888 = vlaneseq
    %v3889 = vshrl.u32 %v3888, 7
    %v3890 = vsub.s32 0, %v3889
    %v3891 = vrot.slane %v3887, %v3890
    %3893 = vbcast.lane.b32.xlu0 %v3891, 256
    %v3894 = vpop.permute.xlu0 %3893
    %v3895 = vlaneseq
    %v3896 = vshrl.u32 %v3895, 7
    %v3897 = vsub.s32 1, %v3896
    %v3898 = vrot.slane %v3887, %v3897
    %3900 = vbcast.lane.b32.xlu0 %v3898, 256
    %v3901 = vpop.permute.xlu0 %3900
    %v3902 = vmul.f32 %v2967, %v3894
    %v3903 = vmul.f32 %v2968, %v3901
    %v3904 = vsel %vm260, %v3902, 0.0
    %v3905 = vrot.slane %v3904, 4
    %v3906 = vadd.f32 %v3904, %v3905
    %v3907 = vrot.slane %v3906, 2
    %v3908 = vadd.f32 %v3906, %v3907
    %v3909 = vrot.slane %v3908, 1
    %v3910 = vadd.f32 %v3908, %v3909
    %v3911 = vsel %vm260, %v3903, 0.0
    %v3912 = vrot.slane %v3911, 4
    %v3913 = vadd.f32 %v3911, %v3912
    %v3914 = vrot.slane %v3913, 2
    %v3915 = vadd.f32 %v3913, %v3914
    %v3916 = vrot.slane %v3915, 1
    %v3917 = vadd.f32 %v3915, %v3916
    %v3920 = vsel %vm3332, %v3917, %v3910
    %3922 = vrot.lane.b32.xlu0 %v3743, 64
    %v3923 = vpop.permute.xlu0 %3922
    %v3925 = vsel %vm260, %v3920, %v3923
    %v3927 = vsel %vm3432, %v3925, 0
    %3929 = vmatprep.subr.mxu0 0.0
    %3930 = vmatpush1.msra.mxu0 0.0
    %3931 = vmatprep.subr.mxu0 0.0
    %3932 = vmatpush1.msra.mxu0 0.0
    %3933 = vmatprep.subr.mxu0 0.0
    %3934 = vmatpush1.msra.mxu0 0.0
    %3935 = vmatprep.subr.mxu0 0.0
    %3936 = vmatpush1.msra.mxu0 0.0
    %3937 = vmatprep.subr.mxu0 0.0
    %3938 = vmatpush1.msra.mxu0 0.0
    %3939 = vmatprep.subr.mxu0 0.0
    %3940 = vmatpush1.msra.mxu0 0.0
    %3941 = vmatprep.subr.mxu0 0.0
    %3942 = vmatpush1.msra.mxu0 0.0
    %3943 = vmatprep.subr.mxu0 0.0
    %3944 = vmatpush1.msra.mxu0 0.0
    %3945 = vmatprep.subr.mxu0 0.0
    %3946 = vmatpush1.msra.mxu0 %v2989
    %3947 = vmatprep.subr.mxu0 0.0
    %3948 = vmatpush1.msra.mxu0 %v2988
    %3949 = vmatprep.subr.mxu0 0.0
    %3950 = vmatpush1.msra.mxu0 %v2987
    %3951 = vmatprep.subr.mxu0 0.0
    %3952 = vmatpush1.msra.mxu0 %v2986
    %3953 = vmatprep.subr.mxu0 0.0
    %3954 = vmatpush1.msra.mxu0 %v2985
    %3955 = vmatprep.subr.mxu0 0.0
    %3956 = vmatpush1.msra.mxu0 %v2984
    %3957 = vmatprep.subr.mxu0 0.0
    %3958 = vmatpush1.msra.mxu0 %v2983
    %3959 = vmatprep.subr.mxu0 0.0
    %3960 = vmatpush1.msra.mxu0 %v2982
    %3961 = vmatprep.subr.mxu0 0.0
    %3962 = vmatpush2.msra.mxu0 0.0
    %3963 = vmatprep.subr.mxu0 0.0
    %3964 = vmatpush2.msra.mxu0 0.0
    %3965 = vmatprep.subr.mxu0 0.0
    %3966 = vmatpush2.msra.mxu0 0.0
    %3967 = vmatprep.subr.mxu0 0.0
    %3968 = vmatpush2.msra.mxu0 0.0
    %3969 = vmatprep.subr.mxu0 0.0
    %3970 = vmatpush2.msra.mxu0 0.0
    %3971 = vmatprep.subr.mxu0 0.0
    %3972 = vmatpush2.msra.mxu0 0.0
    %3973 = vmatprep.subr.mxu0 0.0
    %3974 = vmatpush2.msra.mxu0 0.0
    %3975 = vmatprep.subr.mxu0 0.0
    %3976 = vmatpush2.msra.mxu0 0.0
    %3977 = vmatprep.subr.mxu0 0.0
    %3978 = vmatpush2.msra.mxu0 0.0
    %3979 = vmatprep.subr.mxu0 0.0
    %3980 = vmatpush2.msra.mxu0 0.0
    %3981 = vmatprep.subr.mxu0 0.0
    %3982 = vmatpush2.msra.mxu0 0.0
    %3983 = vmatprep.subr.mxu0 0.0
    %3984 = vmatpush2.msra.mxu0 0.0
    %3985 = vmatprep.subr.mxu0 0.0
    %3986 = vmatpush2.msra.mxu0 0.0
    %3987 = vmatprep.subr.mxu0 0.0
    %3988 = vmatpush2.msra.mxu0 0.0
    %3989 = vmatprep.subr.mxu0 0.0
    %3990 = vmatpush2.msra.mxu0 0.0
    %3991 = vmatprep.subr.mxu0 0.0
    %3992 = vmatpush2.msra.mxu0 0.0
    %3993 = vmatprep.mubr.f32.mxu0 0.0
    %3994 = vmatmul.mubr.f32.gmra.mxu0 %v3927
    %v3995 = vpop.f32.mrf.mxu0
    %v3996 = vadd.f32 %v3430, %v3995
    %v3997 = vpop.f32.mrf.mxu0
    %3998 = vdwg.mxu0
    %v3999 = vtanh.pop %v3996
    %v4000 = vmul.f32 %v3887, %v3571
    %v4001 = vsel %vm3335, %v4000, -inf
    %4002 = vmax.xlane.f32.xlu0 %v4001
    %v4003 = vpop.xlane.xlu0 %4002
    %vm4004 = vcmp.eq.f32.partialorder %v4000, %v4003
    %v4005 = vsel %vm4004, %v3081, 8
    %v4006 = vsel %vm3335, %v4005, 2147483647
    %v4007 = vand.u32 %v4006, 65535
    %v4008 = vshra.s32 %v4006, 16
    %v4009 = vcvt.s32.f32 %v4007
    %v4010 = vcvt.s32.f32 %v4008
    %4011 = vmin.xlane.f32.xlu0 %v4010
    %v4012 = vpop.xlane.xlu0 %4011
    %vm4013 = vcmp.eq.f32.partialorder %v4010, %v4012
    %v4014 = vsel %vm4013, %v4009, inf
    %4015 = vmin.xlane.f32.xlu0 %v4014
    %v4016 = vpop.xlane.xlu0 %4015
    %v4017 = vcvt.f32.s32 %v4016
    %v4018 = vcvt.f32.s32 %v4012
    %v4019 = vshll.u32 %v4018, 16
    %v4020 = vadd.s32 %v4019, %v4017
    %vm4021 = vcmp.eq.s32.totalorder %v3081, %v4020
    %v4022 = vsel %vm4021, 1, 0
    %v4023 = vcvt.s32.f32 %v4022
    %v4024 = vsub.f32 1.0, %v4023
    %v4025 = vmul.f32 %v3571, %v4024
    %v4026 = vlaneseq
    %v4027 = vshrl.u32 %v4026, 7
    %v4028 = vsub.s32 0, %v4027
    %v4029 = vrot.slane %v4023, %v4028
    %4031 = vbcast.lane.b32.xlu0 %v4029, 256
    %v4032 = vpop.permute.xlu0 %4031
    %v4033 = vlaneseq
    %v4034 = vshrl.u32 %v4033, 7
    %v4035 = vsub.s32 1, %v4034
    %v4036 = vrot.slane %v4023, %v4035
    %4038 = vbcast.lane.b32.xlu0 %v4036, 256
    %v4039 = vpop.permute.xlu0 %4038
    %v4040 = vmul.f32 %v2969, %v4032
    %v4041 = vmul.f32 %v2970, %v4039
    %v4042 = vrot.slane %v4040, 4
    %v4043 = vadd.f32 %v4040, %v4042
    %v4044 = vrot.slane %v4043, 2
    %v4045 = vadd.f32 %v4043, %v4044
    %v4046 = vrot.slane %v4045, 1
    %v4047 = vadd.f32 %v4045, %v4046
    %v4048 = vrot.slane %v4041, 4
    %v4049 = vadd.f32 %v4041, %v4048
    %v4050 = vrot.slane %v4049, 2
    %v4051 = vadd.f32 %v4049, %v4050
    %v4052 = vrot.slane %v4051, 1
    %v4053 = vadd.f32 %v4051, %v4052
    %v4056 = vunpack.c.l.s4 1966171168
    %v4057 = vunpack.c.0.s8 %v4056
    %v4058 = vlaneseq
    %v4059 = vshrl.u32 %v4058, 7
    %v4060 = vsub.s32 %v4057, %v4059
    %v4061 = vrot.slane %v3887, %v4060
    %v4062 = vcombine.high %v4061, %v4061
    %v4064 = vunpack.c.l.s4 1966171168
    %v4065 = vunpack.c.0.s8 %v4064
    %v4066 = vlaneseq
    %v4067 = vshrl.u32 %v4066, 7
    %v4068 = vsub.s32 %v4065, %v4067
    %v4069 = vrot.slane %v4061, %v4068
    %v4071 = vunpack.c.l.s4 1966171168
    %v4072 = vunpack.c.0.s8 %v4071
    %v4073 = vlaneseq
    %v4074 = vshrl.u32 %v4073, 7
    %v4075 = vsub.s32 %v4072, %v4074
    %v4076 = vrot.slane %v4062, %v4075
    %4079 = vst.msk [vmem:[#allocation4 + $0x1] sm:$0x1] %vm3602, %v4069
    %4080 = vst.msk [vmem:[#allocation4 + $0x9] sm:$0x1] %vm3602, %v4076
    %vm4081 = vcmask 9224
    %4082 = vst.msk [vmem:[#allocation6] sm:$0x3] %vm4081, %v4020
    %v4084 = vsel %vm260, %v3999, 0
    %4086 = vmatprep.subr.mxu0 0.0
    %4087 = vmatpush1.msra.mxu0 0.0
    %4088 = vmatprep.subr.mxu0 0.0
    %4089 = vmatpush1.msra.mxu0 0.0
    %4090 = vmatprep.subr.mxu0 0.0
    %4091 = vmatpush1.msra.mxu0 0.0
    %4092 = vmatprep.subr.mxu0 0.0
    %4093 = vmatpush1.msra.mxu0 0.0
    %4094 = vmatprep.subr.mxu0 0.0
    %4095 = vmatpush1.msra.mxu0 0.0
    %4096 = vmatprep.subr.mxu0 0.0
    %4097 = vmatpush1.msra.mxu0 0.0
    %4098 = vmatprep.subr.mxu0 0.0
    %4099 = vmatpush1.msra.mxu0 0.0
    %4100 = vmatprep.subr.mxu0 0.0
    %4101 = vmatpush1.msra.mxu0 0.0
    %4102 = vmatprep.subr.mxu0 0.0
    %4103 = vmatpush1.msra.mxu0 0.0
    %4104 = vmatprep.subr.mxu0 0.0
    %4105 = vmatpush1.msra.mxu0 0.0
    %4106 = vmatprep.subr.mxu0 0.0
    %4107 = vmatpush1.msra.mxu0 0.0
    %4108 = vmatprep.subr.mxu0 0.0
    %4109 = vmatpush1.msra.mxu0 0.0
    %4110 = vmatprep.subr.mxu0 0.0
    %4111 = vmatpush1.msra.mxu0 %v2974
    %4112 = vmatprep.subr.mxu0 0.0
    %4113 = vmatpush1.msra.mxu0 %v2973
    %4114 = vmatprep.subr.mxu0 0.0
    %4115 = vmatpush1.msra.mxu0 %v2972
    %4116 = vmatprep.subr.mxu0 0.0
    %4117 = vmatpush1.msra.mxu0 %v2971
    %4118 = vmatprep.subr.mxu0 0.0
    %4119 = vmatpush2.msra.mxu0 0.0
    %4120 = vmatprep.subr.mxu0 0.0
    %4121 = vmatpush2.msra.mxu0 0.0
    %4122 = vmatprep.subr.mxu0 0.0
    %4123 = vmatpush2.msra.mxu0 0.0
    %4124 = vmatprep.subr.mxu0 0.0
    %4125 = vmatpush2.msra.mxu0 0.0
    %4126 = vmatprep.subr.mxu0 0.0
    %4127 = vmatpush2.msra.mxu0 0.0
    %4128 = vmatprep.subr.mxu0 0.0
    %4129 = vmatpush2.msra.mxu0 0.0
    %4130 = vmatprep.subr.mxu0 0.0
    %4131 = vmatpush2.msra.mxu0 0.0
    %4132 = vmatprep.subr.mxu0 0.0
    %4133 = vmatpush2.msra.mxu0 0.0
    %4134 = vmatprep.subr.mxu0 0.0
    %4135 = vmatpush2.msra.mxu0 0.0
    %4136 = vmatprep.subr.mxu0 0.0
    %4137 = vmatpush2.msra.mxu0 0.0
    %4138 = vmatprep.subr.mxu0 0.0
    %4139 = vmatpush2.msra.mxu0 0.0
    %4140 = vmatprep.subr.mxu0 0.0
    %4141 = vmatpush2.msra.mxu0 0.0
    %4142 = vmatprep.subr.mxu0 0.0
    %4143 = vmatpush2.msra.mxu0 0.0
    %4144 = vmatprep.subr.mxu0 0.0
    %4145 = vmatpush2.msra.mxu0 0.0
    %4146 = vmatprep.subr.mxu0 0.0
    %4147 = vmatpush2.msra.mxu0 0.0
    %4148 = vmatprep.subr.mxu0 0.0
    %4149 = vmatpush2.msra.mxu0 0.0
    %4150 = vmatprep.mubr.f32.mxu0 0.0
    %4151 = vmatmul.mubr.f32.gmra.mxu0 %v4084
    %v4152 = vpop.f32.mrf.mxu0
    %v4153 = vadd.f32 0.0, %v4152
    %v4154 = vpop.f32.mrf.mxu0
    %4155 = vdwg.mxu0
    %v4157 = vrot.slane %v4153, 1
    %v4160 = vadd.f32 %v4047, %v4153
    %v4161 = vadd.f32 %v4053, %v4157
    %v4162 = vadd.f32 %v4160, %v3157
    %v4163 = vadd.f32 %v4161, %v3157
    %v4164 = vxor.u32 %v4162, 2147483648
    %v4165 = vxor.u32 %v4163, 2147483648
    %v4166 = vmul.f32 %v4164, 1.442695
    %v4167 = vpow.pop %v4166
    %v4168 = vmul.f32 %v4165, 1.442695
    %v4169 = vpow.pop %v4168
    %v4170 = vadd.f32 %v4167, 1.0
    %v4171 = vadd.f32 %v4169, 1.0
    %v4172 = vrcp.pop %v4170
    %v4173 = vmul.f32 1.0, %v4172
    %v4174 = vrcp.pop %v4171
    %v4175 = vmul.f32 1.0, %v4174
    %v4176 = vtanh.pop %v4162
    %v4177 = vtanh.pop %v4163
    %v4178 = vmul.f32 %v4173, %v3726
    %v4179 = vmul.f32 %v4175, %v3727
    %4182 = vrot.lane.b32.xlu0 %v4176, 64
    %v4183 = vpop.permute.xlu0 %4182
    %4184 = vrot.lane.b32.xlu0 %v4177, 64
    %v4185 = vpop.permute.xlu0 %4184
    %v4188 = vmul.f32 %v4173, %v4183
    %v4189 = vmul.f32 %v4175, %v4185
    %4192 = vrot.lane.b32.xlu0 %v4188, 32
    %v4193 = vpop.permute.xlu0 %4192
    %4194 = vrot.lane.b32.xlu0 %v4189, 32
    %v4195 = vpop.permute.xlu0 %4194
    %v4198 = vadd.f32 %v4178, %v4193
    %v4199 = vadd.f32 %v4179, %v4195
    %v4200 = vtanh.pop %v4198
    %v4201 = vtanh.pop %v4199
    %4204 = vrot.lane.b32.xlu0 %v4200, 64
    %v4205 = vpop.permute.xlu0 %4204
    %4206 = vrot.lane.b32.xlu0 %v4201, 64
    %v4207 = vpop.permute.xlu0 %4206
    %v4210 = vmul.f32 %v4173, %v4205
    %v4211 = vmul.f32 %v4175, %v4207
    %v4214 = vrot.slane %v4211, 7
    %v4215 = vsel %vm3332, %v4214, %v4210
    %4216 = vrot.lane.b32.xlu0 %v4215, 32
    %v4217 = vpop.permute.xlu0 %4216
    %v4218 = vsel %vm260, %v4217, 0
    %4220 = vmatprep.subr.mxu0 0.0
    %4221 = vmatpush1.msra.mxu0 0.0
    %4222 = vmatprep.subr.mxu0 0.0
    %4223 = vmatpush1.msra.mxu0 0.0
    %4224 = vmatprep.subr.mxu0 0.0
    %4225 = vmatpush1.msra.mxu0 0.0
    %4226 = vmatprep.subr.mxu0 0.0
    %4227 = vmatpush1.msra.mxu0 0.0
    %4228 = vmatprep.subr.mxu0 0.0
    %4229 = vmatpush1.msra.mxu0 0.0
    %4230 = vmatprep.subr.mxu0 0.0
    %4231 = vmatpush1.msra.mxu0 0.0
    %4232 = vmatprep.subr.mxu0 0.0
    %4233 = vmatpush1.msra.mxu0 0.0
    %4234 = vmatprep.subr.mxu0 0.0
    %4235 = vmatpush1.msra.mxu0 0.0
    %4236 = vmatprep.subr.mxu0 0.0
    %4237 = vmatpush1.msra.mxu0 0.0
    %4238 = vmatprep.subr.mxu0 0.0
    %4239 = vmatpush1.msra.mxu0 0.0
    %4240 = vmatprep.subr.mxu0 0.0
    %4241 = vmatpush1.msra.mxu0 0.0
    %4242 = vmatprep.subr.mxu0 0.0
    %4243 = vmatpush1.msra.mxu0 0.0
    %4244 = vmatprep.subr.mxu0 0.0
    %4245 = vmatpush1.msra.mxu0 %v2979
    %4246 = vmatprep.subr.mxu0 0.0
    %4247 = vmatpush1.msra.mxu0 %v2978
    %4248 = vmatprep.subr.mxu0 0.0
    %4249 = vmatpush1.msra.mxu0 %v2977
    %4250 = vmatprep.subr.mxu0 0.0
    %4251 = vmatpush1.msra.mxu0 %v2976
    %4252 = vmatprep.subr.mxu0 0.0
    %4253 = vmatpush2.msra.mxu0 0.0
    %4254 = vmatprep.subr.mxu0 0.0
    %4255 = vmatpush2.msra.mxu0 0.0
    %4256 = vmatprep.subr.mxu0 0.0
    %4257 = vmatpush2.msra.mxu0 0.0
    %4258 = vmatprep.subr.mxu0 0.0
    %4259 = vmatpush2.msra.mxu0 0.0
    %4260 = vmatprep.subr.mxu0 0.0
    %4261 = vmatpush2.msra.mxu0 0.0
    %4262 = vmatprep.subr.mxu0 0.0
    %4263 = vmatpush2.msra.mxu0 0.0
    %4264 = vmatprep.subr.mxu0 0.0
    %4265 = vmatpush2.msra.mxu0 0.0
    %4266 = vmatprep.subr.mxu0 0.0
    %4267 = vmatpush2.msra.mxu0 0.0
    %4268 = vmatprep.subr.mxu0 0.0
    %4269 = vmatpush2.msra.mxu0 0.0
    %4270 = vmatprep.subr.mxu0 0.0
    %4271 = vmatpush2.msra.mxu0 0.0
    %4272 = vmatprep.subr.mxu0 0.0
    %4273 = vmatpush2.msra.mxu0 0.0
    %4274 = vmatprep.subr.mxu0 0.0
    %4275 = vmatpush2.msra.mxu0 0.0
    %4276 = vmatprep.subr.mxu0 0.0
    %4277 = vmatpush2.msra.mxu0 0.0
    %4278 = vmatprep.subr.mxu0 0.0
    %4279 = vmatpush2.msra.mxu0 0.0
    %4280 = vmatprep.subr.mxu0 0.0
    %4281 = vmatpush2.msra.mxu0 0.0
    %4282 = vmatprep.subr.mxu0 0.0
    %4283 = vmatpush2.msra.mxu0 0.0
    %4284 = vmatprep.mubr.f32.mxu0 0.0
    %4285 = vmatmul.mubr.f32.gmra.mxu0 %v4218
    %v4286 = vpop.f32.mrf.mxu0
    %v4287 = vadd.f32 %v3191, %v4286
    %v4288 = vpop.f32.mrf.mxu0
    %4289 = vdwg.mxu0
    %v4292 = vunpack.c.l.s4 1966171168
    %v4293 = vunpack.c.0.s8 %v4292
    %v4294 = vlaneseq
    %v4295 = vshrl.u32 %v4294, 7
    %v4296 = vsub.s32 %v4293, %v4295
    %v4297 = vrot.slane %v4287, %v4296
    %v4298 = vcombine.high %v4297, %v4297
    %v4300 = vunpack.c.l.s4 1966171168
    %v4301 = vunpack.c.0.s8 %v4300
    %v4302 = vlaneseq
    %v4303 = vshrl.u32 %v4302, 7
    %v4304 = vsub.s32 %v4301, %v4303
    %v4305 = vrot.slane %v4297, %v4304
    %v4307 = vunpack.c.l.s4 1966171168
    %v4308 = vunpack.c.0.s8 %v4307
    %v4309 = vlaneseq
    %v4310 = vshrl.u32 %v4309, 7
    %v4311 = vsub.s32 %v4308, %v4310
    %v4312 = vrot.slane %v4298, %v4311
    %v4313 = vlaneseq
    %v4314 = vshrl.u32 %v4313, 7
    %v4315 = vsub.s32 0, %v4314
    %v4316 = vrot.slane %v4305, %v4315
    %v4317 = vlaneseq
    %v4318 = vshrl.u32 %v4317, 7
    %v4319 = vsub.s32 0, %v4318
    %v4320 = vrot.slane %v4312, %v4319
    %v4323 = vadd.f32 %v4316, %v2967
    %v4324 = vadd.f32 %v4320, %v2968
    %v4325 = vtanh.pop %v4323
    %v4326 = vtanh.pop %v4324
    %v4327 = vmul.f32 %v4325, %v3309
    %v4328 = vmul.f32 %v4326, %v3309
    %v4329 = vsel %vm260, %v4327, 0.0
    %4330 = vadd.xlane.f32.xlu0 %v4329
    %v4331 = vpop.xlane.xlu0 %4330
    %v4332 = vsel %vm260, %v4328, 0.0
    %4333 = vadd.xlane.f32.xlu0 %v4332
    %v4334 = vpop.xlane.xlu0 %4333
    %vm4335 = vcmp.gt.f32.partialorder %v4025, 0.0
    %v4338 = vlaneseq
    %v4339 = vshrl.u32 %v4338, 7
    %v4340 = vsub.s32 %v3081, %v4339
    %v4341 = vrot.slane %v4331, %v4340
    %v4342 = vlaneseq
    %v4343 = vshrl.u32 %v4342, 7
    %v4344 = vsub.s32 %v3081, %v4343
    %v4345 = vrot.slane %v4334, %v4344
    %v4346 = vsel %vm3332, %v4345, %v4341
    %v4348 = vsel %vm4335, %v4346, -1e+30
    %v4349 = vsel %vm3335, %v4348, -inf
    %4350 = vmax.xlane.f32.xlu0 %v4349
    %v4351 = vpop.xlane.xlu0 %4350
    %v4352 = vsub.f32 %v4348, %v4351
    %v4353 = vmul.f32 %v4352, 1.442695
    %v4354 = vpow.pop %v4353
    %v4355 = vsel %vm3335, %v4354, 0.0
    %4356 = vadd.xlane.f32.xlu0 %v4355
    %v4357 = vpop.xlane.xlu0 %4356
    %v4358 = vrcp.pop %v4357
    %v4359 = vmul.f32 %v4354, %v4358
    %v4360 = vlaneseq
    %v4361 = vshrl.u32 %v4360, 7
    %v4362 = vsub.s32 0, %v4361
    %v4363 = vrot.slane %v4359, %v4362
    %4365 = vbcast.lane.b32.xlu0 %v4363, 256
    %v4366 = vpop.permute.xlu0 %4365
    %v4367 = vlaneseq
    %v4368 = vshrl.u32 %v4367, 7
    %v4369 = vsub.s32 1, %v4368
    %v4370 = vrot.slane %v4359, %v4369
    %4372 = vbcast.lane.b32.xlu0 %v4370, 256
    %v4373 = vpop.permute.xlu0 %4372
    %v4374 = vmul.f32 %v2967, %v4366
    %v4375 = vmul.f32 %v2968, %v4373
    %v4376 = vsel %vm260, %v4374, 0.0
    %v4377 = vrot.slane %v4376, 4
    %v4378 = vadd.f32 %v4376, %v4377
    %v4379 = vrot.slane %v4378, 2
    %v4380 = vadd.f32 %v4378, %v4379
    %v4381 = vrot.slane %v4380, 1
    %v4382 = vadd.f32 %v4380, %v4381
    %v4383 = vsel %vm260, %v4375, 0.0
    %v4384 = vrot.slane %v4383, 4
    %v4385 = vadd.f32 %v4383, %v4384
    %v4386 = vrot.slane %v4385, 2
    %v4387 = vadd.f32 %v4385, %v4386
    %v4388 = vrot.slane %v4387, 1
    %v4389 = vadd.f32 %v4387, %v4388
    %v4392 = vsel %vm3332, %v4389, %v4382
    %4394 = vrot.lane.b32.xlu0 %v4215, 64
    %v4395 = vpop.permute.xlu0 %4394
    %v4397 = vsel %vm260, %v4392, %v4395
    %v4399 = vsel %vm3432, %v4397, 0
    %4401 = vmatprep.subr.mxu0 0.0
    %4402 = vmatpush1.msra.mxu0 0.0
    %4403 = vmatprep.subr.mxu0 0.0
    %4404 = vmatpush1.msra.mxu0 0.0
    %4405 = vmatprep.subr.mxu0 0.0
    %4406 = vmatpush1.msra.mxu0 0.0
    %4407 = vmatprep.subr.mxu0 0.0
    %4408 = vmatpush1.msra.mxu0 0.0
    %4409 = vmatprep.subr.mxu0 0.0
    %4410 = vmatpush1.msra.mxu0 0.0
    %4411 = vmatprep.subr.mxu0 0.0
    %4412 = vmatpush1.msra.mxu0 0.0
    %4413 = vmatprep.subr.mxu0 0.0
    %4414 = vmatpush1.msra.mxu0 0.0
    %4415 = vmatprep.subr.mxu0 0.0
    %4416 = vmatpush1.msra.mxu0 0.0
    %4417 = vmatprep.subr.mxu0 0.0
    %4418 = vmatpush1.msra.mxu0 %v2989
    %4419 = vmatprep.subr.mxu0 0.0
    %4420 = vmatpush1.msra.mxu0 %v2988
    %4421 = vmatprep.subr.mxu0 0.0
    %4422 = vmatpush1.msra.mxu0 %v2987
    %4423 = vmatprep.subr.mxu0 0.0
    %4424 = vmatpush1.msra.mxu0 %v2986
    %4425 = vmatprep.subr.mxu0 0.0
    %4426 = vmatpush1.msra.mxu0 %v2985
    %4427 = vmatprep.subr.mxu0 0.0
    %4428 = vmatpush1.msra.mxu0 %v2984
    %4429 = vmatprep.subr.mxu0 0.0
    %4430 = vmatpush1.msra.mxu0 %v2983
    %4431 = vmatprep.subr.mxu0 0.0
    %4432 = vmatpush1.msra.mxu0 %v2982
    %4433 = vmatprep.subr.mxu0 0.0
    %4434 = vmatpush2.msra.mxu0 0.0
    %4435 = vmatprep.subr.mxu0 0.0
    %4436 = vmatpush2.msra.mxu0 0.0
    %4437 = vmatprep.subr.mxu0 0.0
    %4438 = vmatpush2.msra.mxu0 0.0
    %4439 = vmatprep.subr.mxu0 0.0
    %4440 = vmatpush2.msra.mxu0 0.0
    %4441 = vmatprep.subr.mxu0 0.0
    %4442 = vmatpush2.msra.mxu0 0.0
    %4443 = vmatprep.subr.mxu0 0.0
    %4444 = vmatpush2.msra.mxu0 0.0
    %4445 = vmatprep.subr.mxu0 0.0
    %4446 = vmatpush2.msra.mxu0 0.0
    %4447 = vmatprep.subr.mxu0 0.0
    %4448 = vmatpush2.msra.mxu0 0.0
    %4449 = vmatprep.subr.mxu0 0.0
    %4450 = vmatpush2.msra.mxu0 0.0
    %4451 = vmatprep.subr.mxu0 0.0
    %4452 = vmatpush2.msra.mxu0 0.0
    %4453 = vmatprep.subr.mxu0 0.0
    %4454 = vmatpush2.msra.mxu0 0.0
    %4455 = vmatprep.subr.mxu0 0.0
    %4456 = vmatpush2.msra.mxu0 0.0
    %4457 = vmatprep.subr.mxu0 0.0
    %4458 = vmatpush2.msra.mxu0 0.0
    %4459 = vmatprep.subr.mxu0 0.0
    %4460 = vmatpush2.msra.mxu0 0.0
    %4461 = vmatprep.subr.mxu0 0.0
    %4462 = vmatpush2.msra.mxu0 0.0
    %4463 = vmatprep.subr.mxu0 0.0
    %4464 = vmatpush2.msra.mxu0 0.0
    %4465 = vmatprep.mubr.f32.mxu0 0.0
    %4466 = vmatmul.mubr.f32.gmra.mxu0 %v4399
    %v4467 = vpop.f32.mrf.mxu0
    %v4468 = vadd.f32 %v3430, %v4467
    %v4469 = vpop.f32.mrf.mxu0
    %4470 = vdwg.mxu0
    %v4471 = vtanh.pop %v4468
    %v4472 = vmul.f32 %v4359, %v4025
    %v4473 = vsel %vm3335, %v4472, -inf
    %4474 = vmax.xlane.f32.xlu0 %v4473
    %v4475 = vpop.xlane.xlu0 %4474
    %vm4476 = vcmp.eq.f32.partialorder %v4472, %v4475
    %v4477 = vsel %vm4476, %v3081, 8
    %v4478 = vsel %vm3335, %v4477, 2147483647
    %v4479 = vand.u32 %v4478, 65535
    %v4480 = vshra.s32 %v4478, 16
    %v4481 = vcvt.s32.f32 %v4479
    %v4482 = vcvt.s32.f32 %v4480
    %4483 = vmin.xlane.f32.xlu0 %v4482
    %v4484 = vpop.xlane.xlu0 %4483
    %vm4485 = vcmp.eq.f32.partialorder %v4482, %v4484
    %v4486 = vsel %vm4485, %v4481, inf
    %4487 = vmin.xlane.f32.xlu0 %v4486
    %v4488 = vpop.xlane.xlu0 %4487
    %v4489 = vcvt.f32.s32 %v4488
    %v4490 = vcvt.f32.s32 %v4484
    %v4491 = vshll.u32 %v4490, 16
    %v4492 = vadd.s32 %v4491, %v4489
    %vm4493 = vcmp.eq.s32.totalorder %v3081, %v4492
    %v4494 = vsel %vm4493, 1, 0
    %v4495 = vcvt.s32.f32 %v4494
    %v4496 = vsub.f32 1.0, %v4495
    %v4497 = vmul.f32 %v4025, %v4496
    %v4498 = vlaneseq
    %v4499 = vshrl.u32 %v4498, 7
    %v4500 = vsub.s32 0, %v4499
    %v4501 = vrot.slane %v4495, %v4500
    %4503 = vbcast.lane.b32.xlu0 %v4501, 256
    %v4504 = vpop.permute.xlu0 %4503
    %v4505 = vlaneseq
    %v4506 = vshrl.u32 %v4505, 7
    %v4507 = vsub.s32 1, %v4506
    %v4508 = vrot.slane %v4495, %v4507
    %4510 = vbcast.lane.b32.xlu0 %v4508, 256
    %v4511 = vpop.permute.xlu0 %4510
    %v4512 = vmul.f32 %v2969, %v4504
    %v4513 = vmul.f32 %v2970, %v4511
    %v4514 = vrot.slane %v4512, 4
    %v4515 = vadd.f32 %v4512, %v4514
    %v4516 = vrot.slane %v4515, 2
    %v4517 = vadd.f32 %v4515, %v4516
    %v4518 = vrot.slane %v4517, 1
    %v4519 = vadd.f32 %v4517, %v4518
    %v4520 = vrot.slane %v4513, 4
    %v4521 = vadd.f32 %v4513, %v4520
    %v4522 = vrot.slane %v4521, 2
    %v4523 = vadd.f32 %v4521, %v4522
    %v4524 = vrot.slane %v4523, 1
    %v4525 = vadd.f32 %v4523, %v4524
    %v4528 = vunpack.c.l.s4 1966171168
    %v4529 = vunpack.c.0.s8 %v4528
    %v4530 = vlaneseq
    %v4531 = vshrl.u32 %v4530, 7
    %v4532 = vsub.s32 %v4529, %v4531
    %v4533 = vrot.slane %v4359, %v4532
    %v4534 = vcombine.high %v4533, %v4533
    %v4536 = vunpack.c.l.s4 1966171168
    %v4537 = vunpack.c.0.s8 %v4536
    %v4538 = vlaneseq
    %v4539 = vshrl.u32 %v4538, 7
    %v4540 = vsub.s32 %v4537, %v4539
    %v4541 = vrot.slane %v4533, %v4540
    %v4543 = vunpack.c.l.s4 1966171168
    %v4544 = vunpack.c.0.s8 %v4543
    %v4545 = vlaneseq
    %v4546 = vshrl.u32 %v4545, 7
    %v4547 = vsub.s32 %v4544, %v4546
    %v4548 = vrot.slane %v4534, %v4547
    %4551 = vst.msk [vmem:[#allocation4 + $0x2] sm:$0x1] %vm3602, %v4541
    %4552 = vst.msk [vmem:[#allocation4 + $0xa] sm:$0x1] %vm3602, %v4548
    %vm4553 = vcmask 17424
    %4554 = vst.msk [vmem:[#allocation6] sm:$0x3] %vm4553, %v4492
    %v4556 = vsel %vm260, %v4471, 0
    %4558 = vmatprep.subr.mxu0 0.0
    %4559 = vmatpush1.msra.mxu0 0.0
    %4560 = vmatprep.subr.mxu0 0.0
    %4561 = vmatpush1.msra.mxu0 0.0
    %4562 = vmatprep.subr.mxu0 0.0
    %4563 = vmatpush1.msra.mxu0 0.0
    %4564 = vmatprep.subr.mxu0 0.0
    %4565 = vmatpush1.msra.mxu0 0.0
    %4566 = vmatprep.subr.mxu0 0.0
    %4567 = vmatpush1.msra.mxu0 0.0
    %4568 = vmatprep.subr.mxu0 0.0
    %4569 = vmatpush1.msra.mxu0 0.0
    %4570 = vmatprep.subr.mxu0 0.0
    %4571 = vmatpush1.msra.mxu0 0.0
    %4572 = vmatprep.subr.mxu0 0.0
    %4573 = vmatpush1.msra.mxu0 0.0
    %4574 = vmatprep.subr.mxu0 0.0
    %4575 = vmatpush1.msra.mxu0 0.0
    %4576 = vmatprep.subr.mxu0 0.0
    %4577 = vmatpush1.msra.mxu0 0.0
    %4578 = vmatprep.subr.mxu0 0.0
    %4579 = vmatpush1.msra.mxu0 0.0
    %4580 = vmatprep.subr.mxu0 0.0
    %4581 = vmatpush1.msra.mxu0 0.0
    %4582 = vmatprep.subr.mxu0 0.0
    %4583 = vmatpush1.msra.mxu0 %v2974
    %4584 = vmatprep.subr.mxu0 0.0
    %4585 = vmatpush1.msra.mxu0 %v2973
    %4586 = vmatprep.subr.mxu0 0.0
    %4587 = vmatpush1.msra.mxu0 %v2972
    %4588 = vmatprep.subr.mxu0 0.0
    %4589 = vmatpush1.msra.mxu0 %v2971
    %4590 = vmatprep.subr.mxu0 0.0
    %4591 = vmatpush2.msra.mxu0 0.0
    %4592 = vmatprep.subr.mxu0 0.0
    %4593 = vmatpush2.msra.mxu0 0.0
    %4594 = vmatprep.subr.mxu0 0.0
    %4595 = vmatpush2.msra.mxu0 0.0
    %4596 = vmatprep.subr.mxu0 0.0
    %4597 = vmatpush2.msra.mxu0 0.0
    %4598 = vmatprep.subr.mxu0 0.0
    %4599 = vmatpush2.msra.mxu0 0.0
    %4600 = vmatprep.subr.mxu0 0.0
    %4601 = vmatpush2.msra.mxu0 0.0
    %4602 = vmatprep.subr.mxu0 0.0
    %4603 = vmatpush2.msra.mxu0 0.0
    %4604 = vmatprep.subr.mxu0 0.0
    %4605 = vmatpush2.msra.mxu0 0.0
    %4606 = vmatprep.subr.mxu0 0.0
    %4607 = vmatpush2.msra.mxu0 0.0
    %4608 = vmatprep.subr.mxu0 0.0
    %4609 = vmatpush2.msra.mxu0 0.0
    %4610 = vmatprep.subr.mxu0 0.0
    %4611 = vmatpush2.msra.mxu0 0.0
    %4612 = vmatprep.subr.mxu0 0.0
    %4613 = vmatpush2.msra.mxu0 0.0
    %4614 = vmatprep.subr.mxu0 0.0
    %4615 = vmatpush2.msra.mxu0 0.0
    %4616 = vmatprep.subr.mxu0 0.0
    %4617 = vmatpush2.msra.mxu0 0.0
    %4618 = vmatprep.subr.mxu0 0.0
    %4619 = vmatpush2.msra.mxu0 0.0
    %4620 = vmatprep.subr.mxu0 0.0
    %4621 = vmatpush2.msra.mxu0 0.0
    %4622 = vmatprep.mubr.f32.mxu0 0.0
    %4623 = vmatmul.mubr.f32.gmra.mxu0 %v4556
    %v4624 = vpop.f32.mrf.mxu0
    %v4625 = vadd.f32 0.0, %v4624
    %v4626 = vpop.f32.mrf.mxu0
    %4627 = vdwg.mxu0
    %v4629 = vrot.slane %v4625, 1
    %v4632 = vadd.f32 %v4519, %v4625
    %v4633 = vadd.f32 %v4525, %v4629
    %v4634 = vadd.f32 %v4632, %v3157
    %v4635 = vadd.f32 %v4633, %v3157
    %v4636 = vxor.u32 %v4634, 2147483648
    %v4637 = vxor.u32 %v4635, 2147483648
    %v4638 = vmul.f32 %v4636, 1.442695
    %v4639 = vpow.pop %v4638
    %v4640 = vmul.f32 %v4637, 1.442695
    %v4641 = vpow.pop %v4640
    %v4642 = vadd.f32 %v4639, 1.0
    %v4643 = vadd.f32 %v4641, 1.0
    %v4644 = vrcp.pop %v4642
    %v4645 = vmul.f32 1.0, %v4644
    %v4646 = vrcp.pop %v4643
    %v4647 = vmul.f32 1.0, %v4646
    %v4648 = vtanh.pop %v4634
    %v4649 = vtanh.pop %v4635
    %v4650 = vmul.f32 %v4645, %v4198
    %v4651 = vmul.f32 %v4647, %v4199
    %4654 = vrot.lane.b32.xlu0 %v4648, 64
    %v4655 = vpop.permute.xlu0 %4654
    %4656 = vrot.lane.b32.xlu0 %v4649, 64
    %v4657 = vpop.permute.xlu0 %4656
    %v4660 = vmul.f32 %v4645, %v4655
    %v4661 = vmul.f32 %v4647, %v4657
    %4664 = vrot.lane.b32.xlu0 %v4660, 32
    %v4665 = vpop.permute.xlu0 %4664
    %4666 = vrot.lane.b32.xlu0 %v4661, 32
    %v4667 = vpop.permute.xlu0 %4666
    %v4670 = vadd.f32 %v4650, %v4665
    %v4671 = vadd.f32 %v4651, %v4667
    %v4672 = vtanh.pop %v4670
    %v4673 = vtanh.pop %v4671
    %4676 = vrot.lane.b32.xlu0 %v4672, 64
    %v4677 = vpop.permute.xlu0 %4676
    %4678 = vrot.lane.b32.xlu0 %v4673, 64
    %v4679 = vpop.permute.xlu0 %4678
    %v4682 = vmul.f32 %v4645, %v4677
    %v4683 = vmul.f32 %v4647, %v4679
    %v4686 = vrot.slane %v4683, 7
    %v4687 = vsel %vm3332, %v4686, %v4682
    %4688 = vrot.lane.b32.xlu0 %v4687, 32
    %v4689 = vpop.permute.xlu0 %4688
    %v4690 = vsel %vm260, %v4689, 0
    %4692 = vmatprep.subr.mxu0 0.0
    %4693 = vmatpush1.msra.mxu0 0.0
    %4694 = vmatprep.subr.mxu0 0.0
    %4695 = vmatpush1.msra.mxu0 0.0
    %4696 = vmatprep.subr.mxu0 0.0
    %4697 = vmatpush1.msra.mxu0 0.0
    %4698 = vmatprep.subr.mxu0 0.0
    %4699 = vmatpush1.msra.mxu0 0.0
    %4700 = vmatprep.subr.mxu0 0.0
    %4701 = vmatpush1.msra.mxu0 0.0
    %4702 = vmatprep.subr.mxu0 0.0
    %4703 = vmatpush1.msra.mxu0 0.0
    %4704 = vmatprep.subr.mxu0 0.0
    %4705 = vmatpush1.msra.mxu0 0.0
    %4706 = vmatprep.subr.mxu0 0.0
    %4707 = vmatpush1.msra.mxu0 0.0
    %4708 = vmatprep.subr.mxu0 0.0
    %4709 = vmatpush1.msra.mxu0 0.0
    %4710 = vmatprep.subr.mxu0 0.0
    %4711 = vmatpush1.msra.mxu0 0.0
    %4712 = vmatprep.subr.mxu0 0.0
    %4713 = vmatpush1.msra.mxu0 0.0
    %4714 = vmatprep.subr.mxu0 0.0
    %4715 = vmatpush1.msra.mxu0 0.0
    %4716 = vmatprep.subr.mxu0 0.0
    %4717 = vmatpush1.msra.mxu0 %v2979
    %4718 = vmatprep.subr.mxu0 0.0
    %4719 = vmatpush1.msra.mxu0 %v2978
    %4720 = vmatprep.subr.mxu0 0.0
    %4721 = vmatpush1.msra.mxu0 %v2977
    %4722 = vmatprep.subr.mxu0 0.0
    %4723 = vmatpush1.msra.mxu0 %v2976
    %4724 = vmatprep.subr.mxu0 0.0
    %4725 = vmatpush2.msra.mxu0 0.0
    %4726 = vmatprep.subr.mxu0 0.0
    %4727 = vmatpush2.msra.mxu0 0.0
    %4728 = vmatprep.subr.mxu0 0.0
    %4729 = vmatpush2.msra.mxu0 0.0
    %4730 = vmatprep.subr.mxu0 0.0
    %4731 = vmatpush2.msra.mxu0 0.0
    %4732 = vmatprep.subr.mxu0 0.0
    %4733 = vmatpush2.msra.mxu0 0.0
    %4734 = vmatprep.subr.mxu0 0.0
    %4735 = vmatpush2.msra.mxu0 0.0
    %4736 = vmatprep.subr.mxu0 0.0
    %4737 = vmatpush2.msra.mxu0 0.0
    %4738 = vmatprep.subr.mxu0 0.0
    %4739 = vmatpush2.msra.mxu0 0.0
    %4740 = vmatprep.subr.mxu0 0.0
    %4741 = vmatpush2.msra.mxu0 0.0
    %4742 = vmatprep.subr.mxu0 0.0
    %4743 = vmatpush2.msra.mxu0 0.0
    %4744 = vmatprep.subr.mxu0 0.0
    %4745 = vmatpush2.msra.mxu0 0.0
    %4746 = vmatprep.subr.mxu0 0.0
    %4747 = vmatpush2.msra.mxu0 0.0
    %4748 = vmatprep.subr.mxu0 0.0
    %4749 = vmatpush2.msra.mxu0 0.0
    %4750 = vmatprep.subr.mxu0 0.0
    %4751 = vmatpush2.msra.mxu0 0.0
    %4752 = vmatprep.subr.mxu0 0.0
    %4753 = vmatpush2.msra.mxu0 0.0
    %4754 = vmatprep.subr.mxu0 0.0
    %4755 = vmatpush2.msra.mxu0 0.0
    %4756 = vmatprep.mubr.f32.mxu0 0.0
    %4757 = vmatmul.mubr.f32.gmra.mxu0 %v4690
    %v4758 = vpop.f32.mrf.mxu0
    %v4759 = vadd.f32 %v3191, %v4758
    %v4760 = vpop.f32.mrf.mxu0
    %4761 = vdwg.mxu0
    %v4764 = vunpack.c.l.s4 1966171168
    %v4765 = vunpack.c.0.s8 %v4764
    %v4766 = vlaneseq
    %v4767 = vshrl.u32 %v4766, 7
    %v4768 = vsub.s32 %v4765, %v4767
    %v4769 = vrot.slane %v4759, %v4768
    %v4770 = vcombine.high %v4769, %v4769
    %v4772 = vunpack.c.l.s4 1966171168
    %v4773 = vunpack.c.0.s8 %v4772
    %v4774 = vlaneseq
    %v4775 = vshrl.u32 %v4774, 7
    %v4776 = vsub.s32 %v4773, %v4775
    %v4777 = vrot.slane %v4769, %v4776
    %v4779 = vunpack.c.l.s4 1966171168
    %v4780 = vunpack.c.0.s8 %v4779
    %v4781 = vlaneseq
    %v4782 = vshrl.u32 %v4781, 7
    %v4783 = vsub.s32 %v4780, %v4782
    %v4784 = vrot.slane %v4770, %v4783
    %v4785 = vlaneseq
    %v4786 = vshrl.u32 %v4785, 7
    %v4787 = vsub.s32 0, %v4786
    %v4788 = vrot.slane %v4777, %v4787
    %v4789 = vlaneseq
    %v4790 = vshrl.u32 %v4789, 7
    %v4791 = vsub.s32 0, %v4790
    %v4792 = vrot.slane %v4784, %v4791
    %v4795 = vadd.f32 %v4788, %v2967
    %v4796 = vadd.f32 %v4792, %v2968
    %v4797 = vtanh.pop %v4795
    %v4798 = vtanh.pop %v4796
    %v4799 = vmul.f32 %v4797, %v3309
    %v4800 = vmul.f32 %v4798, %v3309
    %v4801 = vsel %vm260, %v4799, 0.0
    %4802 = vadd.xlane.f32.xlu0 %v4801
    %v4803 = vpop.xlane.xlu0 %4802
    %v4804 = vsel %vm260, %v4800, 0.0
    %4805 = vadd.xlane.f32.xlu0 %v4804
    %v4806 = vpop.xlane.xlu0 %4805
    %vm4807 = vcmp.gt.f32.partialorder %v4497, 0.0
    %v4810 = vlaneseq
    %v4811 = vshrl.u32 %v4810, 7
    %v4812 = vsub.s32 %v3081, %v4811
    %v4813 = vrot.slane %v4803, %v4812
    %v4814 = vlaneseq
    %v4815 = vshrl.u32 %v4814, 7
    %v4816 = vsub.s32 %v3081, %v4815
    %v4817 = vrot.slane %v4806, %v4816
    %v4818 = vsel %vm3332, %v4817, %v4813
    %v4820 = vsel %vm4807, %v4818, -1e+30
    %v4821 = vsel %vm3335, %v4820, -inf
    %4822 = vmax.xlane.f32.xlu0 %v4821
    %v4823 = vpop.xlane.xlu0 %4822
    %v4824 = vsub.f32 %v4820, %v4823
    %v4825 = vmul.f32 %v4824, 1.442695
    %v4826 = vpow.pop %v4825
    %v4827 = vsel %vm3335, %v4826, 0.0
    %4828 = vadd.xlane.f32.xlu0 %v4827
    %v4829 = vpop.xlane.xlu0 %4828
    %v4830 = vrcp.pop %v4829
    %v4831 = vmul.f32 %v4826, %v4830
    %v4832 = vlaneseq
    %v4833 = vshrl.u32 %v4832, 7
    %v4834 = vsub.s32 0, %v4833
    %v4835 = vrot.slane %v4831, %v4834
    %4837 = vbcast.lane.b32.xlu0 %v4835, 256
    %v4838 = vpop.permute.xlu0 %4837
    %v4839 = vlaneseq
    %v4840 = vshrl.u32 %v4839, 7
    %v4841 = vsub.s32 1, %v4840
    %v4842 = vrot.slane %v4831, %v4841
    %4844 = vbcast.lane.b32.xlu0 %v4842, 256
    %v4845 = vpop.permute.xlu0 %4844
    %v4846 = vmul.f32 %v2967, %v4838
    %v4847 = vmul.f32 %v2968, %v4845
    %v4848 = vsel %vm260, %v4846, 0.0
    %v4849 = vrot.slane %v4848, 4
    %v4850 = vadd.f32 %v4848, %v4849
    %v4851 = vrot.slane %v4850, 2
    %v4852 = vadd.f32 %v4850, %v4851
    %v4853 = vrot.slane %v4852, 1
    %v4854 = vadd.f32 %v4852, %v4853
    %v4855 = vsel %vm260, %v4847, 0.0
    %v4856 = vrot.slane %v4855, 4
    %v4857 = vadd.f32 %v4855, %v4856
    %v4858 = vrot.slane %v4857, 2
    %v4859 = vadd.f32 %v4857, %v4858
    %v4860 = vrot.slane %v4859, 1
    %v4861 = vadd.f32 %v4859, %v4860
    %v4864 = vsel %vm3332, %v4861, %v4854
    %4866 = vrot.lane.b32.xlu0 %v4687, 64
    %v4867 = vpop.permute.xlu0 %4866
    %v4869 = vsel %vm260, %v4864, %v4867
    %v4871 = vsel %vm3432, %v4869, 0
    %4873 = vmatprep.subr.mxu0 0.0
    %4874 = vmatpush1.msra.mxu0 0.0
    %4875 = vmatprep.subr.mxu0 0.0
    %4876 = vmatpush1.msra.mxu0 0.0
    %4877 = vmatprep.subr.mxu0 0.0
    %4878 = vmatpush1.msra.mxu0 0.0
    %4879 = vmatprep.subr.mxu0 0.0
    %4880 = vmatpush1.msra.mxu0 0.0
    %4881 = vmatprep.subr.mxu0 0.0
    %4882 = vmatpush1.msra.mxu0 0.0
    %4883 = vmatprep.subr.mxu0 0.0
    %4884 = vmatpush1.msra.mxu0 0.0
    %4885 = vmatprep.subr.mxu0 0.0
    %4886 = vmatpush1.msra.mxu0 0.0
    %4887 = vmatprep.subr.mxu0 0.0
    %4888 = vmatpush1.msra.mxu0 0.0
    %4889 = vmatprep.subr.mxu0 0.0
    %4890 = vmatpush1.msra.mxu0 %v2989
    %4891 = vmatprep.subr.mxu0 0.0
    %4892 = vmatpush1.msra.mxu0 %v2988
    %4893 = vmatprep.subr.mxu0 0.0
    %4894 = vmatpush1.msra.mxu0 %v2987
    %4895 = vmatprep.subr.mxu0 0.0
    %4896 = vmatpush1.msra.mxu0 %v2986
    %4897 = vmatprep.subr.mxu0 0.0
    %4898 = vmatpush1.msra.mxu0 %v2985
    %4899 = vmatprep.subr.mxu0 0.0
    %4900 = vmatpush1.msra.mxu0 %v2984
    %4901 = vmatprep.subr.mxu0 0.0
    %4902 = vmatpush1.msra.mxu0 %v2983
    %4903 = vmatprep.subr.mxu0 0.0
    %4904 = vmatpush1.msra.mxu0 %v2982
    %4905 = vmatprep.subr.mxu0 0.0
    %4906 = vmatpush2.msra.mxu0 0.0
    %4907 = vmatprep.subr.mxu0 0.0
    %4908 = vmatpush2.msra.mxu0 0.0
    %4909 = vmatprep.subr.mxu0 0.0
    %4910 = vmatpush2.msra.mxu0 0.0
    %4911 = vmatprep.subr.mxu0 0.0
    %4912 = vmatpush2.msra.mxu0 0.0
    %4913 = vmatprep.subr.mxu0 0.0
    %4914 = vmatpush2.msra.mxu0 0.0
    %4915 = vmatprep.subr.mxu0 0.0
    %4916 = vmatpush2.msra.mxu0 0.0
    %4917 = vmatprep.subr.mxu0 0.0
    %4918 = vmatpush2.msra.mxu0 0.0
    %4919 = vmatprep.subr.mxu0 0.0
    %4920 = vmatpush2.msra.mxu0 0.0
    %4921 = vmatprep.subr.mxu0 0.0
    %4922 = vmatpush2.msra.mxu0 0.0
    %4923 = vmatprep.subr.mxu0 0.0
    %4924 = vmatpush2.msra.mxu0 0.0
    %4925 = vmatprep.subr.mxu0 0.0
    %4926 = vmatpush2.msra.mxu0 0.0
    %4927 = vmatprep.subr.mxu0 0.0
    %4928 = vmatpush2.msra.mxu0 0.0
    %4929 = vmatprep.subr.mxu0 0.0
    %4930 = vmatpush2.msra.mxu0 0.0
    %4931 = vmatprep.subr.mxu0 0.0
    %4932 = vmatpush2.msra.mxu0 0.0
    %4933 = vmatprep.subr.mxu0 0.0
    %4934 = vmatpush2.msra.mxu0 0.0
    %4935 = vmatprep.subr.mxu0 0.0
    %4936 = vmatpush2.msra.mxu0 0.0
    %4937 = vmatprep.mubr.f32.mxu0 0.0
    %4938 = vmatmul.mubr.f32.gmra.mxu0 %v4871
    %v4939 = vpop.f32.mrf.mxu0
    %v4940 = vadd.f32 %v3430, %v4939
    %v4941 = vpop.f32.mrf.mxu0
    %4942 = vdwg.mxu0
    %v4943 = vtanh.pop %v4940
    %v4944 = vmul.f32 %v4831, %v4497
    %v4945 = vsel %vm3335, %v4944, -inf
    %4946 = vmax.xlane.f32.xlu0 %v4945
    %v4947 = vpop.xlane.xlu0 %4946
    %vm4948 = vcmp.eq.f32.partialorder %v4944, %v4947
    %v4949 = vsel %vm4948, %v3081, 8
    %v4950 = vsel %vm3335, %v4949, 2147483647
    %v4951 = vand.u32 %v4950, 65535
    %v4952 = vshra.s32 %v4950, 16
    %v4953 = vcvt.s32.f32 %v4951
    %v4954 = vcvt.s32.f32 %v4952
    %4955 = vmin.xlane.f32.xlu0 %v4954
    %v4956 = vpop.xlane.xlu0 %4955
    %vm4957 = vcmp.eq.f32.partialorder %v4954, %v4956
    %v4958 = vsel %vm4957, %v4953, inf
    %4959 = vmin.xlane.f32.xlu0 %v4958
    %v4960 = vpop.xlane.xlu0 %4959
    %v4961 = vcvt.f32.s32 %v4960
    %v4962 = vcvt.f32.s32 %v4956
    %v4963 = vshll.u32 %v4962, 16
    %v4964 = vadd.s32 %v4963, %v4961
    %vm4965 = vcmp.eq.s32.totalorder %v3081, %v4964
    %v4966 = vsel %vm4965, 1, 0
    %v4967 = vcvt.s32.f32 %v4966
    %v4968 = vsub.f32 1.0, %v4967
    %v4969 = vmul.f32 %v4497, %v4968
    %v4970 = vlaneseq
    %v4971 = vshrl.u32 %v4970, 7
    %v4972 = vsub.s32 0, %v4971
    %v4973 = vrot.slane %v4967, %v4972
    %4975 = vbcast.lane.b32.xlu0 %v4973, 256
    %v4976 = vpop.permute.xlu0 %4975
    %v4977 = vlaneseq
    %v4978 = vshrl.u32 %v4977, 7
    %v4979 = vsub.s32 1, %v4978
    %v4980 = vrot.slane %v4967, %v4979
    %4982 = vbcast.lane.b32.xlu0 %v4980, 256
    %v4983 = vpop.permute.xlu0 %4982
    %v4984 = vmul.f32 %v2969, %v4976
    %v4985 = vmul.f32 %v2970, %v4983
    %v4986 = vrot.slane %v4984, 4
    %v4987 = vadd.f32 %v4984, %v4986
    %v4988 = vrot.slane %v4987, 2
    %v4989 = vadd.f32 %v4987, %v4988
    %v4990 = vrot.slane %v4989, 1
    %v4991 = vadd.f32 %v4989, %v4990
    %v4992 = vrot.slane %v4985, 4
    %v4993 = vadd.f32 %v4985, %v4992
    %v4994 = vrot.slane %v4993, 2
    %v4995 = vadd.f32 %v4993, %v4994
    %v4996 = vrot.slane %v4995, 1
    %v4997 = vadd.f32 %v4995, %v4996
    %v5000 = vunpack.c.l.s4 1966171168
    %v5001 = vunpack.c.0.s8 %v5000
    %v5002 = vlaneseq
    %v5003 = vshrl.u32 %v5002, 7
    %v5004 = vsub.s32 %v5001, %v5003
    %v5005 = vrot.slane %v4831, %v5004
    %v5006 = vcombine.high %v5005, %v5005
    %v5008 = vunpack.c.l.s4 1966171168
    %v5009 = vunpack.c.0.s8 %v5008
    %v5010 = vlaneseq
    %v5011 = vshrl.u32 %v5010, 7
    %v5012 = vsub.s32 %v5009, %v5011
    %v5013 = vrot.slane %v5005, %v5012
    %v5015 = vunpack.c.l.s4 1966171168
    %v5016 = vunpack.c.0.s8 %v5015
    %v5017 = vlaneseq
    %v5018 = vshrl.u32 %v5017, 7
    %v5019 = vsub.s32 %v5016, %v5018
    %v5020 = vrot.slane %v5006, %v5019
    %5023 = vst.msk [vmem:[#allocation4 + $0x3] sm:$0x1] %vm3602, %v5013
    %5024 = vst.msk [vmem:[#allocation4 + $0xb] sm:$0x1] %vm3602, %v5020
    %vm5025 = vcmask 25624
    %5026 = vst.msk [vmem:[#allocation6] sm:$0x3] %vm5025, %v4964
    %v5028 = vsel %vm260, %v4943, 0
    %5030 = vmatprep.subr.mxu0 0.0
    %5031 = vmatpush1.msra.mxu0 0.0
    %5032 = vmatprep.subr.mxu0 0.0
    %5033 = vmatpush1.msra.mxu0 0.0
    %5034 = vmatprep.subr.mxu0 0.0
    %5035 = vmatpush1.msra.mxu0 0.0
    %5036 = vmatprep.subr.mxu0 0.0
    %5037 = vmatpush1.msra.mxu0 0.0
    %5038 = vmatprep.subr.mxu0 0.0
    %5039 = vmatpush1.msra.mxu0 0.0
    %5040 = vmatprep.subr.mxu0 0.0
    %5041 = vmatpush1.msra.mxu0 0.0
    %5042 = vmatprep.subr.mxu0 0.0
    %5043 = vmatpush1.msra.mxu0 0.0
    %5044 = vmatprep.subr.mxu0 0.0
    %5045 = vmatpush1.msra.mxu0 0.0
    %5046 = vmatprep.subr.mxu0 0.0
    %5047 = vmatpush1.msra.mxu0 0.0
    %5048 = vmatprep.subr.mxu0 0.0
    %5049 = vmatpush1.msra.mxu0 0.0
    %5050 = vmatprep.subr.mxu0 0.0
    %5051 = vmatpush1.msra.mxu0 0.0
    %5052 = vmatprep.subr.mxu0 0.0
    %5053 = vmatpush1.msra.mxu0 0.0
    %5054 = vmatprep.subr.mxu0 0.0
    %5055 = vmatpush1.msra.mxu0 %v2974
    %5056 = vmatprep.subr.mxu0 0.0
    %5057 = vmatpush1.msra.mxu0 %v2973
    %5058 = vmatprep.subr.mxu0 0.0
    %5059 = vmatpush1.msra.mxu0 %v2972
    %5060 = vmatprep.subr.mxu0 0.0
    %5061 = vmatpush1.msra.mxu0 %v2971
    %5062 = vmatprep.subr.mxu0 0.0
    %5063 = vmatpush2.msra.mxu0 0.0
    %5064 = vmatprep.subr.mxu0 0.0
    %5065 = vmatpush2.msra.mxu0 0.0
    %5066 = vmatprep.subr.mxu0 0.0
    %5067 = vmatpush2.msra.mxu0 0.0
    %5068 = vmatprep.subr.mxu0 0.0
    %5069 = vmatpush2.msra.mxu0 0.0
    %5070 = vmatprep.subr.mxu0 0.0
    %5071 = vmatpush2.msra.mxu0 0.0
    %5072 = vmatprep.subr.mxu0 0.0
    %5073 = vmatpush2.msra.mxu0 0.0
    %5074 = vmatprep.subr.mxu0 0.0
    %5075 = vmatpush2.msra.mxu0 0.0
    %5076 = vmatprep.subr.mxu0 0.0
    %5077 = vmatpush2.msra.mxu0 0.0
    %5078 = vmatprep.subr.mxu0 0.0
    %5079 = vmatpush2.msra.mxu0 0.0
    %5080 = vmatprep.subr.mxu0 0.0
    %5081 = vmatpush2.msra.mxu0 0.0
    %5082 = vmatprep.subr.mxu0 0.0
    %5083 = vmatpush2.msra.mxu0 0.0
    %5084 = vmatprep.subr.mxu0 0.0
    %5085 = vmatpush2.msra.mxu0 0.0
    %5086 = vmatprep.subr.mxu0 0.0
    %5087 = vmatpush2.msra.mxu0 0.0
    %5088 = vmatprep.subr.mxu0 0.0
    %5089 = vmatpush2.msra.mxu0 0.0
    %5090 = vmatprep.subr.mxu0 0.0
    %5091 = vmatpush2.msra.mxu0 0.0
    %5092 = vmatprep.subr.mxu0 0.0
    %5093 = vmatpush2.msra.mxu0 0.0
    %5094 = vmatprep.mubr.f32.mxu0 0.0
    %5095 = vmatmul.mubr.f32.gmra.mxu0 %v5028
    %v5096 = vpop.f32.mrf.mxu0
    %v5097 = vadd.f32 0.0, %v5096
    %v5098 = vpop.f32.mrf.mxu0
    %5099 = vdwg.mxu0
    %v5101 = vrot.slane %v5097, 1
    %v5104 = vadd.f32 %v4991, %v5097
    %v5105 = vadd.f32 %v4997, %v5101
    %v5106 = vadd.f32 %v5104, %v3157
    %v5107 = vadd.f32 %v5105, %v3157
    %v5108 = vxor.u32 %v5106, 2147483648
    %v5109 = vxor.u32 %v5107, 2147483648
    %v5110 = vmul.f32 %v5108, 1.442695
    %v5111 = vpow.pop %v5110
    %v5112 = vmul.f32 %v5109, 1.442695
    %v5113 = vpow.pop %v5112
    %v5114 = vadd.f32 %v5111, 1.0
    %v5115 = vadd.f32 %v5113, 1.0
    %v5116 = vrcp.pop %v5114
    %v5117 = vmul.f32 1.0, %v5116
    %v5118 = vrcp.pop %v5115
    %v5119 = vmul.f32 1.0, %v5118
    %v5120 = vtanh.pop %v5106
    %v5121 = vtanh.pop %v5107
    %v5122 = vmul.f32 %v5117, %v4670
    %v5123 = vmul.f32 %v5119, %v4671
    %5126 = vrot.lane.b32.xlu0 %v5120, 64
    %v5127 = vpop.permute.xlu0 %5126
    %5128 = vrot.lane.b32.xlu0 %v5121, 64
    %v5129 = vpop.permute.xlu0 %5128
    %v5132 = vmul.f32 %v5117, %v5127
    %v5133 = vmul.f32 %v5119, %v5129
    %5136 = vrot.lane.b32.xlu0 %v5132, 32
    %v5137 = vpop.permute.xlu0 %5136
    %5138 = vrot.lane.b32.xlu0 %v5133, 32
    %v5139 = vpop.permute.xlu0 %5138
    %v5142 = vadd.f32 %v5122, %v5137
    %v5143 = vadd.f32 %v5123, %v5139
    %v5144 = vtanh.pop %v5142
    %v5145 = vtanh.pop %v5143
    %5148 = vrot.lane.b32.xlu0 %v5144, 64
    %v5149 = vpop.permute.xlu0 %5148
    %5150 = vrot.lane.b32.xlu0 %v5145, 64
    %v5151 = vpop.permute.xlu0 %5150
    %v5154 = vmul.f32 %v5117, %v5149
    %v5155 = vmul.f32 %v5119, %v5151
    %v5158 = vrot.slane %v5155, 7
    %v5159 = vsel %vm3332, %v5158, %v5154
    %5160 = vrot.lane.b32.xlu0 %v5159, 32
    %v5161 = vpop.permute.xlu0 %5160
    %v5162 = vsel %vm260, %v5161, 0
    %5164 = vmatprep.subr.mxu0 0.0
    %5165 = vmatpush1.msra.mxu0 0.0
    %5166 = vmatprep.subr.mxu0 0.0
    %5167 = vmatpush1.msra.mxu0 0.0
    %5168 = vmatprep.subr.mxu0 0.0
    %5169 = vmatpush1.msra.mxu0 0.0
    %5170 = vmatprep.subr.mxu0 0.0
    %5171 = vmatpush1.msra.mxu0 0.0
    %5172 = vmatprep.subr.mxu0 0.0
    %5173 = vmatpush1.msra.mxu0 0.0
    %5174 = vmatprep.subr.mxu0 0.0
    %5175 = vmatpush1.msra.mxu0 0.0
    %5176 = vmatprep.subr.mxu0 0.0
    %5177 = vmatpush1.msra.mxu0 0.0
    %5178 = vmatprep.subr.mxu0 0.0
    %5179 = vmatpush1.msra.mxu0 0.0
    %5180 = vmatprep.subr.mxu0 0.0
    %5181 = vmatpush1.msra.mxu0 0.0
    %5182 = vmatprep.subr.mxu0 0.0
    %5183 = vmatpush1.msra.mxu0 0.0
    %5184 = vmatprep.subr.mxu0 0.0
    %5185 = vmatpush1.msra.mxu0 0.0
    %5186 = vmatprep.subr.mxu0 0.0
    %5187 = vmatpush1.msra.mxu0 0.0
    %5188 = vmatprep.subr.mxu0 0.0
    %5189 = vmatpush1.msra.mxu0 %v2979
    %5190 = vmatprep.subr.mxu0 0.0
    %5191 = vmatpush1.msra.mxu0 %v2978
    %5192 = vmatprep.subr.mxu0 0.0
    %5193 = vmatpush1.msra.mxu0 %v2977
    %5194 = vmatprep.subr.mxu0 0.0
    %5195 = vmatpush1.msra.mxu0 %v2976
    %5196 = vmatprep.subr.mxu0 0.0
    %5197 = vmatpush2.msra.mxu0 0.0
    %5198 = vmatprep.subr.mxu0 0.0
    %5199 = vmatpush2.msra.mxu0 0.0
    %5200 = vmatprep.subr.mxu0 0.0
    %5201 = vmatpush2.msra.mxu0 0.0
    %5202 = vmatprep.subr.mxu0 0.0
    %5203 = vmatpush2.msra.mxu0 0.0
    %5204 = vmatprep.subr.mxu0 0.0
    %5205 = vmatpush2.msra.mxu0 0.0
    %5206 = vmatprep.subr.mxu0 0.0
    %5207 = vmatpush2.msra.mxu0 0.0
    %5208 = vmatprep.subr.mxu0 0.0
    %5209 = vmatpush2.msra.mxu0 0.0
    %5210 = vmatprep.subr.mxu0 0.0
    %5211 = vmatpush2.msra.mxu0 0.0
    %5212 = vmatprep.subr.mxu0 0.0
    %5213 = vmatpush2.msra.mxu0 0.0
    %5214 = vmatprep.subr.mxu0 0.0
    %5215 = vmatpush2.msra.mxu0 0.0
    %5216 = vmatprep.subr.mxu0 0.0
    %5217 = vmatpush2.msra.mxu0 0.0
    %5218 = vmatprep.subr.mxu0 0.0
    %5219 = vmatpush2.msra.mxu0 0.0
    %5220 = vmatprep.subr.mxu0 0.0
    %5221 = vmatpush2.msra.mxu0 0.0
    %5222 = vmatprep.subr.mxu0 0.0
    %5223 = vmatpush2.msra.mxu0 0.0
    %5224 = vmatprep.subr.mxu0 0.0
    %5225 = vmatpush2.msra.mxu0 0.0
    %5226 = vmatprep.subr.mxu0 0.0
    %5227 = vmatpush2.msra.mxu0 0.0
    %5228 = vmatprep.mubr.f32.mxu0 0.0
    %5229 = vmatmul.mubr.f32.gmra.mxu0 %v5162
    %v5230 = vpop.f32.mrf.mxu0
    %v5231 = vadd.f32 %v3191, %v5230
    %v5232 = vpop.f32.mrf.mxu0
    %5233 = vdwg.mxu0
    %v5236 = vunpack.c.l.s4 1966171168
    %v5237 = vunpack.c.0.s8 %v5236
    %v5238 = vlaneseq
    %v5239 = vshrl.u32 %v5238, 7
    %v5240 = vsub.s32 %v5237, %v5239
    %v5241 = vrot.slane %v5231, %v5240
    %v5242 = vcombine.high %v5241, %v5241
    %v5244 = vunpack.c.l.s4 1966171168
    %v5245 = vunpack.c.0.s8 %v5244
    %v5246 = vlaneseq
    %v5247 = vshrl.u32 %v5246, 7
    %v5248 = vsub.s32 %v5245, %v5247
    %v5249 = vrot.slane %v5241, %v5248
    %v5251 = vunpack.c.l.s4 1966171168
    %v5252 = vunpack.c.0.s8 %v5251
    %v5253 = vlaneseq
    %v5254 = vshrl.u32 %v5253, 7
    %v5255 = vsub.s32 %v5252, %v5254
    %v5256 = vrot.slane %v5242, %v5255
    %v5257 = vlaneseq
    %v5258 = vshrl.u32 %v5257, 7
    %v5259 = vsub.s32 0, %v5258
    %v5260 = vrot.slane %v5249, %v5259
    %v5261 = vlaneseq
    %v5262 = vshrl.u32 %v5261, 7
    %v5263 = vsub.s32 0, %v5262
    %v5264 = vrot.slane %v5256, %v5263
    %v5267 = vadd.f32 %v5260, %v2967
    %v5268 = vadd.f32 %v5264, %v2968
    %v5269 = vtanh.pop %v5267
    %v5270 = vtanh.pop %v5268
    %v5271 = vmul.f32 %v5269, %v3309
    %v5272 = vmul.f32 %v5270, %v3309
    %v5273 = vsel %vm260, %v5271, 0.0
    %5274 = vadd.xlane.f32.xlu0 %v5273
    %v5275 = vpop.xlane.xlu0 %5274
    %v5276 = vsel %vm260, %v5272, 0.0
    %5277 = vadd.xlane.f32.xlu0 %v5276
    %v5278 = vpop.xlane.xlu0 %5277
    %vm5279 = vcmp.gt.f32.partialorder %v4969, 0.0
    %v5282 = vlaneseq
    %v5283 = vshrl.u32 %v5282, 7
    %v5284 = vsub.s32 %v3081, %v5283
    %v5285 = vrot.slane %v5275, %v5284
    %v5286 = vlaneseq
    %v5287 = vshrl.u32 %v5286, 7
    %v5288 = vsub.s32 %v3081, %v5287
    %v5289 = vrot.slane %v5278, %v5288
    %v5290 = vsel %vm3332, %v5289, %v5285
    %v5292 = vsel %vm5279, %v5290, -1e+30
    %v5293 = vsel %vm3335, %v5292, -inf
    %5294 = vmax.xlane.f32.xlu0 %v5293
    %v5295 = vpop.xlane.xlu0 %5294
    %v5296 = vsub.f32 %v5292, %v5295
    %v5297 = vmul.f32 %v5296, 1.442695
    %v5298 = vpow.pop %v5297
    %v5299 = vsel %vm3335, %v5298, 0.0
    %5300 = vadd.xlane.f32.xlu0 %v5299
    %v5301 = vpop.xlane.xlu0 %5300
    %v5302 = vrcp.pop %v5301
    %v5303 = vmul.f32 %v5298, %v5302
    %v5304 = vlaneseq
    %v5305 = vshrl.u32 %v5304, 7
    %v5306 = vsub.s32 0, %v5305
    %v5307 = vrot.slane %v5303, %v5306
    %5309 = vbcast.lane.b32.xlu0 %v5307, 256
    %v5310 = vpop.permute.xlu0 %5309
    %v5311 = vlaneseq
    %v5312 = vshrl.u32 %v5311, 7
    %v5313 = vsub.s32 1, %v5312
    %v5314 = vrot.slane %v5303, %v5313
    %5316 = vbcast.lane.b32.xlu0 %v5314, 256
    %v5317 = vpop.permute.xlu0 %5316
    %v5318 = vmul.f32 %v2967, %v5310
    %v5319 = vmul.f32 %v2968, %v5317
    %v5320 = vsel %vm260, %v5318, 0.0
    %v5321 = vrot.slane %v5320, 4
    %v5322 = vadd.f32 %v5320, %v5321
    %v5323 = vrot.slane %v5322, 2
    %v5324 = vadd.f32 %v5322, %v5323
    %v5325 = vrot.slane %v5324, 1
    %v5326 = vadd.f32 %v5324, %v5325
    %v5327 = vsel %vm260, %v5319, 0.0
    %v5328 = vrot.slane %v5327, 4
    %v5329 = vadd.f32 %v5327, %v5328
    %v5330 = vrot.slane %v5329, 2
    %v5331 = vadd.f32 %v5329, %v5330
    %v5332 = vrot.slane %v5331, 1
    %v5333 = vadd.f32 %v5331, %v5332
    %v5336 = vsel %vm3332, %v5333, %v5326
    %5338 = vrot.lane.b32.xlu0 %v5159, 64
    %v5339 = vpop.permute.xlu0 %5338
    %v5341 = vsel %vm260, %v5336, %v5339
    %v5343 = vsel %vm3432, %v5341, 0
    %5345 = vmatprep.subr.mxu0 0.0
    %5346 = vmatpush1.msra.mxu0 0.0
    %5347 = vmatprep.subr.mxu0 0.0
    %5348 = vmatpush1.msra.mxu0 0.0
    %5349 = vmatprep.subr.mxu0 0.0
    %5350 = vmatpush1.msra.mxu0 0.0
    %5351 = vmatprep.subr.mxu0 0.0
    %5352 = vmatpush1.msra.mxu0 0.0
    %5353 = vmatprep.subr.mxu0 0.0
    %5354 = vmatpush1.msra.mxu0 0.0
    %5355 = vmatprep.subr.mxu0 0.0
    %5356 = vmatpush1.msra.mxu0 0.0
    %5357 = vmatprep.subr.mxu0 0.0
    %5358 = vmatpush1.msra.mxu0 0.0
    %5359 = vmatprep.subr.mxu0 0.0
    %5360 = vmatpush1.msra.mxu0 0.0
    %5361 = vmatprep.subr.mxu0 0.0
    %5362 = vmatpush1.msra.mxu0 %v2989
    %5363 = vmatprep.subr.mxu0 0.0
    %5364 = vmatpush1.msra.mxu0 %v2988
    %5365 = vmatprep.subr.mxu0 0.0
    %5366 = vmatpush1.msra.mxu0 %v2987
    %5367 = vmatprep.subr.mxu0 0.0
    %5368 = vmatpush1.msra.mxu0 %v2986
    %5369 = vmatprep.subr.mxu0 0.0
    %5370 = vmatpush1.msra.mxu0 %v2985
    %5371 = vmatprep.subr.mxu0 0.0
    %5372 = vmatpush1.msra.mxu0 %v2984
    %5373 = vmatprep.subr.mxu0 0.0
    %5374 = vmatpush1.msra.mxu0 %v2983
    %5375 = vmatprep.subr.mxu0 0.0
    %5376 = vmatpush1.msra.mxu0 %v2982
    %5377 = vmatprep.subr.mxu0 0.0
    %5378 = vmatpush2.msra.mxu0 0.0
    %5379 = vmatprep.subr.mxu0 0.0
    %5380 = vmatpush2.msra.mxu0 0.0
    %5381 = vmatprep.subr.mxu0 0.0
    %5382 = vmatpush2.msra.mxu0 0.0
    %5383 = vmatprep.subr.mxu0 0.0
    %5384 = vmatpush2.msra.mxu0 0.0
    %5385 = vmatprep.subr.mxu0 0.0
    %5386 = vmatpush2.msra.mxu0 0.0
    %5387 = vmatprep.subr.mxu0 0.0
    %5388 = vmatpush2.msra.mxu0 0.0
    %5389 = vmatprep.subr.mxu0 0.0
    %5390 = vmatpush2.msra.mxu0 0.0
    %5391 = vmatprep.subr.mxu0 0.0
    %5392 = vmatpush2.msra.mxu0 0.0
    %5393 = vmatprep.subr.mxu0 0.0
    %5394 = vmatpush2.msra.mxu0 0.0
    %5395 = vmatprep.subr.mxu0 0.0
    %5396 = vmatpush2.msra.mxu0 0.0
    %5397 = vmatprep.subr.mxu0 0.0
    %5398 = vmatpush2.msra.mxu0 0.0
    %5399 = vmatprep.subr.mxu0 0.0
    %5400 = vmatpush2.msra.mxu0 0.0
    %5401 = vmatprep.subr.mxu0 0.0
    %5402 = vmatpush2.msra.mxu0 0.0
    %5403 = vmatprep.subr.mxu0 0.0
    %5404 = vmatpush2.msra.mxu0 0.0
    %5405 = vmatprep.subr.mxu0 0.0
    %5406 = vmatpush2.msra.mxu0 0.0
    %5407 = vmatprep.subr.mxu0 0.0
    %5408 = vmatpush2.msra.mxu0 0.0
    %5409 = vmatprep.mubr.f32.mxu0 0.0
    %5410 = vmatmul.mubr.f32.gmra.mxu0 %v5343
    %v5411 = vpop.f32.mrf.mxu0
    %v5412 = vadd.f32 %v3430, %v5411
    %v5413 = vpop.f32.mrf.mxu0
    %5414 = vdwg.mxu0
    %v5415 = vtanh.pop %v5412
    %v5416 = vmul.f32 %v5303, %v4969
    %v5417 = vsel %vm3335, %v5416, -inf
    %5418 = vmax.xlane.f32.xlu0 %v5417
    %v5419 = vpop.xlane.xlu0 %5418
    %vm5420 = vcmp.eq.f32.partialorder %v5416, %v5419
    %v5421 = vsel %vm5420, %v3081, 8
    %v5422 = vsel %vm3335, %v5421, 2147483647
    %v5423 = vand.u32 %v5422, 65535
    %v5424 = vshra.s32 %v5422, 16
    %v5425 = vcvt.s32.f32 %v5423
    %v5426 = vcvt.s32.f32 %v5424
    %5427 = vmin.xlane.f32.xlu0 %v5426
    %v5428 = vpop.xlane.xlu0 %5427
    %vm5429 = vcmp.eq.f32.partialorder %v5426, %v5428
    %v5430 = vsel %vm5429, %v5425, inf
    %5431 = vmin.xlane.f32.xlu0 %v5430
    %v5432 = vpop.xlane.xlu0 %5431
    %v5433 = vcvt.f32.s32 %v5432
    %v5434 = vcvt.f32.s32 %v5428
    %v5435 = vshll.u32 %v5434, 16
    %v5436 = vadd.s32 %v5435, %v5433
    %vm5437 = vcmp.eq.s32.totalorder %v3081, %v5436
    %v5438 = vsel %vm5437, 1, 0
    %v5439 = vcvt.s32.f32 %v5438
    %v5440 = vsub.f32 1.0, %v5439
    %v5441 = vmul.f32 %v4969, %v5440
    %v5442 = vlaneseq
    %v5443 = vshrl.u32 %v5442, 7
    %v5444 = vsub.s32 0, %v5443
    %v5445 = vrot.slane %v5439, %v5444
    %5447 = vbcast.lane.b32.xlu0 %v5445, 256
    %v5448 = vpop.permute.xlu0 %5447
    %v5449 = vlaneseq
    %v5450 = vshrl.u32 %v5449, 7
    %v5451 = vsub.s32 1, %v5450
    %v5452 = vrot.slane %v5439, %v5451
    %5454 = vbcast.lane.b32.xlu0 %v5452, 256
    %v5455 = vpop.permute.xlu0 %5454
    %v5456 = vmul.f32 %v2969, %v5448
    %v5457 = vmul.f32 %v2970, %v5455
    %v5458 = vrot.slane %v5456, 4
    %v5459 = vadd.f32 %v5456, %v5458
    %v5460 = vrot.slane %v5459, 2
    %v5461 = vadd.f32 %v5459, %v5460
    %v5462 = vrot.slane %v5461, 1
    %v5463 = vadd.f32 %v5461, %v5462
    %v5464 = vrot.slane %v5457, 4
    %v5465 = vadd.f32 %v5457, %v5464
    %v5466 = vrot.slane %v5465, 2
    %v5467 = vadd.f32 %v5465, %v5466
    %v5468 = vrot.slane %v5467, 1
    %v5469 = vadd.f32 %v5467, %v5468
    %v5472 = vunpack.c.l.s4 1966171168
    %v5473 = vunpack.c.0.s8 %v5472
    %v5474 = vlaneseq
    %v5475 = vshrl.u32 %v5474, 7
    %v5476 = vsub.s32 %v5473, %v5475
    %v5477 = vrot.slane %v5303, %v5476
    %v5478 = vcombine.high %v5477, %v5477
    %v5480 = vunpack.c.l.s4 1966171168
    %v5481 = vunpack.c.0.s8 %v5480
    %v5482 = vlaneseq
    %v5483 = vshrl.u32 %v5482, 7
    %v5484 = vsub.s32 %v5481, %v5483
    %v5485 = vrot.slane %v5477, %v5484
    %v5487 = vunpack.c.l.s4 1966171168
    %v5488 = vunpack.c.0.s8 %v5487
    %v5489 = vlaneseq
    %v5490 = vshrl.u32 %v5489, 7
    %v5491 = vsub.s32 %v5488, %v5490
    %v5492 = vrot.slane %v5478, %v5491
    %5495 = vst.msk [vmem:[#allocation4 + $0x4] sm:$0x1] %vm3602, %v5485
    %5496 = vst.msk [vmem:[#allocation4 + $0xc] sm:$0x1] %vm3602, %v5492
    %vm5497 = vcmask 33824
    %5498 = vst.msk [vmem:[#allocation6] sm:$0x3] %vm5497, %v5436
    %v5500 = vsel %vm260, %v5415, 0
    %5502 = vmatprep.subr.mxu0 0.0
    %5503 = vmatpush1.msra.mxu0 0.0
    %5504 = vmatprep.subr.mxu0 0.0
    %5505 = vmatpush1.msra.mxu0 0.0
    %5506 = vmatprep.subr.mxu0 0.0
    %5507 = vmatpush1.msra.mxu0 0.0
    %5508 = vmatprep.subr.mxu0 0.0
    %5509 = vmatpush1.msra.mxu0 0.0
    %5510 = vmatprep.subr.mxu0 0.0
    %5511 = vmatpush1.msra.mxu0 0.0
    %5512 = vmatprep.subr.mxu0 0.0
    %5513 = vmatpush1.msra.mxu0 0.0
    %5514 = vmatprep.subr.mxu0 0.0
    %5515 = vmatpush1.msra.mxu0 0.0
    %5516 = vmatprep.subr.mxu0 0.0
    %5517 = vmatpush1.msra.mxu0 0.0
    %5518 = vmatprep.subr.mxu0 0.0
    %5519 = vmatpush1.msra.mxu0 0.0
    %5520 = vmatprep.subr.mxu0 0.0
    %5521 = vmatpush1.msra.mxu0 0.0
    %5522 = vmatprep.subr.mxu0 0.0
    %5523 = vmatpush1.msra.mxu0 0.0
    %5524 = vmatprep.subr.mxu0 0.0
    %5525 = vmatpush1.msra.mxu0 0.0
    %5526 = vmatprep.subr.mxu0 0.0
    %5527 = vmatpush1.msra.mxu0 %v2974
    %5528 = vmatprep.subr.mxu0 0.0
    %5529 = vmatpush1.msra.mxu0 %v2973
    %5530 = vmatprep.subr.mxu0 0.0
    %5531 = vmatpush1.msra.mxu0 %v2972
    %5532 = vmatprep.subr.mxu0 0.0
    %5533 = vmatpush1.msra.mxu0 %v2971
    %5534 = vmatprep.subr.mxu0 0.0
    %5535 = vmatpush2.msra.mxu0 0.0
    %5536 = vmatprep.subr.mxu0 0.0
    %5537 = vmatpush2.msra.mxu0 0.0
    %5538 = vmatprep.subr.mxu0 0.0
    %5539 = vmatpush2.msra.mxu0 0.0
    %5540 = vmatprep.subr.mxu0 0.0
    %5541 = vmatpush2.msra.mxu0 0.0
    %5542 = vmatprep.subr.mxu0 0.0
    %5543 = vmatpush2.msra.mxu0 0.0
    %5544 = vmatprep.subr.mxu0 0.0
    %5545 = vmatpush2.msra.mxu0 0.0
    %5546 = vmatprep.subr.mxu0 0.0
    %5547 = vmatpush2.msra.mxu0 0.0
    %5548 = vmatprep.subr.mxu0 0.0
    %5549 = vmatpush2.msra.mxu0 0.0
    %5550 = vmatprep.subr.mxu0 0.0
    %5551 = vmatpush2.msra.mxu0 0.0
    %5552 = vmatprep.subr.mxu0 0.0
    %5553 = vmatpush2.msra.mxu0 0.0
    %5554 = vmatprep.subr.mxu0 0.0
    %5555 = vmatpush2.msra.mxu0 0.0
    %5556 = vmatprep.subr.mxu0 0.0
    %5557 = vmatpush2.msra.mxu0 0.0
    %5558 = vmatprep.subr.mxu0 0.0
    %5559 = vmatpush2.msra.mxu0 0.0
    %5560 = vmatprep.subr.mxu0 0.0
    %5561 = vmatpush2.msra.mxu0 0.0
    %5562 = vmatprep.subr.mxu0 0.0
    %5563 = vmatpush2.msra.mxu0 0.0
    %5564 = vmatprep.subr.mxu0 0.0
    %5565 = vmatpush2.msra.mxu0 0.0
    %5566 = vmatprep.mubr.f32.mxu0 0.0
    %5567 = vmatmul.mubr.f32.gmra.mxu0 %v5500
    %v5568 = vpop.f32.mrf.mxu0
    %v5569 = vadd.f32 0.0, %v5568
    %v5570 = vpop.f32.mrf.mxu0
    %5571 = vdwg.mxu0
    %v5573 = vrot.slane %v5569, 1
    %v5576 = vadd.f32 %v5463, %v5569
    %v5577 = vadd.f32 %v5469, %v5573
    %v5578 = vadd.f32 %v5576, %v3157
    %v5579 = vadd.f32 %v5577, %v3157
    %v5580 = vxor.u32 %v5578, 2147483648
    %v5581 = vxor.u32 %v5579, 2147483648
    %v5582 = vmul.f32 %v5580, 1.442695
    %v5583 = vpow.pop %v5582
    %v5584 = vmul.f32 %v5581, 1.442695
    %v5585 = vpow.pop %v5584
    %v5586 = vadd.f32 %v5583, 1.0
    %v5587 = vadd.f32 %v5585, 1.0
    %v5588 = vrcp.pop %v5586
    %v5589 = vmul.f32 1.0, %v5588
    %v5590 = vrcp.pop %v5587
    %v5591 = vmul.f32 1.0, %v5590
    %v5592 = vtanh.pop %v5578
    %v5593 = vtanh.pop %v5579
    %v5594 = vmul.f32 %v5589, %v5142
    %v5595 = vmul.f32 %v5591, %v5143
    %5598 = vrot.lane.b32.xlu0 %v5592, 64
    %v5599 = vpop.permute.xlu0 %5598
    %5600 = vrot.lane.b32.xlu0 %v5593, 64
    %v5601 = vpop.permute.xlu0 %5600
    %v5604 = vmul.f32 %v5589, %v5599
    %v5605 = vmul.f32 %v5591, %v5601
    %5608 = vrot.lane.b32.xlu0 %v5604, 32
    %v5609 = vpop.permute.xlu0 %5608
    %5610 = vrot.lane.b32.xlu0 %v5605, 32
    %v5611 = vpop.permute.xlu0 %5610
    %v5614 = vadd.f32 %v5594, %v5609
    %v5615 = vadd.f32 %v5595, %v5611
    %v5616 = vtanh.pop %v5614
    %v5617 = vtanh.pop %v5615
    %5620 = vrot.lane.b32.xlu0 %v5616, 64
    %v5621 = vpop.permute.xlu0 %5620
    %5622 = vrot.lane.b32.xlu0 %v5617, 64
    %v5623 = vpop.permute.xlu0 %5622
    %v5626 = vmul.f32 %v5589, %v5621
    %v5627 = vmul.f32 %v5591, %v5623
    %v5630 = vrot.slane %v5627, 7
    %v5631 = vsel %vm3332, %v5630, %v5626
    %5632 = vrot.lane.b32.xlu0 %v5631, 32
    %v5633 = vpop.permute.xlu0 %5632
    %v5634 = vsel %vm260, %v5633, 0
    %5636 = vmatprep.subr.mxu0 0.0
    %5637 = vmatpush1.msra.mxu0 0.0
    %5638 = vmatprep.subr.mxu0 0.0
    %5639 = vmatpush1.msra.mxu0 0.0
    %5640 = vmatprep.subr.mxu0 0.0
    %5641 = vmatpush1.msra.mxu0 0.0
    %5642 = vmatprep.subr.mxu0 0.0
    %5643 = vmatpush1.msra.mxu0 0.0
    %5644 = vmatprep.subr.mxu0 0.0
    %5645 = vmatpush1.msra.mxu0 0.0
    %5646 = vmatprep.subr.mxu0 0.0
    %5647 = vmatpush1.msra.mxu0 0.0
    %5648 = vmatprep.subr.mxu0 0.0
    %5649 = vmatpush1.msra.mxu0 0.0
    %5650 = vmatprep.subr.mxu0 0.0
    %5651 = vmatpush1.msra.mxu0 0.0
    %5652 = vmatprep.subr.mxu0 0.0
    %5653 = vmatpush1.msra.mxu0 0.0
    %5654 = vmatprep.subr.mxu0 0.0
    %5655 = vmatpush1.msra.mxu0 0.0
    %5656 = vmatprep.subr.mxu0 0.0
    %5657 = vmatpush1.msra.mxu0 0.0
    %5658 = vmatprep.subr.mxu0 0.0
    %5659 = vmatpush1.msra.mxu0 0.0
    %5660 = vmatprep.subr.mxu0 0.0
    %5661 = vmatpush1.msra.mxu0 %v2979
    %5662 = vmatprep.subr.mxu0 0.0
    %5663 = vmatpush1.msra.mxu0 %v2978
    %5664 = vmatprep.subr.mxu0 0.0
    %5665 = vmatpush1.msra.mxu0 %v2977
    %5666 = vmatprep.subr.mxu0 0.0
    %5667 = vmatpush1.msra.mxu0 %v2976
    %5668 = vmatprep.subr.mxu0 0.0
    %5669 = vmatpush2.msra.mxu0 0.0
    %5670 = vmatprep.subr.mxu0 0.0
    %5671 = vmatpush2.msra.mxu0 0.0
    %5672 = vmatprep.subr.mxu0 0.0
    %5673 = vmatpush2.msra.mxu0 0.0
    %5674 = vmatprep.subr.mxu0 0.0
    %5675 = vmatpush2.msra.mxu0 0.0
    %5676 = vmatprep.subr.mxu0 0.0
    %5677 = vmatpush2.msra.mxu0 0.0
    %5678 = vmatprep.subr.mxu0 0.0
    %5679 = vmatpush2.msra.mxu0 0.0
    %5680 = vmatprep.subr.mxu0 0.0
    %5681 = vmatpush2.msra.mxu0 0.0
    %5682 = vmatprep.subr.mxu0 0.0
    %5683 = vmatpush2.msra.mxu0 0.0
    %5684 = vmatprep.subr.mxu0 0.0
    %5685 = vmatpush2.msra.mxu0 0.0
    %5686 = vmatprep.subr.mxu0 0.0
    %5687 = vmatpush2.msra.mxu0 0.0
    %5688 = vmatprep.subr.mxu0 0.0
    %5689 = vmatpush2.msra.mxu0 0.0
    %5690 = vmatprep.subr.mxu0 0.0
    %5691 = vmatpush2.msra.mxu0 0.0
    %5692 = vmatprep.subr.mxu0 0.0
    %5693 = vmatpush2.msra.mxu0 0.0
    %5694 = vmatprep.subr.mxu0 0.0
    %5695 = vmatpush2.msra.mxu0 0.0
    %5696 = vmatprep.subr.mxu0 0.0
    %5697 = vmatpush2.msra.mxu0 0.0
    %5698 = vmatprep.subr.mxu0 0.0
    %5699 = vmatpush2.msra.mxu0 0.0
    %5700 = vmatprep.mubr.f32.mxu0 0.0
    %5701 = vmatmul.mubr.f32.gmra.mxu0 %v5634
    %v5702 = vpop.f32.mrf.mxu0
    %v5703 = vadd.f32 %v3191, %v5702
    %v5704 = vpop.f32.mrf.mxu0
    %5705 = vdwg.mxu0
    %v5708 = vunpack.c.l.s4 1966171168
    %v5709 = vunpack.c.0.s8 %v5708
    %v5710 = vlaneseq
    %v5711 = vshrl.u32 %v5710, 7
    %v5712 = vsub.s32 %v5709, %v5711
    %v5713 = vrot.slane %v5703, %v5712
    %v5714 = vcombine.high %v5713, %v5713
    %v5716 = vunpack.c.l.s4 1966171168
    %v5717 = vunpack.c.0.s8 %v5716
    %v5718 = vlaneseq
    %v5719 = vshrl.u32 %v5718, 7
    %v5720 = vsub.s32 %v5717, %v5719
    %v5721 = vrot.slane %v5713, %v5720
    %v5723 = vunpack.c.l.s4 1966171168
    %v5724 = vunpack.c.0.s8 %v5723
    %v5725 = vlaneseq
    %v5726 = vshrl.u32 %v5725, 7
    %v5727 = vsub.s32 %v5724, %v5726
    %v5728 = vrot.slane %v5714, %v5727
    %v5729 = vlaneseq
    %v5730 = vshrl.u32 %v5729, 7
    %v5731 = vsub.s32 0, %v5730
    %v5732 = vrot.slane %v5721, %v5731
    %v5733 = vlaneseq
    %v5734 = vshrl.u32 %v5733, 7
    %v5735 = vsub.s32 0, %v5734
    %v5736 = vrot.slane %v5728, %v5735
    %v5739 = vadd.f32 %v5732, %v2967
    %v5740 = vadd.f32 %v5736, %v2968
    %v5741 = vtanh.pop %v5739
    %v5742 = vtanh.pop %v5740
    %v5743 = vmul.f32 %v5741, %v3309
    %v5744 = vmul.f32 %v5742, %v3309
    %v5745 = vsel %vm260, %v5743, 0.0
    %5746 = vadd.xlane.f32.xlu0 %v5745
    %v5747 = vpop.xlane.xlu0 %5746
    %v5748 = vsel %vm260, %v5744, 0.0
    %5749 = vadd.xlane.f32.xlu0 %v5748
    %v5750 = vpop.xlane.xlu0 %5749
    %vm5751 = vcmp.gt.f32.partialorder %v5441, 0.0
    %v5754 = vlaneseq
    %v5755 = vshrl.u32 %v5754, 7
    %v5756 = vsub.s32 %v3081, %v5755
    %v5757 = vrot.slane %v5747, %v5756
    %v5758 = vlaneseq
    %v5759 = vshrl.u32 %v5758, 7
    %v5760 = vsub.s32 %v3081, %v5759
    %v5761 = vrot.slane %v5750, %v5760
    %v5762 = vsel %vm3332, %v5761, %v5757
    %v5764 = vsel %vm5751, %v5762, -1e+30
    %v5765 = vsel %vm3335, %v5764, -inf
    %5766 = vmax.xlane.f32.xlu0 %v5765
    %v5767 = vpop.xlane.xlu0 %5766
    %v5768 = vsub.f32 %v5764, %v5767
    %v5769 = vmul.f32 %v5768, 1.442695
    %v5770 = vpow.pop %v5769
    %v5771 = vsel %vm3335, %v5770, 0.0
    %5772 = vadd.xlane.f32.xlu0 %v5771
    %v5773 = vpop.xlane.xlu0 %5772
    %v5774 = vrcp.pop %v5773
    %v5775 = vmul.f32 %v5770, %v5774
    %v5776 = vlaneseq
    %v5777 = vshrl.u32 %v5776, 7
    %v5778 = vsub.s32 0, %v5777
    %v5779 = vrot.slane %v5775, %v5778
    %5781 = vbcast.lane.b32.xlu0 %v5779, 256
    %v5782 = vpop.permute.xlu0 %5781
    %v5783 = vlaneseq
    %v5784 = vshrl.u32 %v5783, 7
    %v5785 = vsub.s32 1, %v5784
    %v5786 = vrot.slane %v5775, %v5785
    %5788 = vbcast.lane.b32.xlu0 %v5786, 256
    %v5789 = vpop.permute.xlu0 %5788
    %v5790 = vmul.f32 %v2967, %v5782
    %v5791 = vmul.f32 %v2968, %v5789
    %v5792 = vsel %vm260, %v5790, 0.0
    %v5793 = vrot.slane %v5792, 4
    %v5794 = vadd.f32 %v5792, %v5793
    %v5795 = vrot.slane %v5794, 2
    %v5796 = vadd.f32 %v5794, %v5795
    %v5797 = vrot.slane %v5796, 1
    %v5798 = vadd.f32 %v5796, %v5797
    %v5799 = vsel %vm260, %v5791, 0.0
    %v5800 = vrot.slane %v5799, 4
    %v5801 = vadd.f32 %v5799, %v5800
    %v5802 = vrot.slane %v5801, 2
    %v5803 = vadd.f32 %v5801, %v5802
    %v5804 = vrot.slane %v5803, 1
    %v5805 = vadd.f32 %v5803, %v5804
    %v5808 = vsel %vm3332, %v5805, %v5798
    %5810 = vrot.lane.b32.xlu0 %v5631, 64
    %v5811 = vpop.permute.xlu0 %5810
    %v5813 = vsel %vm260, %v5808, %v5811
    %v5815 = vsel %vm3432, %v5813, 0
    %5817 = vmatprep.subr.mxu0 0.0
    %5818 = vmatpush1.msra.mxu0 0.0
    %5819 = vmatprep.subr.mxu0 0.0
    %5820 = vmatpush1.msra.mxu0 0.0
    %5821 = vmatprep.subr.mxu0 0.0
    %5822 = vmatpush1.msra.mxu0 0.0
    %5823 = vmatprep.subr.mxu0 0.0
    %5824 = vmatpush1.msra.mxu0 0.0
    %5825 = vmatprep.subr.mxu0 0.0
    %5826 = vmatpush1.msra.mxu0 0.0
    %5827 = vmatprep.subr.mxu0 0.0
    %5828 = vmatpush1.msra.mxu0 0.0
    %5829 = vmatprep.subr.mxu0 0.0
    %5830 = vmatpush1.msra.mxu0 0.0
    %5831 = vmatprep.subr.mxu0 0.0
    %5832 = vmatpush1.msra.mxu0 0.0
    %5833 = vmatprep.subr.mxu0 0.0
    %5834 = vmatpush1.msra.mxu0 %v2989
    %5835 = vmatprep.subr.mxu0 0.0
    %5836 = vmatpush1.msra.mxu0 %v2988
    %5837 = vmatprep.subr.mxu0 0.0
    %5838 = vmatpush1.msra.mxu0 %v2987
    %5839 = vmatprep.subr.mxu0 0.0
    %5840 = vmatpush1.msra.mxu0 %v2986
    %5841 = vmatprep.subr.mxu0 0.0
    %5842 = vmatpush1.msra.mxu0 %v2985
    %5843 = vmatprep.subr.mxu0 0.0
    %5844 = vmatpush1.msra.mxu0 %v2984
    %5845 = vmatprep.subr.mxu0 0.0
    %5846 = vmatpush1.msra.mxu0 %v2983
    %5847 = vmatprep.subr.mxu0 0.0
    %5848 = vmatpush1.msra.mxu0 %v2982
    %5849 = vmatprep.subr.mxu0 0.0
    %5850 = vmatpush2.msra.mxu0 0.0
    %5851 = vmatprep.subr.mxu0 0.0
    %5852 = vmatpush2.msra.mxu0 0.0
    %5853 = vmatprep.subr.mxu0 0.0
    %5854 = vmatpush2.msra.mxu0 0.0
    %5855 = vmatprep.subr.mxu0 0.0
    %5856 = vmatpush2.msra.mxu0 0.0
    %5857 = vmatprep.subr.mxu0 0.0
    %5858 = vmatpush2.msra.mxu0 0.0
    %5859 = vmatprep.subr.mxu0 0.0
    %5860 = vmatpush2.msra.mxu0 0.0
    %5861 = vmatprep.subr.mxu0 0.0
    %5862 = vmatpush2.msra.mxu0 0.0
    %5863 = vmatprep.subr.mxu0 0.0
    %5864 = vmatpush2.msra.mxu0 0.0
    %5865 = vmatprep.subr.mxu0 0.0
    %5866 = vmatpush2.msra.mxu0 0.0
    %5867 = vmatprep.subr.mxu0 0.0
    %5868 = vmatpush2.msra.mxu0 0.0
    %5869 = vmatprep.subr.mxu0 0.0
    %5870 = vmatpush2.msra.mxu0 0.0
    %5871 = vmatprep.subr.mxu0 0.0
    %5872 = vmatpush2.msra.mxu0 0.0
    %5873 = vmatprep.subr.mxu0 0.0
    %5874 = vmatpush2.msra.mxu0 0.0
    %5875 = vmatprep.subr.mxu0 0.0
    %5876 = vmatpush2.msra.mxu0 0.0
    %5877 = vmatprep.subr.mxu0 0.0
    %5878 = vmatpush2.msra.mxu0 0.0
    %5879 = vmatprep.subr.mxu0 0.0
    %5880 = vmatpush2.msra.mxu0 0.0
    %5881 = vmatprep.mubr.f32.mxu0 0.0
    %5882 = vmatmul.mubr.f32.gmra.mxu0 %v5815
    %v5883 = vpop.f32.mrf.mxu0
    %v5884 = vadd.f32 %v3430, %v5883
    %v5885 = vpop.f32.mrf.mxu0
    %5886 = vdwg.mxu0
    %v5887 = vtanh.pop %v5884
    %v5888 = vmul.f32 %v5775, %v5441
    %v5889 = vsel %vm3335, %v5888, -inf
    %5890 = vmax.xlane.f32.xlu0 %v5889
    %v5891 = vpop.xlane.xlu0 %5890
    %vm5892 = vcmp.eq.f32.partialorder %v5888, %v5891
    %v5893 = vsel %vm5892, %v3081, 8
    %v5894 = vsel %vm3335, %v5893, 2147483647
    %v5895 = vand.u32 %v5894, 65535
    %v5896 = vshra.s32 %v5894, 16
    %v5897 = vcvt.s32.f32 %v5895
    %v5898 = vcvt.s32.f32 %v5896
    %5899 = vmin.xlane.f32.xlu0 %v5898
    %v5900 = vpop.xlane.xlu0 %5899
    %vm5901 = vcmp.eq.f32.partialorder %v5898, %v5900
    %v5902 = vsel %vm5901, %v5897, inf
    %5903 = vmin.xlane.f32.xlu0 %v5902
    %v5904 = vpop.xlane.xlu0 %5903
    %v5905 = vcvt.f32.s32 %v5904
    %v5906 = vcvt.f32.s32 %v5900
    %v5907 = vshll.u32 %v5906, 16
    %v5908 = vadd.s32 %v5907, %v5905
    %vm5909 = vcmp.eq.s32.totalorder %v3081, %v5908
    %v5910 = vsel %vm5909, 1, 0
    %v5911 = vcvt.s32.f32 %v5910
    %v5912 = vsub.f32 1.0, %v5911
    %v5913 = vmul.f32 %v5441, %v5912
    %v5914 = vlaneseq
    %v5915 = vshrl.u32 %v5914, 7
    %v5916 = vsub.s32 0, %v5915
    %v5917 = vrot.slane %v5911, %v5916
    %5919 = vbcast.lane.b32.xlu0 %v5917, 256
    %v5920 = vpop.permute.xlu0 %5919
    %v5921 = vlaneseq
    %v5922 = vshrl.u32 %v5921, 7
    %v5923 = vsub.s32 1, %v5922
    %v5924 = vrot.slane %v5911, %v5923
    %5926 = vbcast.lane.b32.xlu0 %v5924, 256
    %v5927 = vpop.permute.xlu0 %5926
    %v5928 = vmul.f32 %v2969, %v5920
    %v5929 = vmul.f32 %v2970, %v5927
    %v5930 = vrot.slane %v5928, 4
    %v5931 = vadd.f32 %v5928, %v5930
    %v5932 = vrot.slane %v5931, 2
    %v5933 = vadd.f32 %v5931, %v5932
    %v5934 = vrot.slane %v5933, 1
    %v5935 = vadd.f32 %v5933, %v5934
    %v5936 = vrot.slane %v5929, 4
    %v5937 = vadd.f32 %v5929, %v5936
    %v5938 = vrot.slane %v5937, 2
    %v5939 = vadd.f32 %v5937, %v5938
    %v5940 = vrot.slane %v5939, 1
    %v5941 = vadd.f32 %v5939, %v5940
    %v5944 = vunpack.c.l.s4 1966171168
    %v5945 = vunpack.c.0.s8 %v5944
    %v5946 = vlaneseq
    %v5947 = vshrl.u32 %v5946, 7
    %v5948 = vsub.s32 %v5945, %v5947
    %v5949 = vrot.slane %v5775, %v5948
    %v5950 = vcombine.high %v5949, %v5949
    %v5952 = vunpack.c.l.s4 1966171168
    %v5953 = vunpack.c.0.s8 %v5952
    %v5954 = vlaneseq
    %v5955 = vshrl.u32 %v5954, 7
    %v5956 = vsub.s32 %v5953, %v5955
    %v5957 = vrot.slane %v5949, %v5956
    %v5959 = vunpack.c.l.s4 1966171168
    %v5960 = vunpack.c.0.s8 %v5959
    %v5961 = vlaneseq
    %v5962 = vshrl.u32 %v5961, 7
    %v5963 = vsub.s32 %v5960, %v5962
    %v5964 = vrot.slane %v5950, %v5963
    %5967 = vst.msk [vmem:[#allocation4 + $0x5] sm:$0x1] %vm3602, %v5957
    %5968 = vst.msk [vmem:[#allocation4 + $0xd] sm:$0x1] %vm3602, %v5964
    %vm5969 = vcmask 42024
    %5970 = vst.msk [vmem:[#allocation6] sm:$0x3] %vm5969, %v5908
    %v5972 = vsel %vm260, %v5887, 0
    %5974 = vmatprep.subr.mxu0 0.0
    %5975 = vmatpush1.msra.mxu0 0.0
    %5976 = vmatprep.subr.mxu0 0.0
    %5977 = vmatpush1.msra.mxu0 0.0
    %5978 = vmatprep.subr.mxu0 0.0
    %5979 = vmatpush1.msra.mxu0 0.0
    %5980 = vmatprep.subr.mxu0 0.0
    %5981 = vmatpush1.msra.mxu0 0.0
    %5982 = vmatprep.subr.mxu0 0.0
    %5983 = vmatpush1.msra.mxu0 0.0
    %5984 = vmatprep.subr.mxu0 0.0
    %5985 = vmatpush1.msra.mxu0 0.0
    %5986 = vmatprep.subr.mxu0 0.0
    %5987 = vmatpush1.msra.mxu0 0.0
    %5988 = vmatprep.subr.mxu0 0.0
    %5989 = vmatpush1.msra.mxu0 0.0
    %5990 = vmatprep.subr.mxu0 0.0
    %5991 = vmatpush1.msra.mxu0 0.0
    %5992 = vmatprep.subr.mxu0 0.0
    %5993 = vmatpush1.msra.mxu0 0.0
    %5994 = vmatprep.subr.mxu0 0.0
    %5995 = vmatpush1.msra.mxu0 0.0
    %5996 = vmatprep.subr.mxu0 0.0
    %5997 = vmatpush1.msra.mxu0 0.0
    %5998 = vmatprep.subr.mxu0 0.0
    %5999 = vmatpush1.msra.mxu0 %v2974
    %6000 = vmatprep.subr.mxu0 0.0
    %6001 = vmatpush1.msra.mxu0 %v2973
    %6002 = vmatprep.subr.mxu0 0.0
    %6003 = vmatpush1.msra.mxu0 %v2972
    %6004 = vmatprep.subr.mxu0 0.0
    %6005 = vmatpush1.msra.mxu0 %v2971
    %6006 = vmatprep.subr.mxu0 0.0
    %6007 = vmatpush2.msra.mxu0 0.0
    %6008 = vmatprep.subr.mxu0 0.0
    %6009 = vmatpush2.msra.mxu0 0.0
    %6010 = vmatprep.subr.mxu0 0.0
    %6011 = vmatpush2.msra.mxu0 0.0
    %6012 = vmatprep.subr.mxu0 0.0
    %6013 = vmatpush2.msra.mxu0 0.0
    %6014 = vmatprep.subr.mxu0 0.0
    %6015 = vmatpush2.msra.mxu0 0.0
    %6016 = vmatprep.subr.mxu0 0.0
    %6017 = vmatpush2.msra.mxu0 0.0
    %6018 = vmatprep.subr.mxu0 0.0
    %6019 = vmatpush2.msra.mxu0 0.0
    %6020 = vmatprep.subr.mxu0 0.0
    %6021 = vmatpush2.msra.mxu0 0.0
    %6022 = vmatprep.subr.mxu0 0.0
    %6023 = vmatpush2.msra.mxu0 0.0
    %6024 = vmatprep.subr.mxu0 0.0
    %6025 = vmatpush2.msra.mxu0 0.0
    %6026 = vmatprep.subr.mxu0 0.0
    %6027 = vmatpush2.msra.mxu0 0.0
    %6028 = vmatprep.subr.mxu0 0.0
    %6029 = vmatpush2.msra.mxu0 0.0
    %6030 = vmatprep.subr.mxu0 0.0
    %6031 = vmatpush2.msra.mxu0 0.0
    %6032 = vmatprep.subr.mxu0 0.0
    %6033 = vmatpush2.msra.mxu0 0.0
    %6034 = vmatprep.subr.mxu0 0.0
    %6035 = vmatpush2.msra.mxu0 0.0
    %6036 = vmatprep.subr.mxu0 0.0
    %6037 = vmatpush2.msra.mxu0 0.0
    %6038 = vmatprep.mubr.f32.mxu0 0.0
    %6039 = vmatmul.mubr.f32.gmra.mxu0 %v5972
    %v6040 = vpop.f32.mrf.mxu0
    %v6041 = vadd.f32 0.0, %v6040
    %v6042 = vpop.f32.mrf.mxu0
    %6043 = vdwg.mxu0
    %v6045 = vrot.slane %v6041, 1
    %v6048 = vadd.f32 %v5935, %v6041
    %v6049 = vadd.f32 %v5941, %v6045
    %v6050 = vadd.f32 %v6048, %v3157
    %v6051 = vadd.f32 %v6049, %v3157
    %v6052 = vxor.u32 %v6050, 2147483648
    %v6053 = vxor.u32 %v6051, 2147483648
    %v6054 = vmul.f32 %v6052, 1.442695
    %v6055 = vpow.pop %v6054
    %v6056 = vmul.f32 %v6053, 1.442695
    %v6057 = vpow.pop %v6056
    %v6058 = vadd.f32 %v6055, 1.0
    %v6059 = vadd.f32 %v6057, 1.0
    %v6060 = vrcp.pop %v6058
    %v6061 = vmul.f32 1.0, %v6060
    %v6062 = vrcp.pop %v6059
    %v6063 = vmul.f32 1.0, %v6062
    %v6064 = vtanh.pop %v6050
    %v6065 = vtanh.pop %v6051
    %v6066 = vmul.f32 %v6061, %v5614
    %v6067 = vmul.f32 %v6063, %v5615
    %6070 = vrot.lane.b32.xlu0 %v6064, 64
    %v6071 = vpop.permute.xlu0 %6070
    %6072 = vrot.lane.b32.xlu0 %v6065, 64
    %v6073 = vpop.permute.xlu0 %6072
    %v6076 = vmul.f32 %v6061, %v6071
    %v6077 = vmul.f32 %v6063, %v6073
    %6080 = vrot.lane.b32.xlu0 %v6076, 32
    %v6081 = vpop.permute.xlu0 %6080
    %6082 = vrot.lane.b32.xlu0 %v6077, 32
    %v6083 = vpop.permute.xlu0 %6082
    %v6086 = vadd.f32 %v6066, %v6081
    %v6087 = vadd.f32 %v6067, %v6083
    %v6088 = vtanh.pop %v6086
    %v6089 = vtanh.pop %v6087
    %6092 = vrot.lane.b32.xlu0 %v6088, 64
    %v6093 = vpop.permute.xlu0 %6092
    %6094 = vrot.lane.b32.xlu0 %v6089, 64
    %v6095 = vpop.permute.xlu0 %6094
    %v6098 = vmul.f32 %v6061, %v6093
    %v6099 = vmul.f32 %v6063, %v6095
    %v6102 = vrot.slane %v6099, 7
    %v6103 = vsel %vm3332, %v6102, %v6098
    %6104 = vrot.lane.b32.xlu0 %v6103, 32
    %v6105 = vpop.permute.xlu0 %6104
    %v6106 = vsel %vm260, %v6105, 0
    %6108 = vmatprep.subr.mxu0 0.0
    %6109 = vmatpush1.msra.mxu0 0.0
    %6110 = vmatprep.subr.mxu0 0.0
    %6111 = vmatpush1.msra.mxu0 0.0
    %6112 = vmatprep.subr.mxu0 0.0
    %6113 = vmatpush1.msra.mxu0 0.0
    %6114 = vmatprep.subr.mxu0 0.0
    %6115 = vmatpush1.msra.mxu0 0.0
    %6116 = vmatprep.subr.mxu0 0.0
    %6117 = vmatpush1.msra.mxu0 0.0
    %6118 = vmatprep.subr.mxu0 0.0
    %6119 = vmatpush1.msra.mxu0 0.0
    %6120 = vmatprep.subr.mxu0 0.0
    %6121 = vmatpush1.msra.mxu0 0.0
    %6122 = vmatprep.subr.mxu0 0.0
    %6123 = vmatpush1.msra.mxu0 0.0
    %6124 = vmatprep.subr.mxu0 0.0
    %6125 = vmatpush1.msra.mxu0 0.0
    %6126 = vmatprep.subr.mxu0 0.0
    %6127 = vmatpush1.msra.mxu0 0.0
    %6128 = vmatprep.subr.mxu0 0.0
    %6129 = vmatpush1.msra.mxu0 0.0
    %6130 = vmatprep.subr.mxu0 0.0
    %6131 = vmatpush1.msra.mxu0 0.0
    %6132 = vmatprep.subr.mxu0 0.0
    %6133 = vmatpush1.msra.mxu0 %v2979
    %6134 = vmatprep.subr.mxu0 0.0
    %6135 = vmatpush1.msra.mxu0 %v2978
    %6136 = vmatprep.subr.mxu0 0.0
    %6137 = vmatpush1.msra.mxu0 %v2977
    %6138 = vmatprep.subr.mxu0 0.0
    %6139 = vmatpush1.msra.mxu0 %v2976
    %6140 = vmatprep.subr.mxu0 0.0
    %6141 = vmatpush2.msra.mxu0 0.0
    %6142 = vmatprep.subr.mxu0 0.0
    %6143 = vmatpush2.msra.mxu0 0.0
    %6144 = vmatprep.subr.mxu0 0.0
    %6145 = vmatpush2.msra.mxu0 0.0
    %6146 = vmatprep.subr.mxu0 0.0
    %6147 = vmatpush2.msra.mxu0 0.0
    %6148 = vmatprep.subr.mxu0 0.0
    %6149 = vmatpush2.msra.mxu0 0.0
    %6150 = vmatprep.subr.mxu0 0.0
    %6151 = vmatpush2.msra.mxu0 0.0
    %6152 = vmatprep.subr.mxu0 0.0
    %6153 = vmatpush2.msra.mxu0 0.0
    %6154 = vmatprep.subr.mxu0 0.0
    %6155 = vmatpush2.msra.mxu0 0.0
    %6156 = vmatprep.subr.mxu0 0.0
    %6157 = vmatpush2.msra.mxu0 0.0
    %6158 = vmatprep.subr.mxu0 0.0
    %6159 = vmatpush2.msra.mxu0 0.0
    %6160 = vmatprep.subr.mxu0 0.0
    %6161 = vmatpush2.msra.mxu0 0.0
    %6162 = vmatprep.subr.mxu0 0.0
    %6163 = vmatpush2.msra.mxu0 0.0
    %6164 = vmatprep.subr.mxu0 0.0
    %6165 = vmatpush2.msra.mxu0 0.0
    %6166 = vmatprep.subr.mxu0 0.0
    %6167 = vmatpush2.msra.mxu0 0.0
    %6168 = vmatprep.subr.mxu0 0.0
    %6169 = vmatpush2.msra.mxu0 0.0
    %6170 = vmatprep.subr.mxu0 0.0
    %6171 = vmatpush2.msra.mxu0 0.0
    %6172 = vmatprep.mubr.f32.mxu0 0.0
    %6173 = vmatmul.mubr.f32.gmra.mxu0 %v6106
    %v6174 = vpop.f32.mrf.mxu0
    %v6175 = vadd.f32 %v3191, %v6174
    %v6176 = vpop.f32.mrf.mxu0
    %6177 = vdwg.mxu0
    %v6180 = vunpack.c.l.s4 1966171168
    %v6181 = vunpack.c.0.s8 %v6180
    %v6182 = vlaneseq
    %v6183 = vshrl.u32 %v6182, 7
    %v6184 = vsub.s32 %v6181, %v6183
    %v6185 = vrot.slane %v6175, %v6184
    %v6186 = vcombine.high %v6185, %v6185
    %v6188 = vunpack.c.l.s4 1966171168
    %v6189 = vunpack.c.0.s8 %v6188
    %v6190 = vlaneseq
    %v6191 = vshrl.u32 %v6190, 7
    %v6192 = vsub.s32 %v6189, %v6191
    %v6193 = vrot.slane %v6185, %v6192
    %v6195 = vunpack.c.l.s4 1966171168
    %v6196 = vunpack.c.0.s8 %v6195
    %v6197 = vlaneseq
    %v6198 = vshrl.u32 %v6197, 7
    %v6199 = vsub.s32 %v6196, %v6198
    %v6200 = vrot.slane %v6186, %v6199
    %v6201 = vlaneseq
    %v6202 = vshrl.u32 %v6201, 7
    %v6203 = vsub.s32 0, %v6202
    %v6204 = vrot.slane %v6193, %v6203
    %v6205 = vlaneseq
    %v6206 = vshrl.u32 %v6205, 7
    %v6207 = vsub.s32 0, %v6206
    %v6208 = vrot.slane %v6200, %v6207
    %v6211 = vadd.f32 %v6204, %v2967
    %v6212 = vadd.f32 %v6208, %v2968
    %v6213 = vtanh.pop %v6211
    %v6214 = vtanh.pop %v6212
    %v6215 = vmul.f32 %v6213, %v3309
    %v6216 = vmul.f32 %v6214, %v3309
    %v6217 = vsel %vm260, %v6215, 0.0
    %6218 = vadd.xlane.f32.xlu0 %v6217
    %v6219 = vpop.xlane.xlu0 %6218
    %v6220 = vsel %vm260, %v6216, 0.0
    %6221 = vadd.xlane.f32.xlu0 %v6220
    %v6222 = vpop.xlane.xlu0 %6221
    %vm6223 = vcmp.gt.f32.partialorder %v5913, 0.0
    %v6226 = vlaneseq
    %v6227 = vshrl.u32 %v6226, 7
    %v6228 = vsub.s32 %v3081, %v6227
    %v6229 = vrot.slane %v6219, %v6228
    %v6230 = vlaneseq
    %v6231 = vshrl.u32 %v6230, 7
    %v6232 = vsub.s32 %v3081, %v6231
    %v6233 = vrot.slane %v6222, %v6232
    %v6234 = vsel %vm3332, %v6233, %v6229
    %v6236 = vsel %vm6223, %v6234, -1e+30
    %v6237 = vsel %vm3335, %v6236, -inf
    %6238 = vmax.xlane.f32.xlu0 %v6237
    %v6239 = vpop.xlane.xlu0 %6238
    %v6240 = vsub.f32 %v6236, %v6239
    %v6241 = vmul.f32 %v6240, 1.442695
    %v6242 = vpow.pop %v6241
    %v6243 = vsel %vm3335, %v6242, 0.0
    %6244 = vadd.xlane.f32.xlu0 %v6243
    %v6245 = vpop.xlane.xlu0 %6244
    %v6246 = vrcp.pop %v6245
    %v6247 = vmul.f32 %v6242, %v6246
    %v6248 = vlaneseq
    %v6249 = vshrl.u32 %v6248, 7
    %v6250 = vsub.s32 0, %v6249
    %v6251 = vrot.slane %v6247, %v6250
    %6253 = vbcast.lane.b32.xlu0 %v6251, 256
    %v6254 = vpop.permute.xlu0 %6253
    %v6255 = vlaneseq
    %v6256 = vshrl.u32 %v6255, 7
    %v6257 = vsub.s32 1, %v6256
    %v6258 = vrot.slane %v6247, %v6257
    %6260 = vbcast.lane.b32.xlu0 %v6258, 256
    %v6261 = vpop.permute.xlu0 %6260
    %v6262 = vmul.f32 %v2967, %v6254
    %v6263 = vmul.f32 %v2968, %v6261
    %v6264 = vsel %vm260, %v6262, 0.0
    %v6265 = vrot.slane %v6264, 4
    %v6266 = vadd.f32 %v6264, %v6265
    %v6267 = vrot.slane %v6266, 2
    %v6268 = vadd.f32 %v6266, %v6267
    %v6269 = vrot.slane %v6268, 1
    %v6270 = vadd.f32 %v6268, %v6269
    %v6271 = vsel %vm260, %v6263, 0.0
    %v6272 = vrot.slane %v6271, 4
    %v6273 = vadd.f32 %v6271, %v6272
    %v6274 = vrot.slane %v6273, 2
    %v6275 = vadd.f32 %v6273, %v6274
    %v6276 = vrot.slane %v6275, 1
    %v6277 = vadd.f32 %v6275, %v6276
    %v6280 = vsel %vm3332, %v6277, %v6270
    %6282 = vrot.lane.b32.xlu0 %v6103, 64
    %v6283 = vpop.permute.xlu0 %6282
    %v6285 = vsel %vm260, %v6280, %v6283
    %v6287 = vsel %vm3432, %v6285, 0
    %6289 = vmatprep.subr.mxu0 0.0
    %6290 = vmatpush1.msra.mxu0 0.0
    %6291 = vmatprep.subr.mxu0 0.0
    %6292 = vmatpush1.msra.mxu0 0.0
    %6293 = vmatprep.subr.mxu0 0.0
    %6294 = vmatpush1.msra.mxu0 0.0
    %6295 = vmatprep.subr.mxu0 0.0
    %6296 = vmatpush1.msra.mxu0 0.0
    %6297 = vmatprep.subr.mxu0 0.0
    %6298 = vmatpush1.msra.mxu0 0.0
    %6299 = vmatprep.subr.mxu0 0.0
    %6300 = vmatpush1.msra.mxu0 0.0
    %6301 = vmatprep.subr.mxu0 0.0
    %6302 = vmatpush1.msra.mxu0 0.0
    %6303 = vmatprep.subr.mxu0 0.0
    %6304 = vmatpush1.msra.mxu0 0.0
    %6305 = vmatprep.subr.mxu0 0.0
    %6306 = vmatpush1.msra.mxu0 %v2989
    %6307 = vmatprep.subr.mxu0 0.0
    %6308 = vmatpush1.msra.mxu0 %v2988
    %6309 = vmatprep.subr.mxu0 0.0
    %6310 = vmatpush1.msra.mxu0 %v2987
    %6311 = vmatprep.subr.mxu0 0.0
    %6312 = vmatpush1.msra.mxu0 %v2986
    %6313 = vmatprep.subr.mxu0 0.0
    %6314 = vmatpush1.msra.mxu0 %v2985
    %6315 = vmatprep.subr.mxu0 0.0
    %6316 = vmatpush1.msra.mxu0 %v2984
    %6317 = vmatprep.subr.mxu0 0.0
    %6318 = vmatpush1.msra.mxu0 %v2983
    %6319 = vmatprep.subr.mxu0 0.0
    %6320 = vmatpush1.msra.mxu0 %v2982
    %6321 = vmatprep.subr.mxu0 0.0
    %6322 = vmatpush2.msra.mxu0 0.0
    %6323 = vmatprep.subr.mxu0 0.0
    %6324 = vmatpush2.msra.mxu0 0.0
    %6325 = vmatprep.subr.mxu0 0.0
    %6326 = vmatpush2.msra.mxu0 0.0
    %6327 = vmatprep.subr.mxu0 0.0
    %6328 = vmatpush2.msra.mxu0 0.0
    %6329 = vmatprep.subr.mxu0 0.0
    %6330 = vmatpush2.msra.mxu0 0.0
    %6331 = vmatprep.subr.mxu0 0.0
    %6332 = vmatpush2.msra.mxu0 0.0
    %6333 = vmatprep.subr.mxu0 0.0
    %6334 = vmatpush2.msra.mxu0 0.0
    %6335 = vmatprep.subr.mxu0 0.0
    %6336 = vmatpush2.msra.mxu0 0.0
    %6337 = vmatprep.subr.mxu0 0.0
    %6338 = vmatpush2.msra.mxu0 0.0
    %6339 = vmatprep.subr.mxu0 0.0
    %6340 = vmatpush2.msra.mxu0 0.0
    %6341 = vmatprep.subr.mxu0 0.0
    %6342 = vmatpush2.msra.mxu0 0.0
    %6343 = vmatprep.subr.mxu0 0.0
    %6344 = vmatpush2.msra.mxu0 0.0
    %6345 = vmatprep.subr.mxu0 0.0
    %6346 = vmatpush2.msra.mxu0 0.0
    %6347 = vmatprep.subr.mxu0 0.0
    %6348 = vmatpush2.msra.mxu0 0.0
    %6349 = vmatprep.subr.mxu0 0.0
    %6350 = vmatpush2.msra.mxu0 0.0
    %6351 = vmatprep.subr.mxu0 0.0
    %6352 = vmatpush2.msra.mxu0 0.0
    %6353 = vmatprep.mubr.f32.mxu0 0.0
    %6354 = vmatmul.mubr.f32.gmra.mxu0 %v6287
    %v6355 = vpop.f32.mrf.mxu0
    %v6356 = vadd.f32 %v3430, %v6355
    %v6357 = vpop.f32.mrf.mxu0
    %6358 = vdwg.mxu0
    %v6359 = vtanh.pop %v6356
    %v6360 = vmul.f32 %v6247, %v5913
    %v6361 = vsel %vm3335, %v6360, -inf
    %6362 = vmax.xlane.f32.xlu0 %v6361
    %v6363 = vpop.xlane.xlu0 %6362
    %vm6364 = vcmp.eq.f32.partialorder %v6360, %v6363
    %v6365 = vsel %vm6364, %v3081, 8
    %v6366 = vsel %vm3335, %v6365, 2147483647
    %v6367 = vand.u32 %v6366, 65535
    %v6368 = vshra.s32 %v6366, 16
    %v6369 = vcvt.s32.f32 %v6367
    %v6370 = vcvt.s32.f32 %v6368
    %6371 = vmin.xlane.f32.xlu0 %v6370
    %v6372 = vpop.xlane.xlu0 %6371
    %vm6373 = vcmp.eq.f32.partialorder %v6370, %v6372
    %v6374 = vsel %vm6373, %v6369, inf
    %6375 = vmin.xlane.f32.xlu0 %v6374
    %v6376 = vpop.xlane.xlu0 %6375
    %v6377 = vcvt.f32.s32 %v6376
    %v6378 = vcvt.f32.s32 %v6372
    %v6379 = vshll.u32 %v6378, 16
    %v6380 = vadd.s32 %v6379, %v6377
    %vm6381 = vcmp.eq.s32.totalorder %v3081, %v6380
    %v6382 = vsel %vm6381, 1, 0
    %v6383 = vcvt.s32.f32 %v6382
    %v6384 = vsub.f32 1.0, %v6383
    %v6385 = vmul.f32 %v5913, %v6384
    %v6386 = vlaneseq
    %v6387 = vshrl.u32 %v6386, 7
    %v6388 = vsub.s32 0, %v6387
    %v6389 = vrot.slane %v6383, %v6388
    %6391 = vbcast.lane.b32.xlu0 %v6389, 256
    %v6392 = vpop.permute.xlu0 %6391
    %v6393 = vlaneseq
    %v6394 = vshrl.u32 %v6393, 7
    %v6395 = vsub.s32 1, %v6394
    %v6396 = vrot.slane %v6383, %v6395
    %6398 = vbcast.lane.b32.xlu0 %v6396, 256
    %v6399 = vpop.permute.xlu0 %6398
    %v6400 = vmul.f32 %v2969, %v6392
    %v6401 = vmul.f32 %v2970, %v6399
    %v6402 = vrot.slane %v6400, 4
    %v6403 = vadd.f32 %v6400, %v6402
    %v6404 = vrot.slane %v6403, 2
    %v6405 = vadd.f32 %v6403, %v6404
    %v6406 = vrot.slane %v6405, 1
    %v6407 = vadd.f32 %v6405, %v6406
    %v6408 = vrot.slane %v6401, 4
    %v6409 = vadd.f32 %v6401, %v6408
    %v6410 = vrot.slane %v6409, 2
    %v6411 = vadd.f32 %v6409, %v6410
    %v6412 = vrot.slane %v6411, 1
    %v6413 = vadd.f32 %v6411, %v6412
    %v6416 = vunpack.c.l.s4 1966171168
    %v6417 = vunpack.c.0.s8 %v6416
    %v6418 = vlaneseq
    %v6419 = vshrl.u32 %v6418, 7
    %v6420 = vsub.s32 %v6417, %v6419
    %v6421 = vrot.slane %v6247, %v6420
    %v6422 = vcombine.high %v6421, %v6421
    %v6424 = vunpack.c.l.s4 1966171168
    %v6425 = vunpack.c.0.s8 %v6424
    %v6426 = vlaneseq
    %v6427 = vshrl.u32 %v6426, 7
    %v6428 = vsub.s32 %v6425, %v6427
    %v6429 = vrot.slane %v6421, %v6428
    %v6431 = vunpack.c.l.s4 1966171168
    %v6432 = vunpack.c.0.s8 %v6431
    %v6433 = vlaneseq
    %v6434 = vshrl.u32 %v6433, 7
    %v6435 = vsub.s32 %v6432, %v6434
    %v6436 = vrot.slane %v6422, %v6435
    %6439 = vst.msk [vmem:[#allocation4 + $0x6] sm:$0x1] %vm3602, %v6429
    %6440 = vst.msk [vmem:[#allocation4 + $0xe] sm:$0x1] %vm3602, %v6436
    %vm6441 = vcmask 50224
    %6442 = vst.msk [vmem:[#allocation6] sm:$0x3] %vm6441, %v6380
    %v6444 = vsel %vm260, %v6359, 0
    %6446 = vmatprep.subr.mxu0 0.0
    %6447 = vmatpush1.msra.mxu0 0.0
    %6448 = vmatprep.subr.mxu0 0.0
    %6449 = vmatpush1.msra.mxu0 0.0
    %6450 = vmatprep.subr.mxu0 0.0
    %6451 = vmatpush1.msra.mxu0 0.0
    %6452 = vmatprep.subr.mxu0 0.0
    %6453 = vmatpush1.msra.mxu0 0.0
    %6454 = vmatprep.subr.mxu0 0.0
    %6455 = vmatpush1.msra.mxu0 0.0
    %6456 = vmatprep.subr.mxu0 0.0
    %6457 = vmatpush1.msra.mxu0 0.0
    %6458 = vmatprep.subr.mxu0 0.0
    %6459 = vmatpush1.msra.mxu0 0.0
    %6460 = vmatprep.subr.mxu0 0.0
    %6461 = vmatpush1.msra.mxu0 0.0
    %6462 = vmatprep.subr.mxu0 0.0
    %6463 = vmatpush1.msra.mxu0 0.0
    %6464 = vmatprep.subr.mxu0 0.0
    %6465 = vmatpush1.msra.mxu0 0.0
    %6466 = vmatprep.subr.mxu0 0.0
    %6467 = vmatpush1.msra.mxu0 0.0
    %6468 = vmatprep.subr.mxu0 0.0
    %6469 = vmatpush1.msra.mxu0 0.0
    %6470 = vmatprep.subr.mxu0 0.0
    %6471 = vmatpush1.msra.mxu0 %v2974
    %6472 = vmatprep.subr.mxu0 0.0
    %6473 = vmatpush1.msra.mxu0 %v2973
    %6474 = vmatprep.subr.mxu0 0.0
    %6475 = vmatpush1.msra.mxu0 %v2972
    %6476 = vmatprep.subr.mxu0 0.0
    %6477 = vmatpush1.msra.mxu0 %v2971
    %6478 = vmatprep.subr.mxu0 0.0
    %6479 = vmatpush2.msra.mxu0 0.0
    %6480 = vmatprep.subr.mxu0 0.0
    %6481 = vmatpush2.msra.mxu0 0.0
    %6482 = vmatprep.subr.mxu0 0.0
    %6483 = vmatpush2.msra.mxu0 0.0
    %6484 = vmatprep.subr.mxu0 0.0
    %6485 = vmatpush2.msra.mxu0 0.0
    %6486 = vmatprep.subr.mxu0 0.0
    %6487 = vmatpush2.msra.mxu0 0.0
    %6488 = vmatprep.subr.mxu0 0.0
    %6489 = vmatpush2.msra.mxu0 0.0
    %6490 = vmatprep.subr.mxu0 0.0
    %6491 = vmatpush2.msra.mxu0 0.0
    %6492 = vmatprep.subr.mxu0 0.0
    %6493 = vmatpush2.msra.mxu0 0.0
    %6494 = vmatprep.subr.mxu0 0.0
    %6495 = vmatpush2.msra.mxu0 0.0
    %6496 = vmatprep.subr.mxu0 0.0
    %6497 = vmatpush2.msra.mxu0 0.0
    %6498 = vmatprep.subr.mxu0 0.0
    %6499 = vmatpush2.msra.mxu0 0.0
    %6500 = vmatprep.subr.mxu0 0.0
    %6501 = vmatpush2.msra.mxu0 0.0
    %6502 = vmatprep.subr.mxu0 0.0
    %6503 = vmatpush2.msra.mxu0 0.0
    %6504 = vmatprep.subr.mxu0 0.0
    %6505 = vmatpush2.msra.mxu0 0.0
    %6506 = vmatprep.subr.mxu0 0.0
    %6507 = vmatpush2.msra.mxu0 0.0
    %6508 = vmatprep.subr.mxu0 0.0
    %6509 = vmatpush2.msra.mxu0 0.0
    %6510 = vmatprep.mubr.f32.mxu0 0.0
    %6511 = vmatmul.mubr.f32.gmra.mxu0 %v6444
    %v6512 = vpop.f32.mrf.mxu0
    %v6513 = vadd.f32 0.0, %v6512
    %v6514 = vpop.f32.mrf.mxu0
    %6515 = vdwg.mxu0
    %v6517 = vrot.slane %v6513, 1
    %v6520 = vadd.f32 %v6407, %v6513
    %v6521 = vadd.f32 %v6413, %v6517
    %v6522 = vadd.f32 %v6520, %v3157
    %v6523 = vadd.f32 %v6521, %v3157
    %v6524 = vxor.u32 %v6522, 2147483648
    %v6525 = vxor.u32 %v6523, 2147483648
    %v6526 = vmul.f32 %v6524, 1.442695
    %v6527 = vpow.pop %v6526
    %v6528 = vmul.f32 %v6525, 1.442695
    %v6529 = vpow.pop %v6528
    %v6530 = vadd.f32 %v6527, 1.0
    %v6531 = vadd.f32 %v6529, 1.0
    %v6532 = vrcp.pop %v6530
    %v6533 = vmul.f32 1.0, %v6532
    %v6534 = vrcp.pop %v6531
    %v6535 = vmul.f32 1.0, %v6534
    %v6536 = vtanh.pop %v6522
    %v6537 = vtanh.pop %v6523
    %v6538 = vmul.f32 %v6533, %v6086
    %v6539 = vmul.f32 %v6535, %v6087
    %6542 = vrot.lane.b32.xlu0 %v6536, 64
    %v6543 = vpop.permute.xlu0 %6542
    %6544 = vrot.lane.b32.xlu0 %v6537, 64
    %v6545 = vpop.permute.xlu0 %6544
    %v6548 = vmul.f32 %v6533, %v6543
    %v6549 = vmul.f32 %v6535, %v6545
    %6552 = vrot.lane.b32.xlu0 %v6548, 32
    %v6553 = vpop.permute.xlu0 %6552
    %6554 = vrot.lane.b32.xlu0 %v6549, 32
    %v6555 = vpop.permute.xlu0 %6554
    %v6558 = vadd.f32 %v6538, %v6553
    %v6559 = vadd.f32 %v6539, %v6555
    %v6560 = vtanh.pop %v6558
    %v6561 = vtanh.pop %v6559
    %6564 = vrot.lane.b32.xlu0 %v6560, 64
    %v6565 = vpop.permute.xlu0 %6564
    %6566 = vrot.lane.b32.xlu0 %v6561, 64
    %v6567 = vpop.permute.xlu0 %6566
    %v6570 = vmul.f32 %v6533, %v6565
    %v6571 = vmul.f32 %v6535, %v6567
    %v6574 = vrot.slane %v6571, 7
    %v6575 = vsel %vm3332, %v6574, %v6570
    %6576 = vrot.lane.b32.xlu0 %v6575, 32
    %v6577 = vpop.permute.xlu0 %6576
    %v6578 = vsel %vm260, %v6577, 0
    %6580 = vmatprep.subr.mxu0 0.0
    %6581 = vmatpush1.msra.mxu0 0.0
    %6582 = vmatprep.subr.mxu0 0.0
    %6583 = vmatpush1.msra.mxu0 0.0
    %6584 = vmatprep.subr.mxu0 0.0
    %6585 = vmatpush1.msra.mxu0 0.0
    %6586 = vmatprep.subr.mxu0 0.0
    %6587 = vmatpush1.msra.mxu0 0.0
    %6588 = vmatprep.subr.mxu0 0.0
    %6589 = vmatpush1.msra.mxu0 0.0
    %6590 = vmatprep.subr.mxu0 0.0
    %6591 = vmatpush1.msra.mxu0 0.0
    %6592 = vmatprep.subr.mxu0 0.0
    %6593 = vmatpush1.msra.mxu0 0.0
    %6594 = vmatprep.subr.mxu0 0.0
    %6595 = vmatpush1.msra.mxu0 0.0
    %6596 = vmatprep.subr.mxu0 0.0
    %6597 = vmatpush1.msra.mxu0 0.0
    %6598 = vmatprep.subr.mxu0 0.0
    %6599 = vmatpush1.msra.mxu0 0.0
    %6600 = vmatprep.subr.mxu0 0.0
    %6601 = vmatpush1.msra.mxu0 0.0
    %6602 = vmatprep.subr.mxu0 0.0
    %6603 = vmatpush1.msra.mxu0 0.0
    %6604 = vmatprep.subr.mxu0 0.0
    %6605 = vmatpush1.msra.mxu0 %v2979
    %6606 = vmatprep.subr.mxu0 0.0
    %6607 = vmatpush1.msra.mxu0 %v2978
    %6608 = vmatprep.subr.mxu0 0.0
    %6609 = vmatpush1.msra.mxu0 %v2977
    %6610 = vmatprep.subr.mxu0 0.0
    %6611 = vmatpush1.msra.mxu0 %v2976
    %6612 = vmatprep.subr.mxu0 0.0
    %6613 = vmatpush2.msra.mxu0 0.0
    %6614 = vmatprep.subr.mxu0 0.0
    %6615 = vmatpush2.msra.mxu0 0.0
    %6616 = vmatprep.subr.mxu0 0.0
    %6617 = vmatpush2.msra.mxu0 0.0
    %6618 = vmatprep.subr.mxu0 0.0
    %6619 = vmatpush2.msra.mxu0 0.0
    %6620 = vmatprep.subr.mxu0 0.0
    %6621 = vmatpush2.msra.mxu0 0.0
    %6622 = vmatprep.subr.mxu0 0.0
    %6623 = vmatpush2.msra.mxu0 0.0
    %6624 = vmatprep.subr.mxu0 0.0
    %6625 = vmatpush2.msra.mxu0 0.0
    %6626 = vmatprep.subr.mxu0 0.0
    %6627 = vmatpush2.msra.mxu0 0.0
    %6628 = vmatprep.subr.mxu0 0.0
    %6629 = vmatpush2.msra.mxu0 0.0
    %6630 = vmatprep.subr.mxu0 0.0
    %6631 = vmatpush2.msra.mxu0 0.0
    %6632 = vmatprep.subr.mxu0 0.0
    %6633 = vmatpush2.msra.mxu0 0.0
    %6634 = vmatprep.subr.mxu0 0.0
    %6635 = vmatpush2.msra.mxu0 0.0
    %6636 = vmatprep.subr.mxu0 0.0
    %6637 = vmatpush2.msra.mxu0 0.0
    %6638 = vmatprep.subr.mxu0 0.0
    %6639 = vmatpush2.msra.mxu0 0.0
    %6640 = vmatprep.subr.mxu0 0.0
    %6641 = vmatpush2.msra.mxu0 0.0
    %6642 = vmatprep.subr.mxu0 0.0
    %6643 = vmatpush2.msra.mxu0 0.0
    %6644 = vmatprep.mubr.f32.mxu0 0.0
    %6645 = vmatmul.mubr.f32.gmra.mxu0 %v6578
    %v6646 = vpop.f32.mrf.mxu0
    %v6647 = vadd.f32 %v3191, %v6646
    %v6648 = vpop.f32.mrf.mxu0
    %6649 = vdwg.mxu0
    %v6652 = vunpack.c.l.s4 1966171168
    %v6653 = vunpack.c.0.s8 %v6652
    %v6654 = vlaneseq
    %v6655 = vshrl.u32 %v6654, 7
    %v6656 = vsub.s32 %v6653, %v6655
    %v6657 = vrot.slane %v6647, %v6656
    %v6658 = vcombine.high %v6657, %v6657
    %v6660 = vunpack.c.l.s4 1966171168
    %v6661 = vunpack.c.0.s8 %v6660
    %v6662 = vlaneseq
    %v6663 = vshrl.u32 %v6662, 7
    %v6664 = vsub.s32 %v6661, %v6663
    %v6665 = vrot.slane %v6657, %v6664
    %v6667 = vunpack.c.l.s4 1966171168
    %v6668 = vunpack.c.0.s8 %v6667
    %v6669 = vlaneseq
    %v6670 = vshrl.u32 %v6669, 7
    %v6671 = vsub.s32 %v6668, %v6670
    %v6672 = vrot.slane %v6658, %v6671
    %v6673 = vlaneseq
    %v6674 = vshrl.u32 %v6673, 7
    %v6675 = vsub.s32 0, %v6674
    %v6676 = vrot.slane %v6665, %v6675
    %v6677 = vlaneseq
    %v6678 = vshrl.u32 %v6677, 7
    %v6679 = vsub.s32 0, %v6678
    %v6680 = vrot.slane %v6672, %v6679
    %v6683 = vadd.f32 %v6676, %v2967
    %v6684 = vadd.f32 %v6680, %v2968
    %v6685 = vtanh.pop %v6683
    %v6686 = vtanh.pop %v6684
    %v6687 = vmul.f32 %v6685, %v3309
    %v6688 = vmul.f32 %v6686, %v3309
    %v6689 = vsel %vm260, %v6687, 0.0
    %6690 = vadd.xlane.f32.xlu0 %v6689
    %v6691 = vpop.xlane.xlu0 %6690
    %v6692 = vsel %vm260, %v6688, 0.0
    %6693 = vadd.xlane.f32.xlu0 %v6692
    %v6694 = vpop.xlane.xlu0 %6693
    %vm6695 = vcmp.gt.f32.partialorder %v6385, 0.0
    %v6698 = vlaneseq
    %v6699 = vshrl.u32 %v6698, 7
    %v6700 = vsub.s32 %v3081, %v6699
    %v6701 = vrot.slane %v6691, %v6700
    %v6702 = vlaneseq
    %v6703 = vshrl.u32 %v6702, 7
    %v6704 = vsub.s32 %v3081, %v6703
    %v6705 = vrot.slane %v6694, %v6704
    %v6706 = vsel %vm3332, %v6705, %v6701
    %v6708 = vsel %vm6695, %v6706, -1e+30
    %v6709 = vsel %vm3335, %v6708, -inf
    %6710 = vmax.xlane.f32.xlu0 %v6709
    %v6711 = vpop.xlane.xlu0 %6710
    %v6712 = vsub.f32 %v6708, %v6711
    %v6713 = vmul.f32 %v6712, 1.442695
    %v6714 = vpow.pop %v6713
    %v6715 = vsel %vm3335, %v6714, 0.0
    %6716 = vadd.xlane.f32.xlu0 %v6715
    %v6717 = vpop.xlane.xlu0 %6716
    %v6718 = vrcp.pop %v6717
    %v6719 = vmul.f32 %v6714, %v6718
    %v6720 = vmul.f32 %v6719, %v6385
    %v6721 = vsel %vm3335, %v6720, -inf
    %6722 = vmax.xlane.f32.xlu0 %v6721
    %v6723 = vpop.xlane.xlu0 %6722
    %vm6724 = vcmp.eq.f32.partialorder %v6720, %v6723
    %v6725 = vsel %vm6724, %v3081, 8
    %v6726 = vsel %vm3335, %v6725, 2147483647
    %v6727 = vand.u32 %v6726, 65535
    %v6728 = vshra.s32 %v6726, 16
    %v6729 = vcvt.s32.f32 %v6727
    %v6730 = vcvt.s32.f32 %v6728
    %6731 = vmin.xlane.f32.xlu0 %v6730
    %v6732 = vpop.xlane.xlu0 %6731
    %vm6733 = vcmp.eq.f32.partialorder %v6730, %v6732
    %v6734 = vsel %vm6733, %v6729, inf
    %6735 = vmin.xlane.f32.xlu0 %v6734
    %v6736 = vpop.xlane.xlu0 %6735
    %v6737 = vcvt.f32.s32 %v6736
    %v6738 = vcvt.f32.s32 %v6732
    %v6739 = vshll.u32 %v6738, 16
    %v6740 = vadd.s32 %v6739, %v6737
    %v6743 = vunpack.c.l.s4 1966171168
    %v6744 = vunpack.c.0.s8 %v6743
    %v6745 = vlaneseq
    %v6746 = vshrl.u32 %v6745, 7
    %v6747 = vsub.s32 %v6744, %v6746
    %v6748 = vrot.slane %v6719, %v6747
    %v6749 = vcombine.high %v6748, %v6748
    %v6751 = vunpack.c.l.s4 1966171168
    %v6752 = vunpack.c.0.s8 %v6751
    %v6753 = vlaneseq
    %v6754 = vshrl.u32 %v6753, 7
    %v6755 = vsub.s32 %v6752, %v6754
    %v6756 = vrot.slane %v6748, %v6755
    %v6758 = vunpack.c.l.s4 1966171168
    %v6759 = vunpack.c.0.s8 %v6758
    %v6760 = vlaneseq
    %v6761 = vshrl.u32 %v6760, 7
    %v6762 = vsub.s32 %v6759, %v6761
    %v6763 = vrot.slane %v6749, %v6762
    %6766 = vst.msk [vmem:[#allocation4 + $0x7] sm:$0x1] %vm3602, %v6756
    %6767 = vst.msk [vmem:[#allocation4 + $0xf] sm:$0x1] %vm3602, %v6763
    %vm6768 = vcmask 58424
    %6769 = vst.msk [vmem:[#allocation6] sm:$0x3] %vm6768, %v6740
    // Predicated region
    $region78: #{pointer_catalog_forward.1} parent=1 // pred_check
      _
    $region79: #{pointer_catalog_forward.1} parent=1 // pred_check_branch
      %6771 = sbr.rel (0) target = $region81
    $region80: #{pointer_catalog_forward.1} parent=1 // pred_region
      %s6773 = ssub.s32 256, 256
      %6774 = vsyncadd [#allocation5], %s6773
      %s6775 = sshll.u32 [#allocation4], 4
      %s6776 = int_to_ptr.vmem [resolvable:$true] %s6775
      %6781 = dma.vmem_to_hbm [thread:$0]  %s6776, 256, %s19, [#allocation5], 128, 128, 8
    $region81: #{pointer_catalog_forward.1} parent=1 // pred_fallthru
      _
    // Predicated region
    $region82: #{pointer_catalog_forward.1} parent=1 // pred_check
      _
    $region83: #{pointer_catalog_forward.1} parent=1 // pred_check_branch
      %6783 = sbr.rel (0) target = $region85
    $region84: #{pointer_catalog_forward.1} parent=1 // pred_region
      %s6785 = ssub.s32 32, 32
      %6786 = vsyncadd [#allocation7], %s6785
      %s6788 = sshll.u32 [#allocation6], 4
      %s6789 = int_to_ptr.vmem [resolvable:$true] %s6788
      %6791 = dma.vmem_to_hbm [thread:$0]  %s6789, 32, %s20, [#allocation7]
    $region85: #{pointer_catalog_forward.1} parent=1 // pred_fallthru
      _
    // Predicated region
    $region86: #{pointer_catalog_forward.1} parent=1 // pred_check
      _
    $region87: #{pointer_catalog_forward.1} parent=1 // pred_check_branch
      %6793 = sbr.rel (0) target = $region89
    $region88: #{pointer_catalog_forward.1} parent=1 // pred_region
      %6794 = dma.done [#allocation5], 256
    $region89: #{pointer_catalog_forward.1} parent=1 // pred_fallthru
      _
    // Predicated region
    $region90: #{pointer_catalog_forward.1} parent=1 // pred_check
      _
    $region91: #{pointer_catalog_forward.1} parent=1 // pred_check_branch
      %6796 = sbr.rel (0) target = $region93
    $region92: #{pointer_catalog_forward.1} parent=1 // pred_region
      %6797 = dma.done [#allocation7], 32
    $region93: #{pointer_catalog_forward.1} parent=1 // pred_fallthru
      _
    %6798 = vsyncpa [#allocation5], 1
    %6799 = vsyncpa [#allocation7], 1

</llo_original>
